<compile_context>
chip_gen: v7x
topology: tpu7x:2x2x1
jax: 0.10.0
libtpu: 0.0.40
codegen_flags: <defaults>
</compile_context>

<pallas_src>
import jax
import jax.numpy as jnp
from jax.experimental import pallas as pl
from jax.experimental.pallas import tpu as pltpu

# Scaled-down DistilBERT-like configuration (real model: H=768, 12 heads,
# 6 layers, FFN=3072, vocab=30522).
HIDDEN = 32
N_HEADS = 4
HEAD_DIM = HIDDEN // N_HEADS
N_LAYERS = 2
FFN = 64
VOCAB = 100
MAX_POS = 16
SEQ = 8
BATCH = 2
META = 5          # metadata_feature_size
EPS = 1e-12       # DistilBERT LayerNorm eps
LOGIT_PAD = 128   # lane-dense classifier output width (sliced to 3 outside)


def _layer_norm(x, g, b):
    mu = jnp.mean(x, axis=-1, keepdims=True)
    var = jnp.mean((x - mu) ** 2, axis=-1, keepdims=True)
    return (x - mu) * jax.lax.rsqrt(var + EPS) * g + b


# ----------------------------------------------------------------------------
# Pallas kernel 1: the WHOLE encoder stack.
# Grid = (num_seq_blocks, N_LAYERS); the layer axis is "arbitrary" (sequential)
# and the activation block stays resident in VMEM across it; the seq-block axis
# is "parallel" (megacore-shardable).  Layer weights are streamed (L, ...)
# slices, so layer l+1 weights prefetch overlaps layer l compute for free.
# ----------------------------------------------------------------------------
def encoder_stack_kernel(x0_ref, bias_ref,
                         wq_ref, bq_ref, wk_ref, bk_ref, wv_ref, bv_ref,
                         wo_ref, bo_ref, ln1g_ref, ln1b_ref,
                         w1_ref, b1_ref, w2_ref, b2_ref, ln2g_ref, ln2b_ref,
                         out_ref):
    nblk, S, H = out_ref.shape
    T = nblk * S

    # Initialize the resident activation from the embeddings at layer 0.
    @pl.when(pl.program_id(1) == 0)
    def _init():
        out_ref[...] = x0_ref[...]

    x = out_ref[...].reshape(T, H)          # (T, H) rows for the MXU
    bias = bias_ref[...]                    # (nblk, 1, S) additive key mask

    # Per-layer weights (leading block dim of size 1 dropped with [0]).
    wq, bq = wq_ref[0], bq_ref[0]           # (NH, H, HD), (NH, 1, HD)
    wk, bk = wk_ref[0], bk_ref[0]
    wv, bv = wv_ref[0], bv_ref[0]
    wo, bo = wo_ref[0], bo_ref[0]           # (NH, HD, H), (1, H)

    scale = 1.0 / (HEAD_DIM ** 0.5)
    attn = jnp.zeros((T, H), jnp.float32)
    for head in range(N_HEADS):             # static unroll; no lane slicing:
        qh = jnp.dot(x, wq[head], preferred_element_type=jnp.float32) + bq[head]
        kh = jnp.dot(x, wk[head], preferred_element_type=jnp.float32) + bk[head]
        vh = jnp.dot(x, wv[head], preferred_element_type=jnp.float32) + bv[head]
        q3 = qh.reshape(nblk, S, HEAD_DIM)  # leading-dim-only reshapes
        k3 = kh.reshape(nblk, S, HEAD_DIM)
        v3 = vh.reshape(nblk, S, HEAD_DIM)
        s = jnp.einsum("nqd,nkd->nqk", q3, k3,
                       preferred_element_type=jnp.float32) * scale + bias
        s = s - jnp.max(s, axis=-1, keepdims=True)
        p = jnp.exp(s)
        p = p / jnp.sum(p, axis=-1, keepdims=True)
        ctx = jnp.einsum("nqk,nkd->nqd", p, v3,
                         preferred_element_type=jnp.float32)
        # Output projection as accumulated per-head partial dots (no concat).
        attn = attn + jnp.dot(ctx.reshape(T, HEAD_DIM), wo[head],
                              preferred_element_type=jnp.float32)
    attn = attn + bo

    x1 = _layer_norm(x + attn, ln1g_ref[0], ln1b_ref[0])

    # TODO(synk): DistilBERT uses exact (erf) GELU; tanh approximation used
    # here for robust TPU lowering.
    hmid = jax.nn.gelu(
        jnp.dot(x1, w1_ref[0], preferred_element_type=jnp.float32) + b1_ref[0],
        approximate=True)
    ffn = jnp.dot(hmid, w2_ref[0], preferred_element_type=jnp.float32) + b2_ref[0]
    out_ref[...] = _layer_norm(x1 + ffn, ln2g_ref[0], ln2b_ref[0]).reshape(nblk, S, H)


def encoder_stack(x0, attn_bias, stacked, *, num_seq_blocks=1):
    NSEQ, S, H = x0.shape
    L = stacked[0].shape[0]
    assert NSEQ % num_seq_blocks == 0
    nblk = NSEQ // num_seq_blocks

    def wspec(a):
        nd = a.ndim
        return pl.BlockSpec((1,) + a.shape[1:],
                            lambda n, l, _nd=nd: (l,) + (0,) * (_nd - 1))

    in_specs = ([pl.BlockSpec((nblk, S, H), lambda n, l: (n, 0, 0)),
                 pl.BlockSpec((nblk, 1, S), lambda n, l: (n, 0, 0))]
                + [wspec(a) for a in stacked])
    return pl.pallas_call(
        encoder_stack_kernel,
        grid=(num_seq_blocks, L),
        in_specs=in_specs,
        out_specs=pl.BlockSpec((nblk, S, H), lambda n, l: (n, 0, 0)),
        out_shape=jax.ShapeDtypeStruct((NSEQ, S, H), jnp.float32),
        compiler_params=pltpu.CompilerParams(
            dimension_semantics=("parallel", "arbitrary")),
    )(x0, attn_bias, *stacked)


# ----------------------------------------------------------------------------
# Pallas kernel 2: meta_path MLP + pair-feature classifier, without the 6*H
# lane-axis concat (cw1 pre-split into 6 row blocks; partial dots summed).
# Logits are written into a 128-lane padded slab (sliced to 3 outside).
# ----------------------------------------------------------------------------
def head_kernel(vp_ref, va_ref, vb_ref, meta_ref,
                mw1_ref, mb1_ref, mw2_ref, mb2_ref,
                wvp_ref, wva_ref, wd1_ref, wvb_ref, wd2_ref, wm_ref, cb1_ref,
                cw2_ref, cb2_ref, logits_ref):
    vp, va, vb = vp_ref[...], va_ref[...], vb_ref[...]

    # meta_path: Linear -> ReLU -> Linear -> ReLU
    m = jnp.maximum(
        jnp.dot(meta_ref[...], mw1_ref[...],
                preferred_element_type=jnp.float32) + mb1_ref[...], 0.0)
    m = jnp.maximum(
        jnp.dot(m, mw2_ref[...],
                preferred_element_type=jnp.float32) + mb2_ref[...], 0.0)

    # h = ReLU(concat([vp, va, |vp-va|, vb, |vp-vb|, m]) @ cw1 + cb1), computed
    # as a sum of lane-aligned partial dots (Dropout p=0.2 is identity here).
    h = (jnp.dot(vp, wvp_ref[...], preferred_element_type=jnp.float32)
         + jnp.dot(va, wva_ref[...], preferred_element_type=jnp.float32)
         + jnp.dot(jnp.abs(vp - va), wd1_ref[...], preferred_element_type=jnp.float32)
         + jnp.dot(vb, wvb_ref[...], preferred_element_type=jnp.float32)
         + jnp.dot(jnp.abs(vp - vb), wd2_ref[...], preferred_element_type=jnp.float32)
         + jnp.dot(m, wm_ref[...], preferred_element_type=jnp.float32)
         + cb1_ref[...])
    h = jnp.maximum(h, 0.0)
    logits_ref[...] = (
        jnp.dot(h, cw2_ref[...], preferred_element_type=jnp.float32) + cb2_ref[...])


def pair_head(v_p, v_a, v_b, meta, meta_params, cls_params):
    B, H = v_p.shape
    mw1, mb1, mw2, mb2 = meta_params
    cw1, cb1, cw2, cb2 = cls_params
    # Pre-split cw1 row blocks: [vp, va, |vp-va|, vb, |vp-vb|, meta].
    w_vp, w_va, w_d1, w_vb, w_d2, w_m = [cw1[i * H:(i + 1) * H] for i in range(6)]
    pad = LOGIT_PAD - cw2.shape[1]
    cw2p = jnp.pad(cw2, ((0, 0), (0, pad)))
    cb2p = jnp.pad(cb2, ((0, 0), (0, pad)))

    args = (v_p, v_a, v_b, meta, mw1, mb1, mw2, mb2,
            w_vp, w_va, w_d1, w_vb, w_d2, w_m, cb1, cw2p, cb2p)
    vspec = pl.BlockSpec(memory_space=pltpu.MemorySpace.VMEM)
    out = pl.pallas_call(
        head_kernel,
        in_specs=[vspec] * len(args),
        out_specs=vspec,
        out_shape=jax.ShapeDtypeStruct((B, LOGIT_PAD), jnp.float32),
    )(*args)
    return out[:, :3]


# ----------------------------------------------------------------------------
# Parameters (deterministic synthetic init; torch Linear (out,in) weights are
# stored pre-transposed as (in,out) since they are generated here).
# ----------------------------------------------------------------------------
def init_params(key):
    keys = iter(jax.random.split(key, 40))

    def nrm(shape):
        return 0.02 * jax.random.normal(next(keys), shape, jnp.float32)

    def dense(din, dout):
        return nrm((din, dout)), jnp.zeros((1, dout), jnp.float32)

    embed = (nrm((VOCAB, HIDDEN)), nrm((MAX_POS, HIDDEN)),
             jnp.ones((1, HIDDEN), jnp.float32), jnp.zeros((1, HIDDEN), jnp.float32))

    layers = []
    for _ in range(N_LAYERS):
        wq, bq = dense(HIDDEN, HIDDEN)
        wk, bk = dense(HIDDEN, HIDDEN)
        wv, bv = dense(HIDDEN, HIDDEN)
        wo, bo = dense(HIDDEN, HIDDEN)
        w1, b1 = dense(HIDDEN, FFN)
        w2, b2 = dense(FFN, HIDDEN)
        g1 = jnp.ones((1, HIDDEN), jnp.float32); be1 = jnp.zeros((1, HIDDEN), jnp.float32)
        g2 = jnp.ones((1, HIDDEN), jnp.float32); be2 = jnp.zeros((1, HIDDEN), jnp.float32)
        layers.append((wq, bq, wk, bk, wv, bv, wo, bo,
                       g1, be1, w1, b1, w2, b2, g2, be2))

    mw1, mb1 = dense(META, HIDDEN)
    mw2, mb2 = dense(HIDDEN, HIDDEN)
    cw1, cb1 = dense(6 * HIDDEN, HIDDEN)
    cw2, cb2 = dense(HIDDEN, 3)
    return {"embed": embed, "layers": layers,
            "meta": (mw1, mb1, mw2, mb2), "cls": (cw1, cb1, cw2, cb2)}


def _prep_encoder_params(layers):
    """Stack per-layer weights on a leading L axis; pre-split QKV/O per head."""
    def stk(i, f=lambda a: a):
        return jnp.stack([f(lp[i]) for lp in layers], axis=0)

    split_cols_w = lambda w: w.reshape(HIDDEN, N_HEADS, HEAD_DIM).transpose(1, 0, 2)
    split_cols_b = lambda b: b.reshape(1, N_HEADS, HEAD_DIM).transpose(1, 0, 2)
    split_rows_w = lambda w: w.reshape(N_HEADS, HEAD_DIM, HIDDEN)

    return (
        stk(0, split_cols_w), stk(1, split_cols_b),   # wq (L,NH,H,HD), bq (L,NH,1,HD)
        stk(2, split_cols_w), stk(3, split_cols_b),   # wk, bk
        stk(4, split_cols_w), stk(5, split_cols_b),   # wv, bv
        stk(6, split_rows_w), stk(7),                 # wo (L,NH,HD,H), bo (L,1,H)
        stk(8), stk(9),                               # ln1 gamma/beta (L,1,H)
        stk(10), stk(11),                             # w1 (L,H,FFN), b1 (L,1,FFN)
        stk(12), stk(13),                             # w2 (L,FFN,H), b2 (L,1,H)
        stk(14), stk(15),                             # ln2 gamma/beta (L,1,H)
    )


# ----------------------------------------------------------------------------
# Forward (Pallas path) and pure-JAX reference.
# ----------------------------------------------------------------------------
def encode_towers(params, ids, mask):
    """ids, mask: (N, S) stacked sequences of all towers -> (N, H) CLS vecs."""
    word_emb, pos_emb, g, b = params["embed"]
    N, S = ids.shape
    x = word_emb[ids] + pos_emb[None, :S, :]          # glue: embedding gather
    x = _layer_norm(x, g, b)                          # glue: embedding LayerNorm
    # Additive key mask, hoisted out of the per-layer loop (computed once).
    attn_bias = jnp.where(mask > 0.5, 0.0, -1e9).astype(jnp.float32).reshape(N, 1, S)
    stacked = _prep_encoder_params(params["layers"])
    nsb = 2 if N % 2 == 0 else 1                      # parallel axis for megacore
    h = encoder_stack(x, attn_bias, stacked, num_seq_blocks=nsb)
    return h[:, 0]                                    # [CLS] embeddings


@jax.jit
def forward(params, p_ids, p_mask, a_ids, a_mask, b_ids, b_mask, meta):
    B = p_ids.shape[0]
    ids = jnp.concatenate([p_ids, a_ids, b_ids], axis=0)    # one fused pass
    mask = jnp.concatenate([p_mask, a_mask, b_mask], axis=0)
    cls = encode_towers(params, ids, mask)
    v_p, v_a, v_b = cls[:B], cls[B:2 * B], cls[2 * B:]
    return pair_head(v_p, v_a, v_b, meta, params["meta"], params["cls"])


def _ref_encoder_layer(x, mask, p):
    wq, bq, wk, bk, wv, bv, wo, bo, g1, be1, w1, b1, w2, b2, g2, be2 = p
    B, S, H = x.shape
    q, k, v = x @ wq + bq, x @ wk + bk, x @ wv + bv
    split = lambda t: t.reshape(B, S, N_HEADS, HEAD_DIM).transpose(0, 2, 1, 3)
    qh, kh, vh = split(q), split(k), split(v)
    s = jnp.einsum("bhqd,bhkd->bhqk", qh, kh) / (HEAD_DIM ** 0.5)
    s = s + jnp.where(mask[:, None, None, :] > 0.5, 0.0, -1e9)
    pr = jax.nn.softmax(s, axis=-1)
    ctx = jnp.einsum("bhqk,bhkd->bhqd", pr, vh).transpose(0, 2, 1, 3).reshape(B, S, H)
    x1 = _layer_norm(x + ctx @ wo + bo, g1, be1)
    f = jax.nn.gelu(x1 @ w1 + b1, approximate=True) @ w2 + b2
    return _layer_norm(x1 + f, g2, be2)


def forward_ref(params, p_ids, p_mask, a_ids, a_mask, b_ids, b_mask, meta):
    def enc(ids, mask):
        word_emb, pos_emb, g, b = params["embed"]
        S = ids.shape[1]
        x = _layer_norm(word_emb[ids] + pos_emb[None, :S, :], g, b)
        for lp in params["layers"]:
            x = _ref_encoder_layer(x, mask, lp)
        return x[:, 0]

    v_p, v_a, v_b = enc(p_ids, p_mask), enc(a_ids, a_mask), enc(b_ids, b_mask)
    mw1, mb1, mw2, mb2 = params["meta"]
    cw1, cb1, cw2, cb2 = params["cls"]
    m = jnp.maximum(meta @ mw1 + mb1, 0.0)
    m = jnp.maximum(m @ mw2 + mb2, 0.0)
    feat = jnp.concatenate(
        [v_p, v_a, jnp.abs(v_p - v_a), v_b, jnp.abs(v_p - v_b), m], axis=-1)
    return jnp.maximum(feat @ cw1 + cb1, 0.0) @ cw2 + cb2


if __name__ == "__main__":
    key = jax.random.PRNGKey(0)
    pk, dk = jax.random.split(key)
    params = init_params(pk)

    k1, k2, k3, k4 = jax.random.split(dk, 4)
    p_ids = jax.random.randint(k1, (BATCH, SEQ), 0, VOCAB, dtype=jnp.int32)
    a_ids = jax.random.randint(k2, (BATCH, SEQ), 0, VOCAB, dtype=jnp.int32)
    b_ids = jax.random.randint(k3, (BATCH, SEQ), 0, VOCAB, dtype=jnp.int32)
    ones_mask = jnp.ones((BATCH, SEQ), jnp.float32)
    meta = jax.random.normal(k4, (BATCH, META), jnp.float32)

    logits = forward(params, p_ids, ones_mask, a_ids, ones_mask,
                     b_ids, ones_mask, meta)
    logits = jax.block_until_ready(logits)

    ref = forward_ref(params, p_ids, ones_mask, a_ids, ones_mask,
                      b_ids, ones_mask, meta)
    assert logits.shape == (BATCH, 3)
    assert bool(jnp.all(jnp.isfinite(logits)))
    assert bool(jnp.allclose(logits, ref, atol=2e-2, rtol=2e-2))
    print("KERNEL_OK")
</pallas_src>

<mosaic_0001>
module attributes {stable_mosaic.version = 11 : i64} {
  func.func @encoder_stack_kernel(%arg0: i32, %arg1: i32, %arg2: memref<3x8x32xf32, #tpu.memory_space<vmem>>, %arg3: memref<3x1x8xf32, #tpu.memory_space<vmem>>, %arg4: memref<1x4x32x8xf32, #tpu.memory_space<vmem>>, %arg5: memref<1x4x1x8xf32, #tpu.memory_space<vmem>>, %arg6: memref<1x4x32x8xf32, #tpu.memory_space<vmem>>, %arg7: memref<1x4x1x8xf32, #tpu.memory_space<vmem>>, %arg8: memref<1x4x32x8xf32, #tpu.memory_space<vmem>>, %arg9: memref<1x4x1x8xf32, #tpu.memory_space<vmem>>, %arg10: memref<1x4x8x32xf32, #tpu.memory_space<vmem>>, %arg11: memref<1x1x32xf32, #tpu.memory_space<vmem>>, %arg12: memref<1x1x32xf32, #tpu.memory_space<vmem>>, %arg13: memref<1x1x32xf32, #tpu.memory_space<vmem>>, %arg14: memref<1x32x64xf32, #tpu.memory_space<vmem>>, %arg15: memref<1x1x64xf32, #tpu.memory_space<vmem>>, %arg16: memref<1x64x32xf32, #tpu.memory_space<vmem>>, %arg17: memref<1x1x32xf32, #tpu.memory_space<vmem>>, %arg18: memref<1x1x32xf32, #tpu.memory_space<vmem>>, %arg19: memref<1x1x32xf32, #tpu.memory_space<vmem>>, %arg20: memref<3x8x32xf32, #tpu.memory_space<vmem>>) attributes {dimension_semantics = [#tpu.dimension_semantics<parallel>, #tpu.dimension_semantics<arbitrary>], iteration_bounds = array<i64: 2, 2>, scalar_prefetch = 0 : i64, scratch_operands = 0 : i64, tpu.core_type = #tpu.core_type<tc>, window_params = [{transform_indices = @transform_0, window_bounds = array<i64: 3, 8, 32>}, {transform_indices = @transform_1, window_bounds = array<i64: 3, 1, 8>}, {transform_indices = @transform_2, window_bounds = array<i64: 1, 4, 32, 8>}, {transform_indices = @transform_3, window_bounds = array<i64: 1, 4, 1, 8>}, {transform_indices = @transform_4, window_bounds = array<i64: 1, 4, 32, 8>}, {transform_indices = @transform_5, window_bounds = array<i64: 1, 4, 1, 8>}, {transform_indices = @transform_6, window_bounds = array<i64: 1, 4, 32, 8>}, {transform_indices = @transform_7, window_bounds = array<i64: 1, 4, 1, 8>}, {transform_indices = @transform_8, window_bounds = array<i64: 1, 4, 8, 32>}, {transform_indices = @transform_9, window_bounds = array<i64: 1, 1, 32>}, {transform_indices = @transform_10, window_bounds = array<i64: 1, 1, 32>}, {transform_indices = @transform_11, window_bounds = array<i64: 1, 1, 32>}, {transform_indices = @transform_12, window_bounds = array<i64: 1, 32, 64>}, {transform_indices = @transform_13, window_bounds = array<i64: 1, 1, 64>}, {transform_indices = @transform_14, window_bounds = array<i64: 1, 64, 32>}, {transform_indices = @transform_15, window_bounds = array<i64: 1, 1, 32>}, {transform_indices = @transform_16, window_bounds = array<i64: 1, 1, 32>}, {transform_indices = @transform_17, window_bounds = array<i64: 1, 1, 32>}, {transform_indices = @transform_18, window_bounds = array<i64: 3, 8, 32>}]} {
    %c0_i32 = arith.constant 0 : i32
    %0 = arith.cmpi eq, %arg1, %c0_i32 : i32
    %1 = arith.extui %0 : i1 to i32
    %c0_i32_0 = arith.constant 0 : i32
    %2 = arith.cmpi ne, %1, %c0_i32_0 : i32
    scf.if %2 {
      %c0_116 = arith.constant 0 : index
      %c0_117 = arith.constant 0 : index
      %c0_118 = arith.constant 0 : index
      %284 = vector.load %arg2[%c0_116, %c0_117, %c0_118] : memref<3x8x32xf32, #tpu.memory_space<vmem>>, vector<3x8x32xf32>
      %c0_119 = arith.constant 0 : index
      %c0_120 = arith.constant 0 : index
      %c0_121 = arith.constant 0 : index
      %285 = vector.load %arg20[%c0_119, %c0_120, %c0_121] : memref<3x8x32xf32, #tpu.memory_space<vmem>>, vector<3x8x32xf32>
      tpu.vector_store %arg20[%c0_119, %c0_120, %c0_121], %284 {strides = array<i32>} : memref<3x8x32xf32, #tpu.memory_space<vmem>>, vector<3x8x32xf32>,
    } else {
    }
    %c0 = arith.constant 0 : index
    %c0_1 = arith.constant 0 : index
    %c0_2 = arith.constant 0 : index
    %3 = vector.load %arg20[%c0, %c0_1, %c0_2] : memref<3x8x32xf32, #tpu.memory_space<vmem>>, vector<3x8x32xf32>
    %4 = vector.shape_cast %3 : vector<3x8x32xf32> to vector<24x32xf32>
    %c0_3 = arith.constant 0 : index
    %c0_4 = arith.constant 0 : index
    %c0_5 = arith.constant 0 : index
    %5 = vector.load %arg3[%c0_3, %c0_4, %c0_5] : memref<3x1x8xf32, #tpu.memory_space<vmem>>, vector<3x1x8xf32>
    %c0_6 = arith.constant 0 : index
    %c0_7 = arith.constant 0 : index
    %c0_8 = arith.constant 0 : index
    %c0_9 = arith.constant 0 : index
    %6 = vector.load %arg4[%c0_6, %c0_7, %c0_8, %c0_9] : memref<1x4x32x8xf32, #tpu.memory_space<vmem>>, vector<1x4x32x8xf32>
    %7 = vector.shape_cast %6 : vector<1x4x32x8xf32> to vector<4x32x8xf32>
    %c0_10 = arith.constant 0 : index
    %c0_11 = arith.constant 0 : index
    %c0_12 = arith.constant 0 : index
    %c0_13 = arith.constant 0 : index
    %8 = vector.load %arg5[%c0_10, %c0_11, %c0_12, %c0_13] : memref<1x4x1x8xf32, #tpu.memory_space<vmem>>, vector<1x4x1x8xf32>
    %9 = vector.shape_cast %8 : vector<1x4x1x8xf32> to vector<4x1x8xf32>
    %c0_14 = arith.constant 0 : index
    %c0_15 = arith.constant 0 : index
    %c0_16 = arith.constant 0 : index
    %c0_17 = arith.constant 0 : index
    %10 = vector.load %arg6[%c0_14, %c0_15, %c0_16, %c0_17] : memref<1x4x32x8xf32, #tpu.memory_space<vmem>>, vector<1x4x32x8xf32>
    %11 = vector.shape_cast %10 : vector<1x4x32x8xf32> to vector<4x32x8xf32>
    %c0_18 = arith.constant 0 : index
    %c0_19 = arith.constant 0 : index
    %c0_20 = arith.constant 0 : index
    %c0_21 = arith.constant 0 : index
    %12 = vector.load %arg7[%c0_18, %c0_19, %c0_20, %c0_21] : memref<1x4x1x8xf32, #tpu.memory_space<vmem>>, vector<1x4x1x8xf32>
    %13 = vector.shape_cast %12 : vector<1x4x1x8xf32> to vector<4x1x8xf32>
    %c0_22 = arith.constant 0 : index
    %c0_23 = arith.constant 0 : index
    %c0_24 = arith.constant 0 : index
    %c0_25 = arith.constant 0 : index
    %14 = vector.load %arg8[%c0_22, %c0_23, %c0_24, %c0_25] : memref<1x4x32x8xf32, #tpu.memory_space<vmem>>, vector<1x4x32x8xf32>
    %15 = vector.shape_cast %14 : vector<1x4x32x8xf32> to vector<4x32x8xf32>
    %c0_26 = arith.constant 0 : index
    %c0_27 = arith.constant 0 : index
    %c0_28 = arith.constant 0 : index
    %c0_29 = arith.constant 0 : index
    %16 = vector.load %arg9[%c0_26, %c0_27, %c0_28, %c0_29] : memref<1x4x1x8xf32, #tpu.memory_space<vmem>>, vector<1x4x1x8xf32>
    %17 = vector.shape_cast %16 : vector<1x4x1x8xf32> to vector<4x1x8xf32>
    %c0_30 = arith.constant 0 : index
    %c0_31 = arith.constant 0 : index
    %c0_32 = arith.constant 0 : index
    %c0_33 = arith.constant 0 : index
    %18 = vector.load %arg10[%c0_30, %c0_31, %c0_32, %c0_33] : memref<1x4x8x32xf32, #tpu.memory_space<vmem>>, vector<1x4x8x32xf32>
    %19 = vector.shape_cast %18 : vector<1x4x8x32xf32> to vector<4x8x32xf32>
    %c0_34 = arith.constant 0 : index
    %c0_35 = arith.constant 0 : index
    %c0_36 = arith.constant 0 : index
    %20 = vector.load %arg11[%c0_34, %c0_35, %c0_36] : memref<1x1x32xf32, #tpu.memory_space<vmem>>, vector<1x1x32xf32>
    %21 = vector.shape_cast %20 : vector<1x1x32xf32> to vector<1x32xf32>
    %cst = arith.constant 0.000000e+00 : f32
    %22 = vector.broadcast %cst : f32 to vector<24x32xf32>
    %23 = vector.extract_strided_slice %7 {offsets = [0, 0, 0], sizes = [1, 32, 8], strides = [1, 1, 1]} : vector<4x32x8xf32> to vector<1x32x8xf32>
    %24 = vector.shape_cast %23 : vector<1x32x8xf32> to vector<32x8xf32>
    %cst_37 = arith.constant dense<0.000000e+00> : vector<24x8xf32>
    %25 = tpu.matmul %4, %24, %cst_37 {dimension_numbers = #tpu.dot_dimension_numbers<[1], [0], [0], [1], [0, 0, 1, 1], [], []>} : vector<24x32xf32>, vector<32x8xf32>, vector<24x8xf32> -> vector<24x8xf32>
    %26 = vector.extract_strided_slice %9 {offsets = [0, 0, 0], sizes = [1, 1, 8], strides = [1, 1, 1]} : vector<4x1x8xf32> to vector<1x1x8xf32>
    %27 = vector.shape_cast %26 : vector<1x1x8xf32> to vector<1x8xf32>
    %28 = vector.broadcast %27 : vector<1x8xf32> to vector<24x8xf32>
    %29 = arith.addf %25, %28 : vector<24x8xf32>
    %30 = vector.extract_strided_slice %11 {offsets = [0, 0, 0], sizes = [1, 32, 8], strides = [1, 1, 1]} : vector<4x32x8xf32> to vector<1x32x8xf32>
    %31 = vector.shape_cast %30 : vector<1x32x8xf32> to vector<32x8xf32>
    %cst_38 = arith.constant dense<0.000000e+00> : vector<24x8xf32>
    %32 = tpu.matmul %4, %31, %cst_38 {dimension_numbers = #tpu.dot_dimension_numbers<[1], [0], [0], [1], [0, 0, 1, 1], [], []>} : vector<24x32xf32>, vector<32x8xf32>, vector<24x8xf32> -> vector<24x8xf32>
    %33 = vector.extract_strided_slice %13 {offsets = [0, 0, 0], sizes = [1, 1, 8], strides = [1, 1, 1]} : vector<4x1x8xf32> to vector<1x1x8xf32>
    %34 = vector.shape_cast %33 : vector<1x1x8xf32> to vector<1x8xf32>
    %35 = vector.broadcast %34 : vector<1x8xf32> to vector<24x8xf32>
    %36 = arith.addf %32, %35 : vector<24x8xf32>
    %37 = vector.extract_strided_slice %15 {offsets = [0, 0, 0], sizes = [1, 32, 8], strides = [1, 1, 1]} : vector<4x32x8xf32> to vector<1x32x8xf32>
    %38 = vector.shape_cast %37 : vector<1x32x8xf32> to vector<32x8xf32>
    %cst_39 = arith.constant dense<0.000000e+00> : vector<24x8xf32>
    %39 = tpu.matmul %4, %38, %cst_39 {dimension_numbers = #tpu.dot_dimension_numbers<[1], [0], [0], [1], [0, 0, 1, 1], [], []>} : vector<24x32xf32>, vector<32x8xf32>, vector<24x8xf32> -> vector<24x8xf32>
    %40 = vector.extract_strided_slice %17 {offsets = [0, 0, 0], sizes = [1, 1, 8], strides = [1, 1, 1]} : vector<4x1x8xf32> to vector<1x1x8xf32>
    %41 = vector.shape_cast %40 : vector<1x1x8xf32> to vector<1x8xf32>
    %42 = vector.broadcast %41 : vector<1x8xf32> to vector<24x8xf32>
    %43 = arith.addf %39, %42 : vector<24x8xf32>
    %44 = vector.shape_cast %29 : vector<24x8xf32> to vector<3x8x8xf32>
    %45 = vector.shape_cast %36 : vector<24x8xf32> to vector<3x8x8xf32>
    %46 = vector.shape_cast %43 : vector<24x8xf32> to vector<3x8x8xf32>
    "tpu.trace_start"() <{level = 10 : i32, message = "nqd,nkd->nqk"}> : () -> ()
    %cst_40 = arith.constant dense<0.000000e+00> : vector<3x8x8xf32>
    %47 = tpu.matmul %44, %45, %cst_40 {dimension_numbers = #tpu.dot_dimension_numbers<[2], [2], [1], [1], [0, 0, 0, 1, 1, 1], [0], [0]>} : vector<3x8x8xf32>, vector<3x8x8xf32>, vector<3x8x8xf32> -> vector<3x8x8xf32>
    "tpu.trace_stop"() : () -> ()
    %cst_41 = arith.constant 0.353553385 : f32
    %48 = vector.broadcast %cst_41 : f32 to vector<3x8x8xf32>
    %49 = arith.mulf %47, %48 : vector<3x8x8xf32>
    %50 = vector.broadcast %5 : vector<3x1x8xf32> to vector<3x8x8xf32>
    %51 = arith.addf %49, %50 : vector<3x8x8xf32>
    %cst_42 = arith.constant dense<0xFF800000> : vector<3x8xf32>
    %52 = vector.multi_reduction <maximumf>, %51, %cst_42 [2] : vector<3x8x8xf32> to vector<3x8xf32>
    %53 = vector.shape_cast %52 : vector<3x8xf32> to vector<3x8x1xf32>
    %54 = vector.broadcast %53 : vector<3x8x1xf32> to vector<3x8x8xf32>
    %55 = arith.subf %51, %54 : vector<3x8x8xf32>
    %56 = math.exp %55 : vector<3x8x8xf32>
    %cst_43 = arith.constant dense<0.000000e+00> : vector<3x8xf32>
    %57 = vector.multi_reduction <add>, %56, %cst_43 [2] : vector<3x8x8xf32> to vector<3x8xf32>
    %58 = vector.shape_cast %57 : vector<3x8xf32> to vector<3x8x1xf32>
    %59 = vector.broadcast %58 : vector<3x8x1xf32> to vector<3x8x8xf32>
    %60 = arith.divf %56, %59 : vector<3x8x8xf32>
    "tpu.trace_start"() <{level = 10 : i32, message = "nqk,nkd->nqd"}> : () -> ()
    %cst_44 = arith.constant dense<0.000000e+00> : vector<3x8x8xf32>
    %61 = tpu.matmul %60, %46, %cst_44 {dimension_numbers = #tpu.dot_dimension_numbers<[2], [1], [1], [2], [0, 0, 0, 1, 1, 2], [0], [0]>} : vector<3x8x8xf32>, vector<3x8x8xf32>, vector<3x8x8xf32> -> vector<3x8x8xf32>
    "tpu.trace_stop"() : () -> ()
    %62 = vector.shape_cast %61 : vector<3x8x8xf32> to vector<24x8xf32>
    %63 = vector.extract_strided_slice %19 {offsets = [0, 0, 0], sizes = [1, 8, 32], strides = [1, 1, 1]} : vector<4x8x32xf32> to vector<1x8x32xf32>
    %64 = vector.shape_cast %63 : vector<1x8x32xf32> to vector<8x32xf32>
    %cst_45 = arith.constant dense<0.000000e+00> : vector<24x32xf32>
    %65 = tpu.matmul %62, %64, %cst_45 {dimension_numbers = #tpu.dot_dimension_numbers<[1], [0], [0], [1], [0, 0, 1, 1], [], []>} : vector<24x8xf32>, vector<8x32xf32>, vector<24x32xf32> -> vector<24x32xf32>
    %66 = arith.addf %22, %65 : vector<24x32xf32>
    %67 = vector.extract_strided_slice %7 {offsets = [1, 0, 0], sizes = [1, 32, 8], strides = [1, 1, 1]} : vector<4x32x8xf32> to vector<1x32x8xf32>
    %68 = vector.shape_cast %67 : vector<1x32x8xf32> to vector<32x8xf32>
    %cst_46 = arith.constant dense<0.000000e+00> : vector<24x8xf32>
    %69 = tpu.matmul %4, %68, %cst_46 {dimension_numbers = #tpu.dot_dimension_numbers<[1], [0], [0], [1], [0, 0, 1, 1], [], []>} : vector<24x32xf32>, vector<32x8xf32>, vector<24x8xf32> -> vector<24x8xf32>
    %70 = vector.extract_strided_slice %9 {offsets = [1, 0, 0], sizes = [1, 1, 8], strides = [1, 1, 1]} : vector<4x1x8xf32> to vector<1x1x8xf32>
    %71 = vector.shape_cast %70 : vector<1x1x8xf32> to vector<1x8xf32>
    %72 = vector.broadcast %71 : vector<1x8xf32> to vector<24x8xf32>
    %73 = arith.addf %69, %72 : vector<24x8xf32>
    %74 = vector.extract_strided_slice %11 {offsets = [1, 0, 0], sizes = [1, 32, 8], strides = [1, 1, 1]} : vector<4x32x8xf32> to vector<1x32x8xf32>
    %75 = vector.shape_cast %74 : vector<1x32x8xf32> to vector<32x8xf32>
    %cst_47 = arith.constant dense<0.000000e+00> : vector<24x8xf32>
    %76 = tpu.matmul %4, %75, %cst_47 {dimension_numbers = #tpu.dot_dimension_numbers<[1], [0], [0], [1], [0, 0, 1, 1], [], []>} : vector<24x32xf32>, vector<32x8xf32>, vector<24x8xf32> -> vector<24x8xf32>
    %77 = vector.extract_strided_slice %13 {offsets = [1, 0, 0], sizes = [1, 1, 8], strides = [1, 1, 1]} : vector<4x1x8xf32> to vector<1x1x8xf32>
    %78 = vector.shape_cast %77 : vector<1x1x8xf32> to vector<1x8xf32>
    %79 = vector.broadcast %78 : vector<1x8xf32> to vector<24x8xf32>
    %80 = arith.addf %76, %79 : vector<24x8xf32>
    %81 = vector.extract_strided_slice %15 {offsets = [1, 0, 0], sizes = [1, 32, 8], strides = [1, 1, 1]} : vector<4x32x8xf32> to vector<1x32x8xf32>
    %82 = vector.shape_cast %81 : vector<1x32x8xf32> to vector<32x8xf32>
    %cst_48 = arith.constant dense<0.000000e+00> : vector<24x8xf32>
    %83 = tpu.matmul %4, %82, %cst_48 {dimension_numbers = #tpu.dot_dimension_numbers<[1], [0], [0], [1], [0, 0, 1, 1], [], []>} : vector<24x32xf32>, vector<32x8xf32>, vector<24x8xf32> -> vector<24x8xf32>
    %84 = vector.extract_strided_slice %17 {offsets = [1, 0, 0], sizes = [1, 1, 8], strides = [1, 1, 1]} : vector<4x1x8xf32> to vector<1x1x8xf32>
    %85 = vector.shape_cast %84 : vector<1x1x8xf32> to vector<1x8xf32>
    %86 = vector.broadcast %85 : vector<1x8xf32> to vector<24x8xf32>
    %87 = arith.addf %83, %86 : vector<24x8xf32>
    %88 = vector.shape_cast %73 : vector<24x8xf32> to vector<3x8x8xf32>
    %89 = vector.shape_cast %80 : vector<24x8xf32> to vector<3x8x8xf32>
    %90 = vector.shape_cast %87 : vector<24x8xf32> to vector<3x8x8xf32>
    "tpu.trace_start"() <{level = 10 : i32, message = "nqd,nkd->nqk"}> : () -> ()
    %cst_49 = arith.constant dense<0.000000e+00> : vector<3x8x8xf32>
    %91 = tpu.matmul %88, %89, %cst_49 {dimension_numbers = #tpu.dot_dimension_numbers<[2], [2], [1], [1], [0, 0, 0, 1, 1, 1], [0], [0]>} : vector<3x8x8xf32>, vector<3x8x8xf32>, vector<3x8x8xf32> -> vector<3x8x8xf32>
    "tpu.trace_stop"() : () -> ()
    %cst_50 = arith.constant 0.353553385 : f32
    %92 = vector.broadcast %cst_50 : f32 to vector<3x8x8xf32>
    %93 = arith.mulf %91, %92 : vector<3x8x8xf32>
    %94 = vector.broadcast %5 : vector<3x1x8xf32> to vector<3x8x8xf32>
    %95 = arith.addf %93, %94 : vector<3x8x8xf32>
    %cst_51 = arith.constant dense<0xFF800000> : vector<3x8xf32>
    %96 = vector.multi_reduction <maximumf>, %95, %cst_51 [2] : vector<3x8x8xf32> to vector<3x8xf32>
    %97 = vector.shape_cast %96 : vector<3x8xf32> to vector<3x8x1xf32>
    %98 = vector.broadcast %97 : vector<3x8x1xf32> to vector<3x8x8xf32>
    %99 = arith.subf %95, %98 : vector<3x8x8xf32>
    %100 = math.exp %99 : vector<3x8x8xf32>
    %cst_52 = arith.constant dense<0.000000e+00> : vector<3x8xf32>
    %101 = vector.multi_reduction <add>, %100, %cst_52 [2] : vector<3x8x8xf32> to vector<3x8xf32>
    %102 = vector.shape_cast %101 : vector<3x8xf32> to vector<3x8x1xf32>
    %103 = vector.broadcast %102 : vector<3x8x1xf32> to vector<3x8x8xf32>
    %104 = arith.divf %100, %103 : vector<3x8x8xf32>
    "tpu.trace_start"() <{level = 10 : i32, message = "nqk,nkd->nqd"}> : () -> ()
    %cst_53 = arith.constant dense<0.000000e+00> : vector<3x8x8xf32>
    %105 = tpu.matmul %104, %90, %cst_53 {dimension_numbers = #tpu.dot_dimension_numbers<[2], [1], [1], [2], [0, 0, 0, 1, 1, 2], [0], [0]>} : vector<3x8x8xf32>, vector<3x8x8xf32>, vector<3x8x8xf32> -> vector<3x8x8xf32>
    "tpu.trace_stop"() : () -> ()
    %106 = vector.shape_cast %105 : vector<3x8x8xf32> to vector<24x8xf32>
    %107 = vector.extract_strided_slice %19 {offsets = [1, 0, 0], sizes = [1, 8, 32], strides = [1, 1, 1]} : vector<4x8x32xf32> to vector<1x8x32xf32>
    %108 = vector.shape_cast %107 : vector<1x8x32xf32> to vector<8x32xf32>
    %cst_54 = arith.constant dense<0.000000e+00> : vector<24x32xf32>
    %109 = tpu.matmul %106, %108, %cst_54 {dimension_numbers = #tpu.dot_dimension_numbers<[1], [0], [0], [1], [0, 0, 1, 1], [], []>} : vector<24x8xf32>, vector<8x32xf32>, vector<24x32xf32> -> vector<24x32xf32>
    %110 = arith.addf %66, %109 : vector<24x32xf32>
    %111 = vector.extract_strided_slice %7 {offsets = [2, 0, 0], sizes = [1, 32, 8], strides = [1, 1, 1]} : vector<4x32x8xf32> to vector<1x32x8xf32>
    %112 = vector.shape_cast %111 : vector<1x32x8xf32> to vector<32x8xf32>
    %cst_55 = arith.constant dense<0.000000e+00> : vector<24x8xf32>
    %113 = tpu.matmul %4, %112, %cst_55 {dimension_numbers = #tpu.dot_dimension_numbers<[1], [0], [0], [1], [0, 0, 1, 1], [], []>} : vector<24x32xf32>, vector<32x8xf32>, vector<24x8xf32> -> vector<24x8xf32>
    %114 = vector.extract_strided_slice %9 {offsets = [2, 0, 0], sizes = [1, 1, 8], strides = [1, 1, 1]} : vector<4x1x8xf32> to vector<1x1x8xf32>
    %115 = vector.shape_cast %114 : vector<1x1x8xf32> to vector<1x8xf32>
    %116 = vector.broadcast %115 : vector<1x8xf32> to vector<24x8xf32>
    %117 = arith.addf %113, %116 : vector<24x8xf32>
    %118 = vector.extract_strided_slice %11 {offsets = [2, 0, 0], sizes = [1, 32, 8], strides = [1, 1, 1]} : vector<4x32x8xf32> to vector<1x32x8xf32>
    %119 = vector.shape_cast %118 : vector<1x32x8xf32> to vector<32x8xf32>
    %cst_56 = arith.constant dense<0.000000e+00> : vector<24x8xf32>
    %120 = tpu.matmul %4, %119, %cst_56 {dimension_numbers = #tpu.dot_dimension_numbers<[1], [0], [0], [1], [0, 0, 1, 1], [], []>} : vector<24x32xf32>, vector<32x8xf32>, vector<24x8xf32> -> vector<24x8xf32>
    %121 = vector.extract_strided_slice %13 {offsets = [2, 0, 0], sizes = [1, 1, 8], strides = [1, 1, 1]} : vector<4x1x8xf32> to vector<1x1x8xf32>
    %122 = vector.shape_cast %121 : vector<1x1x8xf32> to vector<1x8xf32>
    %123 = vector.broadcast %122 : vector<1x8xf32> to vector<24x8xf32>
    %124 = arith.addf %120, %123 : vector<24x8xf32>
    %125 = vector.extract_strided_slice %15 {offsets = [2, 0, 0], sizes = [1, 32, 8], strides = [1, 1, 1]} : vector<4x32x8xf32> to vector<1x32x8xf32>
    %126 = vector.shape_cast %125 : vector<1x32x8xf32> to vector<32x8xf32>
    %cst_57 = arith.constant dense<0.000000e+00> : vector<24x8xf32>
    %127 = tpu.matmul %4, %126, %cst_57 {dimension_numbers = #tpu.dot_dimension_numbers<[1], [0], [0], [1], [0, 0, 1, 1], [], []>} : vector<24x32xf32>, vector<32x8xf32>, vector<24x8xf32> -> vector<24x8xf32>
    %128 = vector.extract_strided_slice %17 {offsets = [2, 0, 0], sizes = [1, 1, 8], strides = [1, 1, 1]} : vector<4x1x8xf32> to vector<1x1x8xf32>
    %129 = vector.shape_cast %128 : vector<1x1x8xf32> to vector<1x8xf32>
    %130 = vector.broadcast %129 : vector<1x8xf32> to vector<24x8xf32>
    %131 = arith.addf %127, %130 : vector<24x8xf32>
    %132 = vector.shape_cast %117 : vector<24x8xf32> to vector<3x8x8xf32>
    %133 = vector.shape_cast %124 : vector<24x8xf32> to vector<3x8x8xf32>
    %134 = vector.shape_cast %131 : vector<24x8xf32> to vector<3x8x8xf32>
    "tpu.trace_start"() <{level = 10 : i32, message = "nqd,nkd->nqk"}> : () -> ()
    %cst_58 = arith.constant dense<0.000000e+00> : vector<3x8x8xf32>
    %135 = tpu.matmul %132, %133, %cst_58 {dimension_numbers = #tpu.dot_dimension_numbers<[2], [2], [1], [1], [0, 0, 0, 1, 1, 1], [0], [0]>} : vector<3x8x8xf32>, vector<3x8x8xf32>, vector<3x8x8xf32> -> vector<3x8x8xf32>
    "tpu.trace_stop"() : () -> ()
    %cst_59 = arith.constant 0.353553385 : f32
    %136 = vector.broadcast %cst_59 : f32 to vector<3x8x8xf32>
    %137 = arith.mulf %135, %136 : vector<3x8x8xf32>
    %138 = vector.broadcast %5 : vector<3x1x8xf32> to vector<3x8x8xf32>
    %139 = arith.addf %137, %138 : vector<3x8x8xf32>
    %cst_60 = arith.constant dense<0xFF800000> : vector<3x8xf32>
    %140 = vector.multi_reduction <maximumf>, %139, %cst_60 [2] : vector<3x8x8xf32> to vector<3x8xf32>
    %141 = vector.shape_cast %140 : vector<3x8xf32> to vector<3x8x1xf32>
    %142 = vector.broadcast %141 : vector<3x8x1xf32> to vector<3x8x8xf32>
    %143 = arith.subf %139, %142 : vector<3x8x8xf32>
    %144 = math.exp %143 : vector<3x8x8xf32>
    %cst_61 = arith.constant dense<0.000000e+00> : vector<3x8xf32>
    %145 = vector.multi_reduction <add>, %144, %cst_61 [2] : vector<3x8x8xf32> to vector<3x8xf32>
    %146 = vector.shape_cast %145 : vector<3x8xf32> to vector<3x8x1xf32>
    %147 = vector.broadcast %146 : vector<3x8x1xf32> to vector<3x8x8xf32>
    %148 = arith.divf %144, %147 : vector<3x8x8xf32>
    "tpu.trace_start"() <{level = 10 : i32, message = "nqk,nkd->nqd"}> : () -> ()
    %cst_62 = arith.constant dense<0.000000e+00> : vector<3x8x8xf32>
    %149 = tpu.matmul %148, %134, %cst_62 {dimension_numbers = #tpu.dot_dimension_numbers<[2], [1], [1], [2], [0, 0, 0, 1, 1, 2], [0], [0]>} : vector<3x8x8xf32>, vector<3x8x8xf32>, vector<3x8x8xf32> -> vector<3x8x8xf32>
    "tpu.trace_stop"() : () -> ()
    %150 = vector.shape_cast %149 : vector<3x8x8xf32> to vector<24x8xf32>
    %151 = vector.extract_strided_slice %19 {offsets = [2, 0, 0], sizes = [1, 8, 32], strides = [1, 1, 1]} : vector<4x8x32xf32> to vector<1x8x32xf32>
    %152 = vector.shape_cast %151 : vector<1x8x32xf32> to vector<8x32xf32>
    %cst_63 = arith.constant dense<0.000000e+00> : vector<24x32xf32>
    %153 = tpu.matmul %150, %152, %cst_63 {dimension_numbers = #tpu.dot_dimension_numbers<[1], [0], [0], [1], [0, 0, 1, 1], [], []>} : vector<24x8xf32>, vector<8x32xf32>, vector<24x32xf32> -> vector<24x32xf32>
    %154 = arith.addf %110, %153 : vector<24x32xf32>
    %155 = vector.extract_strided_slice %7 {offsets = [3, 0, 0], sizes = [1, 32, 8], strides = [1, 1, 1]} : vector<4x32x8xf32> to vector<1x32x8xf32>
    %156 = vector.shape_cast %155 : vector<1x32x8xf32> to vector<32x8xf32>
    %cst_64 = arith.constant dense<0.000000e+00> : vector<24x8xf32>
    %157 = tpu.matmul %4, %156, %cst_64 {dimension_numbers = #tpu.dot_dimension_numbers<[1], [0], [0], [1], [0, 0, 1, 1], [], []>} : vector<24x32xf32>, vector<32x8xf32>, vector<24x8xf32> -> vector<24x8xf32>
    %158 = vector.extract_strided_slice %9 {offsets = [3, 0, 0], sizes = [1, 1, 8], strides = [1, 1, 1]} : vector<4x1x8xf32> to vector<1x1x8xf32>
    %159 = vector.shape_cast %158 : vector<1x1x8xf32> to vector<1x8xf32>
    %160 = vector.broadcast %159 : vector<1x8xf32> to vector<24x8xf32>
    %161 = arith.addf %157, %160 : vector<24x8xf32>
    %162 = vector.extract_strided_slice %11 {offsets = [3, 0, 0], sizes = [1, 32, 8], strides = [1, 1, 1]} : vector<4x32x8xf32> to vector<1x32x8xf32>
    %163 = vector.shape_cast %162 : vector<1x32x8xf32> to vector<32x8xf32>
    %cst_65 = arith.constant dense<0.000000e+00> : vector<24x8xf32>
    %164 = tpu.matmul %4, %163, %cst_65 {dimension_numbers = #tpu.dot_dimension_numbers<[1], [0], [0], [1], [0, 0, 1, 1], [], []>} : vector<24x32xf32>, vector<32x8xf32>, vector<24x8xf32> -> vector<24x8xf32>
    %165 = vector.extract_strided_slice %13 {offsets = [3, 0, 0], sizes = [1, 1, 8], strides = [1, 1, 1]} : vector<4x1x8xf32> to vector<1x1x8xf32>
    %166 = vector.shape_cast %165 : vector<1x1x8xf32> to vector<1x8xf32>
    %167 = vector.broadcast %166 : vector<1x8xf32> to vector<24x8xf32>
    %168 = arith.addf %164, %167 : vector<24x8xf32>
    %169 = vector.extract_strided_slice %15 {offsets = [3, 0, 0], sizes = [1, 32, 8], strides = [1, 1, 1]} : vector<4x32x8xf32> to vector<1x32x8xf32>
    %170 = vector.shape_cast %169 : vector<1x32x8xf32> to vector<32x8xf32>
    %cst_66 = arith.constant dense<0.000000e+00> : vector<24x8xf32>
    %171 = tpu.matmul %4, %170, %cst_66 {dimension_numbers = #tpu.dot_dimension_numbers<[1], [0], [0], [1], [0, 0, 1, 1], [], []>} : vector<24x32xf32>, vector<32x8xf32>, vector<24x8xf32> -> vector<24x8xf32>
    %172 = vector.extract_strided_slice %17 {offsets = [3, 0, 0], sizes = [1, 1, 8], strides = [1, 1, 1]} : vector<4x1x8xf32> to vector<1x1x8xf32>
    %173 = vector.shape_cast %172 : vector<1x1x8xf32> to vector<1x8xf32>
    %174 = vector.broadcast %173 : vector<1x8xf32> to vector<24x8xf32>
    %175 = arith.addf %171, %174 : vector<24x8xf32>
    %176 = vector.shape_cast %161 : vector<24x8xf32> to vector<3x8x8xf32>
    %177 = vector.shape_cast %168 : vector<24x8xf32> to vector<3x8x8xf32>
    %178 = vector.shape_cast %175 : vector<24x8xf32> to vector<3x8x8xf32>
    "tpu.trace_start"() <{level = 10 : i32, message = "nqd,nkd->nqk"}> : () -> ()
    %cst_67 = arith.constant dense<0.000000e+00> : vector<3x8x8xf32>
    %179 = tpu.matmul %176, %177, %cst_67 {dimension_numbers = #tpu.dot_dimension_numbers<[2], [2], [1], [1], [0, 0, 0, 1, 1, 1], [0], [0]>} : vector<3x8x8xf32>, vector<3x8x8xf32>, vector<3x8x8xf32> -> vector<3x8x8xf32>
    "tpu.trace_stop"() : () -> ()
    %cst_68 = arith.constant 0.353553385 : f32
    %180 = vector.broadcast %cst_68 : f32 to vector<3x8x8xf32>
    %181 = arith.mulf %179, %180 : vector<3x8x8xf32>
    %182 = vector.broadcast %5 : vector<3x1x8xf32> to vector<3x8x8xf32>
    %183 = arith.addf %181, %182 : vector<3x8x8xf32>
    %cst_69 = arith.constant dense<0xFF800000> : vector<3x8xf32>
    %184 = vector.multi_reduction <maximumf>, %183, %cst_69 [2] : vector<3x8x8xf32> to vector<3x8xf32>
    %185 = vector.shape_cast %184 : vector<3x8xf32> to vector<3x8x1xf32>
    %186 = vector.broadcast %185 : vector<3x8x1xf32> to vector<3x8x8xf32>
    %187 = arith.subf %183, %186 : vector<3x8x8xf32>
    %188 = math.exp %187 : vector<3x8x8xf32>
    %cst_70 = arith.constant dense<0.000000e+00> : vector<3x8xf32>
    %189 = vector.multi_reduction <add>, %188, %cst_70 [2] : vector<3x8x8xf32> to vector<3x8xf32>
    %190 = vector.shape_cast %189 : vector<3x8xf32> to vector<3x8x1xf32>
    %191 = vector.broadcast %190 : vector<3x8x1xf32> to vector<3x8x8xf32>
    %192 = arith.divf %188, %191 : vector<3x8x8xf32>
    "tpu.trace_start"() <{level = 10 : i32, message = "nqk,nkd->nqd"}> : () -> ()
    %cst_71 = arith.constant dense<0.000000e+00> : vector<3x8x8xf32>
    %193 = tpu.matmul %192, %178, %cst_71 {dimension_numbers = #tpu.dot_dimension_numbers<[2], [1], [1], [2], [0, 0, 0, 1, 1, 2], [0], [0]>} : vector<3x8x8xf32>, vector<3x8x8xf32>, vector<3x8x8xf32> -> vector<3x8x8xf32>
    "tpu.trace_stop"() : () -> ()
    %194 = vector.shape_cast %193 : vector<3x8x8xf32> to vector<24x8xf32>
    %195 = vector.extract_strided_slice %19 {offsets = [3, 0, 0], sizes = [1, 8, 32], strides = [1, 1, 1]} : vector<4x8x32xf32> to vector<1x8x32xf32>
    %196 = vector.shape_cast %195 : vector<1x8x32xf32> to vector<8x32xf32>
    %cst_72 = arith.constant dense<0.000000e+00> : vector<24x32xf32>
    %197 = tpu.matmul %194, %196, %cst_72 {dimension_numbers = #tpu.dot_dimension_numbers<[1], [0], [0], [1], [0, 0, 1, 1], [], []>} : vector<24x8xf32>, vector<8x32xf32>, vector<24x32xf32> -> vector<24x32xf32>
    %198 = arith.addf %154, %197 : vector<24x32xf32>
    %199 = vector.broadcast %21 : vector<1x32xf32> to vector<24x32xf32>
    %200 = arith.addf %198, %199 : vector<24x32xf32>
    %201 = arith.addf %4, %200 : vector<24x32xf32>
    %c0_73 = arith.constant 0 : index
    %c0_74 = arith.constant 0 : index
    %c0_75 = arith.constant 0 : index
    %202 = vector.load %arg12[%c0_73, %c0_74, %c0_75] : memref<1x1x32xf32, #tpu.memory_space<vmem>>, vector<1x1x32xf32>
    %203 = vector.shape_cast %202 : vector<1x1x32xf32> to vector<1x32xf32>
    %c0_76 = arith.constant 0 : index
    %c0_77 = arith.constant 0 : index
    %c0_78 = arith.constant 0 : index
    %204 = vector.load %arg13[%c0_76, %c0_77, %c0_78] : memref<1x1x32xf32, #tpu.memory_space<vmem>>, vector<1x1x32xf32>
    %205 = vector.shape_cast %204 : vector<1x1x32xf32> to vector<1x32xf32>
    %cst_79 = arith.constant dense<0.000000e+00> : vector<24xf32>
    %206 = vector.multi_reduction <add>, %201, %cst_79 [1] : vector<24x32xf32> to vector<24xf32>
    %207 = vector.shape_cast %206 : vector<24xf32> to vector<24x1xf32>
    %cst_80 = arith.constant 3.200000e+01 : f32
    %208 = vector.broadcast %cst_80 : f32 to vector<24x1xf32>
    %209 = arith.divf %207, %208 : vector<24x1xf32>
    %210 = vector.broadcast %209 : vector<24x1xf32> to vector<24x32xf32>
    %211 = arith.subf %201, %210 : vector<24x32xf32>
    %212 = arith.mulf %211, %211 : vector<24x32xf32>
    %cst_81 = arith.constant dense<0.000000e+00> : vector<24xf32>
    %213 = vector.multi_reduction <add>, %212, %cst_81 [1] : vector<24x32xf32> to vector<24xf32>
    %214 = vector.shape_cast %213 : vector<24xf32> to vector<24x1xf32>
    %cst_82 = arith.constant 3.200000e+01 : f32
    %215 = vector.broadcast %cst_82 : f32 to vector<24x1xf32>
    %216 = arith.divf %214, %215 : vector<24x1xf32>
    %217 = vector.broadcast %209 : vector<24x1xf32> to vector<24x32xf32>
    %218 = arith.subf %201, %217 : vector<24x32xf32>
    %cst_83 = arith.constant 9.99999996E-13 : f32
    %219 = vector.broadcast %cst_83 : f32 to vector<24x1xf32>
    %220 = arith.addf %216, %219 : vector<24x1xf32>
    %221 = math.rsqrt %220 : vector<24x1xf32>
    %222 = vector.broadcast %221 : vector<24x1xf32> to vector<24x32xf32>
    %223 = arith.mulf %218, %222 : vector<24x32xf32>
    %224 = vector.broadcast %203 : vector<1x32xf32> to vector<24x32xf32>
    %225 = arith.mulf %223, %224 : vector<24x32xf32>
    %226 = vector.broadcast %205 : vector<1x32xf32> to vector<24x32xf32>
    %227 = arith.addf %225, %226 : vector<24x32xf32>
    %c0_84 = arith.constant 0 : index
    %c0_85 = arith.constant 0 : index
    %c0_86 = arith.constant 0 : index
    %228 = vector.load %arg14[%c0_84, %c0_85, %c0_86] : memref<1x32x64xf32, #tpu.memory_space<vmem>>, vector<1x32x64xf32>
    %229 = vector.shape_cast %228 : vector<1x32x64xf32> to vector<32x64xf32>
    %cst_87 = arith.constant dense<0.000000e+00> : vector<24x64xf32>
    %230 = tpu.matmul %227, %229, %cst_87 {dimension_numbers = #tpu.dot_dimension_numbers<[1], [0], [0], [1], [0, 0, 1, 1], [], []>} : vector<24x32xf32>, vector<32x64xf32>, vector<24x64xf32> -> vector<24x64xf32>
    %c0_88 = arith.constant 0 : index
    %c0_89 = arith.constant 0 : index
    %c0_90 = arith.constant 0 : index
    %231 = vector.load %arg15[%c0_88, %c0_89, %c0_90] : memref<1x1x64xf32, #tpu.memory_space<vmem>>, vector<1x1x64xf32>
    %232 = vector.shape_cast %231 : vector<1x1x64xf32> to vector<1x64xf32>
    %233 = vector.broadcast %232 : vector<1x64xf32> to vector<24x64xf32>
    %234 = arith.addf %230, %233 : vector<24x64xf32>
    %235 = arith.mulf %234, %234 : vector<24x64xf32>
    %236 = arith.mulf %234, %235 : vector<24x64xf32>
    %cst_91 = arith.constant 4.471500e-02 : f32
    %237 = vector.broadcast %cst_91 : f32 to vector<24x64xf32>
    %238 = arith.mulf %237, %236 : vector<24x64xf32>
    %239 = arith.addf %234, %238 : vector<24x64xf32>
    %cst_92 = arith.constant 0.797884583 : f32
    %240 = vector.broadcast %cst_92 : f32 to vector<24x64xf32>
    %241 = arith.mulf %240, %239 : vector<24x64xf32>
    %242 = math.tanh %241 : vector<24x64xf32>
    %cst_93 = arith.constant 1.000000e+00 : f32
    %243 = vector.broadcast %cst_93 : f32 to vector<24x64xf32>
    %244 = arith.addf %243, %242 : vector<24x64xf32>
    %cst_94 = arith.constant 5.000000e-01 : f32
    %245 = vector.broadcast %cst_94 : f32 to vector<24x64xf32>
    %246 = arith.mulf %245, %244 : vector<24x64xf32>
    %247 = arith.mulf %234, %246 : vector<24x64xf32>
    %c0_95 = arith.constant 0 : index
    %c0_96 = arith.constant 0 : index
    %c0_97 = arith.constant 0 : index
    %248 = vector.load %arg16[%c0_95, %c0_96, %c0_97] : memref<1x64x32xf32, #tpu.memory_space<vmem>>, vector<1x64x32xf32>
    %249 = vector.shape_cast %248 : vector<1x64x32xf32> to vector<64x32xf32>
    %cst_98 = arith.constant dense<0.000000e+00> : vector<24x32xf32>
    %250 = tpu.matmul %247, %249, %cst_98 {dimension_numbers = #tpu.dot_dimension_numbers<[1], [0], [0], [1], [0, 0, 1, 1], [], []>} : vector<24x64xf32>, vector<64x32xf32>, vector<24x32xf32> -> vector<24x32xf32>
    %c0_99 = arith.constant 0 : index
    %c0_100 = arith.constant 0 : index
    %c0_101 = arith.constant 0 : index
    %251 = vector.load %arg17[%c0_99, %c0_100, %c0_101] : memref<1x1x32xf32, #tpu.memory_space<vmem>>, vector<1x1x32xf32>
    %252 = vector.shape_cast %251 : vector<1x1x32xf32> to vector<1x32xf32>
    %253 = vector.broadcast %252 : vector<1x32xf32> to vector<24x32xf32>
    %254 = arith.addf %250, %253 : vector<24x32xf32>
    %255 = arith.addf %227, %254 : vector<24x32xf32>
    %c0_102 = arith.constant 0 : index
    %c0_103 = arith.constant 0 : index
    %c0_104 = arith.constant 0 : index
    %256 = vector.load %arg18[%c0_102, %c0_103, %c0_104] : memref<1x1x32xf32, #tpu.memory_space<vmem>>, vector<1x1x32xf32>
    %257 = vector.shape_cast %256 : vector<1x1x32xf32> to vector<1x32xf32>
    %c0_105 = arith.constant 0 : index
    %c0_106 = arith.constant 0 : index
    %c0_107 = arith.constant 0 : index
    %258 = vector.load %arg19[%c0_105, %c0_106, %c0_107] : memref<1x1x32xf32, #tpu.memory_space<vmem>>, vector<1x1x32xf32>
    %259 = vector.shape_cast %258 : vector<1x1x32xf32> to vector<1x32xf32>
    %cst_108 = arith.constant dense<0.000000e+00> : vector<24xf32>
    %260 = vector.multi_reduction <add>, %255, %cst_108 [1] : vector<24x32xf32> to vector<24xf32>
    %261 = vector.shape_cast %260 : vector<24xf32> to vector<24x1xf32>
    %cst_109 = arith.constant 3.200000e+01 : f32
    %262 = vector.broadcast %cst_109 : f32 to vector<24x1xf32>
    %263 = arith.divf %261, %262 : vector<24x1xf32>
    %264 = vector.broadcast %263 : vector<24x1xf32> to vector<24x32xf32>
    %265 = arith.subf %255, %264 : vector<24x32xf32>
    %266 = arith.mulf %265, %265 : vector<24x32xf32>
    %cst_110 = arith.constant dense<0.000000e+00> : vector<24xf32>
    %267 = vector.multi_reduction <add>, %266, %cst_110 [1] : vector<24x32xf32> to vector<24xf32>
    %268 = vector.shape_cast %267 : vector<24xf32> to vector<24x1xf32>
    %cst_111 = arith.constant 3.200000e+01 : f32
    %269 = vector.broadcast %cst_111 : f32 to vector<24x1xf32>
    %270 = arith.divf %268, %269 : vector<24x1xf32>
    %271 = vector.broadcast %263 : vector<24x1xf32> to vector<24x32xf32>
    %272 = arith.subf %255, %271 : vector<24x32xf32>
    %cst_112 = arith.constant 9.99999996E-13 : f32
    %273 = vector.broadcast %cst_112 : f32 to vector<24x1xf32>
    %274 = arith.addf %270, %273 : vector<24x1xf32>
    %275 = math.rsqrt %274 : vector<24x1xf32>
    %276 = vector.broadcast %275 : vector<24x1xf32> to vector<24x32xf32>
    %277 = arith.mulf %272, %276 : vector<24x32xf32>
    %278 = vector.broadcast %257 : vector<1x32xf32> to vector<24x32xf32>
    %279 = arith.mulf %277, %278 : vector<24x32xf32>
    %280 = vector.broadcast %259 : vector<1x32xf32> to vector<24x32xf32>
    %281 = arith.addf %279, %280 : vector<24x32xf32>
    %282 = vector.shape_cast %281 : vector<24x32xf32> to vector<3x8x32xf32>
    %c0_113 = arith.constant 0 : index
    %c0_114 = arith.constant 0 : index
    %c0_115 = arith.constant 0 : index
    %283 = vector.load %arg20[%c0_113, %c0_114, %c0_115] : memref<3x8x32xf32, #tpu.memory_space<vmem>>, vector<3x8x32xf32>
    tpu.vector_store %arg20[%c0_113, %c0_114, %c0_115], %282 {strides = array<i32>} : memref<3x8x32xf32, #tpu.memory_space<vmem>>, vector<3x8x32xf32>,
    return
  }
  func.func @transform_0(%arg0: i32, %arg1: i32) -> (i32, i32, i32) {
    %c0_i32 = arith.constant 0 : i32
    %c0_i32_0 = arith.constant 0 : i32
    %c0_i32_1 = arith.constant 0 : i32
    return %arg0, %c0_i32, %c0_i32_0 : i32, i32, i32
  }
  func.func @transform_1(%arg0: i32, %arg1: i32) -> (i32, i32, i32) {
    %c0_i32 = arith.constant 0 : i32
    %c0_i32_0 = arith.constant 0 : i32
    %c0_i32_1 = arith.constant 0 : i32
    return %arg0, %c0_i32, %c0_i32_0 : i32, i32, i32
  }
  func.func @transform_2(%arg0: i32, %arg1: i32) -> (i32, i32, i32, i32) {
    %c0_i32 = arith.constant 0 : i32
    %c0_i32_0 = arith.constant 0 : i32
    %c0_i32_1 = arith.constant 0 : i32
    %c0_i32_2 = arith.constant 0 : i32
    return %arg1, %c0_i32, %c0_i32_0, %c0_i32_1 : i32, i32, i32, i32
  }
  func.func @transform_3(%arg0: i32, %arg1: i32) -> (i32, i32, i32, i32) {
    %c0_i32 = arith.constant 0 : i32
    %c0_i32_0 = arith.constant 0 : i32
    %c0_i32_1 = arith.constant 0 : i32
    %c0_i32_2 = arith.constant 0 : i32
    return %arg1, %c0_i32, %c0_i32_0, %c0_i32_1 : i32, i32, i32, i32
  }
  func.func @transform_4(%arg0: i32, %arg1: i32) -> (i32, i32, i32, i32) {
    %c0_i32 = arith.constant 0 : i32
    %c0_i32_0 = arith.constant 0 : i32
    %c0_i32_1 = arith.constant 0 : i32
    %c0_i32_2 = arith.constant 0 : i32
    return %arg1, %c0_i32, %c0_i32_0, %c0_i32_1 : i32, i32, i32, i32
  }
  func.func @transform_5(%arg0: i32, %arg1: i32) -> (i32, i32, i32, i32) {
    %c0_i32 = arith.constant 0 : i32
    %c0_i32_0 = arith.constant 0 : i32
    %c0_i32_1 = arith.constant 0 : i32
    %c0_i32_2 = arith.constant 0 : i32
    return %arg1, %c0_i32, %c0_i32_0, %c0_i32_1 : i32, i32, i32, i32
  }
  func.func @transform_6(%arg0: i32, %arg1: i32) -> (i32, i32, i32, i32) {
    %c0_i32 = arith.constant 0 : i32
    %c0_i32_0 = arith.constant 0 : i32
    %c0_i32_1 = arith.constant 0 : i32
    %c0_i32_2 = arith.constant 0 : i32
    return %arg1, %c0_i32, %c0_i32_0, %c0_i32_1 : i32, i32, i32, i32
  }
  func.func @transform_7(%arg0: i32, %arg1: i32) -> (i32, i32, i32, i32) {
    %c0_i32 = arith.constant 0 : i32
    %c0_i32_0 = arith.constant 0 : i32
    %c0_i32_1 = arith.constant 0 : i32
    %c0_i32_2 = arith.constant 0 : i32
    return %arg1, %c0_i32, %c0_i32_0, %c0_i32_1 : i32, i32, i32, i32
  }
  func.func @transform_8(%arg0: i32, %arg1: i32) -> (i32, i32, i32, i32) {
    %c0_i32 = arith.constant 0 : i32
    %c0_i32_0 = arith.constant 0 : i32
    %c0_i32_1 = arith.constant 0 : i32
    %c0_i32_2 = arith.constant 0 : i32
    return %arg1, %c0_i32, %c0_i32_0, %c0_i32_1 : i32, i32, i32, i32
  }
  func.func @transform_9(%arg0: i32, %arg1: i32) -> (i32, i32, i32) {
    %c0_i32 = arith.constant 0 : i32
    %c0_i32_0 = arith.constant 0 : i32
    %c0_i32_1 = arith.constant 0 : i32
    return %arg1, %c0_i32, %c0_i32_0 : i32, i32, i32
  }
  func.func @transform_10(%arg0: i32, %arg1: i32) -> (i32, i32, i32) {
    %c0_i32 = arith.constant 0 : i32
    %c0_i32_0 = arith.constant 0 : i32
    %c0_i32_1 = arith.constant 0 : i32
    return %arg1, %c0_i32, %c0_i32_0 : i32, i32, i32
  }
  func.func @transform_11(%arg0: i32, %arg1: i32) -> (i32, i32, i32) {
    %c0_i32 = arith.constant 0 : i32
    %c0_i32_0 = arith.constant 0 : i32
    %c0_i32_1 = arith.constant 0 : i32
    return %arg1, %c0_i32, %c0_i32_0 : i32, i32, i32
  }
  func.func @transform_12(%arg0: i32, %arg1: i32) -> (i32, i32, i32) {
    %c0_i32 = arith.constant 0 : i32
    %c0_i32_0 = arith.constant 0 : i32
    %c0_i32_1 = arith.constant 0 : i32
    return %arg1, %c0_i32, %c0_i32_0 : i32, i32, i32
  }
  func.func @transform_13(%arg0: i32, %arg1: i32) -> (i32, i32, i32) {
    %c0_i32 = arith.constant 0 : i32
    %c0_i32_0 = arith.constant 0 : i32
    %c0_i32_1 = arith.constant 0 : i32
    return %arg1, %c0_i32, %c0_i32_0 : i32, i32, i32
  }
  func.func @transform_14(%arg0: i32, %arg1: i32) -> (i32, i32, i32) {
    %c0_i32 = arith.constant 0 : i32
    %c0_i32_0 = arith.constant 0 : i32
    %c0_i32_1 = arith.constant 0 : i32
    return %arg1, %c0_i32, %c0_i32_0 : i32, i32, i32
  }
  func.func @transform_15(%arg0: i32, %arg1: i32) -> (i32, i32, i32) {
    %c0_i32 = arith.constant 0 : i32
    %c0_i32_0 = arith.constant 0 : i32
    %c0_i32_1 = arith.constant 0 : i32
    return %arg1, %c0_i32, %c0_i32_0 : i32, i32, i32
  }
  func.func @transform_16(%arg0: i32, %arg1: i32) -> (i32, i32, i32) {
    %c0_i32 = arith.constant 0 : i32
    %c0_i32_0 = arith.constant 0 : i32
    %c0_i32_1 = arith.constant 0 : i32
    return %arg1, %c0_i32, %c0_i32_0 : i32, i32, i32
  }
  func.func @transform_17(%arg0: i32, %arg1: i32) -> (i32, i32, i32) {
    %c0_i32 = arith.constant 0 : i32
    %c0_i32_0 = arith.constant 0 : i32
    %c0_i32_1 = arith.constant 0 : i32
    return %arg1, %c0_i32, %c0_i32_0 : i32, i32, i32
  }
  func.func @transform_18(%arg0: i32, %arg1: i32) -> (i32, i32, i32) {
    %c0_i32 = arith.constant 0 : i32
    %c0_i32_0 = arith.constant 0 : i32
    %c0_i32_1 = arith.constant 0 : i32
    return %arg0, %c0_i32, %c0_i32_0 : i32, i32, i32
  }
}

module attributes {stable_mosaic.version = 11 : i64} {
  func.func @head_kernel(%arg0: memref<2x32xf32, #tpu.memory_space<vmem>>, %arg1: memref<2x32xf32, #tpu.memory_space<vmem>>, %arg2: memref<2x32xf32, #tpu.memory_space<vmem>>, %arg3: memref<2x5xf32, #tpu.memory_space<vmem>>, %arg4: memref<5x32xf32, #tpu.memory_space<vmem>>, %arg5: memref<1x32xf32, #tpu.memory_space<vmem>>, %arg6: memref<32x32xf32, #tpu.memory_space<vmem>>, %arg7: memref<1x32xf32, #tpu.memory_space<vmem>>, %arg8: memref<32x32xf32, #tpu.memory_space<vmem>>, %arg9: memref<32x32xf32, #tpu.memory_space<vmem>>, %arg10: memref<32x32xf32, #tpu.memory_space<vmem>>, %arg11: memref<32x32xf32, #tpu.memory_space<vmem>>, %arg12: memref<32x32xf32, #tpu.memory_space<vmem>>, %arg13: memref<32x32xf32, #tpu.memory_space<vmem>>, %arg14: memref<1x32xf32, #tpu.memory_space<vmem>>, %arg15: memref<32x128xf32, #tpu.memory_space<vmem>>, %arg16: memref<1x128xf32, #tpu.memory_space<vmem>>, %arg17: memref<2x128xf32, #tpu.memory_space<vmem>>) attributes {dimension_semantics = [], scalar_prefetch = 0 : i64, scratch_operands = 0 : i64, tpu.core_type = #tpu.core_type<tc>} {
    %c0 = arith.constant 0 : index
    %c0_0 = arith.constant 0 : index
    %0 = vector.load %arg0[%c0, %c0_0] : memref<2x32xf32, #tpu.memory_space<vmem>>, vector<2x32xf32>
    %c0_1 = arith.constant 0 : index
    %c0_2 = arith.constant 0 : index
    %1 = vector.load %arg1[%c0_1, %c0_2] : memref<2x32xf32, #tpu.memory_space<vmem>>, vector<2x32xf32>
    %c0_3 = arith.constant 0 : index
    %c0_4 = arith.constant 0 : index
    %2 = vector.load %arg2[%c0_3, %c0_4] : memref<2x32xf32, #tpu.memory_space<vmem>>, vector<2x32xf32>
    %c0_5 = arith.constant 0 : index
    %c0_6 = arith.constant 0 : index
    %3 = vector.load %arg3[%c0_5, %c0_6] : memref<2x5xf32, #tpu.memory_space<vmem>>, vector<2x5xf32>
    %c0_7 = arith.constant 0 : index
    %c0_8 = arith.constant 0 : index
    %4 = vector.load %arg4[%c0_7, %c0_8] : memref<5x32xf32, #tpu.memory_space<vmem>>, vector<5x32xf32>
    %cst = arith.constant dense<0.000000e+00> : vector<2x32xf32>
    %5 = tpu.matmul %3, %4, %cst {dimension_numbers = #tpu.dot_dimension_numbers<[1], [0], [0], [1], [0, 0, 1, 1], [], []>} : vector<2x5xf32>, vector<5x32xf32>, vector<2x32xf32> -> vector<2x32xf32>
    %c0_9 = arith.constant 0 : index
    %c0_10 = arith.constant 0 : index
    %6 = vector.load %arg5[%c0_9, %c0_10] : memref<1x32xf32, #tpu.memory_space<vmem>>, vector<1x32xf32>
    %7 = vector.broadcast %6 : vector<1x32xf32> to vector<2x32xf32>
    %8 = arith.addf %5, %7 : vector<2x32xf32>
    %cst_11 = arith.constant 0.000000e+00 : f32
    %9 = vector.broadcast %cst_11 : f32 to vector<2x32xf32>
    %10 = arith.maximumf %8, %9 : vector<2x32xf32>
    %c0_12 = arith.constant 0 : index
    %c0_13 = arith.constant 0 : index
    %11 = vector.load %arg6[%c0_12, %c0_13] : memref<32x32xf32, #tpu.memory_space<vmem>>, vector<32x32xf32>
    %cst_14 = arith.constant dense<0.000000e+00> : vector<2x32xf32>
    %12 = tpu.matmul %10, %11, %cst_14 {dimension_numbers = #tpu.dot_dimension_numbers<[1], [0], [0], [1], [0, 0, 1, 1], [], []>} : vector<2x32xf32>, vector<32x32xf32>, vector<2x32xf32> -> vector<2x32xf32>
    %c0_15 = arith.constant 0 : index
    %c0_16 = arith.constant 0 : index
    %13 = vector.load %arg7[%c0_15, %c0_16] : memref<1x32xf32, #tpu.memory_space<vmem>>, vector<1x32xf32>
    %14 = vector.broadcast %13 : vector<1x32xf32> to vector<2x32xf32>
    %15 = arith.addf %12, %14 : vector<2x32xf32>
    %cst_17 = arith.constant 0.000000e+00 : f32
    %16 = vector.broadcast %cst_17 : f32 to vector<2x32xf32>
    %17 = arith.maximumf %15, %16 : vector<2x32xf32>
    %c0_18 = arith.constant 0 : index
    %c0_19 = arith.constant 0 : index
    %18 = vector.load %arg8[%c0_18, %c0_19] : memref<32x32xf32, #tpu.memory_space<vmem>>, vector<32x32xf32>
    %cst_20 = arith.constant dense<0.000000e+00> : vector<2x32xf32>
    %19 = tpu.matmul %0, %18, %cst_20 {dimension_numbers = #tpu.dot_dimension_numbers<[1], [0], [0], [1], [0, 0, 1, 1], [], []>} : vector<2x32xf32>, vector<32x32xf32>, vector<2x32xf32> -> vector<2x32xf32>
    %c0_21 = arith.constant 0 : index
    %c0_22 = arith.constant 0 : index
    %20 = vector.load %arg9[%c0_21, %c0_22] : memref<32x32xf32, #tpu.memory_space<vmem>>, vector<32x32xf32>
    %cst_23 = arith.constant dense<0.000000e+00> : vector<2x32xf32>
    %21 = tpu.matmul %1, %20, %cst_23 {dimension_numbers = #tpu.dot_dimension_numbers<[1], [0], [0], [1], [0, 0, 1, 1], [], []>} : vector<2x32xf32>, vector<32x32xf32>, vector<2x32xf32> -> vector<2x32xf32>
    %22 = arith.addf %19, %21 : vector<2x32xf32>
    %23 = arith.subf %0, %1 : vector<2x32xf32>
    %24 = math.absf %23 : vector<2x32xf32>
    %c0_24 = arith.constant 0 : index
    %c0_25 = arith.constant 0 : index
    %25 = vector.load %arg10[%c0_24, %c0_25] : memref<32x32xf32, #tpu.memory_space<vmem>>, vector<32x32xf32>
    %cst_26 = arith.constant dense<0.000000e+00> : vector<2x32xf32>
    %26 = tpu.matmul %24, %25, %cst_26 {dimension_numbers = #tpu.dot_dimension_numbers<[1], [0], [0], [1], [0, 0, 1, 1], [], []>} : vector<2x32xf32>, vector<32x32xf32>, vector<2x32xf32> -> vector<2x32xf32>
    %27 = arith.addf %22, %26 : vector<2x32xf32>
    %c0_27 = arith.constant 0 : index
    %c0_28 = arith.constant 0 : index
    %28 = vector.load %arg11[%c0_27, %c0_28] : memref<32x32xf32, #tpu.memory_space<vmem>>, vector<32x32xf32>
    %cst_29 = arith.constant dense<0.000000e+00> : vector<2x32xf32>
    %29 = tpu.matmul %2, %28, %cst_29 {dimension_numbers = #tpu.dot_dimension_numbers<[1], [0], [0], [1], [0, 0, 1, 1], [], []>} : vector<2x32xf32>, vector<32x32xf32>, vector<2x32xf32> -> vector<2x32xf32>
    %30 = arith.addf %27, %29 : vector<2x32xf32>
    %31 = arith.subf %0, %2 : vector<2x32xf32>
    %32 = math.absf %31 : vector<2x32xf32>
    %c0_30 = arith.constant 0 : index
    %c0_31 = arith.constant 0 : index
    %33 = vector.load %arg12[%c0_30, %c0_31] : memref<32x32xf32, #tpu.memory_space<vmem>>, vector<32x32xf32>
    %cst_32 = arith.constant dense<0.000000e+00> : vector<2x32xf32>
    %34 = tpu.matmul %32, %33, %cst_32 {dimension_numbers = #tpu.dot_dimension_numbers<[1], [0], [0], [1], [0, 0, 1, 1], [], []>} : vector<2x32xf32>, vector<32x32xf32>, vector<2x32xf32> -> vector<2x32xf32>
    %35 = arith.addf %30, %34 : vector<2x32xf32>
    %c0_33 = arith.constant 0 : index
    %c0_34 = arith.constant 0 : index
    %36 = vector.load %arg13[%c0_33, %c0_34] : memref<32x32xf32, #tpu.memory_space<vmem>>, vector<32x32xf32>
    %cst_35 = arith.constant dense<0.000000e+00> : vector<2x32xf32>
    %37 = tpu.matmul %17, %36, %cst_35 {dimension_numbers = #tpu.dot_dimension_numbers<[1], [0], [0], [1], [0, 0, 1, 1], [], []>} : vector<2x32xf32>, vector<32x32xf32>, vector<2x32xf32> -> vector<2x32xf32>
    %38 = arith.addf %35, %37 : vector<2x32xf32>
    %c0_36 = arith.constant 0 : index
    %c0_37 = arith.constant 0 : index
    %39 = vector.load %arg14[%c0_36, %c0_37] : memref<1x32xf32, #tpu.memory_space<vmem>>, vector<1x32xf32>
    %40 = vector.broadcast %39 : vector<1x32xf32> to vector<2x32xf32>
    %41 = arith.addf %38, %40 : vector<2x32xf32>
    %cst_38 = arith.constant 0.000000e+00 : f32
    %42 = vector.broadcast %cst_38 : f32 to vector<2x32xf32>
    %43 = arith.maximumf %41, %42 : vector<2x32xf32>
    %c0_39 = arith.constant 0 : index
    %c0_40 = arith.constant 0 : index
    %44 = vector.load %arg15[%c0_39, %c0_40] : memref<32x128xf32, #tpu.memory_space<vmem>>, vector<32x128xf32>
    %cst_41 = arith.constant dense<0.000000e+00> : vector<2x128xf32>
    %45 = tpu.matmul %43, %44, %cst_41 {dimension_numbers = #tpu.dot_dimension_numbers<[1], [0], [0], [1], [0, 0, 1, 1], [], []>} : vector<2x32xf32>, vector<32x128xf32>, vector<2x128xf32> -> vector<2x128xf32>
    %c0_42 = arith.constant 0 : index
    %c0_43 = arith.constant 0 : index
    %46 = vector.load %arg16[%c0_42, %c0_43] : memref<1x128xf32, #tpu.memory_space<vmem>>, vector<1x128xf32>
    %47 = vector.broadcast %46 : vector<1x128xf32> to vector<2x128xf32>
    %48 = arith.addf %45, %47 : vector<2x128xf32>
    %c0_44 = arith.constant 0 : index
    %c0_45 = arith.constant 0 : index
    %49 = vector.load %arg17[%c0_44, %c0_45] : memref<2x128xf32, #tpu.memory_space<vmem>>, vector<2x128xf32>
    tpu.vector_store %arg17[%c0_44, %c0_45], %48 {strides = array<i32>} : memref<2x128xf32, #tpu.memory_space<vmem>>, vector<2x128xf32>,
    return
  }
}

</mosaic_0001>

<llo_original>
// kernel: forward.3
$region0: #{forward.3}
  #allocation0 [shape = 'u32[]', space=smem, size = 0x4, offset = 0x4, fixed_abs, tag = 'smem constant byte address 0x4 - core index']
  #allocation1 [shape = 'u32[144,128]{1,0:T(1,128)}', space=vmem, size = 0x12000, scoped, tag = 'internal scratch']
  %s0 = inlined_call_operand.vmem [shape: f32[2,32], index: 0, kind: input, shape index: {}]
  %s1 = inlined_call_operand.vmem [shape: f32[2,32], index: 1, kind: input, shape index: {}]
  %s2 = inlined_call_operand.vmem [shape: f32[2,32], index: 2, kind: input, shape index: {}]
  %s3 = inlined_call_operand.vmem [shape: f32[2,5], index: 3, kind: input, shape index: {}]
  %s4 = inlined_call_operand.vmem [shape: f32[5,32], index: 4, kind: input, shape index: {}]
  %s5 = inlined_call_operand.vmem [shape: f32[1,32], index: 5, kind: input, shape index: {}]
  %s6 = inlined_call_operand.vmem [shape: f32[32,32], index: 6, kind: input, shape index: {}]
  %s7 = inlined_call_operand.vmem [shape: f32[1,32], index: 7, kind: input, shape index: {}]
  %s8 = inlined_call_operand.vmem [shape: f32[32,32], index: 8, kind: input, shape index: {}]
  %s9 = inlined_call_operand.vmem [shape: f32[32,32], index: 9, kind: input, shape index: {}]
  %s10 = inlined_call_operand.vmem [shape: f32[32,32], index: 10, kind: input, shape index: {}]
  %s11 = inlined_call_operand.vmem [shape: f32[32,32], index: 11, kind: input, shape index: {}]
  %s12 = inlined_call_operand.vmem [shape: f32[32,32], index: 12, kind: input, shape index: {}]
  %s13 = inlined_call_operand.vmem [shape: f32[32,32], index: 13, kind: input, shape index: {}]
  %s14 = inlined_call_operand.vmem [shape: f32[1,32], index: 14, kind: input, shape index: {}]
  %s15 = inlined_call_operand.vmem [shape: f32[32,128], index: 15, kind: input, shape index: {}]
  %s16 = inlined_call_operand.vmem [shape: f32[1,128], index: 16, kind: input, shape index: {}]
  %s17 = inlined_call_operand.hbm [shape: f32[2,128], index: 17, kind: output, shape index: {}]
  %s18 = sld [smem:[#allocation0]]
  $region78: #{forward.3} parent=0
    _
  %s20 = ssub.s32 1, %s18
  %s21 = scalar_select 0, %s20, %s18
  $region1: #{forward.3} parent=0
    #allocation2 [shape = 'u8[1024]{0}', space=vmem, size = 0x400, scoped, tag = 'output window, operand 0, single buffered']
    #allocation3 [shape = 's32[1]{0}', space=sflag, size = 0x4, scoped, tag = 'scoped memory for forward.3']
    %22 = vsyncpa [#allocation3], 0
    // Predicated region
    $region2: #{forward.3} parent=1 // pred_check
      _
    $region3: #{forward.3} parent=1 // pred_check_branch
      %24 = sbr.rel (0) target = $region5
    $region4: #{forward.3} parent=1 // pred_region
      _
    $region5: #{forward.3} parent=1 // pred_fallthru
      _
    // Predicated region
    $region6: #{forward.3} parent=1 // pred_check
      _
    $region7: #{forward.3} parent=1 // pred_check_branch
      %26 = sbr.rel (0) target = $region9
    $region8: #{forward.3} parent=1 // pred_region
      _
    $region9: #{forward.3} parent=1 // pred_fallthru
      _
    // Predicated region
    $region10: #{forward.3} parent=1 // pred_check
      _
    $region11: #{forward.3} parent=1 // pred_check_branch
      %28 = sbr.rel (0) target = $region13
    $region12: #{forward.3} parent=1 // pred_region
      _
    $region13: #{forward.3} parent=1 // pred_fallthru
      _
    // Predicated region
    $region14: #{forward.3} parent=1 // pred_check
      _
    $region15: #{forward.3} parent=1 // pred_check_branch
      %30 = sbr.rel (0) target = $region17
    $region16: #{forward.3} parent=1 // pred_region
      _
    $region17: #{forward.3} parent=1 // pred_fallthru
      _
    // Predicated region
    $region18: #{forward.3} parent=1 // pred_check
      _
    $region19: #{forward.3} parent=1 // pred_check_branch
      %32 = sbr.rel (0) target = $region21
    $region20: #{forward.3} parent=1 // pred_region
      _
    $region21: #{forward.3} parent=1 // pred_fallthru
      _
    // Predicated region
    $region22: #{forward.3} parent=1 // pred_check
      _
    $region23: #{forward.3} parent=1 // pred_check_branch
      %34 = sbr.rel (0) target = $region25
    $region24: #{forward.3} parent=1 // pred_region
      _
    $region25: #{forward.3} parent=1 // pred_fallthru
      _
    // Predicated region
    $region26: #{forward.3} parent=1 // pred_check
      _
    $region27: #{forward.3} parent=1 // pred_check_branch
      %36 = sbr.rel (0) target = $region29
    $region28: #{forward.3} parent=1 // pred_region
      _
    $region29: #{forward.3} parent=1 // pred_fallthru
      _
    // Predicated region
    $region30: #{forward.3} parent=1 // pred_check
      _
    $region31: #{forward.3} parent=1 // pred_check_branch
      %38 = sbr.rel (0) target = $region33
    $region32: #{forward.3} parent=1 // pred_region
      _
    $region33: #{forward.3} parent=1 // pred_fallthru
      _
    // Predicated region
    $region34: #{forward.3} parent=1 // pred_check
      _
    $region35: #{forward.3} parent=1 // pred_check_branch
      %40 = sbr.rel (0) target = $region37
    $region36: #{forward.3} parent=1 // pred_region
      _
    $region37: #{forward.3} parent=1 // pred_fallthru
      _
    // Predicated region
    $region38: #{forward.3} parent=1 // pred_check
      _
    $region39: #{forward.3} parent=1 // pred_check_branch
      %42 = sbr.rel (0) target = $region41
    $region40: #{forward.3} parent=1 // pred_region
      _
    $region41: #{forward.3} parent=1 // pred_fallthru
      _
    // Predicated region
    $region42: #{forward.3} parent=1 // pred_check
      _
    $region43: #{forward.3} parent=1 // pred_check_branch
      %44 = sbr.rel (0) target = $region45
    $region44: #{forward.3} parent=1 // pred_region
      _
    $region45: #{forward.3} parent=1 // pred_fallthru
      _
    // Predicated region
    $region46: #{forward.3} parent=1 // pred_check
      _
    $region47: #{forward.3} parent=1 // pred_check_branch
      %46 = sbr.rel (0) target = $region49
    $region48: #{forward.3} parent=1 // pred_region
      _
    $region49: #{forward.3} parent=1 // pred_fallthru
      _
    // Predicated region
    $region50: #{forward.3} parent=1 // pred_check
      _
    $region51: #{forward.3} parent=1 // pred_check_branch
      %48 = sbr.rel (0) target = $region53
    $region52: #{forward.3} parent=1 // pred_region
      _
    $region53: #{forward.3} parent=1 // pred_fallthru
      _
    // Predicated region
    $region54: #{forward.3} parent=1 // pred_check
      _
    $region55: #{forward.3} parent=1 // pred_check_branch
      %50 = sbr.rel (0) target = $region57
    $region56: #{forward.3} parent=1 // pred_region
      _
    $region57: #{forward.3} parent=1 // pred_fallthru
      _
    // Predicated region
    $region58: #{forward.3} parent=1 // pred_check
      _
    $region59: #{forward.3} parent=1 // pred_check_branch
      %52 = sbr.rel (0) target = $region61
    $region60: #{forward.3} parent=1 // pred_region
      _
    $region61: #{forward.3} parent=1 // pred_fallthru
      _
    // Predicated region
    $region62: #{forward.3} parent=1 // pred_check
      _
    $region63: #{forward.3} parent=1 // pred_check_branch
      %54 = sbr.rel (0) target = $region65
    $region64: #{forward.3} parent=1 // pred_region
      _
    $region65: #{forward.3} parent=1 // pred_fallthru
      _
    // Predicated region
    $region66: #{forward.3} parent=1 // pred_check
      _
    $region67: #{forward.3} parent=1 // pred_check_branch
      %56 = sbr.rel (0) target = $region69
    $region68: #{forward.3} parent=1 // pred_region
      _
    $region69: #{forward.3} parent=1 // pred_fallthru
      _
    %v57 = vld [vmem:[%s0] sm:$0x3]
    %v58 = vld [vmem:[%s1] sm:$0x3]
    %v59 = vld [vmem:[%s2] sm:$0x3]
    %v60 = vld [vmem:[%s3] sm:$0x3]
    %v61 = vld [vmem:[%s4] sm:$0x1f]
    %v62 = vld [vmem:[%s5] sm:$0x1]
    %v64 = vlaneseq
    %v65 = vshrl.u32 %v64, 7
    %v66 = vsub.s32 0, %v65
    %v67 = vrot.slane %v62, %v66
    %vm69 = vcmask 39936
    %v71 = vsel %vm69, %v60, 0
    %vm73 = vcmask 1044480
    %v75 = vsel %vm73, %v61, 0
    %77 = vmatprep.subr.mxu0 0.0
    %78 = vmatpush1.msra.mxu0 %v75
    %79 = vmatprep.subr.mxu0 0.0
    %80 = vmatpush1.msra.mxu0 0.0
    %81 = vmatprep.subr.mxu0 0.0
    %82 = vmatpush1.msra.mxu0 0.0
    %83 = vmatprep.subr.mxu0 0.0
    %84 = vmatpush1.msra.mxu0 0.0
    %85 = vmatprep.subr.mxu0 0.0
    %86 = vmatpush1.msra.mxu0 0.0
    %87 = vmatprep.subr.mxu0 0.0
    %88 = vmatpush1.msra.mxu0 0.0
    %89 = vmatprep.subr.mxu0 0.0
    %90 = vmatpush1.msra.mxu0 0.0
    %91 = vmatprep.subr.mxu0 0.0
    %92 = vmatpush1.msra.mxu0 0.0
    %93 = vmatprep.subr.mxu0 0.0
    %94 = vmatpush1.msra.mxu0 0.0
    %95 = vmatprep.subr.mxu0 0.0
    %96 = vmatpush1.msra.mxu0 0.0
    %97 = vmatprep.subr.mxu0 0.0
    %98 = vmatpush1.msra.mxu0 0.0
    %99 = vmatprep.subr.mxu0 0.0
    %100 = vmatpush1.msra.mxu0 0.0
    %101 = vmatprep.subr.mxu0 0.0
    %102 = vmatpush1.msra.mxu0 0.0
    %103 = vmatprep.subr.mxu0 0.0
    %104 = vmatpush1.msra.mxu0 0.0
    %105 = vmatprep.subr.mxu0 0.0
    %106 = vmatpush1.msra.mxu0 0.0
    %107 = vmatprep.subr.mxu0 0.0
    %108 = vmatpush1.msra.mxu0 0.0
    %109 = vmatprep.subr.mxu0 0.0
    %110 = vmatpush1.msra.mxu0 0.0
    %111 = vmatprep.subr.mxu0 0.0
    %112 = vmatpush1.msra.mxu0 0.0
    %113 = vmatprep.subr.mxu0 0.0
    %114 = vmatpush1.msra.mxu0 0.0
    %115 = vmatprep.subr.mxu0 0.0
    %116 = vmatpush1.msra.mxu0 0.0
    %117 = vmatprep.subr.mxu0 0.0
    %118 = vmatpush1.msra.mxu0 0.0
    %119 = vmatprep.subr.mxu0 0.0
    %120 = vmatpush1.msra.mxu0 0.0
    %121 = vmatprep.subr.mxu0 0.0
    %122 = vmatpush1.msra.mxu0 0.0
    %123 = vmatprep.subr.mxu0 0.0
    %124 = vmatpush1.msra.mxu0 0.0
    %125 = vmatprep.subr.mxu0 0.0
    %126 = vmatpush1.msra.mxu0 0.0
    %127 = vmatprep.subr.mxu0 0.0
    %128 = vmatpush1.msra.mxu0 0.0
    %129 = vmatprep.subr.mxu0 0.0
    %130 = vmatpush1.msra.mxu0 0.0
    %131 = vmatprep.subr.mxu0 0.0
    %132 = vmatpush1.msra.mxu0 0.0
    %133 = vmatprep.subr.mxu0 0.0
    %134 = vmatpush1.msra.mxu0 0.0
    %135 = vmatprep.subr.mxu0 0.0
    %136 = vmatpush1.msra.mxu0 0.0
    %137 = vmatprep.subr.mxu0 0.0
    %138 = vmatpush1.msra.mxu0 0.0
    %139 = vmatprep.subr.mxu0 0.0
    %140 = vmatpush1.msra.mxu0 0.0
    %141 = vmatprep.mubr.f32.mxu0 0.0
    %142 = vmatmul.mubr.f32.gmra.mrb[0].mxu0 %v71
    %v143 = vpop.f32.mrb[0].mxu0
    %v144 = vadd.f32 %v67, %v143
    %v145 = vpop.f32.mrb[0].mxu0
    %146 = vdwg.mxu0
    %v147 = vmax.f32 %v144, 0.0
    %v148 = vld [vmem:[%s6] sm:$0xff]
    %v149 = vld [vmem:[%s6 + $0x8] sm:$0xff]
    %v150 = vld [vmem:[%s6 + $0x10] sm:$0xff]
    %v151 = vld [vmem:[%s6 + $0x18] sm:$0xff]
    %v152 = vld [vmem:[%s7] sm:$0x1]
    %v154 = vlaneseq
    %v155 = vshrl.u32 %v154, 7
    %v156 = vsub.s32 0, %v155
    %v157 = vrot.slane %v152, %v156
    %vm159 = vcmask 261120
    %v161 = vsel %vm159, %v147, 0
    %163 = vmatprep.subr.mxu0 0.0
    %164 = vmatpush1.msra.mxu0 %v148
    %165 = vmatprep.subr.mxu0 0.0
    %166 = vmatpush1.msra.mxu0 %v149
    %167 = vmatprep.subr.mxu0 0.0
    %168 = vmatpush1.msra.mxu0 %v150
    %169 = vmatprep.subr.mxu0 0.0
    %170 = vmatpush1.msra.mxu0 %v151
    %171 = vmatprep.subr.mxu0 0.0
    %172 = vmatpush1.msra.mxu0 0.0
    %173 = vmatprep.subr.mxu0 0.0
    %174 = vmatpush1.msra.mxu0 0.0
    %175 = vmatprep.subr.mxu0 0.0
    %176 = vmatpush1.msra.mxu0 0.0
    %177 = vmatprep.subr.mxu0 0.0
    %178 = vmatpush1.msra.mxu0 0.0
    %179 = vmatprep.subr.mxu0 0.0
    %180 = vmatpush1.msra.mxu0 0.0
    %181 = vmatprep.subr.mxu0 0.0
    %182 = vmatpush1.msra.mxu0 0.0
    %183 = vmatprep.subr.mxu0 0.0
    %184 = vmatpush1.msra.mxu0 0.0
    %185 = vmatprep.subr.mxu0 0.0
    %186 = vmatpush1.msra.mxu0 0.0
    %187 = vmatprep.subr.mxu0 0.0
    %188 = vmatpush1.msra.mxu0 0.0
    %189 = vmatprep.subr.mxu0 0.0
    %190 = vmatpush1.msra.mxu0 0.0
    %191 = vmatprep.subr.mxu0 0.0
    %192 = vmatpush1.msra.mxu0 0.0
    %193 = vmatprep.subr.mxu0 0.0
    %194 = vmatpush1.msra.mxu0 0.0
    %195 = vmatprep.subr.mxu0 0.0
    %196 = vmatpush1.msra.mxu0 0.0
    %197 = vmatprep.subr.mxu0 0.0
    %198 = vmatpush1.msra.mxu0 0.0
    %199 = vmatprep.subr.mxu0 0.0
    %200 = vmatpush1.msra.mxu0 0.0
    %201 = vmatprep.subr.mxu0 0.0
    %202 = vmatpush1.msra.mxu0 0.0
    %203 = vmatprep.subr.mxu0 0.0
    %204 = vmatpush1.msra.mxu0 0.0
    %205 = vmatprep.subr.mxu0 0.0
    %206 = vmatpush1.msra.mxu0 0.0
    %207 = vmatprep.subr.mxu0 0.0
    %208 = vmatpush1.msra.mxu0 0.0
    %209 = vmatprep.subr.mxu0 0.0
    %210 = vmatpush1.msra.mxu0 0.0
    %211 = vmatprep.subr.mxu0 0.0
    %212 = vmatpush1.msra.mxu0 0.0
    %213 = vmatprep.subr.mxu0 0.0
    %214 = vmatpush1.msra.mxu0 0.0
    %215 = vmatprep.subr.mxu0 0.0
    %216 = vmatpush1.msra.mxu0 0.0
    %217 = vmatprep.subr.mxu0 0.0
    %218 = vmatpush1.msra.mxu0 0.0
    %219 = vmatprep.subr.mxu0 0.0
    %220 = vmatpush1.msra.mxu0 0.0
    %221 = vmatprep.subr.mxu0 0.0
    %222 = vmatpush1.msra.mxu0 0.0
    %223 = vmatprep.subr.mxu0 0.0
    %224 = vmatpush1.msra.mxu0 0.0
    %225 = vmatprep.subr.mxu0 0.0
    %226 = vmatpush1.msra.mxu0 0.0
    %227 = vmatprep.mubr.f32.mxu0 0.0
    %228 = vmatmul.mubr.f32.gmra.mrb[0].mxu0 %v161
    %v229 = vpop.f32.mrb[0].mxu0
    %v230 = vadd.f32 %v157, %v229
    %v231 = vpop.f32.mrb[0].mxu0
    %232 = vdwg.mxu0
    %v233 = vmax.f32 %v230, 0.0
    %v234 = vld [vmem:[%s8] sm:$0xff]
    %v235 = vld [vmem:[%s8 + $0x8] sm:$0xff]
    %v236 = vld [vmem:[%s8 + $0x10] sm:$0xff]
    %v237 = vld [vmem:[%s8 + $0x18] sm:$0xff]
    %v238 = vld [vmem:[%s9] sm:$0xff]
    %v239 = vld [vmem:[%s9 + $0x8] sm:$0xff]
    %v240 = vld [vmem:[%s9 + $0x10] sm:$0xff]
    %v241 = vld [vmem:[%s9 + $0x18] sm:$0xff]
    %v243 = vsel %vm159, %v58, 0
    %245 = vmatprep.subr.mxu0 0.0
    %246 = vmatpush1.msra.mxu0 %v238
    %247 = vmatprep.subr.mxu0 0.0
    %248 = vmatpush1.msra.mxu0 %v239
    %249 = vmatprep.subr.mxu0 0.0
    %250 = vmatpush1.msra.mxu0 %v240
    %251 = vmatprep.subr.mxu0 0.0
    %252 = vmatpush1.msra.mxu0 %v241
    %253 = vmatprep.subr.mxu0 0.0
    %254 = vmatpush1.msra.mxu0 0.0
    %255 = vmatprep.subr.mxu0 0.0
    %256 = vmatpush1.msra.mxu0 0.0
    %257 = vmatprep.subr.mxu0 0.0
    %258 = vmatpush1.msra.mxu0 0.0
    %259 = vmatprep.subr.mxu0 0.0
    %260 = vmatpush1.msra.mxu0 0.0
    %261 = vmatprep.subr.mxu0 0.0
    %262 = vmatpush1.msra.mxu0 0.0
    %263 = vmatprep.subr.mxu0 0.0
    %264 = vmatpush1.msra.mxu0 0.0
    %265 = vmatprep.subr.mxu0 0.0
    %266 = vmatpush1.msra.mxu0 0.0
    %267 = vmatprep.subr.mxu0 0.0
    %268 = vmatpush1.msra.mxu0 0.0
    %269 = vmatprep.subr.mxu0 0.0
    %270 = vmatpush1.msra.mxu0 0.0
    %271 = vmatprep.subr.mxu0 0.0
    %272 = vmatpush1.msra.mxu0 0.0
    %273 = vmatprep.subr.mxu0 0.0
    %274 = vmatpush1.msra.mxu0 0.0
    %275 = vmatprep.subr.mxu0 0.0
    %276 = vmatpush1.msra.mxu0 0.0
    %277 = vmatprep.subr.mxu0 0.0
    %278 = vmatpush1.msra.mxu0 0.0
    %279 = vmatprep.subr.mxu0 0.0
    %280 = vmatpush1.msra.mxu0 0.0
    %281 = vmatprep.subr.mxu0 0.0
    %282 = vmatpush1.msra.mxu0 0.0
    %283 = vmatprep.subr.mxu0 0.0
    %284 = vmatpush1.msra.mxu0 0.0
    %285 = vmatprep.subr.mxu0 0.0
    %286 = vmatpush1.msra.mxu0 0.0
    %287 = vmatprep.subr.mxu0 0.0
    %288 = vmatpush1.msra.mxu0 0.0
    %289 = vmatprep.subr.mxu0 0.0
    %290 = vmatpush1.msra.mxu0 0.0
    %291 = vmatprep.subr.mxu0 0.0
    %292 = vmatpush1.msra.mxu0 0.0
    %293 = vmatprep.subr.mxu0 0.0
    %294 = vmatpush1.msra.mxu0 0.0
    %295 = vmatprep.subr.mxu0 0.0
    %296 = vmatpush1.msra.mxu0 0.0
    %297 = vmatprep.subr.mxu0 0.0
    %298 = vmatpush1.msra.mxu0 0.0
    %299 = vmatprep.subr.mxu0 0.0
    %300 = vmatpush1.msra.mxu0 0.0
    %301 = vmatprep.subr.mxu0 0.0
    %302 = vmatpush1.msra.mxu0 0.0
    %303 = vmatprep.subr.mxu0 0.0
    %304 = vmatpush1.msra.mxu0 0.0
    %305 = vmatprep.subr.mxu0 0.0
    %306 = vmatpush1.msra.mxu0 0.0
    %307 = vmatprep.subr.mxu0 0.0
    %308 = vmatpush1.msra.mxu0 0.0
    %309 = vmatprep.mubr.f32.mxu0 0.0
    %310 = vmatmul.mubr.f32.gmra.mrb[0].mxu0 %v243
    %v311 = vpop.f32.mrb[0].mxu0
    %v312 = vadd.f32 0.0, %v311
    %v313 = vpop.f32.mrb[0].mxu0
    %314 = vdwg.mxu0
    %v316 = vsel %vm159, %v57, 0
    %318 = vmatprep.subr.mxu0 0.0
    %319 = vmatpush1.msra.mxu0 %v234
    %320 = vmatprep.subr.mxu0 0.0
    %321 = vmatpush1.msra.mxu0 %v235
    %322 = vmatprep.subr.mxu0 0.0
    %323 = vmatpush1.msra.mxu0 %v236
    %324 = vmatprep.subr.mxu0 0.0
    %325 = vmatpush1.msra.mxu0 %v237
    %326 = vmatprep.subr.mxu0 0.0
    %327 = vmatpush1.msra.mxu0 0.0
    %328 = vmatprep.subr.mxu0 0.0
    %329 = vmatpush1.msra.mxu0 0.0
    %330 = vmatprep.subr.mxu0 0.0
    %331 = vmatpush1.msra.mxu0 0.0
    %332 = vmatprep.subr.mxu0 0.0
    %333 = vmatpush1.msra.mxu0 0.0
    %334 = vmatprep.subr.mxu0 0.0
    %335 = vmatpush1.msra.mxu0 0.0
    %336 = vmatprep.subr.mxu0 0.0
    %337 = vmatpush1.msra.mxu0 0.0
    %338 = vmatprep.subr.mxu0 0.0
    %339 = vmatpush1.msra.mxu0 0.0
    %340 = vmatprep.subr.mxu0 0.0
    %341 = vmatpush1.msra.mxu0 0.0
    %342 = vmatprep.subr.mxu0 0.0
    %343 = vmatpush1.msra.mxu0 0.0
    %344 = vmatprep.subr.mxu0 0.0
    %345 = vmatpush1.msra.mxu0 0.0
    %346 = vmatprep.subr.mxu0 0.0
    %347 = vmatpush1.msra.mxu0 0.0
    %348 = vmatprep.subr.mxu0 0.0
    %349 = vmatpush1.msra.mxu0 0.0
    %350 = vmatprep.subr.mxu0 0.0
    %351 = vmatpush1.msra.mxu0 0.0
    %352 = vmatprep.subr.mxu0 0.0
    %353 = vmatpush1.msra.mxu0 0.0
    %354 = vmatprep.subr.mxu0 0.0
    %355 = vmatpush1.msra.mxu0 0.0
    %356 = vmatprep.subr.mxu0 0.0
    %357 = vmatpush1.msra.mxu0 0.0
    %358 = vmatprep.subr.mxu0 0.0
    %359 = vmatpush1.msra.mxu0 0.0
    %360 = vmatprep.subr.mxu0 0.0
    %361 = vmatpush1.msra.mxu0 0.0
    %362 = vmatprep.subr.mxu0 0.0
    %363 = vmatpush1.msra.mxu0 0.0
    %364 = vmatprep.subr.mxu0 0.0
    %365 = vmatpush1.msra.mxu0 0.0
    %366 = vmatprep.subr.mxu0 0.0
    %367 = vmatpush1.msra.mxu0 0.0
    %368 = vmatprep.subr.mxu0 0.0
    %369 = vmatpush1.msra.mxu0 0.0
    %370 = vmatprep.subr.mxu0 0.0
    %371 = vmatpush1.msra.mxu0 0.0
    %372 = vmatprep.subr.mxu0 0.0
    %373 = vmatpush1.msra.mxu0 0.0
    %374 = vmatprep.subr.mxu0 0.0
    %375 = vmatpush1.msra.mxu0 0.0
    %376 = vmatprep.subr.mxu0 0.0
    %377 = vmatpush1.msra.mxu0 0.0
    %378 = vmatprep.subr.mxu0 0.0
    %379 = vmatpush1.msra.mxu0 0.0
    %380 = vmatprep.subr.mxu0 0.0
    %381 = vmatpush1.msra.mxu0 0.0
    %382 = vmatprep.mubr.f32.mxu0 0.0
    %383 = vmatmul.mubr.f32.gmra.mrb[0].mxu0 %v316
    %v384 = vpop.f32.mrb[0].mxu0
    %v385 = vadd.f32 %v312, %v384
    %v386 = vpop.f32.mrb[0].mxu0
    %387 = vdwg.mxu0
    %v388 = vsub.f32 %v57, %v58
    %v389 = vand.u32 2147483647, %v388
    %v390 = vld [vmem:[%s10] sm:$0xff]
    %v391 = vld [vmem:[%s10 + $0x8] sm:$0xff]
    %v392 = vld [vmem:[%s10 + $0x10] sm:$0xff]
    %v393 = vld [vmem:[%s10 + $0x18] sm:$0xff]
    %v395 = vsel %vm159, %v389, 0
    %397 = vmatprep.subr.mxu0 0.0
    %398 = vmatpush1.msra.mxu0 %v390
    %399 = vmatprep.subr.mxu0 0.0
    %400 = vmatpush1.msra.mxu0 %v391
    %401 = vmatprep.subr.mxu0 0.0
    %402 = vmatpush1.msra.mxu0 %v392
    %403 = vmatprep.subr.mxu0 0.0
    %404 = vmatpush1.msra.mxu0 %v393
    %405 = vmatprep.subr.mxu0 0.0
    %406 = vmatpush1.msra.mxu0 0.0
    %407 = vmatprep.subr.mxu0 0.0
    %408 = vmatpush1.msra.mxu0 0.0
    %409 = vmatprep.subr.mxu0 0.0
    %410 = vmatpush1.msra.mxu0 0.0
    %411 = vmatprep.subr.mxu0 0.0
    %412 = vmatpush1.msra.mxu0 0.0
    %413 = vmatprep.subr.mxu0 0.0
    %414 = vmatpush1.msra.mxu0 0.0
    %415 = vmatprep.subr.mxu0 0.0
    %416 = vmatpush1.msra.mxu0 0.0
    %417 = vmatprep.subr.mxu0 0.0
    %418 = vmatpush1.msra.mxu0 0.0
    %419 = vmatprep.subr.mxu0 0.0
    %420 = vmatpush1.msra.mxu0 0.0
    %421 = vmatprep.subr.mxu0 0.0
    %422 = vmatpush1.msra.mxu0 0.0
    %423 = vmatprep.subr.mxu0 0.0
    %424 = vmatpush1.msra.mxu0 0.0
    %425 = vmatprep.subr.mxu0 0.0
    %426 = vmatpush1.msra.mxu0 0.0
    %427 = vmatprep.subr.mxu0 0.0
    %428 = vmatpush1.msra.mxu0 0.0
    %429 = vmatprep.subr.mxu0 0.0
    %430 = vmatpush1.msra.mxu0 0.0
    %431 = vmatprep.subr.mxu0 0.0
    %432 = vmatpush1.msra.mxu0 0.0
    %433 = vmatprep.subr.mxu0 0.0
    %434 = vmatpush1.msra.mxu0 0.0
    %435 = vmatprep.subr.mxu0 0.0
    %436 = vmatpush1.msra.mxu0 0.0
    %437 = vmatprep.subr.mxu0 0.0
    %438 = vmatpush1.msra.mxu0 0.0
    %439 = vmatprep.subr.mxu0 0.0
    %440 = vmatpush1.msra.mxu0 0.0
    %441 = vmatprep.subr.mxu0 0.0
    %442 = vmatpush1.msra.mxu0 0.0
    %443 = vmatprep.subr.mxu0 0.0
    %444 = vmatpush1.msra.mxu0 0.0
    %445 = vmatprep.subr.mxu0 0.0
    %446 = vmatpush1.msra.mxu0 0.0
    %447 = vmatprep.subr.mxu0 0.0
    %448 = vmatpush1.msra.mxu0 0.0
    %449 = vmatprep.subr.mxu0 0.0
    %450 = vmatpush1.msra.mxu0 0.0
    %451 = vmatprep.subr.mxu0 0.0
    %452 = vmatpush1.msra.mxu0 0.0
    %453 = vmatprep.subr.mxu0 0.0
    %454 = vmatpush1.msra.mxu0 0.0
    %455 = vmatprep.subr.mxu0 0.0
    %456 = vmatpush1.msra.mxu0 0.0
    %457 = vmatprep.subr.mxu0 0.0
    %458 = vmatpush1.msra.mxu0 0.0
    %459 = vmatprep.subr.mxu0 0.0
    %460 = vmatpush1.msra.mxu0 0.0
    %461 = vmatprep.mubr.f32.mxu0 0.0
    %462 = vmatmul.mubr.f32.gmra.mrb[0].mxu0 %v395
    %v463 = vpop.f32.mrb[0].mxu0
    %v464 = vadd.f32 0.0, %v463
    %v465 = vpop.f32.mrb[0].mxu0
    %466 = vdwg.mxu0
    %v467 = vadd.f32 %v385, %v464
    %v468 = vld [vmem:[%s11] sm:$0xff]
    %v469 = vld [vmem:[%s11 + $0x8] sm:$0xff]
    %v470 = vld [vmem:[%s11 + $0x10] sm:$0xff]
    %v471 = vld [vmem:[%s11 + $0x18] sm:$0xff]
    %v473 = vsel %vm159, %v59, 0
    %475 = vmatprep.subr.mxu0 0.0
    %476 = vmatpush1.msra.mxu0 %v468
    %477 = vmatprep.subr.mxu0 0.0
    %478 = vmatpush1.msra.mxu0 %v469
    %479 = vmatprep.subr.mxu0 0.0
    %480 = vmatpush1.msra.mxu0 %v470
    %481 = vmatprep.subr.mxu0 0.0
    %482 = vmatpush1.msra.mxu0 %v471
    %483 = vmatprep.subr.mxu0 0.0
    %484 = vmatpush1.msra.mxu0 0.0
    %485 = vmatprep.subr.mxu0 0.0
    %486 = vmatpush1.msra.mxu0 0.0
    %487 = vmatprep.subr.mxu0 0.0
    %488 = vmatpush1.msra.mxu0 0.0
    %489 = vmatprep.subr.mxu0 0.0
    %490 = vmatpush1.msra.mxu0 0.0
    %491 = vmatprep.subr.mxu0 0.0
    %492 = vmatpush1.msra.mxu0 0.0
    %493 = vmatprep.subr.mxu0 0.0
    %494 = vmatpush1.msra.mxu0 0.0
    %495 = vmatprep.subr.mxu0 0.0
    %496 = vmatpush1.msra.mxu0 0.0
    %497 = vmatprep.subr.mxu0 0.0
    %498 = vmatpush1.msra.mxu0 0.0
    %499 = vmatprep.subr.mxu0 0.0
    %500 = vmatpush1.msra.mxu0 0.0
    %501 = vmatprep.subr.mxu0 0.0
    %502 = vmatpush1.msra.mxu0 0.0
    %503 = vmatprep.subr.mxu0 0.0
    %504 = vmatpush1.msra.mxu0 0.0
    %505 = vmatprep.subr.mxu0 0.0
    %506 = vmatpush1.msra.mxu0 0.0
    %507 = vmatprep.subr.mxu0 0.0
    %508 = vmatpush1.msra.mxu0 0.0
    %509 = vmatprep.subr.mxu0 0.0
    %510 = vmatpush1.msra.mxu0 0.0
    %511 = vmatprep.subr.mxu0 0.0
    %512 = vmatpush1.msra.mxu0 0.0
    %513 = vmatprep.subr.mxu0 0.0
    %514 = vmatpush1.msra.mxu0 0.0
    %515 = vmatprep.subr.mxu0 0.0
    %516 = vmatpush1.msra.mxu0 0.0
    %517 = vmatprep.subr.mxu0 0.0
    %518 = vmatpush1.msra.mxu0 0.0
    %519 = vmatprep.subr.mxu0 0.0
    %520 = vmatpush1.msra.mxu0 0.0
    %521 = vmatprep.subr.mxu0 0.0
    %522 = vmatpush1.msra.mxu0 0.0
    %523 = vmatprep.subr.mxu0 0.0
    %524 = vmatpush1.msra.mxu0 0.0
    %525 = vmatprep.subr.mxu0 0.0
    %526 = vmatpush1.msra.mxu0 0.0
    %527 = vmatprep.subr.mxu0 0.0
    %528 = vmatpush1.msra.mxu0 0.0
    %529 = vmatprep.subr.mxu0 0.0
    %530 = vmatpush1.msra.mxu0 0.0
    %531 = vmatprep.subr.mxu0 0.0
    %532 = vmatpush1.msra.mxu0 0.0
    %533 = vmatprep.subr.mxu0 0.0
    %534 = vmatpush1.msra.mxu0 0.0
    %535 = vmatprep.subr.mxu0 0.0
    %536 = vmatpush1.msra.mxu0 0.0
    %537 = vmatprep.subr.mxu0 0.0
    %538 = vmatpush1.msra.mxu0 0.0
    %539 = vmatprep.mubr.f32.mxu0 0.0
    %540 = vmatmul.mubr.f32.gmra.mrb[0].mxu0 %v473
    %v541 = vpop.f32.mrb[0].mxu0
    %v542 = vadd.f32 0.0, %v541
    %v543 = vpop.f32.mrb[0].mxu0
    %544 = vdwg.mxu0
    %v545 = vadd.f32 %v467, %v542
    %v546 = vsub.f32 %v57, %v59
    %v547 = vand.u32 2147483647, %v546
    %v548 = vld [vmem:[%s12] sm:$0xff]
    %v549 = vld [vmem:[%s12 + $0x8] sm:$0xff]
    %v550 = vld [vmem:[%s12 + $0x10] sm:$0xff]
    %v551 = vld [vmem:[%s12 + $0x18] sm:$0xff]
    %v553 = vsel %vm159, %v547, 0
    %555 = vmatprep.subr.mxu0 0.0
    %556 = vmatpush1.msra.mxu0 %v548
    %557 = vmatprep.subr.mxu0 0.0
    %558 = vmatpush1.msra.mxu0 %v549
    %559 = vmatprep.subr.mxu0 0.0
    %560 = vmatpush1.msra.mxu0 %v550
    %561 = vmatprep.subr.mxu0 0.0
    %562 = vmatpush1.msra.mxu0 %v551
    %563 = vmatprep.subr.mxu0 0.0
    %564 = vmatpush1.msra.mxu0 0.0
    %565 = vmatprep.subr.mxu0 0.0
    %566 = vmatpush1.msra.mxu0 0.0
    %567 = vmatprep.subr.mxu0 0.0
    %568 = vmatpush1.msra.mxu0 0.0
    %569 = vmatprep.subr.mxu0 0.0
    %570 = vmatpush1.msra.mxu0 0.0
    %571 = vmatprep.subr.mxu0 0.0
    %572 = vmatpush1.msra.mxu0 0.0
    %573 = vmatprep.subr.mxu0 0.0
    %574 = vmatpush1.msra.mxu0 0.0
    %575 = vmatprep.subr.mxu0 0.0
    %576 = vmatpush1.msra.mxu0 0.0
    %577 = vmatprep.subr.mxu0 0.0
    %578 = vmatpush1.msra.mxu0 0.0
    %579 = vmatprep.subr.mxu0 0.0
    %580 = vmatpush1.msra.mxu0 0.0
    %581 = vmatprep.subr.mxu0 0.0
    %582 = vmatpush1.msra.mxu0 0.0
    %583 = vmatprep.subr.mxu0 0.0
    %584 = vmatpush1.msra.mxu0 0.0
    %585 = vmatprep.subr.mxu0 0.0
    %586 = vmatpush1.msra.mxu0 0.0
    %587 = vmatprep.subr.mxu0 0.0
    %588 = vmatpush1.msra.mxu0 0.0
    %589 = vmatprep.subr.mxu0 0.0
    %590 = vmatpush1.msra.mxu0 0.0
    %591 = vmatprep.subr.mxu0 0.0
    %592 = vmatpush1.msra.mxu0 0.0
    %593 = vmatprep.subr.mxu0 0.0
    %594 = vmatpush1.msra.mxu0 0.0
    %595 = vmatprep.subr.mxu0 0.0
    %596 = vmatpush1.msra.mxu0 0.0
    %597 = vmatprep.subr.mxu0 0.0
    %598 = vmatpush1.msra.mxu0 0.0
    %599 = vmatprep.subr.mxu0 0.0
    %600 = vmatpush1.msra.mxu0 0.0
    %601 = vmatprep.subr.mxu0 0.0
    %602 = vmatpush1.msra.mxu0 0.0
    %603 = vmatprep.subr.mxu0 0.0
    %604 = vmatpush1.msra.mxu0 0.0
    %605 = vmatprep.subr.mxu0 0.0
    %606 = vmatpush1.msra.mxu0 0.0
    %607 = vmatprep.subr.mxu0 0.0
    %608 = vmatpush1.msra.mxu0 0.0
    %609 = vmatprep.subr.mxu0 0.0
    %610 = vmatpush1.msra.mxu0 0.0
    %611 = vmatprep.subr.mxu0 0.0
    %612 = vmatpush1.msra.mxu0 0.0
    %613 = vmatprep.subr.mxu0 0.0
    %614 = vmatpush1.msra.mxu0 0.0
    %615 = vmatprep.subr.mxu0 0.0
    %616 = vmatpush1.msra.mxu0 0.0
    %617 = vmatprep.subr.mxu0 0.0
    %618 = vmatpush1.msra.mxu0 0.0
    %619 = vmatprep.mubr.f32.mxu0 0.0
    %620 = vmatmul.mubr.f32.gmra.mrb[0].mxu0 %v553
    %v621 = vpop.f32.mrb[0].mxu0
    %v622 = vadd.f32 0.0, %v621
    %v623 = vpop.f32.mrb[0].mxu0
    %624 = vdwg.mxu0
    %v625 = vadd.f32 %v545, %v622
    %v626 = vld [vmem:[%s13] sm:$0xff]
    %v627 = vld [vmem:[%s13 + $0x8] sm:$0xff]
    %v628 = vld [vmem:[%s13 + $0x10] sm:$0xff]
    %v629 = vld [vmem:[%s13 + $0x18] sm:$0xff]
    %v631 = vsel %vm159, %v233, 0
    %633 = vmatprep.subr.mxu0 0.0
    %634 = vmatpush1.msra.mxu0 %v626
    %635 = vmatprep.subr.mxu0 0.0
    %636 = vmatpush1.msra.mxu0 %v627
    %637 = vmatprep.subr.mxu0 0.0
    %638 = vmatpush1.msra.mxu0 %v628
    %639 = vmatprep.subr.mxu0 0.0
    %640 = vmatpush1.msra.mxu0 %v629
    %641 = vmatprep.subr.mxu0 0.0
    %642 = vmatpush1.msra.mxu0 0.0
    %643 = vmatprep.subr.mxu0 0.0
    %644 = vmatpush1.msra.mxu0 0.0
    %645 = vmatprep.subr.mxu0 0.0
    %646 = vmatpush1.msra.mxu0 0.0
    %647 = vmatprep.subr.mxu0 0.0
    %648 = vmatpush1.msra.mxu0 0.0
    %649 = vmatprep.subr.mxu0 0.0
    %650 = vmatpush1.msra.mxu0 0.0
    %651 = vmatprep.subr.mxu0 0.0
    %652 = vmatpush1.msra.mxu0 0.0
    %653 = vmatprep.subr.mxu0 0.0
    %654 = vmatpush1.msra.mxu0 0.0
    %655 = vmatprep.subr.mxu0 0.0
    %656 = vmatpush1.msra.mxu0 0.0
    %657 = vmatprep.subr.mxu0 0.0
    %658 = vmatpush1.msra.mxu0 0.0
    %659 = vmatprep.subr.mxu0 0.0
    %660 = vmatpush1.msra.mxu0 0.0
    %661 = vmatprep.subr.mxu0 0.0
    %662 = vmatpush1.msra.mxu0 0.0
    %663 = vmatprep.subr.mxu0 0.0
    %664 = vmatpush1.msra.mxu0 0.0
    %665 = vmatprep.subr.mxu0 0.0
    %666 = vmatpush1.msra.mxu0 0.0
    %667 = vmatprep.subr.mxu0 0.0
    %668 = vmatpush1.msra.mxu0 0.0
    %669 = vmatprep.subr.mxu0 0.0
    %670 = vmatpush1.msra.mxu0 0.0
    %671 = vmatprep.subr.mxu0 0.0
    %672 = vmatpush1.msra.mxu0 0.0
    %673 = vmatprep.subr.mxu0 0.0
    %674 = vmatpush1.msra.mxu0 0.0
    %675 = vmatprep.subr.mxu0 0.0
    %676 = vmatpush1.msra.mxu0 0.0
    %677 = vmatprep.subr.mxu0 0.0
    %678 = vmatpush1.msra.mxu0 0.0
    %679 = vmatprep.subr.mxu0 0.0
    %680 = vmatpush1.msra.mxu0 0.0
    %681 = vmatprep.subr.mxu0 0.0
    %682 = vmatpush1.msra.mxu0 0.0
    %683 = vmatprep.subr.mxu0 0.0
    %684 = vmatpush1.msra.mxu0 0.0
    %685 = vmatprep.subr.mxu0 0.0
    %686 = vmatpush1.msra.mxu0 0.0
    %687 = vmatprep.subr.mxu0 0.0
    %688 = vmatpush1.msra.mxu0 0.0
    %689 = vmatprep.subr.mxu0 0.0
    %690 = vmatpush1.msra.mxu0 0.0
    %691 = vmatprep.subr.mxu0 0.0
    %692 = vmatpush1.msra.mxu0 0.0
    %693 = vmatprep.subr.mxu0 0.0
    %694 = vmatpush1.msra.mxu0 0.0
    %695 = vmatprep.subr.mxu0 0.0
    %696 = vmatpush1.msra.mxu0 0.0
    %697 = vmatprep.mubr.f32.mxu0 0.0
    %698 = vmatmul.mubr.f32.gmra.mrb[0].mxu0 %v631
    %v699 = vpop.f32.mrb[0].mxu0
    %v700 = vadd.f32 0.0, %v699
    %v701 = vpop.f32.mrb[0].mxu0
    %702 = vdwg.mxu0
    %v703 = vadd.f32 %v625, %v700
    %v704 = vld [vmem:[%s14] sm:$0x1]
    %v706 = vlaneseq
    %v707 = vshrl.u32 %v706, 7
    %v708 = vsub.s32 0, %v707
    %v709 = vrot.slane %v704, %v708
    %v711 = vadd.f32 %v703, %v709
    %v712 = vmax.f32 %v711, 0.0
    %v713 = vld [vmem:[%s15] sm:$0xff]
    %v714 = vld [vmem:[%s15 + $0x8] sm:$0xff]
    %v715 = vld [vmem:[%s15 + $0x10] sm:$0xff]
    %v716 = vld [vmem:[%s15 + $0x18] sm:$0xff]
    %v717 = vld [vmem:[%s16] sm:$0x1]
    %v719 = vlaneseq
    %v720 = vshrl.u32 %v719, 7
    %v721 = vsub.s32 0, %v720
    %v722 = vrot.slane %v717, %v721
    %v725 = vsel %vm159, %v712, 0
    %727 = vmatprep.subr.mxu0 0.0
    %728 = vmatpush1.msra.mxu0 %v713
    %729 = vmatprep.subr.mxu0 0.0
    %730 = vmatpush1.msra.mxu0 %v714
    %731 = vmatprep.subr.mxu0 0.0
    %732 = vmatpush1.msra.mxu0 %v715
    %733 = vmatprep.subr.mxu0 0.0
    %734 = vmatpush1.msra.mxu0 %v716
    %735 = vmatprep.subr.mxu0 0.0
    %736 = vmatpush1.msra.mxu0 0.0
    %737 = vmatprep.subr.mxu0 0.0
    %738 = vmatpush1.msra.mxu0 0.0
    %739 = vmatprep.subr.mxu0 0.0
    %740 = vmatpush1.msra.mxu0 0.0
    %741 = vmatprep.subr.mxu0 0.0
    %742 = vmatpush1.msra.mxu0 0.0
    %743 = vmatprep.subr.mxu0 0.0
    %744 = vmatpush1.msra.mxu0 0.0
    %745 = vmatprep.subr.mxu0 0.0
    %746 = vmatpush1.msra.mxu0 0.0
    %747 = vmatprep.subr.mxu0 0.0
    %748 = vmatpush1.msra.mxu0 0.0
    %749 = vmatprep.subr.mxu0 0.0
    %750 = vmatpush1.msra.mxu0 0.0
    %751 = vmatprep.subr.mxu0 0.0
    %752 = vmatpush1.msra.mxu0 0.0
    %753 = vmatprep.subr.mxu0 0.0
    %754 = vmatpush1.msra.mxu0 0.0
    %755 = vmatprep.subr.mxu0 0.0
    %756 = vmatpush1.msra.mxu0 0.0
    %757 = vmatprep.subr.mxu0 0.0
    %758 = vmatpush1.msra.mxu0 0.0
    %759 = vmatprep.subr.mxu0 0.0
    %760 = vmatpush1.msra.mxu0 0.0
    %761 = vmatprep.subr.mxu0 0.0
    %762 = vmatpush1.msra.mxu0 0.0
    %763 = vmatprep.subr.mxu0 0.0
    %764 = vmatpush1.msra.mxu0 0.0
    %765 = vmatprep.subr.mxu0 0.0
    %766 = vmatpush1.msra.mxu0 0.0
    %767 = vmatprep.subr.mxu0 0.0
    %768 = vmatpush1.msra.mxu0 0.0
    %769 = vmatprep.subr.mxu0 0.0
    %770 = vmatpush1.msra.mxu0 0.0
    %771 = vmatprep.subr.mxu0 0.0
    %772 = vmatpush1.msra.mxu0 0.0
    %773 = vmatprep.subr.mxu0 0.0
    %774 = vmatpush1.msra.mxu0 0.0
    %775 = vmatprep.subr.mxu0 0.0
    %776 = vmatpush1.msra.mxu0 0.0
    %777 = vmatprep.subr.mxu0 0.0
    %778 = vmatpush1.msra.mxu0 0.0
    %779 = vmatprep.subr.mxu0 0.0
    %780 = vmatpush1.msra.mxu0 0.0
    %781 = vmatprep.subr.mxu0 0.0
    %782 = vmatpush1.msra.mxu0 0.0
    %783 = vmatprep.subr.mxu0 0.0
    %784 = vmatpush1.msra.mxu0 0.0
    %785 = vmatprep.subr.mxu0 0.0
    %786 = vmatpush1.msra.mxu0 0.0
    %787 = vmatprep.subr.mxu0 0.0
    %788 = vmatpush1.msra.mxu0 0.0
    %789 = vmatprep.subr.mxu0 0.0
    %790 = vmatpush1.msra.mxu0 0.0
    %791 = vmatprep.mubr.f32.mxu0 0.0
    %792 = vmatmul.mubr.f32.gmra.mrb[0].mxu0 %v725
    %v793 = vpop.f32.mrb[0].mxu0
    %v794 = vadd.f32 %v722, %v793
    %v795 = vpop.f32.mrb[0].mxu0
    %796 = vdwg.mxu0
    %797 = vst [vmem:[#allocation2] sm:$0x3] %v794
    // Predicated region
    $region70: #{forward.3} parent=1 // pred_check
      _
    $region71: #{forward.3} parent=1 // pred_check_branch
      %799 = sbr.rel (0) target = $region73
    $region72: #{forward.3} parent=1 // pred_region
      %s801 = ssub.s32 32, 32
      %802 = vsyncadd [#allocation3], %s801
      %s804 = sshll.u32 [#allocation2], 4
      %s805 = int_to_ptr.vmem [resolvable:$true] %s804
      %807 = dma.vmem_to_hbm [thread:$0]  %s805, 32, %s17, [#allocation3]
    $region73: #{forward.3} parent=1 // pred_fallthru
      _
    // Predicated region
    $region74: #{forward.3} parent=1 // pred_check
      _
    $region75: #{forward.3} parent=1 // pred_check_branch
      %809 = sbr.rel (0) target = $region77
    $region76: #{forward.3} parent=1 // pred_region
      %810 = dma.done [#allocation3], 32
    $region77: #{forward.3} parent=1 // pred_fallthru
      _
    %811 = vsyncpa [#allocation3], 1

// kernel: forward.2
$region0: #{forward.2}
  #allocation0 [shape = 'u32[]', space=smem, size = 0x4, offset = 0x4, fixed_abs, tag = 'smem constant byte address 0x4 - core index']
  #allocation1 [shape = 'u32[144,128]{1,0:T(1,128)}', space=vmem, size = 0x12000, scoped, tag = 'internal scratch']
  %s0 = inlined_call_operand.vmem [shape: f32[6,8,32], index: 0, kind: input, shape index: {}]
  %s1 = inlined_call_operand.vmem [shape: f32[6,1,8], index: 1, kind: input, shape index: {}]
  %s2 = inlined_call_operand.vmem [shape: f32[2,4,32,8], index: 2, kind: input, shape index: {}]
  %s3 = inlined_call_operand.vmem [shape: f32[2,4,1,8], index: 3, kind: input, shape index: {}]
  %s4 = inlined_call_operand.vmem [shape: f32[2,4,32,8], index: 4, kind: input, shape index: {}]
  %s5 = inlined_call_operand.vmem [shape: f32[2,4,1,8], index: 5, kind: input, shape index: {}]
  %s6 = inlined_call_operand.vmem [shape: f32[2,4,32,8], index: 6, kind: input, shape index: {}]
  %s7 = inlined_call_operand.vmem [shape: f32[2,4,1,8], index: 7, kind: input, shape index: {}]
  %s8 = inlined_call_operand.vmem [shape: f32[2,4,8,32], index: 8, kind: input, shape index: {}]
  %s9 = inlined_call_operand.vmem [shape: f32[2,1,32], index: 9, kind: input, shape index: {}]
  %s10 = inlined_call_operand.vmem [shape: f32[2,1,32], index: 10, kind: input, shape index: {}]
  %s11 = inlined_call_operand.vmem [shape: f32[2,1,32], index: 11, kind: input, shape index: {}]
  %s12 = inlined_call_operand.vmem [shape: f32[2,32,64], index: 12, kind: input, shape index: {}]
  %s13 = inlined_call_operand.vmem [shape: f32[2,1,64], index: 13, kind: input, shape index: {}]
  %s14 = inlined_call_operand.vmem [shape: f32[2,64,32], index: 14, kind: input, shape index: {}]
  %s15 = inlined_call_operand.vmem [shape: f32[2,1,32], index: 15, kind: input, shape index: {}]
  %s16 = inlined_call_operand.vmem [shape: f32[2,1,32], index: 16, kind: input, shape index: {}]
  %s17 = inlined_call_operand.vmem [shape: f32[2,1,32], index: 17, kind: input, shape index: {}]
  %s18 = inlined_call_operand.vmem [shape: f32[6,8,32], index: 18, kind: output, shape index: {}]
  %s19 = sld [smem:[#allocation0]]
  $region109: #{forward.2} parent=0
    _
  %s21 = ssub.s32 1, %s19
  %s22 = scalar_select 0, %s21, %s19
  loop: start=0, step=1, limit=6
  $region2: #{forward.2} parent=0 // loop_pre_header
    _
  $region3: #{forward.2} parent=0 // loop_header
    %s24 = sphi 0, %s28
    %p25 = scmp.ge.s32.totalorder %s24, 6
    %s31 = sphi 0, %s43
    %s32 = sphi 0, %s39
    %s33 = sphi 0, %s31
    %s34 = sphi 0, %s32
    %s35 = sphi 0, %s33
    %s36 = sphi 0, %s34
    %s46 = sphi 0, %s48
    %s49 = sphi 0, %s46
    %s50 = sphi 0, %s49
    %s66 = sphi 0, %s50
    %s72 = sphi 0, %s74
    %s75 = sphi 0, %s72
    %s76 = sphi 0, %s75
    %s92 = sphi 0, %s76
    %s98 = sphi 0, %s100
    %s101 = sphi 0, %s98
    %s102 = sphi 0, %s101
    %s118 = sphi 0, %s102
    %s124 = sphi 0, %s126
    %s127 = sphi 0, %s124
    %s128 = sphi 0, %s127
    %s144 = sphi 0, %s128
    %s150 = sphi 0, %s152
    %s153 = sphi 0, %s150
    %s154 = sphi 0, %s153
    %s170 = sphi 0, %s154
    %s176 = sphi 0, %s178
    %s179 = sphi 0, %s176
    %s180 = sphi 0, %s179
    %s196 = sphi 0, %s180
    %s202 = sphi 0, %s204
    %s205 = sphi 0, %s202
    %s206 = sphi 0, %s205
    %s222 = sphi 0, %s206
    %s228 = sphi 0, %s230
    %s231 = sphi 0, %s228
    %s232 = sphi 0, %s231
    %s248 = sphi 0, %s232
    %s254 = sphi 0, %s256
    %s257 = sphi 0, %s254
    %s258 = sphi 0, %s257
    %s274 = sphi 0, %s258
    %s280 = sphi 0, %s282
    %s283 = sphi 0, %s280
    %s284 = sphi 0, %s283
    %s300 = sphi 0, %s284
    %s306 = sphi 0, %s308
    %s309 = sphi 0, %s306
    %s310 = sphi 0, %s309
    %s326 = sphi 0, %s310
    %s332 = sphi 0, %s334
    %s335 = sphi 0, %s332
    %s336 = sphi 0, %s335
    %s352 = sphi 0, %s336
    %s358 = sphi 0, %s360
    %s361 = sphi 0, %s358
    %s362 = sphi 0, %s361
    %s378 = sphi 0, %s362
    %s384 = sphi 0, %s386
    %s387 = sphi 0, %s384
    %s388 = sphi 0, %s387
    %s404 = sphi 0, %s388
    %s410 = sphi 0, %s412
    %s413 = sphi 0, %s410
    %s414 = sphi 0, %s413
    %s430 = sphi 0, %s414
    %s436 = sphi 0, %s438
    %s439 = sphi 0, %s436
    %s440 = sphi 0, %s439
    %s456 = sphi 0, %s440
    %s462 = sphi 0, %s464
    %s465 = sphi 0, %s462
    %s466 = sphi 0, %s465
    %s482 = sphi 0, %s466
    %s488 = sphi 0, %s490
    %s491 = sphi 0, %s488
    %s492 = sphi 0, %s491
    %s508 = sphi 0, %s492
    %s514 = sphi 0, %s516
    %s517 = sphi 0, %s514
    %s518 = sphi 0, %s517
    %s534 = sphi 0, %s518
  $region4: #{forward.2} parent=0 // loop_header_branch
    %27 = sbr.rel (%p25) target = $region8
  $region5: #{forward.2} parent=0 // loop_body
    %s29 = ssub.s32 %s24, 1
    %s30 = ssub.s32 %s24, 2
    %s37 = sadd.s32 1, %s32
    %p38 = scmp.ge.s32.totalorder %s37, 2
    %s39 = scalar_select %p38, 0, %s37
    %s40 = sadd.s32 1, %s31
    %s41 = scalar_select %p38, %s40, %s31
    %p42 = scmp.ge.s32.totalorder %s41, 2
    %s43 = scalar_select %p42, 0, %s41
    %s44 = ssub.s32 %s31, %s43
    %p45 = scmp.eq.s32.totalorder %s44, 0
    %s47 = sadd.s32 %s46, 1
    %s48 = scalar_select %p45, %s46, %s47
    %p51 = pneg %p45
    %p52 = scmp.eq.s32.totalorder %s24, 3
    %p53 = por %p51, %p52
    %p54 = scmp.ne.s32.totalorder %s46, %s49
    %p55 = scmp.eq.s32.totalorder %s24, 0
    %p56 = por %p54, %p55
    %p57 = scmp.ne.s32.totalorder %s46, %s49
    %p58 = scmp.eq.s32.totalorder %s29, 3
    %p59 = por %p57, %p58
    %p60 = scmp.ne.s32.totalorder %s49, %s50
    %p61 = scmp.eq.s32.totalorder %s29, 0
    %p62 = por %p60, %p61
    %p63 = scmp.ne.s32.totalorder %s49, %s50
    %p64 = scmp.eq.s32.totalorder %s30, 3
    %p65 = por %p63, %p64
    %p67 = scmp.ne.s32.totalorder %s50, %s66
    %p68 = scmp.eq.s32.totalorder %s30, 0
    %p69 = por %p67, %p68
    %s70 = ssub.s32 %s31, %s43
    %p71 = scmp.eq.s32.totalorder %s70, 0
    %s73 = sadd.s32 %s72, 1
    %s74 = scalar_select %p71, %s72, %s73
    %p77 = pneg %p71
    %p78 = scmp.eq.s32.totalorder %s24, 3
    %p79 = por %p77, %p78
    %p80 = scmp.ne.s32.totalorder %s72, %s75
    %p81 = scmp.eq.s32.totalorder %s24, 0
    %p82 = por %p80, %p81
    %p83 = scmp.ne.s32.totalorder %s72, %s75
    %p84 = scmp.eq.s32.totalorder %s29, 3
    %p85 = por %p83, %p84
    %p86 = scmp.ne.s32.totalorder %s75, %s76
    %p87 = scmp.eq.s32.totalorder %s29, 0
    %p88 = por %p86, %p87
    %p89 = scmp.ne.s32.totalorder %s75, %s76
    %p90 = scmp.eq.s32.totalorder %s30, 3
    %p91 = por %p89, %p90
    %p93 = scmp.ne.s32.totalorder %s76, %s92
    %p94 = scmp.eq.s32.totalorder %s30, 0
    %p95 = por %p93, %p94
    %s96 = ssub.s32 %s32, %s39
    %p97 = scmp.eq.s32.totalorder %s96, 0
    %s99 = sadd.s32 %s98, 1
    %s100 = scalar_select %p97, %s98, %s99
    %p103 = pneg %p97
    %p104 = scmp.eq.s32.totalorder %s24, 3
    %p105 = por %p103, %p104
    %p106 = scmp.ne.s32.totalorder %s98, %s101
    %p107 = scmp.eq.s32.totalorder %s24, 0
    %p108 = por %p106, %p107
    %p109 = scmp.ne.s32.totalorder %s98, %s101
    %p110 = scmp.eq.s32.totalorder %s29, 3
    %p111 = por %p109, %p110
    %p112 = scmp.ne.s32.totalorder %s101, %s102
    %p113 = scmp.eq.s32.totalorder %s29, 0
    %p114 = por %p112, %p113
    %p115 = scmp.ne.s32.totalorder %s101, %s102
    %p116 = scmp.eq.s32.totalorder %s30, 3
    %p117 = por %p115, %p116
    %p119 = scmp.ne.s32.totalorder %s102, %s118
    %p120 = scmp.eq.s32.totalorder %s30, 0
    %p121 = por %p119, %p120
    %s122 = ssub.s32 %s32, %s39
    %p123 = scmp.eq.s32.totalorder %s122, 0
    %s125 = sadd.s32 %s124, 1
    %s126 = scalar_select %p123, %s124, %s125
    %p129 = pneg %p123
    %p130 = scmp.eq.s32.totalorder %s24, 3
    %p131 = por %p129, %p130
    %p132 = scmp.ne.s32.totalorder %s124, %s127
    %p133 = scmp.eq.s32.totalorder %s24, 0
    %p134 = por %p132, %p133
    %p135 = scmp.ne.s32.totalorder %s124, %s127
    %p136 = scmp.eq.s32.totalorder %s29, 3
    %p137 = por %p135, %p136
    %p138 = scmp.ne.s32.totalorder %s127, %s128
    %p139 = scmp.eq.s32.totalorder %s29, 0
    %p140 = por %p138, %p139
    %p141 = scmp.ne.s32.totalorder %s127, %s128
    %p142 = scmp.eq.s32.totalorder %s30, 3
    %p143 = por %p141, %p142
    %p145 = scmp.ne.s32.totalorder %s128, %s144
    %p146 = scmp.eq.s32.totalorder %s30, 0
    %p147 = por %p145, %p146
    %s148 = ssub.s32 %s32, %s39
    %p149 = scmp.eq.s32.totalorder %s148, 0
    %s151 = sadd.s32 %s150, 1
    %s152 = scalar_select %p149, %s150, %s151
    %p155 = pneg %p149
    %p156 = scmp.eq.s32.totalorder %s24, 3
    %p157 = por %p155, %p156
    %p158 = scmp.ne.s32.totalorder %s150, %s153
    %p159 = scmp.eq.s32.totalorder %s24, 0
    %p160 = por %p158, %p159
    %p161 = scmp.ne.s32.totalorder %s150, %s153
    %p162 = scmp.eq.s32.totalorder %s29, 3
    %p163 = por %p161, %p162
    %p164 = scmp.ne.s32.totalorder %s153, %s154
    %p165 = scmp.eq.s32.totalorder %s29, 0
    %p166 = por %p164, %p165
    %p167 = scmp.ne.s32.totalorder %s153, %s154
    %p168 = scmp.eq.s32.totalorder %s30, 3
    %p169 = por %p167, %p168
    %p171 = scmp.ne.s32.totalorder %s154, %s170
    %p172 = scmp.eq.s32.totalorder %s30, 0
    %p173 = por %p171, %p172
    %s174 = ssub.s32 %s32, %s39
    %p175 = scmp.eq.s32.totalorder %s174, 0
    %s177 = sadd.s32 %s176, 1
    %s178 = scalar_select %p175, %s176, %s177
    %p181 = pneg %p175
    %p182 = scmp.eq.s32.totalorder %s24, 3
    %p183 = por %p181, %p182
    %p184 = scmp.ne.s32.totalorder %s176, %s179
    %p185 = scmp.eq.s32.totalorder %s24, 0
    %p186 = por %p184, %p185
    %p187 = scmp.ne.s32.totalorder %s176, %s179
    %p188 = scmp.eq.s32.totalorder %s29, 3
    %p189 = por %p187, %p188
    %p190 = scmp.ne.s32.totalorder %s179, %s180
    %p191 = scmp.eq.s32.totalorder %s29, 0
    %p192 = por %p190, %p191
    %p193 = scmp.ne.s32.totalorder %s179, %s180
    %p194 = scmp.eq.s32.totalorder %s30, 3
    %p195 = por %p193, %p194
    %p197 = scmp.ne.s32.totalorder %s180, %s196
    %p198 = scmp.eq.s32.totalorder %s30, 0
    %p199 = por %p197, %p198
    %s200 = ssub.s32 %s32, %s39
    %p201 = scmp.eq.s32.totalorder %s200, 0
    %s203 = sadd.s32 %s202, 1
    %s204 = scalar_select %p201, %s202, %s203
    %p207 = pneg %p201
    %p208 = scmp.eq.s32.totalorder %s24, 3
    %p209 = por %p207, %p208
    %p210 = scmp.ne.s32.totalorder %s202, %s205
    %p211 = scmp.eq.s32.totalorder %s24, 0
    %p212 = por %p210, %p211
    %p213 = scmp.ne.s32.totalorder %s202, %s205
    %p214 = scmp.eq.s32.totalorder %s29, 3
    %p215 = por %p213, %p214
    %p216 = scmp.ne.s32.totalorder %s205, %s206
    %p217 = scmp.eq.s32.totalorder %s29, 0
    %p218 = por %p216, %p217
    %p219 = scmp.ne.s32.totalorder %s205, %s206
    %p220 = scmp.eq.s32.totalorder %s30, 3
    %p221 = por %p219, %p220
    %p223 = scmp.ne.s32.totalorder %s206, %s222
    %p224 = scmp.eq.s32.totalorder %s30, 0
    %p225 = por %p223, %p224
    %s226 = ssub.s32 %s32, %s39
    %p227 = scmp.eq.s32.totalorder %s226, 0
    %s229 = sadd.s32 %s228, 1
    %s230 = scalar_select %p227, %s228, %s229
    %p233 = pneg %p227
    %p234 = scmp.eq.s32.totalorder %s24, 3
    %p235 = por %p233, %p234
    %p236 = scmp.ne.s32.totalorder %s228, %s231
    %p237 = scmp.eq.s32.totalorder %s24, 0
    %p238 = por %p236, %p237
    %p239 = scmp.ne.s32.totalorder %s228, %s231
    %p240 = scmp.eq.s32.totalorder %s29, 3
    %p241 = por %p239, %p240
    %p242 = scmp.ne.s32.totalorder %s231, %s232
    %p243 = scmp.eq.s32.totalorder %s29, 0
    %p244 = por %p242, %p243
    %p245 = scmp.ne.s32.totalorder %s231, %s232
    %p246 = scmp.eq.s32.totalorder %s30, 3
    %p247 = por %p245, %p246
    %p249 = scmp.ne.s32.totalorder %s232, %s248
    %p250 = scmp.eq.s32.totalorder %s30, 0
    %p251 = por %p249, %p250
    %s252 = ssub.s32 %s32, %s39
    %p253 = scmp.eq.s32.totalorder %s252, 0
    %s255 = sadd.s32 %s254, 1
    %s256 = scalar_select %p253, %s254, %s255
    %p259 = pneg %p253
    %p260 = scmp.eq.s32.totalorder %s24, 3
    %p261 = por %p259, %p260
    %p262 = scmp.ne.s32.totalorder %s254, %s257
    %p263 = scmp.eq.s32.totalorder %s24, 0
    %p264 = por %p262, %p263
    %p265 = scmp.ne.s32.totalorder %s254, %s257
    %p266 = scmp.eq.s32.totalorder %s29, 3
    %p267 = por %p265, %p266
    %p268 = scmp.ne.s32.totalorder %s257, %s258
    %p269 = scmp.eq.s32.totalorder %s29, 0
    %p270 = por %p268, %p269
    %p271 = scmp.ne.s32.totalorder %s257, %s258
    %p272 = scmp.eq.s32.totalorder %s30, 3
    %p273 = por %p271, %p272
    %p275 = scmp.ne.s32.totalorder %s258, %s274
    %p276 = scmp.eq.s32.totalorder %s30, 0
    %p277 = por %p275, %p276
    %s278 = ssub.s32 %s32, %s39
    %p279 = scmp.eq.s32.totalorder %s278, 0
    %s281 = sadd.s32 %s280, 1
    %s282 = scalar_select %p279, %s280, %s281
    %p285 = pneg %p279
    %p286 = scmp.eq.s32.totalorder %s24, 3
    %p287 = por %p285, %p286
    %p288 = scmp.ne.s32.totalorder %s280, %s283
    %p289 = scmp.eq.s32.totalorder %s24, 0
    %p290 = por %p288, %p289
    %p291 = scmp.ne.s32.totalorder %s280, %s283
    %p292 = scmp.eq.s32.totalorder %s29, 3
    %p293 = por %p291, %p292
    %p294 = scmp.ne.s32.totalorder %s283, %s284
    %p295 = scmp.eq.s32.totalorder %s29, 0
    %p296 = por %p294, %p295
    %p297 = scmp.ne.s32.totalorder %s283, %s284
    %p298 = scmp.eq.s32.totalorder %s30, 3
    %p299 = por %p297, %p298
    %p301 = scmp.ne.s32.totalorder %s284, %s300
    %p302 = scmp.eq.s32.totalorder %s30, 0
    %p303 = por %p301, %p302
    %s304 = ssub.s32 %s32, %s39
    %p305 = scmp.eq.s32.totalorder %s304, 0
    %s307 = sadd.s32 %s306, 1
    %s308 = scalar_select %p305, %s306, %s307
    %p311 = pneg %p305
    %p312 = scmp.eq.s32.totalorder %s24, 3
    %p313 = por %p311, %p312
    %p314 = scmp.ne.s32.totalorder %s306, %s309
    %p315 = scmp.eq.s32.totalorder %s24, 0
    %p316 = por %p314, %p315
    %p317 = scmp.ne.s32.totalorder %s306, %s309
    %p318 = scmp.eq.s32.totalorder %s29, 3
    %p319 = por %p317, %p318
    %p320 = scmp.ne.s32.totalorder %s309, %s310
    %p321 = scmp.eq.s32.totalorder %s29, 0
    %p322 = por %p320, %p321
    %p323 = scmp.ne.s32.totalorder %s309, %s310
    %p324 = scmp.eq.s32.totalorder %s30, 3
    %p325 = por %p323, %p324
    %p327 = scmp.ne.s32.totalorder %s310, %s326
    %p328 = scmp.eq.s32.totalorder %s30, 0
    %p329 = por %p327, %p328
    %s330 = ssub.s32 %s32, %s39
    %p331 = scmp.eq.s32.totalorder %s330, 0
    %s333 = sadd.s32 %s332, 1
    %s334 = scalar_select %p331, %s332, %s333
    %p337 = pneg %p331
    %p338 = scmp.eq.s32.totalorder %s24, 3
    %p339 = por %p337, %p338
    %p340 = scmp.ne.s32.totalorder %s332, %s335
    %p341 = scmp.eq.s32.totalorder %s24, 0
    %p342 = por %p340, %p341
    %p343 = scmp.ne.s32.totalorder %s332, %s335
    %p344 = scmp.eq.s32.totalorder %s29, 3
    %p345 = por %p343, %p344
    %p346 = scmp.ne.s32.totalorder %s335, %s336
    %p347 = scmp.eq.s32.totalorder %s29, 0
    %p348 = por %p346, %p347
    %p349 = scmp.ne.s32.totalorder %s335, %s336
    %p350 = scmp.eq.s32.totalorder %s30, 3
    %p351 = por %p349, %p350
    %p353 = scmp.ne.s32.totalorder %s336, %s352
    %p354 = scmp.eq.s32.totalorder %s30, 0
    %p355 = por %p353, %p354
    %s356 = ssub.s32 %s32, %s39
    %p357 = scmp.eq.s32.totalorder %s356, 0
    %s359 = sadd.s32 %s358, 1
    %s360 = scalar_select %p357, %s358, %s359
    %p363 = pneg %p357
    %p364 = scmp.eq.s32.totalorder %s24, 3
    %p365 = por %p363, %p364
    %p366 = scmp.ne.s32.totalorder %s358, %s361
    %p367 = scmp.eq.s32.totalorder %s24, 0
    %p368 = por %p366, %p367
    %p369 = scmp.ne.s32.totalorder %s358, %s361
    %p370 = scmp.eq.s32.totalorder %s29, 3
    %p371 = por %p369, %p370
    %p372 = scmp.ne.s32.totalorder %s361, %s362
    %p373 = scmp.eq.s32.totalorder %s29, 0
    %p374 = por %p372, %p373
    %p375 = scmp.ne.s32.totalorder %s361, %s362
    %p376 = scmp.eq.s32.totalorder %s30, 3
    %p377 = por %p375, %p376
    %p379 = scmp.ne.s32.totalorder %s362, %s378
    %p380 = scmp.eq.s32.totalorder %s30, 0
    %p381 = por %p379, %p380
    %s382 = ssub.s32 %s32, %s39
    %p383 = scmp.eq.s32.totalorder %s382, 0
    %s385 = sadd.s32 %s384, 1
    %s386 = scalar_select %p383, %s384, %s385
    %p389 = pneg %p383
    %p390 = scmp.eq.s32.totalorder %s24, 3
    %p391 = por %p389, %p390
    %p392 = scmp.ne.s32.totalorder %s384, %s387
    %p393 = scmp.eq.s32.totalorder %s24, 0
    %p394 = por %p392, %p393
    %p395 = scmp.ne.s32.totalorder %s384, %s387
    %p396 = scmp.eq.s32.totalorder %s29, 3
    %p397 = por %p395, %p396
    %p398 = scmp.ne.s32.totalorder %s387, %s388
    %p399 = scmp.eq.s32.totalorder %s29, 0
    %p400 = por %p398, %p399
    %p401 = scmp.ne.s32.totalorder %s387, %s388
    %p402 = scmp.eq.s32.totalorder %s30, 3
    %p403 = por %p401, %p402
    %p405 = scmp.ne.s32.totalorder %s388, %s404
    %p406 = scmp.eq.s32.totalorder %s30, 0
    %p407 = por %p405, %p406
    %s408 = ssub.s32 %s32, %s39
    %p409 = scmp.eq.s32.totalorder %s408, 0
    %s411 = sadd.s32 %s410, 1
    %s412 = scalar_select %p409, %s410, %s411
    %p415 = pneg %p409
    %p416 = scmp.eq.s32.totalorder %s24, 3
    %p417 = por %p415, %p416
    %p418 = scmp.ne.s32.totalorder %s410, %s413
    %p419 = scmp.eq.s32.totalorder %s24, 0
    %p420 = por %p418, %p419
    %p421 = scmp.ne.s32.totalorder %s410, %s413
    %p422 = scmp.eq.s32.totalorder %s29, 3
    %p423 = por %p421, %p422
    %p424 = scmp.ne.s32.totalorder %s413, %s414
    %p425 = scmp.eq.s32.totalorder %s29, 0
    %p426 = por %p424, %p425
    %p427 = scmp.ne.s32.totalorder %s413, %s414
    %p428 = scmp.eq.s32.totalorder %s30, 3
    %p429 = por %p427, %p428
    %p431 = scmp.ne.s32.totalorder %s414, %s430
    %p432 = scmp.eq.s32.totalorder %s30, 0
    %p433 = por %p431, %p432
    %s434 = ssub.s32 %s32, %s39
    %p435 = scmp.eq.s32.totalorder %s434, 0
    %s437 = sadd.s32 %s436, 1
    %s438 = scalar_select %p435, %s436, %s437
    %p441 = pneg %p435
    %p442 = scmp.eq.s32.totalorder %s24, 3
    %p443 = por %p441, %p442
    %p444 = scmp.ne.s32.totalorder %s436, %s439
    %p445 = scmp.eq.s32.totalorder %s24, 0
    %p446 = por %p444, %p445
    %p447 = scmp.ne.s32.totalorder %s436, %s439
    %p448 = scmp.eq.s32.totalorder %s29, 3
    %p449 = por %p447, %p448
    %p450 = scmp.ne.s32.totalorder %s439, %s440
    %p451 = scmp.eq.s32.totalorder %s29, 0
    %p452 = por %p450, %p451
    %p453 = scmp.ne.s32.totalorder %s439, %s440
    %p454 = scmp.eq.s32.totalorder %s30, 3
    %p455 = por %p453, %p454
    %p457 = scmp.ne.s32.totalorder %s440, %s456
    %p458 = scmp.eq.s32.totalorder %s30, 0
    %p459 = por %p457, %p458
    %s460 = ssub.s32 %s32, %s39
    %p461 = scmp.eq.s32.totalorder %s460, 0
    %s463 = sadd.s32 %s462, 1
    %s464 = scalar_select %p461, %s462, %s463
    %p467 = pneg %p461
    %p468 = scmp.eq.s32.totalorder %s24, 3
    %p469 = por %p467, %p468
    %p470 = scmp.ne.s32.totalorder %s462, %s465
    %p471 = scmp.eq.s32.totalorder %s24, 0
    %p472 = por %p470, %p471
    %p473 = scmp.ne.s32.totalorder %s462, %s465
    %p474 = scmp.eq.s32.totalorder %s29, 3
    %p475 = por %p473, %p474
    %p476 = scmp.ne.s32.totalorder %s465, %s466
    %p477 = scmp.eq.s32.totalorder %s29, 0
    %p478 = por %p476, %p477
    %p479 = scmp.ne.s32.totalorder %s465, %s466
    %p480 = scmp.eq.s32.totalorder %s30, 3
    %p481 = por %p479, %p480
    %p483 = scmp.ne.s32.totalorder %s466, %s482
    %p484 = scmp.eq.s32.totalorder %s30, 0
    %p485 = por %p483, %p484
    %s486 = ssub.s32 %s32, %s39
    %p487 = scmp.eq.s32.totalorder %s486, 0
    %s489 = sadd.s32 %s488, 1
    %s490 = scalar_select %p487, %s488, %s489
    %p493 = pneg %p487
    %p494 = scmp.eq.s32.totalorder %s24, 3
    %p495 = por %p493, %p494
    %p496 = scmp.ne.s32.totalorder %s488, %s491
    %p497 = scmp.eq.s32.totalorder %s24, 0
    %p498 = por %p496, %p497
    %p499 = scmp.ne.s32.totalorder %s488, %s491
    %p500 = scmp.eq.s32.totalorder %s29, 3
    %p501 = por %p499, %p500
    %p502 = scmp.ne.s32.totalorder %s491, %s492
    %p503 = scmp.eq.s32.totalorder %s29, 0
    %p504 = por %p502, %p503
    %p505 = scmp.ne.s32.totalorder %s491, %s492
    %p506 = scmp.eq.s32.totalorder %s30, 3
    %p507 = por %p505, %p506
    %p509 = scmp.ne.s32.totalorder %s492, %s508
    %p510 = scmp.eq.s32.totalorder %s30, 0
    %p511 = por %p509, %p510
    %s512 = ssub.s32 %s31, %s43
    %p513 = scmp.eq.s32.totalorder %s512, 0
    %s515 = sadd.s32 %s514, 1
    %s516 = scalar_select %p513, %s514, %s515
    %p519 = pneg %p513
    %p520 = scmp.eq.s32.totalorder %s24, 3
    %p521 = por %p519, %p520
    %p522 = scmp.ne.s32.totalorder %s514, %s517
    %p523 = scmp.eq.s32.totalorder %s24, 0
    %p524 = por %p522, %p523
    %p525 = scmp.ne.s32.totalorder %s514, %s517
    %p526 = scmp.eq.s32.totalorder %s29, 3
    %p527 = por %p525, %p526
    %p528 = scmp.ne.s32.totalorder %s517, %s518
    %p529 = scmp.eq.s32.totalorder %s29, 0
    %p530 = por %p528, %p529
    %p531 = scmp.ne.s32.totalorder %s517, %s518
    %p532 = scmp.eq.s32.totalorder %s30, 3
    %p533 = por %p531, %p532
    %p535 = scmp.ne.s32.totalorder %s518, %s534
    %p536 = scmp.eq.s32.totalorder %s30, 0
    %p537 = por %p535, %p536
    %p538 = scmp.le.s32.totalorder 1, %s24
    %p539 = scmp.lt.s32.totalorder %s24, 5
    %p540 = pnand %p538, %p539
    %p541 = pneg %p540
    // Predicated region
    $region9: #{forward.2} parent=5 // pred_check
      _
    $region10: #{forward.2} parent=5 // pred_check_branch
      %543 = sbr.rel (%p540) target = $region12
    $region11: #{forward.2} parent=5 // pred_region
      %s544 = ssub.s32 %s24, 1
    $region12: #{forward.2} parent=5 // pred_fallthru
      _
    %p545 = scmp.lt.s32.totalorder %s24, 4
    // Predicated region
    $region13: #{forward.2} parent=5 // pred_check
      %p546 = pneg %p545
    $region14: #{forward.2} parent=5 // pred_check_branch
      %548 = sbr.rel (%p546) target = $region16
    $region15: #{forward.2} parent=5 // pred_region
      // Predicated region
      $region17: #{forward.2} parent=15 // pred_check
        %p549 = pneg %p56
      $region18: #{forward.2} parent=15 // pred_check_branch
        %551 = sbr.rel (%p549) target = $region20
      $region19: #{forward.2} parent=15 // pred_region
        %s552 = smul.u32 3, %s31
        %p553 = scmp.lt.s32.totalorder %s552, 5
        %s554 = scalar_select %p553, %s552, 5
        %s555 = smul.addr %s554, 8
        %s556 = scalar_lea.vmem %s0, %s555
        %s557 = smul.u32 3, %s31
      $region20: #{forward.2} parent=15 // pred_fallthru
        _
      // Predicated region
      $region21: #{forward.2} parent=15 // pred_check
        %p558 = pneg %p82
      $region22: #{forward.2} parent=15 // pred_check_branch
        %560 = sbr.rel (%p558) target = $region24
      $region23: #{forward.2} parent=15 // pred_region
        %s561 = smul.u32 3, %s31
        %p562 = scmp.lt.s32.totalorder %s561, 5
        %s563 = scalar_select %p562, %s561, 5
        %s564 = scalar_lea.vmem %s1, %s563
        %s565 = smul.u32 3, %s31
      $region24: #{forward.2} parent=15 // pred_fallthru
        _
      // Predicated region
      $region25: #{forward.2} parent=15 // pred_check
        %p566 = pneg %p108
      $region26: #{forward.2} parent=15 // pred_check_branch
        %568 = sbr.rel (%p566) target = $region28
      $region27: #{forward.2} parent=15 // pred_region
        %p569 = scmp.lt.s32.totalorder %s32, 1
        %s570 = scalar_select %p569, %s32, 1
        %s571 = smul.addr %s570, 16
        %s572 = smul.addr %s571, 8
        %s573 = scalar_lea.vmem %s2, %s572
      $region28: #{forward.2} parent=15 // pred_fallthru
        _
      // Predicated region
      $region29: #{forward.2} parent=15 // pred_check
        %p574 = pneg %p134
      $region30: #{forward.2} parent=15 // pred_check_branch
        %576 = sbr.rel (%p574) target = $region32
      $region31: #{forward.2} parent=15 // pred_region
        %p577 = scmp.lt.s32.totalorder %s32, 1
        %s578 = scalar_select %p577, %s32, 1
        %s579 = smul.addr %s578, 4
        %s580 = scalar_lea.vmem %s3, %s579
      $region32: #{forward.2} parent=15 // pred_fallthru
        _
      // Predicated region
      $region33: #{forward.2} parent=15 // pred_check
        %p581 = pneg %p160
      $region34: #{forward.2} parent=15 // pred_check_branch
        %583 = sbr.rel (%p581) target = $region36
      $region35: #{forward.2} parent=15 // pred_region
        %p584 = scmp.lt.s32.totalorder %s32, 1
        %s585 = scalar_select %p584, %s32, 1
        %s586 = smul.addr %s585, 16
        %s587 = smul.addr %s586, 8
        %s588 = scalar_lea.vmem %s4, %s587
      $region36: #{forward.2} parent=15 // pred_fallthru
        _
      // Predicated region
      $region37: #{forward.2} parent=15 // pred_check
        %p589 = pneg %p186
      $region38: #{forward.2} parent=15 // pred_check_branch
        %591 = sbr.rel (%p589) target = $region40
      $region39: #{forward.2} parent=15 // pred_region
        %p592 = scmp.lt.s32.totalorder %s32, 1
        %s593 = scalar_select %p592, %s32, 1
        %s594 = smul.addr %s593, 4
        %s595 = scalar_lea.vmem %s5, %s594
      $region40: #{forward.2} parent=15 // pred_fallthru
        _
      // Predicated region
      $region41: #{forward.2} parent=15 // pred_check
        %p596 = pneg %p212
      $region42: #{forward.2} parent=15 // pred_check_branch
        %598 = sbr.rel (%p596) target = $region44
      $region43: #{forward.2} parent=15 // pred_region
        %p599 = scmp.lt.s32.totalorder %s32, 1
        %s600 = scalar_select %p599, %s32, 1
        %s601 = smul.addr %s600, 16
        %s602 = smul.addr %s601, 8
        %s603 = scalar_lea.vmem %s6, %s602
      $region44: #{forward.2} parent=15 // pred_fallthru
        _
      // Predicated region
      $region45: #{forward.2} parent=15 // pred_check
        %p604 = pneg %p238
      $region46: #{forward.2} parent=15 // pred_check_branch
        %606 = sbr.rel (%p604) target = $region48
      $region47: #{forward.2} parent=15 // pred_region
        %p607 = scmp.lt.s32.totalorder %s32, 1
        %s608 = scalar_select %p607, %s32, 1
        %s609 = smul.addr %s608, 4
        %s610 = scalar_lea.vmem %s7, %s609
      $region48: #{forward.2} parent=15 // pred_fallthru
        _
      // Predicated region
      $region49: #{forward.2} parent=15 // pred_check
        %p611 = pneg %p264
      $region50: #{forward.2} parent=15 // pred_check_branch
        %613 = sbr.rel (%p611) target = $region52
      $region51: #{forward.2} parent=15 // pred_region
        %p614 = scmp.lt.s32.totalorder %s32, 1
        %s615 = scalar_select %p614, %s32, 1
        %s616 = smul.addr %s615, 4
        %s617 = smul.addr %s616, 8
        %s618 = scalar_lea.vmem %s8, %s617
      $region52: #{forward.2} parent=15 // pred_fallthru
        _
      // Predicated region
      $region53: #{forward.2} parent=15 // pred_check
        %p619 = pneg %p290
      $region54: #{forward.2} parent=15 // pred_check_branch
        %621 = sbr.rel (%p619) target = $region56
      $region55: #{forward.2} parent=15 // pred_region
        %p622 = scmp.lt.s32.totalorder %s32, 1
        %s623 = scalar_select %p622, %s32, 1
        %s624 = scalar_lea.vmem %s9, %s623
      $region56: #{forward.2} parent=15 // pred_fallthru
        _
      // Predicated region
      $region57: #{forward.2} parent=15 // pred_check
        %p625 = pneg %p316
      $region58: #{forward.2} parent=15 // pred_check_branch
        %627 = sbr.rel (%p625) target = $region60
      $region59: #{forward.2} parent=15 // pred_region
        %p628 = scmp.lt.s32.totalorder %s32, 1
        %s629 = scalar_select %p628, %s32, 1
        %s630 = scalar_lea.vmem %s10, %s629
      $region60: #{forward.2} parent=15 // pred_fallthru
        _
      // Predicated region
      $region61: #{forward.2} parent=15 // pred_check
        %p631 = pneg %p342
      $region62: #{forward.2} parent=15 // pred_check_branch
        %633 = sbr.rel (%p631) target = $region64
      $region63: #{forward.2} parent=15 // pred_region
        %p634 = scmp.lt.s32.totalorder %s32, 1
        %s635 = scalar_select %p634, %s32, 1
        %s636 = scalar_lea.vmem %s11, %s635
      $region64: #{forward.2} parent=15 // pred_fallthru
        _
      // Predicated region
      $region65: #{forward.2} parent=15 // pred_check
        %p637 = pneg %p368
      $region66: #{forward.2} parent=15 // pred_check_branch
        %639 = sbr.rel (%p637) target = $region68
      $region67: #{forward.2} parent=15 // pred_region
        %p640 = scmp.lt.s32.totalorder %s32, 1
        %s641 = scalar_select %p640, %s32, 1
        %s642 = smul.addr %s641, 4
        %s643 = smul.addr %s642, 8
        %s644 = scalar_lea.vmem %s12, %s643
      $region68: #{forward.2} parent=15 // pred_fallthru
        _
      // Predicated region
      $region69: #{forward.2} parent=15 // pred_check
        %p645 = pneg %p394
      $region70: #{forward.2} parent=15 // pred_check_branch
        %647 = sbr.rel (%p645) target = $region72
      $region71: #{forward.2} parent=15 // pred_region
        %p648 = scmp.lt.s32.totalorder %s32, 1
        %s649 = scalar_select %p648, %s32, 1
        %s650 = scalar_lea.vmem %s13, %s649
      $region72: #{forward.2} parent=15 // pred_fallthru
        _
      // Predicated region
      $region73: #{forward.2} parent=15 // pred_check
        %p651 = pneg %p420
      $region74: #{forward.2} parent=15 // pred_check_branch
        %653 = sbr.rel (%p651) target = $region76
      $region75: #{forward.2} parent=15 // pred_region
        %p654 = scmp.lt.s32.totalorder %s32, 1
        %s655 = scalar_select %p654, %s32, 1
        %s656 = smul.addr %s655, 8
        %s657 = smul.addr %s656, 8
        %s658 = scalar_lea.vmem %s14, %s657
      $region76: #{forward.2} parent=15 // pred_fallthru
        _
      // Predicated region
      $region77: #{forward.2} parent=15 // pred_check
        %p659 = pneg %p446
      $region78: #{forward.2} parent=15 // pred_check_branch
        %661 = sbr.rel (%p659) target = $region80
      $region79: #{forward.2} parent=15 // pred_region
        %p662 = scmp.lt.s32.totalorder %s32, 1
        %s663 = scalar_select %p662, %s32, 1
        %s664 = scalar_lea.vmem %s15, %s663
      $region80: #{forward.2} parent=15 // pred_fallthru
        _
      // Predicated region
      $region81: #{forward.2} parent=15 // pred_check
        %p665 = pneg %p472
      $region82: #{forward.2} parent=15 // pred_check_branch
        %667 = sbr.rel (%p665) target = $region84
      $region83: #{forward.2} parent=15 // pred_region
        %p668 = scmp.lt.s32.totalorder %s32, 1
        %s669 = scalar_select %p668, %s32, 1
        %s670 = scalar_lea.vmem %s16, %s669
      $region84: #{forward.2} parent=15 // pred_fallthru
        _
      // Predicated region
      $region85: #{forward.2} parent=15 // pred_check
        %p671 = pneg %p498
      $region86: #{forward.2} parent=15 // pred_check_branch
        %673 = sbr.rel (%p671) target = $region88
      $region87: #{forward.2} parent=15 // pred_region
        %p674 = scmp.lt.s32.totalorder %s32, 1
        %s675 = scalar_select %p674, %s32, 1
        %s676 = scalar_lea.vmem %s17, %s675
      $region88: #{forward.2} parent=15 // pred_fallthru
        _
    $region16: #{forward.2} parent=5 // pred_fallthru
      _
    %p677 = scmp.le.s32.totalorder 1, %s24
    %p678 = scmp.lt.s32.totalorder %s24, 5
    %p679 = pnand %p677, %p678
    %p680 = pneg %p679
    // Predicated region
    $region89: #{forward.2} parent=5 // pred_check
      _
    $region90: #{forward.2} parent=5 // pred_check_branch
      %682 = sbr.rel (%p679) target = $region92
    $region91: #{forward.2} parent=5 // pred_region
      %s683 = ssub.s32 %s24, 1
      %s684 = smul.u32 3, %s33
      %p685 = scmp.lt.s32.totalorder %s684, 5
      %s686 = scalar_select %p685, %s684, 5
      %s687 = smul.addr %s686, 8
      %s688 = scalar_lea.vmem %s0, %s687
      %p689 = pneg %p62
      %p690 = pneg %p59
      %s691 = smul.u32 3, %s33
      %p692 = scmp.lt.s32.totalorder %s691, 5
      %s693 = scalar_select %p692, %s691, 5
      %s694 = scalar_lea.vmem %s1, %s693
      %p695 = pneg %p88
      %p696 = pneg %p85
      %p697 = scmp.lt.s32.totalorder %s34, 1
      %s698 = scalar_select %p697, %s34, 1
      %s699 = smul.addr %s698, 16
      %s700 = smul.addr %s699, 8
      %s701 = scalar_lea.vmem %s2, %s700
      %p702 = pneg %p114
      %p703 = pneg %p111
      %p704 = scmp.lt.s32.totalorder %s34, 1
      %s705 = scalar_select %p704, %s34, 1
      %s706 = smul.addr %s705, 4
      %s707 = scalar_lea.vmem %s3, %s706
      %p708 = pneg %p140
      %p709 = pneg %p137
      %p710 = scmp.lt.s32.totalorder %s34, 1
      %s711 = scalar_select %p710, %s34, 1
      %s712 = smul.addr %s711, 16
      %s713 = smul.addr %s712, 8
      %s714 = scalar_lea.vmem %s4, %s713
      %p715 = pneg %p166
      %p716 = pneg %p163
      %p717 = scmp.lt.s32.totalorder %s34, 1
      %s718 = scalar_select %p717, %s34, 1
      %s719 = smul.addr %s718, 4
      %s720 = scalar_lea.vmem %s5, %s719
      %p721 = pneg %p192
      %p722 = pneg %p189
      %p723 = scmp.lt.s32.totalorder %s34, 1
      %s724 = scalar_select %p723, %s34, 1
      %s725 = smul.addr %s724, 16
      %s726 = smul.addr %s725, 8
      %s727 = scalar_lea.vmem %s6, %s726
      %p728 = pneg %p218
      %p729 = pneg %p215
      %p730 = scmp.lt.s32.totalorder %s34, 1
      %s731 = scalar_select %p730, %s34, 1
      %s732 = smul.addr %s731, 4
      %s733 = scalar_lea.vmem %s7, %s732
      %p734 = pneg %p244
      %p735 = pneg %p241
      %p736 = scmp.lt.s32.totalorder %s34, 1
      %s737 = scalar_select %p736, %s34, 1
      %s738 = smul.addr %s737, 4
      %s739 = smul.addr %s738, 8
      %s740 = scalar_lea.vmem %s8, %s739
      %p741 = pneg %p270
      %p742 = pneg %p267
      %p743 = scmp.lt.s32.totalorder %s34, 1
      %s744 = scalar_select %p743, %s34, 1
      %s745 = scalar_lea.vmem %s9, %s744
      %p746 = pneg %p296
      %p747 = pneg %p293
      %p748 = scmp.lt.s32.totalorder %s34, 1
      %s749 = scalar_select %p748, %s34, 1
      %s750 = scalar_lea.vmem %s10, %s749
      %p751 = pneg %p322
      %p752 = pneg %p319
      %p753 = scmp.lt.s32.totalorder %s34, 1
      %s754 = scalar_select %p753, %s34, 1
      %s755 = scalar_lea.vmem %s11, %s754
      %p756 = pneg %p348
      %p757 = pneg %p345
      %p758 = scmp.lt.s32.totalorder %s34, 1
      %s759 = scalar_select %p758, %s34, 1
      %s760 = smul.addr %s759, 4
      %s761 = smul.addr %s760, 8
      %s762 = scalar_lea.vmem %s12, %s761
      %p763 = pneg %p374
      %p764 = pneg %p371
      %p765 = scmp.lt.s32.totalorder %s34, 1
      %s766 = scalar_select %p765, %s34, 1
      %s767 = scalar_lea.vmem %s13, %s766
      %p768 = pneg %p400
      %p769 = pneg %p397
      %p770 = scmp.lt.s32.totalorder %s34, 1
      %s771 = scalar_select %p770, %s34, 1
      %s772 = smul.addr %s771, 8
      %s773 = smul.addr %s772, 8
      %s774 = scalar_lea.vmem %s14, %s773
      %p775 = pneg %p426
      %p776 = pneg %p423
      %p777 = scmp.lt.s32.totalorder %s34, 1
      %s778 = scalar_select %p777, %s34, 1
      %s779 = scalar_lea.vmem %s15, %s778
      %p780 = pneg %p452
      %p781 = pneg %p449
      %p782 = scmp.lt.s32.totalorder %s34, 1
      %s783 = scalar_select %p782, %s34, 1
      %s784 = scalar_lea.vmem %s16, %s783
      %p785 = pneg %p478
      %p786 = pneg %p475
      %p787 = scmp.lt.s32.totalorder %s34, 1
      %s788 = scalar_select %p787, %s34, 1
      %s789 = scalar_lea.vmem %s17, %s788
      %p790 = pneg %p504
      %p791 = pneg %p501
      %p792 = pneg %p530
      %p793 = pneg %p527
      %s794 = smul.u32 3, %s33
      %p795 = scmp.lt.s32.totalorder %s794, 5
      %s796 = scalar_select %p795, %s794, 5
      %s797 = smul.addr %s796, 8
      %s798 = scalar_lea.vmem %s18, %s797
      %s799 = smul.u32 3, %s33
      %p800 = scmp.lt.s32.totalorder %s799, 5
      %s801 = scalar_select %p800, %s799, 5
      %s802 = smul.addr %s801, 8
      %s803 = scalar_lea.vmem %s0, %s802
      %s804 = smul.u32 3, %s33
      %s805 = smul.u32 3, %s33
      %p806 = scmp.lt.s32.totalorder %s805, 5
      %s807 = scalar_select %p806, %s805, 5
      %s808 = scalar_lea.vmem %s1, %s807
      %s809 = smul.u32 3, %s33
      %p810 = scmp.lt.s32.totalorder %s34, 1
      %s811 = scalar_select %p810, %s34, 1
      %s812 = smul.addr %s811, 16
      %s813 = smul.addr %s812, 8
      %s814 = scalar_lea.vmem %s2, %s813
      %p815 = scmp.lt.s32.totalorder %s34, 1
      %s816 = scalar_select %p815, %s34, 1
      %s817 = smul.addr %s816, 4
      %s818 = scalar_lea.vmem %s3, %s817
      %p819 = scmp.lt.s32.totalorder %s34, 1
      %s820 = scalar_select %p819, %s34, 1
      %s821 = smul.addr %s820, 16
      %s822 = smul.addr %s821, 8
      %s823 = scalar_lea.vmem %s4, %s822
      %p824 = scmp.lt.s32.totalorder %s34, 1
      %s825 = scalar_select %p824, %s34, 1
      %s826 = smul.addr %s825, 4
      %s827 = scalar_lea.vmem %s5, %s826
      %p828 = scmp.lt.s32.totalorder %s34, 1
      %s829 = scalar_select %p828, %s34, 1
      %s830 = smul.addr %s829, 16
      %s831 = smul.addr %s830, 8
      %s832 = scalar_lea.vmem %s6, %s831
      %p833 = scmp.lt.s32.totalorder %s34, 1
      %s834 = scalar_select %p833, %s34, 1
      %s835 = smul.addr %s834, 4
      %s836 = scalar_lea.vmem %s7, %s835
      %p837 = scmp.lt.s32.totalorder %s34, 1
      %s838 = scalar_select %p837, %s34, 1
      %s839 = smul.addr %s838, 4
      %s840 = smul.addr %s839, 8
      %s841 = scalar_lea.vmem %s8, %s840
      %p842 = scmp.lt.s32.totalorder %s34, 1
      %s843 = scalar_select %p842, %s34, 1
      %s844 = scalar_lea.vmem %s9, %s843
      %p845 = scmp.lt.s32.totalorder %s34, 1
      %s846 = scalar_select %p845, %s34, 1
      %s847 = scalar_lea.vmem %s10, %s846
      %p848 = scmp.lt.s32.totalorder %s34, 1
      %s849 = scalar_select %p848, %s34, 1
      %s850 = scalar_lea.vmem %s11, %s849
      %p851 = scmp.lt.s32.totalorder %s34, 1
      %s852 = scalar_select %p851, %s34, 1
      %s853 = smul.addr %s852, 4
      %s854 = smul.addr %s853, 8
      %s855 = scalar_lea.vmem %s12, %s854
      %p856 = scmp.lt.s32.totalorder %s34, 1
      %s857 = scalar_select %p856, %s34, 1
      %s858 = scalar_lea.vmem %s13, %s857
      %p859 = scmp.lt.s32.totalorder %s34, 1
      %s860 = scalar_select %p859, %s34, 1
      %s861 = smul.addr %s860, 8
      %s862 = smul.addr %s861, 8
      %s863 = scalar_lea.vmem %s14, %s862
      %p864 = scmp.lt.s32.totalorder %s34, 1
      %s865 = scalar_select %p864, %s34, 1
      %s866 = scalar_lea.vmem %s15, %s865
      %p867 = scmp.lt.s32.totalorder %s34, 1
      %s868 = scalar_select %p867, %s34, 1
      %s869 = scalar_lea.vmem %s16, %s868
      %p870 = scmp.lt.s32.totalorder %s34, 1
      %s871 = scalar_select %p870, %s34, 1
      %s872 = scalar_lea.vmem %s17, %s871
      %s873 = smul.u32 3, %s33
      %p874 = scmp.lt.s32.totalorder %s873, 5
      %s875 = scalar_select %p874, %s873, 5
      %s876 = smul.addr %s875, 8
      %s877 = scalar_lea.vmem %s18, %s876
      %s878 = smul.u32 3, %s33
      %p879 = scmp.eq.s32.totalorder %s34, 0
      // Predicated region
      $region93: #{forward.2} parent=91 // pred_check
        %p880 = pneg %p879
      $region94: #{forward.2} parent=91 // pred_check_branch
        %882 = sbr.rel (%p880) target = $region96
      $region95: #{forward.2} parent=91 // pred_region
        %v883 = vld [vmem:[%s803] sm:$0xff]
        %v884 = vld [vmem:[%s803 + $0x8] sm:$0xff]
        %v885 = vld [vmem:[%s803 + $0x10] sm:$0xff]
        %vm886 = vcmask 261120
        %887 = vst.msk [vmem:[%s877] sm:$0xff] %vm886, %v883
        %888 = vst.msk [vmem:[%s877 + $0x8] sm:$0xff] %vm886, %v884
        %889 = vst.msk [vmem:[%s877 + $0x10] sm:$0xff] %vm886, %v885
      $region96: #{forward.2} parent=91 // pred_fallthru
        _
      %v890 = vld [vmem:[%s877] sm:$0xff]
      %v891 = vld [vmem:[%s877 + $0x8] sm:$0xff]
      %v892 = vld [vmem:[%s877 + $0x10] sm:$0xff]
      %v893 = vld [vmem:[%s808] sm:$0x1]
      %v894 = vld [vmem:[%s808 + $0x1] sm:$0x1]
      %v895 = vld [vmem:[%s808 + $0x2] sm:$0x1]
      %v896 = vld [vmem:[%s814] sm:$0xff]
      %v897 = vld [vmem:[%s814 + $0x8] sm:$0xff]
      %v898 = vld [vmem:[%s814 + $0x10] sm:$0xff]
      %v899 = vld [vmem:[%s814 + $0x18] sm:$0xff]
      %v900 = vld [vmem:[%s814 + $0x20] sm:$0xff]
      %v901 = vld [vmem:[%s814 + $0x28] sm:$0xff]
      %v902 = vld [vmem:[%s814 + $0x30] sm:$0xff]
      %v903 = vld [vmem:[%s814 + $0x38] sm:$0xff]
      %v904 = vld [vmem:[%s814 + $0x40] sm:$0xff]
      %v905 = vld [vmem:[%s814 + $0x48] sm:$0xff]
      %v906 = vld [vmem:[%s814 + $0x50] sm:$0xff]
      %v907 = vld [vmem:[%s814 + $0x58] sm:$0xff]
      %v908 = vld [vmem:[%s814 + $0x60] sm:$0xff]
      %v909 = vld [vmem:[%s814 + $0x68] sm:$0xff]
      %v910 = vld [vmem:[%s814 + $0x70] sm:$0xff]
      %v911 = vld [vmem:[%s814 + $0x78] sm:$0xff]
      %v912 = vld [vmem:[%s818] sm:$0x1]
      %v913 = vld [vmem:[%s818 + $0x1] sm:$0x1]
      %v914 = vld [vmem:[%s818 + $0x2] sm:$0x1]
      %v915 = vld [vmem:[%s818 + $0x3] sm:$0x1]
      %v916 = vld [vmem:[%s823] sm:$0xff]
      %v917 = vld [vmem:[%s823 + $0x8] sm:$0xff]
      %v918 = vld [vmem:[%s823 + $0x10] sm:$0xff]
      %v919 = vld [vmem:[%s823 + $0x18] sm:$0xff]
      %v920 = vld [vmem:[%s823 + $0x20] sm:$0xff]
      %v921 = vld [vmem:[%s823 + $0x28] sm:$0xff]
      %v922 = vld [vmem:[%s823 + $0x30] sm:$0xff]
      %v923 = vld [vmem:[%s823 + $0x38] sm:$0xff]
      %v924 = vld [vmem:[%s823 + $0x40] sm:$0xff]
      %v925 = vld [vmem:[%s823 + $0x48] sm:$0xff]
      %v926 = vld [vmem:[%s823 + $0x50] sm:$0xff]
      %v927 = vld [vmem:[%s823 + $0x58] sm:$0xff]
      %v928 = vld [vmem:[%s823 + $0x60] sm:$0xff]
      %v929 = vld [vmem:[%s823 + $0x68] sm:$0xff]
      %v930 = vld [vmem:[%s823 + $0x70] sm:$0xff]
      %v931 = vld [vmem:[%s823 + $0x78] sm:$0xff]
      %v932 = vld [vmem:[%s827] sm:$0x1]
      %v933 = vld [vmem:[%s827 + $0x1] sm:$0x1]
      %v934 = vld [vmem:[%s827 + $0x2] sm:$0x1]
      %v935 = vld [vmem:[%s827 + $0x3] sm:$0x1]
      %v936 = vld [vmem:[%s832] sm:$0xff]
      %v937 = vld [vmem:[%s832 + $0x8] sm:$0xff]
      %v938 = vld [vmem:[%s832 + $0x10] sm:$0xff]
      %v939 = vld [vmem:[%s832 + $0x18] sm:$0xff]
      %v940 = vld [vmem:[%s832 + $0x20] sm:$0xff]
      %v941 = vld [vmem:[%s832 + $0x28] sm:$0xff]
      %v942 = vld [vmem:[%s832 + $0x30] sm:$0xff]
      %v943 = vld [vmem:[%s832 + $0x38] sm:$0xff]
      %v944 = vld [vmem:[%s832 + $0x40] sm:$0xff]
      %v945 = vld [vmem:[%s832 + $0x48] sm:$0xff]
      %v946 = vld [vmem:[%s832 + $0x50] sm:$0xff]
      %v947 = vld [vmem:[%s832 + $0x58] sm:$0xff]
      %v948 = vld [vmem:[%s832 + $0x60] sm:$0xff]
      %v949 = vld [vmem:[%s832 + $0x68] sm:$0xff]
      %v950 = vld [vmem:[%s832 + $0x70] sm:$0xff]
      %v951 = vld [vmem:[%s832 + $0x78] sm:$0xff]
      %v952 = vld [vmem:[%s836] sm:$0x1]
      %v953 = vld [vmem:[%s836 + $0x1] sm:$0x1]
      %v954 = vld [vmem:[%s836 + $0x2] sm:$0x1]
      %v955 = vld [vmem:[%s836 + $0x3] sm:$0x1]
      %v956 = vld [vmem:[%s841] sm:$0xff]
      %v957 = vld [vmem:[%s841 + $0x8] sm:$0xff]
      %v958 = vld [vmem:[%s841 + $0x10] sm:$0xff]
      %v959 = vld [vmem:[%s841 + $0x18] sm:$0xff]
      %v960 = vld [vmem:[%s844] sm:$0x1]
      %v962 = vlaneseq
      %v963 = vshrl.u32 %v962, 7
      %v964 = vsub.s32 0, %v963
      %v965 = vrot.slane %v912, %v964
      %vm967 = vcmask 261120
      %v969 = vsel %vm967, %v890, 0
      %v972 = vsel %vm967, %v891, 0
      %v975 = vsel %vm967, %v892, 0
      %977 = vmatprep.subr.mxu0 0.0
      %978 = vmatpush1.msra.mxu0 %v896
      %979 = vmatprep.subr.mxu0 0.0
      %980 = vmatpush1.msra.mxu0 %v897
      %981 = vmatprep.subr.mxu0 0.0
      %982 = vmatpush1.msra.mxu0 %v898
      %983 = vmatprep.subr.mxu0 0.0
      %984 = vmatpush1.msra.mxu0 %v899
      %985 = vmatprep.subr.mxu0 0.0
      %986 = vmatpush1.msra.mxu0 0.0
      %987 = vmatprep.subr.mxu0 0.0
      %988 = vmatpush1.msra.mxu0 0.0
      %989 = vmatprep.subr.mxu0 0.0
      %990 = vmatpush1.msra.mxu0 0.0
      %991 = vmatprep.subr.mxu0 0.0
      %992 = vmatpush1.msra.mxu0 0.0
      %993 = vmatprep.subr.mxu0 0.0
      %994 = vmatpush1.msra.mxu0 0.0
      %995 = vmatprep.subr.mxu0 0.0
      %996 = vmatpush1.msra.mxu0 0.0
      %997 = vmatprep.subr.mxu0 0.0
      %998 = vmatpush1.msra.mxu0 0.0
      %999 = vmatprep.subr.mxu0 0.0
      %1000 = vmatpush1.msra.mxu0 0.0
      %1001 = vmatprep.subr.mxu0 0.0
      %1002 = vmatpush1.msra.mxu0 0.0
      %1003 = vmatprep.subr.mxu0 0.0
      %1004 = vmatpush1.msra.mxu0 0.0
      %1005 = vmatprep.subr.mxu0 0.0
      %1006 = vmatpush1.msra.mxu0 0.0
      %1007 = vmatprep.subr.mxu0 0.0
      %1008 = vmatpush1.msra.mxu0 0.0
      %1009 = vmatprep.subr.mxu0 0.0
      %1010 = vmatpush1.msra.mxu0 0.0
      %1011 = vmatprep.subr.mxu0 0.0
      %1012 = vmatpush1.msra.mxu0 0.0
      %1013 = vmatprep.subr.mxu0 0.0
      %1014 = vmatpush1.msra.mxu0 0.0
      %1015 = vmatprep.subr.mxu0 0.0
      %1016 = vmatpush1.msra.mxu0 0.0
      %1017 = vmatprep.subr.mxu0 0.0
      %1018 = vmatpush1.msra.mxu0 0.0
      %1019 = vmatprep.subr.mxu0 0.0
      %1020 = vmatpush1.msra.mxu0 0.0
      %1021 = vmatprep.subr.mxu0 0.0
      %1022 = vmatpush1.msra.mxu0 0.0
      %1023 = vmatprep.subr.mxu0 0.0
      %1024 = vmatpush1.msra.mxu0 0.0
      %1025 = vmatprep.subr.mxu0 0.0
      %1026 = vmatpush1.msra.mxu0 0.0
      %1027 = vmatprep.subr.mxu0 0.0
      %1028 = vmatpush1.msra.mxu0 0.0
      %1029 = vmatprep.subr.mxu0 0.0
      %1030 = vmatpush1.msra.mxu0 0.0
      %1031 = vmatprep.subr.mxu0 0.0
      %1032 = vmatpush1.msra.mxu0 0.0
      %1033 = vmatprep.subr.mxu0 0.0
      %1034 = vmatpush1.msra.mxu0 0.0
      %1035 = vmatprep.subr.mxu0 0.0
      %1036 = vmatpush1.msra.mxu0 0.0
      %1037 = vmatprep.subr.mxu0 0.0
      %1038 = vmatpush1.msra.mxu0 0.0
      %1039 = vmatprep.subr.mxu0 0.0
      %1040 = vmatpush1.msra.mxu0 0.0
      %1041 = vmatprep.mubr.f32.mxu0 0.0
      %1042 = vmatmul.mubr.f32.gmra.mrb[0].mxu0 %v969
      %v1043 = vpop.f32.mrb[0].mxu0
      %v1044 = vadd.f32 %v965, %v1043
      %v1045 = vpop.f32.mrb[0].mxu0
      %1046 = vmatprep.mubr.f32.mxu0 0.0
      %1047 = vmatmul.mubr.f32.gmra.mrb[0].mxu0 %v972
      %v1048 = vpop.f32.mrb[0].mxu0
      %v1049 = vadd.f32 %v965, %v1048
      %v1050 = vpop.f32.mrb[0].mxu0
      %1051 = vmatprep.mubr.f32.mxu0 0.0
      %1052 = vmatmul.mubr.f32.gmra.mrb[0].mxu0 %v975
      %v1053 = vpop.f32.mrb[0].mxu0
      %v1054 = vadd.f32 %v965, %v1053
      %v1055 = vpop.f32.mrb[0].mxu0
      %1056 = vdwg.mxu0
      %v1058 = vlaneseq
      %v1059 = vshrl.u32 %v1058, 7
      %v1060 = vsub.s32 0, %v1059
      %v1061 = vrot.slane %v932, %v1060
      %1063 = vmatprep.subr.mxu0 0.0
      %1064 = vmatpush1.msra.mxu0 %v916
      %1065 = vmatprep.subr.mxu0 0.0
      %1066 = vmatpush1.msra.mxu0 %v917
      %1067 = vmatprep.subr.mxu0 0.0
      %1068 = vmatpush1.msra.mxu0 %v918
      %1069 = vmatprep.subr.mxu0 0.0
      %1070 = vmatpush1.msra.mxu0 %v919
      %1071 = vmatprep.subr.mxu0 0.0
      %1072 = vmatpush1.msra.mxu0 0.0
      %1073 = vmatprep.subr.mxu0 0.0
      %1074 = vmatpush1.msra.mxu0 0.0
      %1075 = vmatprep.subr.mxu0 0.0
      %1076 = vmatpush1.msra.mxu0 0.0
      %1077 = vmatprep.subr.mxu0 0.0
      %1078 = vmatpush1.msra.mxu0 0.0
      %1079 = vmatprep.subr.mxu0 0.0
      %1080 = vmatpush1.msra.mxu0 0.0
      %1081 = vmatprep.subr.mxu0 0.0
      %1082 = vmatpush1.msra.mxu0 0.0
      %1083 = vmatprep.subr.mxu0 0.0
      %1084 = vmatpush1.msra.mxu0 0.0
      %1085 = vmatprep.subr.mxu0 0.0
      %1086 = vmatpush1.msra.mxu0 0.0
      %1087 = vmatprep.subr.mxu0 0.0
      %1088 = vmatpush1.msra.mxu0 0.0
      %1089 = vmatprep.subr.mxu0 0.0
      %1090 = vmatpush1.msra.mxu0 0.0
      %1091 = vmatprep.subr.mxu0 0.0
      %1092 = vmatpush1.msra.mxu0 0.0
      %1093 = vmatprep.subr.mxu0 0.0
      %1094 = vmatpush1.msra.mxu0 0.0
      %1095 = vmatprep.subr.mxu0 0.0
      %1096 = vmatpush1.msra.mxu0 0.0
      %1097 = vmatprep.subr.mxu0 0.0
      %1098 = vmatpush1.msra.mxu0 0.0
      %1099 = vmatprep.subr.mxu0 0.0
      %1100 = vmatpush1.msra.mxu0 0.0
      %1101 = vmatprep.subr.mxu0 0.0
      %1102 = vmatpush1.msra.mxu0 0.0
      %1103 = vmatprep.subr.mxu0 0.0
      %1104 = vmatpush1.msra.mxu0 0.0
      %1105 = vmatprep.subr.mxu0 0.0
      %1106 = vmatpush1.msra.mxu0 0.0
      %1107 = vmatprep.subr.mxu0 0.0
      %1108 = vmatpush1.msra.mxu0 0.0
      %1109 = vmatprep.subr.mxu0 0.0
      %1110 = vmatpush1.msra.mxu0 0.0
      %1111 = vmatprep.subr.mxu0 0.0
      %1112 = vmatpush1.msra.mxu0 0.0
      %1113 = vmatprep.subr.mxu0 0.0
      %1114 = vmatpush1.msra.mxu0 0.0
      %1115 = vmatprep.subr.mxu0 0.0
      %1116 = vmatpush1.msra.mxu0 0.0
      %1117 = vmatprep.subr.mxu0 0.0
      %1118 = vmatpush1.msra.mxu0 0.0
      %1119 = vmatprep.subr.mxu0 0.0
      %1120 = vmatpush1.msra.mxu0 0.0
      %1121 = vmatprep.subr.mxu0 0.0
      %1122 = vmatpush1.msra.mxu0 0.0
      %1123 = vmatprep.subr.mxu0 0.0
      %1124 = vmatpush1.msra.mxu0 0.0
      %1125 = vmatprep.subr.mxu0 0.0
      %1126 = vmatpush1.msra.mxu0 0.0
      %1127 = vmatprep.mubr.f32.mxu0 0.0
      %1128 = vmatmul.mubr.f32.gmra.mrb[0].mxu0 %v969
      %v1129 = vpop.f32.mrb[0].mxu0
      %v1130 = vadd.f32 %v1061, %v1129
      %v1131 = vpop.f32.mrb[0].mxu0
      %1132 = vmatprep.mubr.f32.mxu0 0.0
      %1133 = vmatmul.mubr.f32.gmra.mrb[0].mxu0 %v972
      %v1134 = vpop.f32.mrb[0].mxu0
      %v1135 = vadd.f32 %v1061, %v1134
      %v1136 = vpop.f32.mrb[0].mxu0
      %1137 = vmatprep.mubr.f32.mxu0 0.0
      %1138 = vmatmul.mubr.f32.gmra.mrb[0].mxu0 %v975
      %v1139 = vpop.f32.mrb[0].mxu0
      %v1140 = vadd.f32 %v1061, %v1139
      %v1141 = vpop.f32.mrb[0].mxu0
      %1142 = vdwg.mxu0
      %v1144 = vlaneseq
      %v1145 = vshrl.u32 %v1144, 7
      %v1146 = vsub.s32 0, %v1145
      %v1147 = vrot.slane %v952, %v1146
      %1149 = vmatprep.subr.mxu0 0.0
      %1150 = vmatpush1.msra.mxu0 %v936
      %1151 = vmatprep.subr.mxu0 0.0
      %1152 = vmatpush1.msra.mxu0 %v937
      %1153 = vmatprep.subr.mxu0 0.0
      %1154 = vmatpush1.msra.mxu0 %v938
      %1155 = vmatprep.subr.mxu0 0.0
      %1156 = vmatpush1.msra.mxu0 %v939
      %1157 = vmatprep.subr.mxu0 0.0
      %1158 = vmatpush1.msra.mxu0 0.0
      %1159 = vmatprep.subr.mxu0 0.0
      %1160 = vmatpush1.msra.mxu0 0.0
      %1161 = vmatprep.subr.mxu0 0.0
      %1162 = vmatpush1.msra.mxu0 0.0
      %1163 = vmatprep.subr.mxu0 0.0
      %1164 = vmatpush1.msra.mxu0 0.0
      %1165 = vmatprep.subr.mxu0 0.0
      %1166 = vmatpush1.msra.mxu0 0.0
      %1167 = vmatprep.subr.mxu0 0.0
      %1168 = vmatpush1.msra.mxu0 0.0
      %1169 = vmatprep.subr.mxu0 0.0
      %1170 = vmatpush1.msra.mxu0 0.0
      %1171 = vmatprep.subr.mxu0 0.0
      %1172 = vmatpush1.msra.mxu0 0.0
      %1173 = vmatprep.subr.mxu0 0.0
      %1174 = vmatpush1.msra.mxu0 0.0
      %1175 = vmatprep.subr.mxu0 0.0
      %1176 = vmatpush1.msra.mxu0 0.0
      %1177 = vmatprep.subr.mxu0 0.0
      %1178 = vmatpush1.msra.mxu0 0.0
      %1179 = vmatprep.subr.mxu0 0.0
      %1180 = vmatpush1.msra.mxu0 0.0
      %1181 = vmatprep.subr.mxu0 0.0
      %1182 = vmatpush1.msra.mxu0 0.0
      %1183 = vmatprep.subr.mxu0 0.0
      %1184 = vmatpush1.msra.mxu0 0.0
      %1185 = vmatprep.subr.mxu0 0.0
      %1186 = vmatpush1.msra.mxu0 0.0
      %1187 = vmatprep.subr.mxu0 0.0
      %1188 = vmatpush1.msra.mxu0 0.0
      %1189 = vmatprep.subr.mxu0 0.0
      %1190 = vmatpush1.msra.mxu0 0.0
      %1191 = vmatprep.subr.mxu0 0.0
      %1192 = vmatpush1.msra.mxu0 0.0
      %1193 = vmatprep.subr.mxu0 0.0
      %1194 = vmatpush1.msra.mxu0 0.0
      %1195 = vmatprep.subr.mxu0 0.0
      %1196 = vmatpush1.msra.mxu0 0.0
      %1197 = vmatprep.subr.mxu0 0.0
      %1198 = vmatpush1.msra.mxu0 0.0
      %1199 = vmatprep.subr.mxu0 0.0
      %1200 = vmatpush1.msra.mxu0 0.0
      %1201 = vmatprep.subr.mxu0 0.0
      %1202 = vmatpush1.msra.mxu0 0.0
      %1203 = vmatprep.subr.mxu0 0.0
      %1204 = vmatpush1.msra.mxu0 0.0
      %1205 = vmatprep.subr.mxu0 0.0
      %1206 = vmatpush1.msra.mxu0 0.0
      %1207 = vmatprep.subr.mxu0 0.0
      %1208 = vmatpush1.msra.mxu0 0.0
      %1209 = vmatprep.subr.mxu0 0.0
      %1210 = vmatpush1.msra.mxu0 0.0
      %1211 = vmatprep.subr.mxu0 0.0
      %1212 = vmatpush1.msra.mxu0 0.0
      %1213 = vmatprep.mubr.f32.mxu0 0.0
      %1214 = vmatmul.mubr.f32.gmra.mrb[0].mxu0 %v969
      %v1215 = vpop.f32.mrb[0].mxu0
      %v1216 = vadd.f32 %v1147, %v1215
      %v1217 = vpop.f32.mrb[0].mxu0
      %1218 = vmatprep.mubr.f32.mxu0 0.0
      %1219 = vmatmul.mubr.f32.gmra.mrb[0].mxu0 %v972
      %v1220 = vpop.f32.mrb[0].mxu0
      %v1221 = vadd.f32 %v1147, %v1220
      %v1222 = vpop.f32.mrb[0].mxu0
      %1223 = vmatprep.mubr.f32.mxu0 0.0
      %1224 = vmatmul.mubr.f32.gmra.mrb[0].mxu0 %v975
      %v1225 = vpop.f32.mrb[0].mxu0
      %v1226 = vadd.f32 %v1147, %v1225
      %v1227 = vpop.f32.mrb[0].mxu0
      %1228 = vdwg.mxu0
      %vm1229 = vcmask 64512
      %v1231 = vsel %vm1229, %v1044, 0
      %v1234 = vsel %vm1229, %v1130, 0
      %1236 = vmatprep.subr.mxu0 0.0
      %1237 = vmatpush1.xpose.msra.mxu0 %v1234
      %1238 = vmatprep.subr.mxu0 0.0
      %1239 = vmatpush1.xpose.msra.mxu0 0.0
      %1240 = vmatprep.subr.mxu0 0.0
      %1241 = vmatpush1.xpose.msra.mxu0 0.0
      %1242 = vmatprep.subr.mxu0 0.0
      %1243 = vmatpush1.xpose.msra.mxu0 0.0
      %1244 = vmatprep.subr.mxu0 0.0
      %1245 = vmatpush1.xpose.msra.mxu0 0.0
      %1246 = vmatprep.subr.mxu0 0.0
      %1247 = vmatpush1.xpose.msra.mxu0 0.0
      %1248 = vmatprep.subr.mxu0 0.0
      %1249 = vmatpush1.xpose.msra.mxu0 0.0
      %1250 = vmatprep.subr.mxu0 0.0
      %1251 = vmatpush1.xpose.msra.mxu0 0.0
      %1252 = vmatprep.subr.mxu0 0.0
      %1253 = vmatpush1.xpose.msra.mxu0 0.0
      %1254 = vmatprep.subr.mxu0 0.0
      %1255 = vmatpush1.xpose.msra.mxu0 0.0
      %1256 = vmatprep.subr.mxu0 0.0
      %1257 = vmatpush1.xpose.msra.mxu0 0.0
      %1258 = vmatprep.subr.mxu0 0.0
      %1259 = vmatpush1.xpose.msra.mxu0 0.0
      %1260 = vmatprep.subr.mxu0 0.0
      %1261 = vmatpush1.xpose.msra.mxu0 0.0
      %1262 = vmatprep.subr.mxu0 0.0
      %1263 = vmatpush1.xpose.msra.mxu0 0.0
      %1264 = vmatprep.subr.mxu0 0.0
      %1265 = vmatpush1.xpose.msra.mxu0 0.0
      %1266 = vmatprep.subr.mxu0 0.0
      %1267 = vmatpush1.xpose.msra.mxu0 0.0
      %1268 = vmatprep.subr.mxu0 0.0
      %1269 = vmatpush1.xpose.msra.mxu0 0.0
      %1270 = vmatprep.subr.mxu0 0.0
      %1271 = vmatpush1.xpose.msra.mxu0 0.0
      %1272 = vmatprep.subr.mxu0 0.0
      %1273 = vmatpush1.xpose.msra.mxu0 0.0
      %1274 = vmatprep.subr.mxu0 0.0
      %1275 = vmatpush1.xpose.msra.mxu0 0.0
      %1276 = vmatprep.subr.mxu0 0.0
      %1277 = vmatpush1.xpose.msra.mxu0 0.0
      %1278 = vmatprep.subr.mxu0 0.0
      %1279 = vmatpush1.xpose.msra.mxu0 0.0
      %1280 = vmatprep.subr.mxu0 0.0
      %1281 = vmatpush1.xpose.msra.mxu0 0.0
      %1282 = vmatprep.subr.mxu0 0.0
      %1283 = vmatpush1.xpose.msra.mxu0 0.0
      %1284 = vmatprep.subr.mxu0 0.0
      %1285 = vmatpush1.xpose.msra.mxu0 0.0
      %1286 = vmatprep.subr.mxu0 0.0
      %1287 = vmatpush1.xpose.msra.mxu0 0.0
      %1288 = vmatprep.subr.mxu0 0.0
      %1289 = vmatpush1.xpose.msra.mxu0 0.0
      %1290 = vmatprep.subr.mxu0 0.0
      %1291 = vmatpush1.xpose.msra.mxu0 0.0
      %1292 = vmatprep.subr.mxu0 0.0
      %1293 = vmatpush1.xpose.msra.mxu0 0.0
      %1294 = vmatprep.subr.mxu0 0.0
      %1295 = vmatpush1.xpose.msra.mxu0 0.0
      %1296 = vmatprep.subr.mxu0 0.0
      %1297 = vmatpush1.xpose.msra.mxu0 0.0
      %1298 = vmatprep.subr.mxu0 0.0
      %1299 = vmatpush1.xpose.msra.mxu0 0.0
      %1300 = vmatprep.mubr.f32.mxu0 0.0
      %1301 = vmatmul.mubr.f32.gmra.mrb[0].mxu0 %v1231
      %v1302 = vpop.f32.mrb[0].mxu0
      %v1303 = vadd.f32 0.0, %v1302
      %v1304 = vpop.f32.mrb[0].mxu0
      %1305 = vdwg.mxu0
      %v1307 = vsel %vm1229, %v1049, 0
      %v1310 = vsel %vm1229, %v1135, 0
      %1312 = vmatprep.subr.mxu0 0.0
      %1313 = vmatpush1.xpose.msra.mxu0 %v1310
      %1314 = vmatprep.subr.mxu0 0.0
      %1315 = vmatpush1.xpose.msra.mxu0 0.0
      %1316 = vmatprep.subr.mxu0 0.0
      %1317 = vmatpush1.xpose.msra.mxu0 0.0
      %1318 = vmatprep.subr.mxu0 0.0
      %1319 = vmatpush1.xpose.msra.mxu0 0.0
      %1320 = vmatprep.subr.mxu0 0.0
      %1321 = vmatpush1.xpose.msra.mxu0 0.0
      %1322 = vmatprep.subr.mxu0 0.0
      %1323 = vmatpush1.xpose.msra.mxu0 0.0
      %1324 = vmatprep.subr.mxu0 0.0
      %1325 = vmatpush1.xpose.msra.mxu0 0.0
      %1326 = vmatprep.subr.mxu0 0.0
      %1327 = vmatpush1.xpose.msra.mxu0 0.0
      %1328 = vmatprep.subr.mxu0 0.0
      %1329 = vmatpush1.xpose.msra.mxu0 0.0
      %1330 = vmatprep.subr.mxu0 0.0
      %1331 = vmatpush1.xpose.msra.mxu0 0.0
      %1332 = vmatprep.subr.mxu0 0.0
      %1333 = vmatpush1.xpose.msra.mxu0 0.0
      %1334 = vmatprep.subr.mxu0 0.0
      %1335 = vmatpush1.xpose.msra.mxu0 0.0
      %1336 = vmatprep.subr.mxu0 0.0
      %1337 = vmatpush1.xpose.msra.mxu0 0.0
      %1338 = vmatprep.subr.mxu0 0.0
      %1339 = vmatpush1.xpose.msra.mxu0 0.0
      %1340 = vmatprep.subr.mxu0 0.0
      %1341 = vmatpush1.xpose.msra.mxu0 0.0
      %1342 = vmatprep.subr.mxu0 0.0
      %1343 = vmatpush1.xpose.msra.mxu0 0.0
      %1344 = vmatprep.subr.mxu0 0.0
      %1345 = vmatpush1.xpose.msra.mxu0 0.0
      %1346 = vmatprep.subr.mxu0 0.0
      %1347 = vmatpush1.xpose.msra.mxu0 0.0
      %1348 = vmatprep.subr.mxu0 0.0
      %1349 = vmatpush1.xpose.msra.mxu0 0.0
      %1350 = vmatprep.subr.mxu0 0.0
      %1351 = vmatpush1.xpose.msra.mxu0 0.0
      %1352 = vmatprep.subr.mxu0 0.0
      %1353 = vmatpush1.xpose.msra.mxu0 0.0
      %1354 = vmatprep.subr.mxu0 0.0
      %1355 = vmatpush1.xpose.msra.mxu0 0.0
      %1356 = vmatprep.subr.mxu0 0.0
      %1357 = vmatpush1.xpose.msra.mxu0 0.0
      %1358 = vmatprep.subr.mxu0 0.0
      %1359 = vmatpush1.xpose.msra.mxu0 0.0
      %1360 = vmatprep.subr.mxu0 0.0
      %1361 = vmatpush1.xpose.msra.mxu0 0.0
      %1362 = vmatprep.subr.mxu0 0.0
      %1363 = vmatpush1.xpose.msra.mxu0 0.0
      %1364 = vmatprep.subr.mxu0 0.0
      %1365 = vmatpush1.xpose.msra.mxu0 0.0
      %1366 = vmatprep.subr.mxu0 0.0
      %1367 = vmatpush1.xpose.msra.mxu0 0.0
      %1368 = vmatprep.subr.mxu0 0.0
      %1369 = vmatpush1.xpose.msra.mxu0 0.0
      %1370 = vmatprep.subr.mxu0 0.0
      %1371 = vmatpush1.xpose.msra.mxu0 0.0
      %1372 = vmatprep.subr.mxu0 0.0
      %1373 = vmatpush1.xpose.msra.mxu0 0.0
      %1374 = vmatprep.subr.mxu0 0.0
      %1375 = vmatpush1.xpose.msra.mxu0 0.0
      %1376 = vmatprep.mubr.f32.mxu0 0.0
      %1377 = vmatmul.mubr.f32.gmra.mrb[0].mxu0 %v1307
      %v1378 = vpop.f32.mrb[0].mxu0
      %v1379 = vadd.f32 0.0, %v1378
      %v1380 = vpop.f32.mrb[0].mxu0
      %1381 = vdwg.mxu0
      %v1383 = vsel %vm1229, %v1054, 0
      %v1386 = vsel %vm1229, %v1140, 0
      %1388 = vmatprep.subr.mxu0 0.0
      %1389 = vmatpush1.xpose.msra.mxu0 %v1386
      %1390 = vmatprep.subr.mxu0 0.0
      %1391 = vmatpush1.xpose.msra.mxu0 0.0
      %1392 = vmatprep.subr.mxu0 0.0
      %1393 = vmatpush1.xpose.msra.mxu0 0.0
      %1394 = vmatprep.subr.mxu0 0.0
      %1395 = vmatpush1.xpose.msra.mxu0 0.0
      %1396 = vmatprep.subr.mxu0 0.0
      %1397 = vmatpush1.xpose.msra.mxu0 0.0
      %1398 = vmatprep.subr.mxu0 0.0
      %1399 = vmatpush1.xpose.msra.mxu0 0.0
      %1400 = vmatprep.subr.mxu0 0.0
      %1401 = vmatpush1.xpose.msra.mxu0 0.0
      %1402 = vmatprep.subr.mxu0 0.0
      %1403 = vmatpush1.xpose.msra.mxu0 0.0
      %1404 = vmatprep.subr.mxu0 0.0
      %1405 = vmatpush1.xpose.msra.mxu0 0.0
      %1406 = vmatprep.subr.mxu0 0.0
      %1407 = vmatpush1.xpose.msra.mxu0 0.0
      %1408 = vmatprep.subr.mxu0 0.0
      %1409 = vmatpush1.xpose.msra.mxu0 0.0
      %1410 = vmatprep.subr.mxu0 0.0
      %1411 = vmatpush1.xpose.msra.mxu0 0.0
      %1412 = vmatprep.subr.mxu0 0.0
      %1413 = vmatpush1.xpose.msra.mxu0 0.0
      %1414 = vmatprep.subr.mxu0 0.0
      %1415 = vmatpush1.xpose.msra.mxu0 0.0
      %1416 = vmatprep.subr.mxu0 0.0
      %1417 = vmatpush1.xpose.msra.mxu0 0.0
      %1418 = vmatprep.subr.mxu0 0.0
      %1419 = vmatpush1.xpose.msra.mxu0 0.0
      %1420 = vmatprep.subr.mxu0 0.0
      %1421 = vmatpush1.xpose.msra.mxu0 0.0
      %1422 = vmatprep.subr.mxu0 0.0
      %1423 = vmatpush1.xpose.msra.mxu0 0.0
      %1424 = vmatprep.subr.mxu0 0.0
      %1425 = vmatpush1.xpose.msra.mxu0 0.0
      %1426 = vmatprep.subr.mxu0 0.0
      %1427 = vmatpush1.xpose.msra.mxu0 0.0
      %1428 = vmatprep.subr.mxu0 0.0
      %1429 = vmatpush1.xpose.msra.mxu0 0.0
      %1430 = vmatprep.subr.mxu0 0.0
      %1431 = vmatpush1.xpose.msra.mxu0 0.0
      %1432 = vmatprep.subr.mxu0 0.0
      %1433 = vmatpush1.xpose.msra.mxu0 0.0
      %1434 = vmatprep.subr.mxu0 0.0
      %1435 = vmatpush1.xpose.msra.mxu0 0.0
      %1436 = vmatprep.subr.mxu0 0.0
      %1437 = vmatpush1.xpose.msra.mxu0 0.0
      %1438 = vmatprep.subr.mxu0 0.0
      %1439 = vmatpush1.xpose.msra.mxu0 0.0
      %1440 = vmatprep.subr.mxu0 0.0
      %1441 = vmatpush1.xpose.msra.mxu0 0.0
      %1442 = vmatprep.subr.mxu0 0.0
      %1443 = vmatpush1.xpose.msra.mxu0 0.0
      %1444 = vmatprep.subr.mxu0 0.0
      %1445 = vmatpush1.xpose.msra.mxu0 0.0
      %1446 = vmatprep.subr.mxu0 0.0
      %1447 = vmatpush1.xpose.msra.mxu0 0.0
      %1448 = vmatprep.subr.mxu0 0.0
      %1449 = vmatpush1.xpose.msra.mxu0 0.0
      %1450 = vmatprep.subr.mxu0 0.0
      %1451 = vmatpush1.xpose.msra.mxu0 0.0
      %1452 = vmatprep.mubr.f32.mxu0 0.0
      %1453 = vmatmul.mubr.f32.gmra.mrb[0].mxu0 %v1383
      %v1454 = vpop.f32.mrb[0].mxu0
      %v1455 = vadd.f32 0.0, %v1454
      %v1456 = vpop.f32.mrb[0].mxu0
      %1457 = vdwg.mxu0
      %v1458 = vmul.f32 %v1303, 0.35355338
      %v1459 = vmul.f32 %v1379, 0.35355338
      %v1460 = vmul.f32 %v1455, 0.35355338
      %v1464 = vlaneseq
      %v1465 = vshrl.u32 %v1464, 7
      %v1466 = vsub.s32 0, %v1465
      %v1467 = vrot.slane %v893, %v1466
      %v1468 = vlaneseq
      %v1469 = vshrl.u32 %v1468, 7
      %v1470 = vsub.s32 0, %v1469
      %v1471 = vrot.slane %v894, %v1470
      %v1472 = vlaneseq
      %v1473 = vshrl.u32 %v1472, 7
      %v1474 = vsub.s32 0, %v1473
      %v1475 = vrot.slane %v895, %v1474
      %v1479 = vadd.f32 %v1458, %v1467
      %v1480 = vadd.f32 %v1459, %v1471
      %v1481 = vadd.f32 %v1460, %v1475
      %v1482 = vsel %vm1229, %v1479, -inf
      %1483 = vmax.xlane.f32.xlu0 %v1482
      %v1484 = vpop.xlane.xlu0 %1483
      %v1485 = vsel %vm1229, %v1480, -inf
      %1486 = vmax.xlane.f32.xlu0 %v1485
      %v1487 = vpop.xlane.xlu0 %1486
      %v1488 = vsel %vm1229, %v1481, -inf
      %1489 = vmax.xlane.f32.xlu0 %v1488
      %v1490 = vpop.xlane.xlu0 %1489
      %v1491 = vsub.f32 %v1479, %v1484
      %v1492 = vsub.f32 %v1480, %v1487
      %v1493 = vsub.f32 %v1481, %v1490
      %v1494 = vmul.f32 %v1491, 1.442695
      %v1495 = vpow.pop %v1494
      %v1496 = vmul.f32 %v1492, 1.442695
      %v1497 = vpow.pop %v1496
      %v1498 = vmul.f32 %v1493, 1.442695
      %v1499 = vpow.pop %v1498
      %v1500 = vsel %vm1229, %v1495, 0.0
      %1501 = vadd.xlane.f32.xlu0 %v1500
      %v1502 = vpop.xlane.xlu0 %1501
      %v1503 = vsel %vm1229, %v1497, 0.0
      %1504 = vadd.xlane.f32.xlu0 %v1503
      %v1505 = vpop.xlane.xlu0 %1504
      %v1506 = vsel %vm1229, %v1499, 0.0
      %1507 = vadd.xlane.f32.xlu0 %v1506
      %v1508 = vpop.xlane.xlu0 %1507
      %v1509 = vrcp.pop %v1502
      %v1510 = vmul.f32 %v1495, %v1509
      %v1511 = vrcp.pop %v1505
      %v1512 = vmul.f32 %v1497, %v1511
      %v1513 = vrcp.pop %v1508
      %v1514 = vmul.f32 %v1499, %v1513
      %v1516 = vsel %vm1229, %v1510, 0
      %1518 = vmatprep.subr.mxu0 0.0
      %1519 = vmatpush1.msra.mxu0 %v1216
      %1520 = vmatprep.subr.mxu0 0.0
      %1521 = vmatpush1.msra.mxu0 0.0
      %1522 = vmatprep.subr.mxu0 0.0
      %1523 = vmatpush1.msra.mxu0 0.0
      %1524 = vmatprep.subr.mxu0 0.0
      %1525 = vmatpush1.msra.mxu0 0.0
      %1526 = vmatprep.subr.mxu0 0.0
      %1527 = vmatpush1.msra.mxu0 0.0
      %1528 = vmatprep.subr.mxu0 0.0
      %1529 = vmatpush1.msra.mxu0 0.0
      %1530 = vmatprep.subr.mxu0 0.0
      %1531 = vmatpush1.msra.mxu0 0.0
      %1532 = vmatprep.subr.mxu0 0.0
      %1533 = vmatpush1.msra.mxu0 0.0
      %1534 = vmatprep.subr.mxu0 0.0
      %1535 = vmatpush1.msra.mxu0 0.0
      %1536 = vmatprep.subr.mxu0 0.0
      %1537 = vmatpush1.msra.mxu0 0.0
      %1538 = vmatprep.subr.mxu0 0.0
      %1539 = vmatpush1.msra.mxu0 0.0
      %1540 = vmatprep.subr.mxu0 0.0
      %1541 = vmatpush1.msra.mxu0 0.0
      %1542 = vmatprep.subr.mxu0 0.0
      %1543 = vmatpush1.msra.mxu0 0.0
      %1544 = vmatprep.subr.mxu0 0.0
      %1545 = vmatpush1.msra.mxu0 0.0
      %1546 = vmatprep.subr.mxu0 0.0
      %1547 = vmatpush1.msra.mxu0 0.0
      %1548 = vmatprep.subr.mxu0 0.0
      %1549 = vmatpush1.msra.mxu0 0.0
      %1550 = vmatprep.subr.mxu0 0.0
      %1551 = vmatpush1.msra.mxu0 0.0
      %1552 = vmatprep.subr.mxu0 0.0
      %1553 = vmatpush1.msra.mxu0 0.0
      %1554 = vmatprep.subr.mxu0 0.0
      %1555 = vmatpush1.msra.mxu0 0.0
      %1556 = vmatprep.subr.mxu0 0.0
      %1557 = vmatpush1.msra.mxu0 0.0
      %1558 = vmatprep.subr.mxu0 0.0
      %1559 = vmatpush1.msra.mxu0 0.0
      %1560 = vmatprep.subr.mxu0 0.0
      %1561 = vmatpush1.msra.mxu0 0.0
      %1562 = vmatprep.subr.mxu0 0.0
      %1563 = vmatpush1.msra.mxu0 0.0
      %1564 = vmatprep.subr.mxu0 0.0
      %1565 = vmatpush1.msra.mxu0 0.0
      %1566 = vmatprep.subr.mxu0 0.0
      %1567 = vmatpush1.msra.mxu0 0.0
      %1568 = vmatprep.subr.mxu0 0.0
      %1569 = vmatpush1.msra.mxu0 0.0
      %1570 = vmatprep.subr.mxu0 0.0
      %1571 = vmatpush1.msra.mxu0 0.0
      %1572 = vmatprep.subr.mxu0 0.0
      %1573 = vmatpush1.msra.mxu0 0.0
      %1574 = vmatprep.subr.mxu0 0.0
      %1575 = vmatpush1.msra.mxu0 0.0
      %1576 = vmatprep.subr.mxu0 0.0
      %1577 = vmatpush1.msra.mxu0 0.0
      %1578 = vmatprep.subr.mxu0 0.0
      %1579 = vmatpush1.msra.mxu0 0.0
      %1580 = vmatprep.subr.mxu0 0.0
      %1581 = vmatpush1.msra.mxu0 0.0
      %1582 = vmatprep.mubr.f32.mxu0 0.0
      %1583 = vmatmul.mubr.f32.gmra.mrb[0].mxu0 %v1516
      %v1584 = vpop.f32.mrb[0].mxu0
      %v1585 = vadd.f32 0.0, %v1584
      %v1586 = vpop.f32.mrb[0].mxu0
      %1587 = vdwg.mxu0
      %v1589 = vsel %vm1229, %v1512, 0
      %1591 = vmatprep.subr.mxu0 0.0
      %1592 = vmatpush1.msra.mxu0 %v1221
      %1593 = vmatprep.subr.mxu0 0.0
      %1594 = vmatpush1.msra.mxu0 0.0
      %1595 = vmatprep.subr.mxu0 0.0
      %1596 = vmatpush1.msra.mxu0 0.0
      %1597 = vmatprep.subr.mxu0 0.0
      %1598 = vmatpush1.msra.mxu0 0.0
      %1599 = vmatprep.subr.mxu0 0.0
      %1600 = vmatpush1.msra.mxu0 0.0
      %1601 = vmatprep.subr.mxu0 0.0
      %1602 = vmatpush1.msra.mxu0 0.0
      %1603 = vmatprep.subr.mxu0 0.0
      %1604 = vmatpush1.msra.mxu0 0.0
      %1605 = vmatprep.subr.mxu0 0.0
      %1606 = vmatpush1.msra.mxu0 0.0
      %1607 = vmatprep.subr.mxu0 0.0
      %1608 = vmatpush1.msra.mxu0 0.0
      %1609 = vmatprep.subr.mxu0 0.0
      %1610 = vmatpush1.msra.mxu0 0.0
      %1611 = vmatprep.subr.mxu0 0.0
      %1612 = vmatpush1.msra.mxu0 0.0
      %1613 = vmatprep.subr.mxu0 0.0
      %1614 = vmatpush1.msra.mxu0 0.0
      %1615 = vmatprep.subr.mxu0 0.0
      %1616 = vmatpush1.msra.mxu0 0.0
      %1617 = vmatprep.subr.mxu0 0.0
      %1618 = vmatpush1.msra.mxu0 0.0
      %1619 = vmatprep.subr.mxu0 0.0
      %1620 = vmatpush1.msra.mxu0 0.0
      %1621 = vmatprep.subr.mxu0 0.0
      %1622 = vmatpush1.msra.mxu0 0.0
      %1623 = vmatprep.subr.mxu0 0.0
      %1624 = vmatpush1.msra.mxu0 0.0
      %1625 = vmatprep.subr.mxu0 0.0
      %1626 = vmatpush1.msra.mxu0 0.0
      %1627 = vmatprep.subr.mxu0 0.0
      %1628 = vmatpush1.msra.mxu0 0.0
      %1629 = vmatprep.subr.mxu0 0.0
      %1630 = vmatpush1.msra.mxu0 0.0
      %1631 = vmatprep.subr.mxu0 0.0
      %1632 = vmatpush1.msra.mxu0 0.0
      %1633 = vmatprep.subr.mxu0 0.0
      %1634 = vmatpush1.msra.mxu0 0.0
      %1635 = vmatprep.subr.mxu0 0.0
      %1636 = vmatpush1.msra.mxu0 0.0
      %1637 = vmatprep.subr.mxu0 0.0
      %1638 = vmatpush1.msra.mxu0 0.0
      %1639 = vmatprep.subr.mxu0 0.0
      %1640 = vmatpush1.msra.mxu0 0.0
      %1641 = vmatprep.subr.mxu0 0.0
      %1642 = vmatpush1.msra.mxu0 0.0
      %1643 = vmatprep.subr.mxu0 0.0
      %1644 = vmatpush1.msra.mxu0 0.0
      %1645 = vmatprep.subr.mxu0 0.0
      %1646 = vmatpush1.msra.mxu0 0.0
      %1647 = vmatprep.subr.mxu0 0.0
      %1648 = vmatpush1.msra.mxu0 0.0
      %1649 = vmatprep.subr.mxu0 0.0
      %1650 = vmatpush1.msra.mxu0 0.0
      %1651 = vmatprep.subr.mxu0 0.0
      %1652 = vmatpush1.msra.mxu0 0.0
      %1653 = vmatprep.subr.mxu0 0.0
      %1654 = vmatpush1.msra.mxu0 0.0
      %1655 = vmatprep.mubr.f32.mxu0 0.0
      %1656 = vmatmul.mubr.f32.gmra.mrb[0].mxu0 %v1589
      %v1657 = vpop.f32.mrb[0].mxu0
      %v1658 = vadd.f32 0.0, %v1657
      %v1659 = vpop.f32.mrb[0].mxu0
      %1660 = vdwg.mxu0
      %v1662 = vsel %vm1229, %v1514, 0
      %1664 = vmatprep.subr.mxu0 0.0
      %1665 = vmatpush1.msra.mxu0 %v1226
      %1666 = vmatprep.subr.mxu0 0.0
      %1667 = vmatpush1.msra.mxu0 0.0
      %1668 = vmatprep.subr.mxu0 0.0
      %1669 = vmatpush1.msra.mxu0 0.0
      %1670 = vmatprep.subr.mxu0 0.0
      %1671 = vmatpush1.msra.mxu0 0.0
      %1672 = vmatprep.subr.mxu0 0.0
      %1673 = vmatpush1.msra.mxu0 0.0
      %1674 = vmatprep.subr.mxu0 0.0
      %1675 = vmatpush1.msra.mxu0 0.0
      %1676 = vmatprep.subr.mxu0 0.0
      %1677 = vmatpush1.msra.mxu0 0.0
      %1678 = vmatprep.subr.mxu0 0.0
      %1679 = vmatpush1.msra.mxu0 0.0
      %1680 = vmatprep.subr.mxu0 0.0
      %1681 = vmatpush1.msra.mxu0 0.0
      %1682 = vmatprep.subr.mxu0 0.0
      %1683 = vmatpush1.msra.mxu0 0.0
      %1684 = vmatprep.subr.mxu0 0.0
      %1685 = vmatpush1.msra.mxu0 0.0
      %1686 = vmatprep.subr.mxu0 0.0
      %1687 = vmatpush1.msra.mxu0 0.0
      %1688 = vmatprep.subr.mxu0 0.0
      %1689 = vmatpush1.msra.mxu0 0.0
      %1690 = vmatprep.subr.mxu0 0.0
      %1691 = vmatpush1.msra.mxu0 0.0
      %1692 = vmatprep.subr.mxu0 0.0
      %1693 = vmatpush1.msra.mxu0 0.0
      %1694 = vmatprep.subr.mxu0 0.0
      %1695 = vmatpush1.msra.mxu0 0.0
      %1696 = vmatprep.subr.mxu0 0.0
      %1697 = vmatpush1.msra.mxu0 0.0
      %1698 = vmatprep.subr.mxu0 0.0
      %1699 = vmatpush1.msra.mxu0 0.0
      %1700 = vmatprep.subr.mxu0 0.0
      %1701 = vmatpush1.msra.mxu0 0.0
      %1702 = vmatprep.subr.mxu0 0.0
      %1703 = vmatpush1.msra.mxu0 0.0
      %1704 = vmatprep.subr.mxu0 0.0
      %1705 = vmatpush1.msra.mxu0 0.0
      %1706 = vmatprep.subr.mxu0 0.0
      %1707 = vmatpush1.msra.mxu0 0.0
      %1708 = vmatprep.subr.mxu0 0.0
      %1709 = vmatpush1.msra.mxu0 0.0
      %1710 = vmatprep.subr.mxu0 0.0
      %1711 = vmatpush1.msra.mxu0 0.0
      %1712 = vmatprep.subr.mxu0 0.0
      %1713 = vmatpush1.msra.mxu0 0.0
      %1714 = vmatprep.subr.mxu0 0.0
      %1715 = vmatpush1.msra.mxu0 0.0
      %1716 = vmatprep.subr.mxu0 0.0
      %1717 = vmatpush1.msra.mxu0 0.0
      %1718 = vmatprep.subr.mxu0 0.0
      %1719 = vmatpush1.msra.mxu0 0.0
      %1720 = vmatprep.subr.mxu0 0.0
      %1721 = vmatpush1.msra.mxu0 0.0
      %1722 = vmatprep.subr.mxu0 0.0
      %1723 = vmatpush1.msra.mxu0 0.0
      %1724 = vmatprep.subr.mxu0 0.0
      %1725 = vmatpush1.msra.mxu0 0.0
      %1726 = vmatprep.subr.mxu0 0.0
      %1727 = vmatpush1.msra.mxu0 0.0
      %1728 = vmatprep.mubr.f32.mxu0 0.0
      %1729 = vmatmul.mubr.f32.gmra.mrb[0].mxu0 %v1662
      %v1730 = vpop.f32.mrb[0].mxu0
      %v1731 = vadd.f32 0.0, %v1730
      %v1732 = vpop.f32.mrb[0].mxu0
      %1733 = vdwg.mxu0
      %v1735 = vlaneseq
      %v1736 = vshrl.u32 %v1735, 7
      %v1737 = vsub.s32 0, %v1736
      %v1738 = vrot.slane %v913, %v1737
      %1740 = vmatprep.subr.mxu0 0.0
      %1741 = vmatpush1.msra.mxu0 %v900
      %1742 = vmatprep.subr.mxu0 0.0
      %1743 = vmatpush1.msra.mxu0 %v901
      %1744 = vmatprep.subr.mxu0 0.0
      %1745 = vmatpush1.msra.mxu0 %v902
      %1746 = vmatprep.subr.mxu0 0.0
      %1747 = vmatpush1.msra.mxu0 %v903
      %1748 = vmatprep.subr.mxu0 0.0
      %1749 = vmatpush1.msra.mxu0 0.0
      %1750 = vmatprep.subr.mxu0 0.0
      %1751 = vmatpush1.msra.mxu0 0.0
      %1752 = vmatprep.subr.mxu0 0.0
      %1753 = vmatpush1.msra.mxu0 0.0
      %1754 = vmatprep.subr.mxu0 0.0
      %1755 = vmatpush1.msra.mxu0 0.0
      %1756 = vmatprep.subr.mxu0 0.0
      %1757 = vmatpush1.msra.mxu0 0.0
      %1758 = vmatprep.subr.mxu0 0.0
      %1759 = vmatpush1.msra.mxu0 0.0
      %1760 = vmatprep.subr.mxu0 0.0
      %1761 = vmatpush1.msra.mxu0 0.0
      %1762 = vmatprep.subr.mxu0 0.0
      %1763 = vmatpush1.msra.mxu0 0.0
      %1764 = vmatprep.subr.mxu0 0.0
      %1765 = vmatpush1.msra.mxu0 0.0
      %1766 = vmatprep.subr.mxu0 0.0
      %1767 = vmatpush1.msra.mxu0 0.0
      %1768 = vmatprep.subr.mxu0 0.0
      %1769 = vmatpush1.msra.mxu0 0.0
      %1770 = vmatprep.subr.mxu0 0.0
      %1771 = vmatpush1.msra.mxu0 0.0
      %1772 = vmatprep.subr.mxu0 0.0
      %1773 = vmatpush1.msra.mxu0 0.0
      %1774 = vmatprep.subr.mxu0 0.0
      %1775 = vmatpush1.msra.mxu0 0.0
      %1776 = vmatprep.subr.mxu0 0.0
      %1777 = vmatpush1.msra.mxu0 0.0
      %1778 = vmatprep.subr.mxu0 0.0
      %1779 = vmatpush1.msra.mxu0 0.0
      %1780 = vmatprep.subr.mxu0 0.0
      %1781 = vmatpush1.msra.mxu0 0.0
      %1782 = vmatprep.subr.mxu0 0.0
      %1783 = vmatpush1.msra.mxu0 0.0
      %1784 = vmatprep.subr.mxu0 0.0
      %1785 = vmatpush1.msra.mxu0 0.0
      %1786 = vmatprep.subr.mxu0 0.0
      %1787 = vmatpush1.msra.mxu0 0.0
      %1788 = vmatprep.subr.mxu0 0.0
      %1789 = vmatpush1.msra.mxu0 0.0
      %1790 = vmatprep.subr.mxu0 0.0
      %1791 = vmatpush1.msra.mxu0 0.0
      %1792 = vmatprep.subr.mxu0 0.0
      %1793 = vmatpush1.msra.mxu0 0.0
      %1794 = vmatprep.subr.mxu0 0.0
      %1795 = vmatpush1.msra.mxu0 0.0
      %1796 = vmatprep.subr.mxu0 0.0
      %1797 = vmatpush1.msra.mxu0 0.0
      %1798 = vmatprep.subr.mxu0 0.0
      %1799 = vmatpush1.msra.mxu0 0.0
      %1800 = vmatprep.subr.mxu0 0.0
      %1801 = vmatpush1.msra.mxu0 0.0
      %1802 = vmatprep.subr.mxu0 0.0
      %1803 = vmatpush1.msra.mxu0 0.0
      %1804 = vmatprep.mubr.f32.mxu0 0.0
      %1805 = vmatmul.mubr.f32.gmra.mrb[0].mxu0 %v969
      %v1806 = vpop.f32.mrb[0].mxu0
      %v1807 = vadd.f32 %v1738, %v1806
      %v1808 = vpop.f32.mrb[0].mxu0
      %1809 = vmatprep.mubr.f32.mxu0 0.0
      %1810 = vmatmul.mubr.f32.gmra.mrb[0].mxu0 %v972
      %v1811 = vpop.f32.mrb[0].mxu0
      %v1812 = vadd.f32 %v1738, %v1811
      %v1813 = vpop.f32.mrb[0].mxu0
      %1814 = vmatprep.mubr.f32.mxu0 0.0
      %1815 = vmatmul.mubr.f32.gmra.mrb[0].mxu0 %v975
      %v1816 = vpop.f32.mrb[0].mxu0
      %v1817 = vadd.f32 %v1738, %v1816
      %v1818 = vpop.f32.mrb[0].mxu0
      %1819 = vdwg.mxu0
      %v1821 = vlaneseq
      %v1822 = vshrl.u32 %v1821, 7
      %v1823 = vsub.s32 0, %v1822
      %v1824 = vrot.slane %v933, %v1823
      %1826 = vmatprep.subr.mxu0 0.0
      %1827 = vmatpush1.msra.mxu0 %v920
      %1828 = vmatprep.subr.mxu0 0.0
      %1829 = vmatpush1.msra.mxu0 %v921
      %1830 = vmatprep.subr.mxu0 0.0
      %1831 = vmatpush1.msra.mxu0 %v922
      %1832 = vmatprep.subr.mxu0 0.0
      %1833 = vmatpush1.msra.mxu0 %v923
      %1834 = vmatprep.subr.mxu0 0.0
      %1835 = vmatpush1.msra.mxu0 0.0
      %1836 = vmatprep.subr.mxu0 0.0
      %1837 = vmatpush1.msra.mxu0 0.0
      %1838 = vmatprep.subr.mxu0 0.0
      %1839 = vmatpush1.msra.mxu0 0.0
      %1840 = vmatprep.subr.mxu0 0.0
      %1841 = vmatpush1.msra.mxu0 0.0
      %1842 = vmatprep.subr.mxu0 0.0
      %1843 = vmatpush1.msra.mxu0 0.0
      %1844 = vmatprep.subr.mxu0 0.0
      %1845 = vmatpush1.msra.mxu0 0.0
      %1846 = vmatprep.subr.mxu0 0.0
      %1847 = vmatpush1.msra.mxu0 0.0
      %1848 = vmatprep.subr.mxu0 0.0
      %1849 = vmatpush1.msra.mxu0 0.0
      %1850 = vmatprep.subr.mxu0 0.0
      %1851 = vmatpush1.msra.mxu0 0.0
      %1852 = vmatprep.subr.mxu0 0.0
      %1853 = vmatpush1.msra.mxu0 0.0
      %1854 = vmatprep.subr.mxu0 0.0
      %1855 = vmatpush1.msra.mxu0 0.0
      %1856 = vmatprep.subr.mxu0 0.0
      %1857 = vmatpush1.msra.mxu0 0.0
      %1858 = vmatprep.subr.mxu0 0.0
      %1859 = vmatpush1.msra.mxu0 0.0
      %1860 = vmatprep.subr.mxu0 0.0
      %1861 = vmatpush1.msra.mxu0 0.0
      %1862 = vmatprep.subr.mxu0 0.0
      %1863 = vmatpush1.msra.mxu0 0.0
      %1864 = vmatprep.subr.mxu0 0.0
      %1865 = vmatpush1.msra.mxu0 0.0
      %1866 = vmatprep.subr.mxu0 0.0
      %1867 = vmatpush1.msra.mxu0 0.0
      %1868 = vmatprep.subr.mxu0 0.0
      %1869 = vmatpush1.msra.mxu0 0.0
      %1870 = vmatprep.subr.mxu0 0.0
      %1871 = vmatpush1.msra.mxu0 0.0
      %1872 = vmatprep.subr.mxu0 0.0
      %1873 = vmatpush1.msra.mxu0 0.0
      %1874 = vmatprep.subr.mxu0 0.0
      %1875 = vmatpush1.msra.mxu0 0.0
      %1876 = vmatprep.subr.mxu0 0.0
      %1877 = vmatpush1.msra.mxu0 0.0
      %1878 = vmatprep.subr.mxu0 0.0
      %1879 = vmatpush1.msra.mxu0 0.0
      %1880 = vmatprep.subr.mxu0 0.0
      %1881 = vmatpush1.msra.mxu0 0.0
      %1882 = vmatprep.subr.mxu0 0.0
      %1883 = vmatpush1.msra.mxu0 0.0
      %1884 = vmatprep.subr.mxu0 0.0
      %1885 = vmatpush1.msra.mxu0 0.0
      %1886 = vmatprep.subr.mxu0 0.0
      %1887 = vmatpush1.msra.mxu0 0.0
      %1888 = vmatprep.subr.mxu0 0.0
      %1889 = vmatpush1.msra.mxu0 0.0
      %1890 = vmatprep.mubr.f32.mxu0 0.0
      %1891 = vmatmul.mubr.f32.gmra.mrb[0].mxu0 %v969
      %v1892 = vpop.f32.mrb[0].mxu0
      %v1893 = vadd.f32 %v1824, %v1892
      %v1894 = vpop.f32.mrb[0].mxu0
      %1895 = vmatprep.mubr.f32.mxu0 0.0
      %1896 = vmatmul.mubr.f32.gmra.mrb[0].mxu0 %v972
      %v1897 = vpop.f32.mrb[0].mxu0
      %v1898 = vadd.f32 %v1824, %v1897
      %v1899 = vpop.f32.mrb[0].mxu0
      %1900 = vmatprep.mubr.f32.mxu0 0.0
      %1901 = vmatmul.mubr.f32.gmra.mrb[0].mxu0 %v975
      %v1902 = vpop.f32.mrb[0].mxu0
      %v1903 = vadd.f32 %v1824, %v1902
      %v1904 = vpop.f32.mrb[0].mxu0
      %1905 = vdwg.mxu0
      %v1907 = vlaneseq
      %v1908 = vshrl.u32 %v1907, 7
      %v1909 = vsub.s32 0, %v1908
      %v1910 = vrot.slane %v953, %v1909
      %1912 = vmatprep.subr.mxu0 0.0
      %1913 = vmatpush1.msra.mxu0 %v940
      %1914 = vmatprep.subr.mxu0 0.0
      %1915 = vmatpush1.msra.mxu0 %v941
      %1916 = vmatprep.subr.mxu0 0.0
      %1917 = vmatpush1.msra.mxu0 %v942
      %1918 = vmatprep.subr.mxu0 0.0
      %1919 = vmatpush1.msra.mxu0 %v943
      %1920 = vmatprep.subr.mxu0 0.0
      %1921 = vmatpush1.msra.mxu0 0.0
      %1922 = vmatprep.subr.mxu0 0.0
      %1923 = vmatpush1.msra.mxu0 0.0
      %1924 = vmatprep.subr.mxu0 0.0
      %1925 = vmatpush1.msra.mxu0 0.0
      %1926 = vmatprep.subr.mxu0 0.0
      %1927 = vmatpush1.msra.mxu0 0.0
      %1928 = vmatprep.subr.mxu0 0.0
      %1929 = vmatpush1.msra.mxu0 0.0
      %1930 = vmatprep.subr.mxu0 0.0
      %1931 = vmatpush1.msra.mxu0 0.0
      %1932 = vmatprep.subr.mxu0 0.0
      %1933 = vmatpush1.msra.mxu0 0.0
      %1934 = vmatprep.subr.mxu0 0.0
      %1935 = vmatpush1.msra.mxu0 0.0
      %1936 = vmatprep.subr.mxu0 0.0
      %1937 = vmatpush1.msra.mxu0 0.0
      %1938 = vmatprep.subr.mxu0 0.0
      %1939 = vmatpush1.msra.mxu0 0.0
      %1940 = vmatprep.subr.mxu0 0.0
      %1941 = vmatpush1.msra.mxu0 0.0
      %1942 = vmatprep.subr.mxu0 0.0
      %1943 = vmatpush1.msra.mxu0 0.0
      %1944 = vmatprep.subr.mxu0 0.0
      %1945 = vmatpush1.msra.mxu0 0.0
      %1946 = vmatprep.subr.mxu0 0.0
      %1947 = vmatpush1.msra.mxu0 0.0
      %1948 = vmatprep.subr.mxu0 0.0
      %1949 = vmatpush1.msra.mxu0 0.0
      %1950 = vmatprep.subr.mxu0 0.0
      %1951 = vmatpush1.msra.mxu0 0.0
      %1952 = vmatprep.subr.mxu0 0.0
      %1953 = vmatpush1.msra.mxu0 0.0
      %1954 = vmatprep.subr.mxu0 0.0
      %1955 = vmatpush1.msra.mxu0 0.0
      %1956 = vmatprep.subr.mxu0 0.0
      %1957 = vmatpush1.msra.mxu0 0.0
      %1958 = vmatprep.subr.mxu0 0.0
      %1959 = vmatpush1.msra.mxu0 0.0
      %1960 = vmatprep.subr.mxu0 0.0
      %1961 = vmatpush1.msra.mxu0 0.0
      %1962 = vmatprep.subr.mxu0 0.0
      %1963 = vmatpush1.msra.mxu0 0.0
      %1964 = vmatprep.subr.mxu0 0.0
      %1965 = vmatpush1.msra.mxu0 0.0
      %1966 = vmatprep.subr.mxu0 0.0
      %1967 = vmatpush1.msra.mxu0 0.0
      %1968 = vmatprep.subr.mxu0 0.0
      %1969 = vmatpush1.msra.mxu0 0.0
      %1970 = vmatprep.subr.mxu0 0.0
      %1971 = vmatpush1.msra.mxu0 0.0
      %1972 = vmatprep.subr.mxu0 0.0
      %1973 = vmatpush1.msra.mxu0 0.0
      %1974 = vmatprep.subr.mxu0 0.0
      %1975 = vmatpush1.msra.mxu0 0.0
      %1976 = vmatprep.mubr.f32.mxu0 0.0
      %1977 = vmatmul.mubr.f32.gmra.mrb[0].mxu0 %v969
      %v1978 = vpop.f32.mrb[0].mxu0
      %v1979 = vadd.f32 %v1910, %v1978
      %v1980 = vpop.f32.mrb[0].mxu0
      %1981 = vmatprep.mubr.f32.mxu0 0.0
      %1982 = vmatmul.mubr.f32.gmra.mrb[0].mxu0 %v972
      %v1983 = vpop.f32.mrb[0].mxu0
      %v1984 = vadd.f32 %v1910, %v1983
      %v1985 = vpop.f32.mrb[0].mxu0
      %1986 = vmatprep.mubr.f32.mxu0 0.0
      %1987 = vmatmul.mubr.f32.gmra.mrb[0].mxu0 %v975
      %v1988 = vpop.f32.mrb[0].mxu0
      %v1989 = vadd.f32 %v1910, %v1988
      %v1990 = vpop.f32.mrb[0].mxu0
      %1991 = vdwg.mxu0
      %v1993 = vsel %vm1229, %v1807, 0
      %v1996 = vsel %vm1229, %v1893, 0
      %1998 = vmatprep.subr.mxu0 0.0
      %1999 = vmatpush1.xpose.msra.mxu0 %v1996
      %2000 = vmatprep.subr.mxu0 0.0
      %2001 = vmatpush1.xpose.msra.mxu0 0.0
      %2002 = vmatprep.subr.mxu0 0.0
      %2003 = vmatpush1.xpose.msra.mxu0 0.0
      %2004 = vmatprep.subr.mxu0 0.0
      %2005 = vmatpush1.xpose.msra.mxu0 0.0
      %2006 = vmatprep.subr.mxu0 0.0
      %2007 = vmatpush1.xpose.msra.mxu0 0.0
      %2008 = vmatprep.subr.mxu0 0.0
      %2009 = vmatpush1.xpose.msra.mxu0 0.0
      %2010 = vmatprep.subr.mxu0 0.0
      %2011 = vmatpush1.xpose.msra.mxu0 0.0
      %2012 = vmatprep.subr.mxu0 0.0
      %2013 = vmatpush1.xpose.msra.mxu0 0.0
      %2014 = vmatprep.subr.mxu0 0.0
      %2015 = vmatpush1.xpose.msra.mxu0 0.0
      %2016 = vmatprep.subr.mxu0 0.0
      %2017 = vmatpush1.xpose.msra.mxu0 0.0
      %2018 = vmatprep.subr.mxu0 0.0
      %2019 = vmatpush1.xpose.msra.mxu0 0.0
      %2020 = vmatprep.subr.mxu0 0.0
      %2021 = vmatpush1.xpose.msra.mxu0 0.0
      %2022 = vmatprep.subr.mxu0 0.0
      %2023 = vmatpush1.xpose.msra.mxu0 0.0
      %2024 = vmatprep.subr.mxu0 0.0
      %2025 = vmatpush1.xpose.msra.mxu0 0.0
      %2026 = vmatprep.subr.mxu0 0.0
      %2027 = vmatpush1.xpose.msra.mxu0 0.0
      %2028 = vmatprep.subr.mxu0 0.0
      %2029 = vmatpush1.xpose.msra.mxu0 0.0
      %2030 = vmatprep.subr.mxu0 0.0
      %2031 = vmatpush1.xpose.msra.mxu0 0.0
      %2032 = vmatprep.subr.mxu0 0.0
      %2033 = vmatpush1.xpose.msra.mxu0 0.0
      %2034 = vmatprep.subr.mxu0 0.0
      %2035 = vmatpush1.xpose.msra.mxu0 0.0
      %2036 = vmatprep.subr.mxu0 0.0
      %2037 = vmatpush1.xpose.msra.mxu0 0.0
      %2038 = vmatprep.subr.mxu0 0.0
      %2039 = vmatpush1.xpose.msra.mxu0 0.0
      %2040 = vmatprep.subr.mxu0 0.0
      %2041 = vmatpush1.xpose.msra.mxu0 0.0
      %2042 = vmatprep.subr.mxu0 0.0
      %2043 = vmatpush1.xpose.msra.mxu0 0.0
      %2044 = vmatprep.subr.mxu0 0.0
      %2045 = vmatpush1.xpose.msra.mxu0 0.0
      %2046 = vmatprep.subr.mxu0 0.0
      %2047 = vmatpush1.xpose.msra.mxu0 0.0
      %2048 = vmatprep.subr.mxu0 0.0
      %2049 = vmatpush1.xpose.msra.mxu0 0.0
      %2050 = vmatprep.subr.mxu0 0.0
      %2051 = vmatpush1.xpose.msra.mxu0 0.0
      %2052 = vmatprep.subr.mxu0 0.0
      %2053 = vmatpush1.xpose.msra.mxu0 0.0
      %2054 = vmatprep.subr.mxu0 0.0
      %2055 = vmatpush1.xpose.msra.mxu0 0.0
      %2056 = vmatprep.subr.mxu0 0.0
      %2057 = vmatpush1.xpose.msra.mxu0 0.0
      %2058 = vmatprep.subr.mxu0 0.0
      %2059 = vmatpush1.xpose.msra.mxu0 0.0
      %2060 = vmatprep.subr.mxu0 0.0
      %2061 = vmatpush1.xpose.msra.mxu0 0.0
      %2062 = vmatprep.mubr.f32.mxu0 0.0
      %2063 = vmatmul.mubr.f32.gmra.mrb[0].mxu0 %v1993
      %v2064 = vpop.f32.mrb[0].mxu0
      %v2065 = vadd.f32 0.0, %v2064
      %v2066 = vpop.f32.mrb[0].mxu0
      %2067 = vdwg.mxu0
      %v2069 = vsel %vm1229, %v1812, 0
      %v2072 = vsel %vm1229, %v1898, 0
      %2074 = vmatprep.subr.mxu0 0.0
      %2075 = vmatpush1.xpose.msra.mxu0 %v2072
      %2076 = vmatprep.subr.mxu0 0.0
      %2077 = vmatpush1.xpose.msra.mxu0 0.0
      %2078 = vmatprep.subr.mxu0 0.0
      %2079 = vmatpush1.xpose.msra.mxu0 0.0
      %2080 = vmatprep.subr.mxu0 0.0
      %2081 = vmatpush1.xpose.msra.mxu0 0.0
      %2082 = vmatprep.subr.mxu0 0.0
      %2083 = vmatpush1.xpose.msra.mxu0 0.0
      %2084 = vmatprep.subr.mxu0 0.0
      %2085 = vmatpush1.xpose.msra.mxu0 0.0
      %2086 = vmatprep.subr.mxu0 0.0
      %2087 = vmatpush1.xpose.msra.mxu0 0.0
      %2088 = vmatprep.subr.mxu0 0.0
      %2089 = vmatpush1.xpose.msra.mxu0 0.0
      %2090 = vmatprep.subr.mxu0 0.0
      %2091 = vmatpush1.xpose.msra.mxu0 0.0
      %2092 = vmatprep.subr.mxu0 0.0
      %2093 = vmatpush1.xpose.msra.mxu0 0.0
      %2094 = vmatprep.subr.mxu0 0.0
      %2095 = vmatpush1.xpose.msra.mxu0 0.0
      %2096 = vmatprep.subr.mxu0 0.0
      %2097 = vmatpush1.xpose.msra.mxu0 0.0
      %2098 = vmatprep.subr.mxu0 0.0
      %2099 = vmatpush1.xpose.msra.mxu0 0.0
      %2100 = vmatprep.subr.mxu0 0.0
      %2101 = vmatpush1.xpose.msra.mxu0 0.0
      %2102 = vmatprep.subr.mxu0 0.0
      %2103 = vmatpush1.xpose.msra.mxu0 0.0
      %2104 = vmatprep.subr.mxu0 0.0
      %2105 = vmatpush1.xpose.msra.mxu0 0.0
      %2106 = vmatprep.subr.mxu0 0.0
      %2107 = vmatpush1.xpose.msra.mxu0 0.0
      %2108 = vmatprep.subr.mxu0 0.0
      %2109 = vmatpush1.xpose.msra.mxu0 0.0
      %2110 = vmatprep.subr.mxu0 0.0
      %2111 = vmatpush1.xpose.msra.mxu0 0.0
      %2112 = vmatprep.subr.mxu0 0.0
      %2113 = vmatpush1.xpose.msra.mxu0 0.0
      %2114 = vmatprep.subr.mxu0 0.0
      %2115 = vmatpush1.xpose.msra.mxu0 0.0
      %2116 = vmatprep.subr.mxu0 0.0
      %2117 = vmatpush1.xpose.msra.mxu0 0.0
      %2118 = vmatprep.subr.mxu0 0.0
      %2119 = vmatpush1.xpose.msra.mxu0 0.0
      %2120 = vmatprep.subr.mxu0 0.0
      %2121 = vmatpush1.xpose.msra.mxu0 0.0
      %2122 = vmatprep.subr.mxu0 0.0
      %2123 = vmatpush1.xpose.msra.mxu0 0.0
      %2124 = vmatprep.subr.mxu0 0.0
      %2125 = vmatpush1.xpose.msra.mxu0 0.0
      %2126 = vmatprep.subr.mxu0 0.0
      %2127 = vmatpush1.xpose.msra.mxu0 0.0
      %2128 = vmatprep.subr.mxu0 0.0
      %2129 = vmatpush1.xpose.msra.mxu0 0.0
      %2130 = vmatprep.subr.mxu0 0.0
      %2131 = vmatpush1.xpose.msra.mxu0 0.0
      %2132 = vmatprep.subr.mxu0 0.0
      %2133 = vmatpush1.xpose.msra.mxu0 0.0
      %2134 = vmatprep.subr.mxu0 0.0
      %2135 = vmatpush1.xpose.msra.mxu0 0.0
      %2136 = vmatprep.subr.mxu0 0.0
      %2137 = vmatpush1.xpose.msra.mxu0 0.0
      %2138 = vmatprep.mubr.f32.mxu0 0.0
      %2139 = vmatmul.mubr.f32.gmra.mrb[0].mxu0 %v2069
      %v2140 = vpop.f32.mrb[0].mxu0
      %v2141 = vadd.f32 0.0, %v2140
      %v2142 = vpop.f32.mrb[0].mxu0
      %2143 = vdwg.mxu0
      %v2145 = vsel %vm1229, %v1817, 0
      %v2148 = vsel %vm1229, %v1903, 0
      %2150 = vmatprep.subr.mxu0 0.0
      %2151 = vmatpush1.xpose.msra.mxu0 %v2148
      %2152 = vmatprep.subr.mxu0 0.0
      %2153 = vmatpush1.xpose.msra.mxu0 0.0
      %2154 = vmatprep.subr.mxu0 0.0
      %2155 = vmatpush1.xpose.msra.mxu0 0.0
      %2156 = vmatprep.subr.mxu0 0.0
      %2157 = vmatpush1.xpose.msra.mxu0 0.0
      %2158 = vmatprep.subr.mxu0 0.0
      %2159 = vmatpush1.xpose.msra.mxu0 0.0
      %2160 = vmatprep.subr.mxu0 0.0
      %2161 = vmatpush1.xpose.msra.mxu0 0.0
      %2162 = vmatprep.subr.mxu0 0.0
      %2163 = vmatpush1.xpose.msra.mxu0 0.0
      %2164 = vmatprep.subr.mxu0 0.0
      %2165 = vmatpush1.xpose.msra.mxu0 0.0
      %2166 = vmatprep.subr.mxu0 0.0
      %2167 = vmatpush1.xpose.msra.mxu0 0.0
      %2168 = vmatprep.subr.mxu0 0.0
      %2169 = vmatpush1.xpose.msra.mxu0 0.0
      %2170 = vmatprep.subr.mxu0 0.0
      %2171 = vmatpush1.xpose.msra.mxu0 0.0
      %2172 = vmatprep.subr.mxu0 0.0
      %2173 = vmatpush1.xpose.msra.mxu0 0.0
      %2174 = vmatprep.subr.mxu0 0.0
      %2175 = vmatpush1.xpose.msra.mxu0 0.0
      %2176 = vmatprep.subr.mxu0 0.0
      %2177 = vmatpush1.xpose.msra.mxu0 0.0
      %2178 = vmatprep.subr.mxu0 0.0
      %2179 = vmatpush1.xpose.msra.mxu0 0.0
      %2180 = vmatprep.subr.mxu0 0.0
      %2181 = vmatpush1.xpose.msra.mxu0 0.0
      %2182 = vmatprep.subr.mxu0 0.0
      %2183 = vmatpush1.xpose.msra.mxu0 0.0
      %2184 = vmatprep.subr.mxu0 0.0
      %2185 = vmatpush1.xpose.msra.mxu0 0.0
      %2186 = vmatprep.subr.mxu0 0.0
      %2187 = vmatpush1.xpose.msra.mxu0 0.0
      %2188 = vmatprep.subr.mxu0 0.0
      %2189 = vmatpush1.xpose.msra.mxu0 0.0
      %2190 = vmatprep.subr.mxu0 0.0
      %2191 = vmatpush1.xpose.msra.mxu0 0.0
      %2192 = vmatprep.subr.mxu0 0.0
      %2193 = vmatpush1.xpose.msra.mxu0 0.0
      %2194 = vmatprep.subr.mxu0 0.0
      %2195 = vmatpush1.xpose.msra.mxu0 0.0
      %2196 = vmatprep.subr.mxu0 0.0
      %2197 = vmatpush1.xpose.msra.mxu0 0.0
      %2198 = vmatprep.subr.mxu0 0.0
      %2199 = vmatpush1.xpose.msra.mxu0 0.0
      %2200 = vmatprep.subr.mxu0 0.0
      %2201 = vmatpush1.xpose.msra.mxu0 0.0
      %2202 = vmatprep.subr.mxu0 0.0
      %2203 = vmatpush1.xpose.msra.mxu0 0.0
      %2204 = vmatprep.subr.mxu0 0.0
      %2205 = vmatpush1.xpose.msra.mxu0 0.0
      %2206 = vmatprep.subr.mxu0 0.0
      %2207 = vmatpush1.xpose.msra.mxu0 0.0
      %2208 = vmatprep.subr.mxu0 0.0
      %2209 = vmatpush1.xpose.msra.mxu0 0.0
      %2210 = vmatprep.subr.mxu0 0.0
      %2211 = vmatpush1.xpose.msra.mxu0 0.0
      %2212 = vmatprep.subr.mxu0 0.0
      %2213 = vmatpush1.xpose.msra.mxu0 0.0
      %2214 = vmatprep.mubr.f32.mxu0 0.0
      %2215 = vmatmul.mubr.f32.gmra.mrb[0].mxu0 %v2145
      %v2216 = vpop.f32.mrb[0].mxu0
      %v2217 = vadd.f32 0.0, %v2216
      %v2218 = vpop.f32.mrb[0].mxu0
      %2219 = vdwg.mxu0
      %v2220 = vmul.f32 %v2065, 0.35355338
      %v2221 = vmul.f32 %v2141, 0.35355338
      %v2222 = vmul.f32 %v2217, 0.35355338
      %v2223 = vadd.f32 %v2220, %v1467
      %v2224 = vadd.f32 %v2221, %v1471
      %v2225 = vadd.f32 %v2222, %v1475
      %v2226 = vsel %vm1229, %v2223, -inf
      %2227 = vmax.xlane.f32.xlu0 %v2226
      %v2228 = vpop.xlane.xlu0 %2227
      %v2229 = vsel %vm1229, %v2224, -inf
      %2230 = vmax.xlane.f32.xlu0 %v2229
      %v2231 = vpop.xlane.xlu0 %2230
      %v2232 = vsel %vm1229, %v2225, -inf
      %2233 = vmax.xlane.f32.xlu0 %v2232
      %v2234 = vpop.xlane.xlu0 %2233
      %v2235 = vsub.f32 %v2223, %v2228
      %v2236 = vsub.f32 %v2224, %v2231
      %v2237 = vsub.f32 %v2225, %v2234
      %v2238 = vmul.f32 %v2235, 1.442695
      %v2239 = vpow.pop %v2238
      %v2240 = vmul.f32 %v2236, 1.442695
      %v2241 = vpow.pop %v2240
      %v2242 = vmul.f32 %v2237, 1.442695
      %v2243 = vpow.pop %v2242
      %v2244 = vsel %vm1229, %v2239, 0.0
      %2245 = vadd.xlane.f32.xlu0 %v2244
      %v2246 = vpop.xlane.xlu0 %2245
      %v2247 = vsel %vm1229, %v2241, 0.0
      %2248 = vadd.xlane.f32.xlu0 %v2247
      %v2249 = vpop.xlane.xlu0 %2248
      %v2250 = vsel %vm1229, %v2243, 0.0
      %2251 = vadd.xlane.f32.xlu0 %v2250
      %v2252 = vpop.xlane.xlu0 %2251
      %v2253 = vrcp.pop %v2246
      %v2254 = vmul.f32 %v2239, %v2253
      %v2255 = vrcp.pop %v2249
      %v2256 = vmul.f32 %v2241, %v2255
      %v2257 = vrcp.pop %v2252
      %v2258 = vmul.f32 %v2243, %v2257
      %v2260 = vsel %vm1229, %v2254, 0
      %2262 = vmatprep.subr.mxu0 0.0
      %2263 = vmatpush1.msra.mxu0 %v1979
      %2264 = vmatprep.subr.mxu0 0.0
      %2265 = vmatpush1.msra.mxu0 0.0
      %2266 = vmatprep.subr.mxu0 0.0
      %2267 = vmatpush1.msra.mxu0 0.0
      %2268 = vmatprep.subr.mxu0 0.0
      %2269 = vmatpush1.msra.mxu0 0.0
      %2270 = vmatprep.subr.mxu0 0.0
      %2271 = vmatpush1.msra.mxu0 0.0
      %2272 = vmatprep.subr.mxu0 0.0
      %2273 = vmatpush1.msra.mxu0 0.0
      %2274 = vmatprep.subr.mxu0 0.0
      %2275 = vmatpush1.msra.mxu0 0.0
      %2276 = vmatprep.subr.mxu0 0.0
      %2277 = vmatpush1.msra.mxu0 0.0
      %2278 = vmatprep.subr.mxu0 0.0
      %2279 = vmatpush1.msra.mxu0 0.0
      %2280 = vmatprep.subr.mxu0 0.0
      %2281 = vmatpush1.msra.mxu0 0.0
      %2282 = vmatprep.subr.mxu0 0.0
      %2283 = vmatpush1.msra.mxu0 0.0
      %2284 = vmatprep.subr.mxu0 0.0
      %2285 = vmatpush1.msra.mxu0 0.0
      %2286 = vmatprep.subr.mxu0 0.0
      %2287 = vmatpush1.msra.mxu0 0.0
      %2288 = vmatprep.subr.mxu0 0.0
      %2289 = vmatpush1.msra.mxu0 0.0
      %2290 = vmatprep.subr.mxu0 0.0
      %2291 = vmatpush1.msra.mxu0 0.0
      %2292 = vmatprep.subr.mxu0 0.0
      %2293 = vmatpush1.msra.mxu0 0.0
      %2294 = vmatprep.subr.mxu0 0.0
      %2295 = vmatpush1.msra.mxu0 0.0
      %2296 = vmatprep.subr.mxu0 0.0
      %2297 = vmatpush1.msra.mxu0 0.0
      %2298 = vmatprep.subr.mxu0 0.0
      %2299 = vmatpush1.msra.mxu0 0.0
      %2300 = vmatprep.subr.mxu0 0.0
      %2301 = vmatpush1.msra.mxu0 0.0
      %2302 = vmatprep.subr.mxu0 0.0
      %2303 = vmatpush1.msra.mxu0 0.0
      %2304 = vmatprep.subr.mxu0 0.0
      %2305 = vmatpush1.msra.mxu0 0.0
      %2306 = vmatprep.subr.mxu0 0.0
      %2307 = vmatpush1.msra.mxu0 0.0
      %2308 = vmatprep.subr.mxu0 0.0
      %2309 = vmatpush1.msra.mxu0 0.0
      %2310 = vmatprep.subr.mxu0 0.0
      %2311 = vmatpush1.msra.mxu0 0.0
      %2312 = vmatprep.subr.mxu0 0.0
      %2313 = vmatpush1.msra.mxu0 0.0
      %2314 = vmatprep.subr.mxu0 0.0
      %2315 = vmatpush1.msra.mxu0 0.0
      %2316 = vmatprep.subr.mxu0 0.0
      %2317 = vmatpush1.msra.mxu0 0.0
      %2318 = vmatprep.subr.mxu0 0.0
      %2319 = vmatpush1.msra.mxu0 0.0
      %2320 = vmatprep.subr.mxu0 0.0
      %2321 = vmatpush1.msra.mxu0 0.0
      %2322 = vmatprep.subr.mxu0 0.0
      %2323 = vmatpush1.msra.mxu0 0.0
      %2324 = vmatprep.subr.mxu0 0.0
      %2325 = vmatpush1.msra.mxu0 0.0
      %2326 = vmatprep.mubr.f32.mxu0 0.0
      %2327 = vmatmul.mubr.f32.gmra.mrb[0].mxu0 %v2260
      %v2328 = vpop.f32.mrb[0].mxu0
      %v2329 = vadd.f32 0.0, %v2328
      %v2330 = vpop.f32.mrb[0].mxu0
      %2331 = vdwg.mxu0
      %v2333 = vsel %vm1229, %v2256, 0
      %2335 = vmatprep.subr.mxu0 0.0
      %2336 = vmatpush1.msra.mxu0 %v1984
      %2337 = vmatprep.subr.mxu0 0.0
      %2338 = vmatpush1.msra.mxu0 0.0
      %2339 = vmatprep.subr.mxu0 0.0
      %2340 = vmatpush1.msra.mxu0 0.0
      %2341 = vmatprep.subr.mxu0 0.0
      %2342 = vmatpush1.msra.mxu0 0.0
      %2343 = vmatprep.subr.mxu0 0.0
      %2344 = vmatpush1.msra.mxu0 0.0
      %2345 = vmatprep.subr.mxu0 0.0
      %2346 = vmatpush1.msra.mxu0 0.0
      %2347 = vmatprep.subr.mxu0 0.0
      %2348 = vmatpush1.msra.mxu0 0.0
      %2349 = vmatprep.subr.mxu0 0.0
      %2350 = vmatpush1.msra.mxu0 0.0
      %2351 = vmatprep.subr.mxu0 0.0
      %2352 = vmatpush1.msra.mxu0 0.0
      %2353 = vmatprep.subr.mxu0 0.0
      %2354 = vmatpush1.msra.mxu0 0.0
      %2355 = vmatprep.subr.mxu0 0.0
      %2356 = vmatpush1.msra.mxu0 0.0
      %2357 = vmatprep.subr.mxu0 0.0
      %2358 = vmatpush1.msra.mxu0 0.0
      %2359 = vmatprep.subr.mxu0 0.0
      %2360 = vmatpush1.msra.mxu0 0.0
      %2361 = vmatprep.subr.mxu0 0.0
      %2362 = vmatpush1.msra.mxu0 0.0
      %2363 = vmatprep.subr.mxu0 0.0
      %2364 = vmatpush1.msra.mxu0 0.0
      %2365 = vmatprep.subr.mxu0 0.0
      %2366 = vmatpush1.msra.mxu0 0.0
      %2367 = vmatprep.subr.mxu0 0.0
      %2368 = vmatpush1.msra.mxu0 0.0
      %2369 = vmatprep.subr.mxu0 0.0
      %2370 = vmatpush1.msra.mxu0 0.0
      %2371 = vmatprep.subr.mxu0 0.0
      %2372 = vmatpush1.msra.mxu0 0.0
      %2373 = vmatprep.subr.mxu0 0.0
      %2374 = vmatpush1.msra.mxu0 0.0
      %2375 = vmatprep.subr.mxu0 0.0
      %2376 = vmatpush1.msra.mxu0 0.0
      %2377 = vmatprep.subr.mxu0 0.0
      %2378 = vmatpush1.msra.mxu0 0.0
      %2379 = vmatprep.subr.mxu0 0.0
      %2380 = vmatpush1.msra.mxu0 0.0
      %2381 = vmatprep.subr.mxu0 0.0
      %2382 = vmatpush1.msra.mxu0 0.0
      %2383 = vmatprep.subr.mxu0 0.0
      %2384 = vmatpush1.msra.mxu0 0.0
      %2385 = vmatprep.subr.mxu0 0.0
      %2386 = vmatpush1.msra.mxu0 0.0
      %2387 = vmatprep.subr.mxu0 0.0
      %2388 = vmatpush1.msra.mxu0 0.0
      %2389 = vmatprep.subr.mxu0 0.0
      %2390 = vmatpush1.msra.mxu0 0.0
      %2391 = vmatprep.subr.mxu0 0.0
      %2392 = vmatpush1.msra.mxu0 0.0
      %2393 = vmatprep.subr.mxu0 0.0
      %2394 = vmatpush1.msra.mxu0 0.0
      %2395 = vmatprep.subr.mxu0 0.0
      %2396 = vmatpush1.msra.mxu0 0.0
      %2397 = vmatprep.subr.mxu0 0.0
      %2398 = vmatpush1.msra.mxu0 0.0
      %2399 = vmatprep.mubr.f32.mxu0 0.0
      %2400 = vmatmul.mubr.f32.gmra.mrb[0].mxu0 %v2333
      %v2401 = vpop.f32.mrb[0].mxu0
      %v2402 = vadd.f32 0.0, %v2401
      %v2403 = vpop.f32.mrb[0].mxu0
      %2404 = vdwg.mxu0
      %v2406 = vsel %vm1229, %v2258, 0
      %2408 = vmatprep.subr.mxu0 0.0
      %2409 = vmatpush1.msra.mxu0 %v1989
      %2410 = vmatprep.subr.mxu0 0.0
      %2411 = vmatpush1.msra.mxu0 0.0
      %2412 = vmatprep.subr.mxu0 0.0
      %2413 = vmatpush1.msra.mxu0 0.0
      %2414 = vmatprep.subr.mxu0 0.0
      %2415 = vmatpush1.msra.mxu0 0.0
      %2416 = vmatprep.subr.mxu0 0.0
      %2417 = vmatpush1.msra.mxu0 0.0
      %2418 = vmatprep.subr.mxu0 0.0
      %2419 = vmatpush1.msra.mxu0 0.0
      %2420 = vmatprep.subr.mxu0 0.0
      %2421 = vmatpush1.msra.mxu0 0.0
      %2422 = vmatprep.subr.mxu0 0.0
      %2423 = vmatpush1.msra.mxu0 0.0
      %2424 = vmatprep.subr.mxu0 0.0
      %2425 = vmatpush1.msra.mxu0 0.0
      %2426 = vmatprep.subr.mxu0 0.0
      %2427 = vmatpush1.msra.mxu0 0.0
      %2428 = vmatprep.subr.mxu0 0.0
      %2429 = vmatpush1.msra.mxu0 0.0
      %2430 = vmatprep.subr.mxu0 0.0
      %2431 = vmatpush1.msra.mxu0 0.0
      %2432 = vmatprep.subr.mxu0 0.0
      %2433 = vmatpush1.msra.mxu0 0.0
      %2434 = vmatprep.subr.mxu0 0.0
      %2435 = vmatpush1.msra.mxu0 0.0
      %2436 = vmatprep.subr.mxu0 0.0
      %2437 = vmatpush1.msra.mxu0 0.0
      %2438 = vmatprep.subr.mxu0 0.0
      %2439 = vmatpush1.msra.mxu0 0.0
      %2440 = vmatprep.subr.mxu0 0.0
      %2441 = vmatpush1.msra.mxu0 0.0
      %2442 = vmatprep.subr.mxu0 0.0
      %2443 = vmatpush1.msra.mxu0 0.0
      %2444 = vmatprep.subr.mxu0 0.0
      %2445 = vmatpush1.msra.mxu0 0.0
      %2446 = vmatprep.subr.mxu0 0.0
      %2447 = vmatpush1.msra.mxu0 0.0
      %2448 = vmatprep.subr.mxu0 0.0
      %2449 = vmatpush1.msra.mxu0 0.0
      %2450 = vmatprep.subr.mxu0 0.0
      %2451 = vmatpush1.msra.mxu0 0.0
      %2452 = vmatprep.subr.mxu0 0.0
      %2453 = vmatpush1.msra.mxu0 0.0
      %2454 = vmatprep.subr.mxu0 0.0
      %2455 = vmatpush1.msra.mxu0 0.0
      %2456 = vmatprep.subr.mxu0 0.0
      %2457 = vmatpush1.msra.mxu0 0.0
      %2458 = vmatprep.subr.mxu0 0.0
      %2459 = vmatpush1.msra.mxu0 0.0
      %2460 = vmatprep.subr.mxu0 0.0
      %2461 = vmatpush1.msra.mxu0 0.0
      %2462 = vmatprep.subr.mxu0 0.0
      %2463 = vmatpush1.msra.mxu0 0.0
      %2464 = vmatprep.subr.mxu0 0.0
      %2465 = vmatpush1.msra.mxu0 0.0
      %2466 = vmatprep.subr.mxu0 0.0
      %2467 = vmatpush1.msra.mxu0 0.0
      %2468 = vmatprep.subr.mxu0 0.0
      %2469 = vmatpush1.msra.mxu0 0.0
      %2470 = vmatprep.subr.mxu0 0.0
      %2471 = vmatpush1.msra.mxu0 0.0
      %2472 = vmatprep.mubr.f32.mxu0 0.0
      %2473 = vmatmul.mubr.f32.gmra.mrb[0].mxu0 %v2406
      %v2474 = vpop.f32.mrb[0].mxu0
      %v2475 = vadd.f32 0.0, %v2474
      %v2476 = vpop.f32.mrb[0].mxu0
      %2477 = vdwg.mxu0
      %v2479 = vsel %vm1229, %v2329, 0
      %v2482 = vsel %vm1229, %v2402, 0
      %v2485 = vsel %vm1229, %v2475, 0
      %2487 = vmatprep.subr.mxu0 0.0
      %2488 = vmatpush1.msra.mxu0 %v957
      %2489 = vmatprep.subr.mxu0 0.0
      %2490 = vmatpush1.msra.mxu0 0.0
      %2491 = vmatprep.subr.mxu0 0.0
      %2492 = vmatpush1.msra.mxu0 0.0
      %2493 = vmatprep.subr.mxu0 0.0
      %2494 = vmatpush1.msra.mxu0 0.0
      %2495 = vmatprep.subr.mxu0 0.0
      %2496 = vmatpush1.msra.mxu0 0.0
      %2497 = vmatprep.subr.mxu0 0.0
      %2498 = vmatpush1.msra.mxu0 0.0
      %2499 = vmatprep.subr.mxu0 0.0
      %2500 = vmatpush1.msra.mxu0 0.0
      %2501 = vmatprep.subr.mxu0 0.0
      %2502 = vmatpush1.msra.mxu0 0.0
      %2503 = vmatprep.subr.mxu0 0.0
      %2504 = vmatpush1.msra.mxu0 0.0
      %2505 = vmatprep.subr.mxu0 0.0
      %2506 = vmatpush1.msra.mxu0 0.0
      %2507 = vmatprep.subr.mxu0 0.0
      %2508 = vmatpush1.msra.mxu0 0.0
      %2509 = vmatprep.subr.mxu0 0.0
      %2510 = vmatpush1.msra.mxu0 0.0
      %2511 = vmatprep.subr.mxu0 0.0
      %2512 = vmatpush1.msra.mxu0 0.0
      %2513 = vmatprep.subr.mxu0 0.0
      %2514 = vmatpush1.msra.mxu0 0.0
      %2515 = vmatprep.subr.mxu0 0.0
      %2516 = vmatpush1.msra.mxu0 0.0
      %2517 = vmatprep.subr.mxu0 0.0
      %2518 = vmatpush1.msra.mxu0 0.0
      %2519 = vmatprep.subr.mxu0 0.0
      %2520 = vmatpush1.msra.mxu0 0.0
      %2521 = vmatprep.subr.mxu0 0.0
      %2522 = vmatpush1.msra.mxu0 0.0
      %2523 = vmatprep.subr.mxu0 0.0
      %2524 = vmatpush1.msra.mxu0 0.0
      %2525 = vmatprep.subr.mxu0 0.0
      %2526 = vmatpush1.msra.mxu0 0.0
      %2527 = vmatprep.subr.mxu0 0.0
      %2528 = vmatpush1.msra.mxu0 0.0
      %2529 = vmatprep.subr.mxu0 0.0
      %2530 = vmatpush1.msra.mxu0 0.0
      %2531 = vmatprep.subr.mxu0 0.0
      %2532 = vmatpush1.msra.mxu0 0.0
      %2533 = vmatprep.subr.mxu0 0.0
      %2534 = vmatpush1.msra.mxu0 0.0
      %2535 = vmatprep.subr.mxu0 0.0
      %2536 = vmatpush1.msra.mxu0 0.0
      %2537 = vmatprep.subr.mxu0 0.0
      %2538 = vmatpush1.msra.mxu0 0.0
      %2539 = vmatprep.subr.mxu0 0.0
      %2540 = vmatpush1.msra.mxu0 0.0
      %2541 = vmatprep.subr.mxu0 0.0
      %2542 = vmatpush1.msra.mxu0 0.0
      %2543 = vmatprep.subr.mxu0 0.0
      %2544 = vmatpush1.msra.mxu0 0.0
      %2545 = vmatprep.subr.mxu0 0.0
      %2546 = vmatpush1.msra.mxu0 0.0
      %2547 = vmatprep.subr.mxu0 0.0
      %2548 = vmatpush1.msra.mxu0 0.0
      %2549 = vmatprep.subr.mxu0 0.0
      %2550 = vmatpush1.msra.mxu0 0.0
      %2551 = vmatprep.mubr.f32.mxu0 0.0
      %2552 = vmatmul.mubr.f32.gmra.mrb[0].mxu0 %v2479
      %v2553 = vpop.f32.mrb[0].mxu0
      %v2554 = vadd.f32 0.0, %v2553
      %v2555 = vpop.f32.mrb[0].mxu0
      %2556 = vmatprep.mubr.f32.mxu0 0.0
      %2557 = vmatmul.mubr.f32.gmra.mrb[0].mxu0 %v2482
      %v2558 = vpop.f32.mrb[0].mxu0
      %v2559 = vadd.f32 0.0, %v2558
      %v2560 = vpop.f32.mrb[0].mxu0
      %2561 = vmatprep.mubr.f32.mxu0 0.0
      %2562 = vmatmul.mubr.f32.gmra.mrb[0].mxu0 %v2485
      %v2563 = vpop.f32.mrb[0].mxu0
      %v2564 = vadd.f32 0.0, %v2563
      %v2565 = vpop.f32.mrb[0].mxu0
      %2566 = vdwg.mxu0
      %v2568 = vsel %vm1229, %v1585, 0
      %v2571 = vsel %vm1229, %v1658, 0
      %v2574 = vsel %vm1229, %v1731, 0
      %2576 = vmatprep.subr.mxu0 0.0
      %2577 = vmatpush1.msra.mxu0 %v956
      %2578 = vmatprep.subr.mxu0 0.0
      %2579 = vmatpush1.msra.mxu0 0.0
      %2580 = vmatprep.subr.mxu0 0.0
      %2581 = vmatpush1.msra.mxu0 0.0
      %2582 = vmatprep.subr.mxu0 0.0
      %2583 = vmatpush1.msra.mxu0 0.0
      %2584 = vmatprep.subr.mxu0 0.0
      %2585 = vmatpush1.msra.mxu0 0.0
      %2586 = vmatprep.subr.mxu0 0.0
      %2587 = vmatpush1.msra.mxu0 0.0
      %2588 = vmatprep.subr.mxu0 0.0
      %2589 = vmatpush1.msra.mxu0 0.0
      %2590 = vmatprep.subr.mxu0 0.0
      %2591 = vmatpush1.msra.mxu0 0.0
      %2592 = vmatprep.subr.mxu0 0.0
      %2593 = vmatpush1.msra.mxu0 0.0
      %2594 = vmatprep.subr.mxu0 0.0
      %2595 = vmatpush1.msra.mxu0 0.0
      %2596 = vmatprep.subr.mxu0 0.0
      %2597 = vmatpush1.msra.mxu0 0.0
      %2598 = vmatprep.subr.mxu0 0.0
      %2599 = vmatpush1.msra.mxu0 0.0
      %2600 = vmatprep.subr.mxu0 0.0
      %2601 = vmatpush1.msra.mxu0 0.0
      %2602 = vmatprep.subr.mxu0 0.0
      %2603 = vmatpush1.msra.mxu0 0.0
      %2604 = vmatprep.subr.mxu0 0.0
      %2605 = vmatpush1.msra.mxu0 0.0
      %2606 = vmatprep.subr.mxu0 0.0
      %2607 = vmatpush1.msra.mxu0 0.0
      %2608 = vmatprep.subr.mxu0 0.0
      %2609 = vmatpush1.msra.mxu0 0.0
      %2610 = vmatprep.subr.mxu0 0.0
      %2611 = vmatpush1.msra.mxu0 0.0
      %2612 = vmatprep.subr.mxu0 0.0
      %2613 = vmatpush1.msra.mxu0 0.0
      %2614 = vmatprep.subr.mxu0 0.0
      %2615 = vmatpush1.msra.mxu0 0.0
      %2616 = vmatprep.subr.mxu0 0.0
      %2617 = vmatpush1.msra.mxu0 0.0
      %2618 = vmatprep.subr.mxu0 0.0
      %2619 = vmatpush1.msra.mxu0 0.0
      %2620 = vmatprep.subr.mxu0 0.0
      %2621 = vmatpush1.msra.mxu0 0.0
      %2622 = vmatprep.subr.mxu0 0.0
      %2623 = vmatpush1.msra.mxu0 0.0
      %2624 = vmatprep.subr.mxu0 0.0
      %2625 = vmatpush1.msra.mxu0 0.0
      %2626 = vmatprep.subr.mxu0 0.0
      %2627 = vmatpush1.msra.mxu0 0.0
      %2628 = vmatprep.subr.mxu0 0.0
      %2629 = vmatpush1.msra.mxu0 0.0
      %2630 = vmatprep.subr.mxu0 0.0
      %2631 = vmatpush1.msra.mxu0 0.0
      %2632 = vmatprep.subr.mxu0 0.0
      %2633 = vmatpush1.msra.mxu0 0.0
      %2634 = vmatprep.subr.mxu0 0.0
      %2635 = vmatpush1.msra.mxu0 0.0
      %2636 = vmatprep.subr.mxu0 0.0
      %2637 = vmatpush1.msra.mxu0 0.0
      %2638 = vmatprep.subr.mxu0 0.0
      %2639 = vmatpush1.msra.mxu0 0.0
      %2640 = vmatprep.mubr.f32.mxu0 0.0
      %2641 = vmatmul.mubr.f32.gmra.mrb[0].mxu0 %v2568
      %v2642 = vpop.f32.mrb[0].mxu0
      %v2643 = vadd.f32 %v2554, %v2642
      %v2644 = vpop.f32.mrb[0].mxu0
      %2645 = vmatprep.mubr.f32.mxu0 0.0
      %2646 = vmatmul.mubr.f32.gmra.mrb[0].mxu0 %v2571
      %v2647 = vpop.f32.mrb[0].mxu0
      %v2648 = vadd.f32 %v2559, %v2647
      %v2649 = vpop.f32.mrb[0].mxu0
      %2650 = vmatprep.mubr.f32.mxu0 0.0
      %2651 = vmatmul.mubr.f32.gmra.mrb[0].mxu0 %v2574
      %v2652 = vpop.f32.mrb[0].mxu0
      %v2653 = vadd.f32 %v2564, %v2652
      %v2654 = vpop.f32.mrb[0].mxu0
      %2655 = vdwg.mxu0
      %v2657 = vlaneseq
      %v2658 = vshrl.u32 %v2657, 7
      %v2659 = vsub.s32 0, %v2658
      %v2660 = vrot.slane %v914, %v2659
      %2662 = vmatprep.subr.mxu0 0.0
      %2663 = vmatpush1.msra.mxu0 %v904
      %2664 = vmatprep.subr.mxu0 0.0
      %2665 = vmatpush1.msra.mxu0 %v905
      %2666 = vmatprep.subr.mxu0 0.0
      %2667 = vmatpush1.msra.mxu0 %v906
      %2668 = vmatprep.subr.mxu0 0.0
      %2669 = vmatpush1.msra.mxu0 %v907
      %2670 = vmatprep.subr.mxu0 0.0
      %2671 = vmatpush1.msra.mxu0 0.0
      %2672 = vmatprep.subr.mxu0 0.0
      %2673 = vmatpush1.msra.mxu0 0.0
      %2674 = vmatprep.subr.mxu0 0.0
      %2675 = vmatpush1.msra.mxu0 0.0
      %2676 = vmatprep.subr.mxu0 0.0
      %2677 = vmatpush1.msra.mxu0 0.0
      %2678 = vmatprep.subr.mxu0 0.0
      %2679 = vmatpush1.msra.mxu0 0.0
      %2680 = vmatprep.subr.mxu0 0.0
      %2681 = vmatpush1.msra.mxu0 0.0
      %2682 = vmatprep.subr.mxu0 0.0
      %2683 = vmatpush1.msra.mxu0 0.0
      %2684 = vmatprep.subr.mxu0 0.0
      %2685 = vmatpush1.msra.mxu0 0.0
      %2686 = vmatprep.subr.mxu0 0.0
      %2687 = vmatpush1.msra.mxu0 0.0
      %2688 = vmatprep.subr.mxu0 0.0
      %2689 = vmatpush1.msra.mxu0 0.0
      %2690 = vmatprep.subr.mxu0 0.0
      %2691 = vmatpush1.msra.mxu0 0.0
      %2692 = vmatprep.subr.mxu0 0.0
      %2693 = vmatpush1.msra.mxu0 0.0
      %2694 = vmatprep.subr.mxu0 0.0
      %2695 = vmatpush1.msra.mxu0 0.0
      %2696 = vmatprep.subr.mxu0 0.0
      %2697 = vmatpush1.msra.mxu0 0.0
      %2698 = vmatprep.subr.mxu0 0.0
      %2699 = vmatpush1.msra.mxu0 0.0
      %2700 = vmatprep.subr.mxu0 0.0
      %2701 = vmatpush1.msra.mxu0 0.0
      %2702 = vmatprep.subr.mxu0 0.0
      %2703 = vmatpush1.msra.mxu0 0.0
      %2704 = vmatprep.subr.mxu0 0.0
      %2705 = vmatpush1.msra.mxu0 0.0
      %2706 = vmatprep.subr.mxu0 0.0
      %2707 = vmatpush1.msra.mxu0 0.0
      %2708 = vmatprep.subr.mxu0 0.0
      %2709 = vmatpush1.msra.mxu0 0.0
      %2710 = vmatprep.subr.mxu0 0.0
      %2711 = vmatpush1.msra.mxu0 0.0
      %2712 = vmatprep.subr.mxu0 0.0
      %2713 = vmatpush1.msra.mxu0 0.0
      %2714 = vmatprep.subr.mxu0 0.0
      %2715 = vmatpush1.msra.mxu0 0.0
      %2716 = vmatprep.subr.mxu0 0.0
      %2717 = vmatpush1.msra.mxu0 0.0
      %2718 = vmatprep.subr.mxu0 0.0
      %2719 = vmatpush1.msra.mxu0 0.0
      %2720 = vmatprep.subr.mxu0 0.0
      %2721 = vmatpush1.msra.mxu0 0.0
      %2722 = vmatprep.subr.mxu0 0.0
      %2723 = vmatpush1.msra.mxu0 0.0
      %2724 = vmatprep.subr.mxu0 0.0
      %2725 = vmatpush1.msra.mxu0 0.0
      %2726 = vmatprep.mubr.f32.mxu0 0.0
      %2727 = vmatmul.mubr.f32.gmra.mrb[0].mxu0 %v969
      %v2728 = vpop.f32.mrb[0].mxu0
      %v2729 = vadd.f32 %v2660, %v2728
      %v2730 = vpop.f32.mrb[0].mxu0
      %2731 = vmatprep.mubr.f32.mxu0 0.0
      %2732 = vmatmul.mubr.f32.gmra.mrb[0].mxu0 %v972
      %v2733 = vpop.f32.mrb[0].mxu0
      %v2734 = vadd.f32 %v2660, %v2733
      %v2735 = vpop.f32.mrb[0].mxu0
      %2736 = vmatprep.mubr.f32.mxu0 0.0
      %2737 = vmatmul.mubr.f32.gmra.mrb[0].mxu0 %v975
      %v2738 = vpop.f32.mrb[0].mxu0
      %v2739 = vadd.f32 %v2660, %v2738
      %v2740 = vpop.f32.mrb[0].mxu0
      %2741 = vdwg.mxu0
      %v2743 = vlaneseq
      %v2744 = vshrl.u32 %v2743, 7
      %v2745 = vsub.s32 0, %v2744
      %v2746 = vrot.slane %v934, %v2745
      %2748 = vmatprep.subr.mxu0 0.0
      %2749 = vmatpush1.msra.mxu0 %v924
      %2750 = vmatprep.subr.mxu0 0.0
      %2751 = vmatpush1.msra.mxu0 %v925
      %2752 = vmatprep.subr.mxu0 0.0
      %2753 = vmatpush1.msra.mxu0 %v926
      %2754 = vmatprep.subr.mxu0 0.0
      %2755 = vmatpush1.msra.mxu0 %v927
      %2756 = vmatprep.subr.mxu0 0.0
      %2757 = vmatpush1.msra.mxu0 0.0
      %2758 = vmatprep.subr.mxu0 0.0
      %2759 = vmatpush1.msra.mxu0 0.0
      %2760 = vmatprep.subr.mxu0 0.0
      %2761 = vmatpush1.msra.mxu0 0.0
      %2762 = vmatprep.subr.mxu0 0.0
      %2763 = vmatpush1.msra.mxu0 0.0
      %2764 = vmatprep.subr.mxu0 0.0
      %2765 = vmatpush1.msra.mxu0 0.0
      %2766 = vmatprep.subr.mxu0 0.0
      %2767 = vmatpush1.msra.mxu0 0.0
      %2768 = vmatprep.subr.mxu0 0.0
      %2769 = vmatpush1.msra.mxu0 0.0
      %2770 = vmatprep.subr.mxu0 0.0
      %2771 = vmatpush1.msra.mxu0 0.0
      %2772 = vmatprep.subr.mxu0 0.0
      %2773 = vmatpush1.msra.mxu0 0.0
      %2774 = vmatprep.subr.mxu0 0.0
      %2775 = vmatpush1.msra.mxu0 0.0
      %2776 = vmatprep.subr.mxu0 0.0
      %2777 = vmatpush1.msra.mxu0 0.0
      %2778 = vmatprep.subr.mxu0 0.0
      %2779 = vmatpush1.msra.mxu0 0.0
      %2780 = vmatprep.subr.mxu0 0.0
      %2781 = vmatpush1.msra.mxu0 0.0
      %2782 = vmatprep.subr.mxu0 0.0
      %2783 = vmatpush1.msra.mxu0 0.0
      %2784 = vmatprep.subr.mxu0 0.0
      %2785 = vmatpush1.msra.mxu0 0.0
      %2786 = vmatprep.subr.mxu0 0.0
      %2787 = vmatpush1.msra.mxu0 0.0
      %2788 = vmatprep.subr.mxu0 0.0
      %2789 = vmatpush1.msra.mxu0 0.0
      %2790 = vmatprep.subr.mxu0 0.0
      %2791 = vmatpush1.msra.mxu0 0.0
      %2792 = vmatprep.subr.mxu0 0.0
      %2793 = vmatpush1.msra.mxu0 0.0
      %2794 = vmatprep.subr.mxu0 0.0
      %2795 = vmatpush1.msra.mxu0 0.0
      %2796 = vmatprep.subr.mxu0 0.0
      %2797 = vmatpush1.msra.mxu0 0.0
      %2798 = vmatprep.subr.mxu0 0.0
      %2799 = vmatpush1.msra.mxu0 0.0
      %2800 = vmatprep.subr.mxu0 0.0
      %2801 = vmatpush1.msra.mxu0 0.0
      %2802 = vmatprep.subr.mxu0 0.0
      %2803 = vmatpush1.msra.mxu0 0.0
      %2804 = vmatprep.subr.mxu0 0.0
      %2805 = vmatpush1.msra.mxu0 0.0
      %2806 = vmatprep.subr.mxu0 0.0
      %2807 = vmatpush1.msra.mxu0 0.0
      %2808 = vmatprep.subr.mxu0 0.0
      %2809 = vmatpush1.msra.mxu0 0.0
      %2810 = vmatprep.subr.mxu0 0.0
      %2811 = vmatpush1.msra.mxu0 0.0
      %2812 = vmatprep.mubr.f32.mxu0 0.0
      %2813 = vmatmul.mubr.f32.gmra.mrb[0].mxu0 %v969
      %v2814 = vpop.f32.mrb[0].mxu0
      %v2815 = vadd.f32 %v2746, %v2814
      %v2816 = vpop.f32.mrb[0].mxu0
      %2817 = vmatprep.mubr.f32.mxu0 0.0
      %2818 = vmatmul.mubr.f32.gmra.mrb[0].mxu0 %v972
      %v2819 = vpop.f32.mrb[0].mxu0
      %v2820 = vadd.f32 %v2746, %v2819
      %v2821 = vpop.f32.mrb[0].mxu0
      %2822 = vmatprep.mubr.f32.mxu0 0.0
      %2823 = vmatmul.mubr.f32.gmra.mrb[0].mxu0 %v975
      %v2824 = vpop.f32.mrb[0].mxu0
      %v2825 = vadd.f32 %v2746, %v2824
      %v2826 = vpop.f32.mrb[0].mxu0
      %2827 = vdwg.mxu0
      %v2829 = vlaneseq
      %v2830 = vshrl.u32 %v2829, 7
      %v2831 = vsub.s32 0, %v2830
      %v2832 = vrot.slane %v954, %v2831
      %2834 = vmatprep.subr.mxu0 0.0
      %2835 = vmatpush1.msra.mxu0 %v944
      %2836 = vmatprep.subr.mxu0 0.0
      %2837 = vmatpush1.msra.mxu0 %v945
      %2838 = vmatprep.subr.mxu0 0.0
      %2839 = vmatpush1.msra.mxu0 %v946
      %2840 = vmatprep.subr.mxu0 0.0
      %2841 = vmatpush1.msra.mxu0 %v947
      %2842 = vmatprep.subr.mxu0 0.0
      %2843 = vmatpush1.msra.mxu0 0.0
      %2844 = vmatprep.subr.mxu0 0.0
      %2845 = vmatpush1.msra.mxu0 0.0
      %2846 = vmatprep.subr.mxu0 0.0
      %2847 = vmatpush1.msra.mxu0 0.0
      %2848 = vmatprep.subr.mxu0 0.0
      %2849 = vmatpush1.msra.mxu0 0.0
      %2850 = vmatprep.subr.mxu0 0.0
      %2851 = vmatpush1.msra.mxu0 0.0
      %2852 = vmatprep.subr.mxu0 0.0
      %2853 = vmatpush1.msra.mxu0 0.0
      %2854 = vmatprep.subr.mxu0 0.0
      %2855 = vmatpush1.msra.mxu0 0.0
      %2856 = vmatprep.subr.mxu0 0.0
      %2857 = vmatpush1.msra.mxu0 0.0
      %2858 = vmatprep.subr.mxu0 0.0
      %2859 = vmatpush1.msra.mxu0 0.0
      %2860 = vmatprep.subr.mxu0 0.0
      %2861 = vmatpush1.msra.mxu0 0.0
      %2862 = vmatprep.subr.mxu0 0.0
      %2863 = vmatpush1.msra.mxu0 0.0
      %2864 = vmatprep.subr.mxu0 0.0
      %2865 = vmatpush1.msra.mxu0 0.0
      %2866 = vmatprep.subr.mxu0 0.0
      %2867 = vmatpush1.msra.mxu0 0.0
      %2868 = vmatprep.subr.mxu0 0.0
      %2869 = vmatpush1.msra.mxu0 0.0
      %2870 = vmatprep.subr.mxu0 0.0
      %2871 = vmatpush1.msra.mxu0 0.0
      %2872 = vmatprep.subr.mxu0 0.0
      %2873 = vmatpush1.msra.mxu0 0.0
      %2874 = vmatprep.subr.mxu0 0.0
      %2875 = vmatpush1.msra.mxu0 0.0
      %2876 = vmatprep.subr.mxu0 0.0
      %2877 = vmatpush1.msra.mxu0 0.0
      %2878 = vmatprep.subr.mxu0 0.0
      %2879 = vmatpush1.msra.mxu0 0.0
      %2880 = vmatprep.subr.mxu0 0.0
      %2881 = vmatpush1.msra.mxu0 0.0
      %2882 = vmatprep.subr.mxu0 0.0
      %2883 = vmatpush1.msra.mxu0 0.0
      %2884 = vmatprep.subr.mxu0 0.0
      %2885 = vmatpush1.msra.mxu0 0.0
      %2886 = vmatprep.subr.mxu0 0.0
      %2887 = vmatpush1.msra.mxu0 0.0
      %2888 = vmatprep.subr.mxu0 0.0
      %2889 = vmatpush1.msra.mxu0 0.0
      %2890 = vmatprep.subr.mxu0 0.0
      %2891 = vmatpush1.msra.mxu0 0.0
      %2892 = vmatprep.subr.mxu0 0.0
      %2893 = vmatpush1.msra.mxu0 0.0
      %2894 = vmatprep.subr.mxu0 0.0
      %2895 = vmatpush1.msra.mxu0 0.0
      %2896 = vmatprep.subr.mxu0 0.0
      %2897 = vmatpush1.msra.mxu0 0.0
      %2898 = vmatprep.mubr.f32.mxu0 0.0
      %2899 = vmatmul.mubr.f32.gmra.mrb[0].mxu0 %v969
      %v2900 = vpop.f32.mrb[0].mxu0
      %v2901 = vadd.f32 %v2832, %v2900
      %v2902 = vpop.f32.mrb[0].mxu0
      %2903 = vmatprep.mubr.f32.mxu0 0.0
      %2904 = vmatmul.mubr.f32.gmra.mrb[0].mxu0 %v972
      %v2905 = vpop.f32.mrb[0].mxu0
      %v2906 = vadd.f32 %v2832, %v2905
      %v2907 = vpop.f32.mrb[0].mxu0
      %2908 = vmatprep.mubr.f32.mxu0 0.0
      %2909 = vmatmul.mubr.f32.gmra.mrb[0].mxu0 %v975
      %v2910 = vpop.f32.mrb[0].mxu0
      %v2911 = vadd.f32 %v2832, %v2910
      %v2912 = vpop.f32.mrb[0].mxu0
      %2913 = vdwg.mxu0
      %v2915 = vsel %vm1229, %v2729, 0
      %v2918 = vsel %vm1229, %v2815, 0
      %2920 = vmatprep.subr.mxu0 0.0
      %2921 = vmatpush1.xpose.msra.mxu0 %v2918
      %2922 = vmatprep.subr.mxu0 0.0
      %2923 = vmatpush1.xpose.msra.mxu0 0.0
      %2924 = vmatprep.subr.mxu0 0.0
      %2925 = vmatpush1.xpose.msra.mxu0 0.0
      %2926 = vmatprep.subr.mxu0 0.0
      %2927 = vmatpush1.xpose.msra.mxu0 0.0
      %2928 = vmatprep.subr.mxu0 0.0
      %2929 = vmatpush1.xpose.msra.mxu0 0.0
      %2930 = vmatprep.subr.mxu0 0.0
      %2931 = vmatpush1.xpose.msra.mxu0 0.0
      %2932 = vmatprep.subr.mxu0 0.0
      %2933 = vmatpush1.xpose.msra.mxu0 0.0
      %2934 = vmatprep.subr.mxu0 0.0
      %2935 = vmatpush1.xpose.msra.mxu0 0.0
      %2936 = vmatprep.subr.mxu0 0.0
      %2937 = vmatpush1.xpose.msra.mxu0 0.0
      %2938 = vmatprep.subr.mxu0 0.0
      %2939 = vmatpush1.xpose.msra.mxu0 0.0
      %2940 = vmatprep.subr.mxu0 0.0
      %2941 = vmatpush1.xpose.msra.mxu0 0.0
      %2942 = vmatprep.subr.mxu0 0.0
      %2943 = vmatpush1.xpose.msra.mxu0 0.0
      %2944 = vmatprep.subr.mxu0 0.0
      %2945 = vmatpush1.xpose.msra.mxu0 0.0
      %2946 = vmatprep.subr.mxu0 0.0
      %2947 = vmatpush1.xpose.msra.mxu0 0.0
      %2948 = vmatprep.subr.mxu0 0.0
      %2949 = vmatpush1.xpose.msra.mxu0 0.0
      %2950 = vmatprep.subr.mxu0 0.0
      %2951 = vmatpush1.xpose.msra.mxu0 0.0
      %2952 = vmatprep.subr.mxu0 0.0
      %2953 = vmatpush1.xpose.msra.mxu0 0.0
      %2954 = vmatprep.subr.mxu0 0.0
      %2955 = vmatpush1.xpose.msra.mxu0 0.0
      %2956 = vmatprep.subr.mxu0 0.0
      %2957 = vmatpush1.xpose.msra.mxu0 0.0
      %2958 = vmatprep.subr.mxu0 0.0
      %2959 = vmatpush1.xpose.msra.mxu0 0.0
      %2960 = vmatprep.subr.mxu0 0.0
      %2961 = vmatpush1.xpose.msra.mxu0 0.0
      %2962 = vmatprep.subr.mxu0 0.0
      %2963 = vmatpush1.xpose.msra.mxu0 0.0
      %2964 = vmatprep.subr.mxu0 0.0
      %2965 = vmatpush1.xpose.msra.mxu0 0.0
      %2966 = vmatprep.subr.mxu0 0.0
      %2967 = vmatpush1.xpose.msra.mxu0 0.0
      %2968 = vmatprep.subr.mxu0 0.0
      %2969 = vmatpush1.xpose.msra.mxu0 0.0
      %2970 = vmatprep.subr.mxu0 0.0
      %2971 = vmatpush1.xpose.msra.mxu0 0.0
      %2972 = vmatprep.subr.mxu0 0.0
      %2973 = vmatpush1.xpose.msra.mxu0 0.0
      %2974 = vmatprep.subr.mxu0 0.0
      %2975 = vmatpush1.xpose.msra.mxu0 0.0
      %2976 = vmatprep.subr.mxu0 0.0
      %2977 = vmatpush1.xpose.msra.mxu0 0.0
      %2978 = vmatprep.subr.mxu0 0.0
      %2979 = vmatpush1.xpose.msra.mxu0 0.0
      %2980 = vmatprep.subr.mxu0 0.0
      %2981 = vmatpush1.xpose.msra.mxu0 0.0
      %2982 = vmatprep.subr.mxu0 0.0
      %2983 = vmatpush1.xpose.msra.mxu0 0.0
      %2984 = vmatprep.mubr.f32.mxu0 0.0
      %2985 = vmatmul.mubr.f32.gmra.mrb[0].mxu0 %v2915
      %v2986 = vpop.f32.mrb[0].mxu0
      %v2987 = vadd.f32 0.0, %v2986
      %v2988 = vpop.f32.mrb[0].mxu0
      %2989 = vdwg.mxu0
      %v2991 = vsel %vm1229, %v2734, 0
      %v2994 = vsel %vm1229, %v2820, 0
      %2996 = vmatprep.subr.mxu0 0.0
      %2997 = vmatpush1.xpose.msra.mxu0 %v2994
      %2998 = vmatprep.subr.mxu0 0.0
      %2999 = vmatpush1.xpose.msra.mxu0 0.0
      %3000 = vmatprep.subr.mxu0 0.0
      %3001 = vmatpush1.xpose.msra.mxu0 0.0
      %3002 = vmatprep.subr.mxu0 0.0
      %3003 = vmatpush1.xpose.msra.mxu0 0.0
      %3004 = vmatprep.subr.mxu0 0.0
      %3005 = vmatpush1.xpose.msra.mxu0 0.0
      %3006 = vmatprep.subr.mxu0 0.0
      %3007 = vmatpush1.xpose.msra.mxu0 0.0
      %3008 = vmatprep.subr.mxu0 0.0
      %3009 = vmatpush1.xpose.msra.mxu0 0.0
      %3010 = vmatprep.subr.mxu0 0.0
      %3011 = vmatpush1.xpose.msra.mxu0 0.0
      %3012 = vmatprep.subr.mxu0 0.0
      %3013 = vmatpush1.xpose.msra.mxu0 0.0
      %3014 = vmatprep.subr.mxu0 0.0
      %3015 = vmatpush1.xpose.msra.mxu0 0.0
      %3016 = vmatprep.subr.mxu0 0.0
      %3017 = vmatpush1.xpose.msra.mxu0 0.0
      %3018 = vmatprep.subr.mxu0 0.0
      %3019 = vmatpush1.xpose.msra.mxu0 0.0
      %3020 = vmatprep.subr.mxu0 0.0
      %3021 = vmatpush1.xpose.msra.mxu0 0.0
      %3022 = vmatprep.subr.mxu0 0.0
      %3023 = vmatpush1.xpose.msra.mxu0 0.0
      %3024 = vmatprep.subr.mxu0 0.0
      %3025 = vmatpush1.xpose.msra.mxu0 0.0
      %3026 = vmatprep.subr.mxu0 0.0
      %3027 = vmatpush1.xpose.msra.mxu0 0.0
      %3028 = vmatprep.subr.mxu0 0.0
      %3029 = vmatpush1.xpose.msra.mxu0 0.0
      %3030 = vmatprep.subr.mxu0 0.0
      %3031 = vmatpush1.xpose.msra.mxu0 0.0
      %3032 = vmatprep.subr.mxu0 0.0
      %3033 = vmatpush1.xpose.msra.mxu0 0.0
      %3034 = vmatprep.subr.mxu0 0.0
      %3035 = vmatpush1.xpose.msra.mxu0 0.0
      %3036 = vmatprep.subr.mxu0 0.0
      %3037 = vmatpush1.xpose.msra.mxu0 0.0
      %3038 = vmatprep.subr.mxu0 0.0
      %3039 = vmatpush1.xpose.msra.mxu0 0.0
      %3040 = vmatprep.subr.mxu0 0.0
      %3041 = vmatpush1.xpose.msra.mxu0 0.0
      %3042 = vmatprep.subr.mxu0 0.0
      %3043 = vmatpush1.xpose.msra.mxu0 0.0
      %3044 = vmatprep.subr.mxu0 0.0
      %3045 = vmatpush1.xpose.msra.mxu0 0.0
      %3046 = vmatprep.subr.mxu0 0.0
      %3047 = vmatpush1.xpose.msra.mxu0 0.0
      %3048 = vmatprep.subr.mxu0 0.0
      %3049 = vmatpush1.xpose.msra.mxu0 0.0
      %3050 = vmatprep.subr.mxu0 0.0
      %3051 = vmatpush1.xpose.msra.mxu0 0.0
      %3052 = vmatprep.subr.mxu0 0.0
      %3053 = vmatpush1.xpose.msra.mxu0 0.0
      %3054 = vmatprep.subr.mxu0 0.0
      %3055 = vmatpush1.xpose.msra.mxu0 0.0
      %3056 = vmatprep.subr.mxu0 0.0
      %3057 = vmatpush1.xpose.msra.mxu0 0.0
      %3058 = vmatprep.subr.mxu0 0.0
      %3059 = vmatpush1.xpose.msra.mxu0 0.0
      %3060 = vmatprep.mubr.f32.mxu0 0.0
      %3061 = vmatmul.mubr.f32.gmra.mrb[0].mxu0 %v2991
      %v3062 = vpop.f32.mrb[0].mxu0
      %v3063 = vadd.f32 0.0, %v3062
      %v3064 = vpop.f32.mrb[0].mxu0
      %3065 = vdwg.mxu0
      %v3067 = vsel %vm1229, %v2739, 0
      %v3070 = vsel %vm1229, %v2825, 0
      %3072 = vmatprep.subr.mxu0 0.0
      %3073 = vmatpush1.xpose.msra.mxu0 %v3070
      %3074 = vmatprep.subr.mxu0 0.0
      %3075 = vmatpush1.xpose.msra.mxu0 0.0
      %3076 = vmatprep.subr.mxu0 0.0
      %3077 = vmatpush1.xpose.msra.mxu0 0.0
      %3078 = vmatprep.subr.mxu0 0.0
      %3079 = vmatpush1.xpose.msra.mxu0 0.0
      %3080 = vmatprep.subr.mxu0 0.0
      %3081 = vmatpush1.xpose.msra.mxu0 0.0
      %3082 = vmatprep.subr.mxu0 0.0
      %3083 = vmatpush1.xpose.msra.mxu0 0.0
      %3084 = vmatprep.subr.mxu0 0.0
      %3085 = vmatpush1.xpose.msra.mxu0 0.0
      %3086 = vmatprep.subr.mxu0 0.0
      %3087 = vmatpush1.xpose.msra.mxu0 0.0
      %3088 = vmatprep.subr.mxu0 0.0
      %3089 = vmatpush1.xpose.msra.mxu0 0.0
      %3090 = vmatprep.subr.mxu0 0.0
      %3091 = vmatpush1.xpose.msra.mxu0 0.0
      %3092 = vmatprep.subr.mxu0 0.0
      %3093 = vmatpush1.xpose.msra.mxu0 0.0
      %3094 = vmatprep.subr.mxu0 0.0
      %3095 = vmatpush1.xpose.msra.mxu0 0.0
      %3096 = vmatprep.subr.mxu0 0.0
      %3097 = vmatpush1.xpose.msra.mxu0 0.0
      %3098 = vmatprep.subr.mxu0 0.0
      %3099 = vmatpush1.xpose.msra.mxu0 0.0
      %3100 = vmatprep.subr.mxu0 0.0
      %3101 = vmatpush1.xpose.msra.mxu0 0.0
      %3102 = vmatprep.subr.mxu0 0.0
      %3103 = vmatpush1.xpose.msra.mxu0 0.0
      %3104 = vmatprep.subr.mxu0 0.0
      %3105 = vmatpush1.xpose.msra.mxu0 0.0
      %3106 = vmatprep.subr.mxu0 0.0
      %3107 = vmatpush1.xpose.msra.mxu0 0.0
      %3108 = vmatprep.subr.mxu0 0.0
      %3109 = vmatpush1.xpose.msra.mxu0 0.0
      %3110 = vmatprep.subr.mxu0 0.0
      %3111 = vmatpush1.xpose.msra.mxu0 0.0
      %3112 = vmatprep.subr.mxu0 0.0
      %3113 = vmatpush1.xpose.msra.mxu0 0.0
      %3114 = vmatprep.subr.mxu0 0.0
      %3115 = vmatpush1.xpose.msra.mxu0 0.0
      %3116 = vmatprep.subr.mxu0 0.0
      %3117 = vmatpush1.xpose.msra.mxu0 0.0
      %3118 = vmatprep.subr.mxu0 0.0
      %3119 = vmatpush1.xpose.msra.mxu0 0.0
      %3120 = vmatprep.subr.mxu0 0.0
      %3121 = vmatpush1.xpose.msra.mxu0 0.0
      %3122 = vmatprep.subr.mxu0 0.0
      %3123 = vmatpush1.xpose.msra.mxu0 0.0
      %3124 = vmatprep.subr.mxu0 0.0
      %3125 = vmatpush1.xpose.msra.mxu0 0.0
      %3126 = vmatprep.subr.mxu0 0.0
      %3127 = vmatpush1.xpose.msra.mxu0 0.0
      %3128 = vmatprep.subr.mxu0 0.0
      %3129 = vmatpush1.xpose.msra.mxu0 0.0
      %3130 = vmatprep.subr.mxu0 0.0
      %3131 = vmatpush1.xpose.msra.mxu0 0.0
      %3132 = vmatprep.subr.mxu0 0.0
      %3133 = vmatpush1.xpose.msra.mxu0 0.0
      %3134 = vmatprep.subr.mxu0 0.0
      %3135 = vmatpush1.xpose.msra.mxu0 0.0
      %3136 = vmatprep.mubr.f32.mxu0 0.0
      %3137 = vmatmul.mubr.f32.gmra.mrb[0].mxu0 %v3067
      %v3138 = vpop.f32.mrb[0].mxu0
      %v3139 = vadd.f32 0.0, %v3138
      %v3140 = vpop.f32.mrb[0].mxu0
      %3141 = vdwg.mxu0
      %v3142 = vmul.f32 %v2987, 0.35355338
      %v3143 = vmul.f32 %v3063, 0.35355338
      %v3144 = vmul.f32 %v3139, 0.35355338
      %v3145 = vadd.f32 %v3142, %v1467
      %v3146 = vadd.f32 %v3143, %v1471
      %v3147 = vadd.f32 %v3144, %v1475
      %v3148 = vsel %vm1229, %v3145, -inf
      %3149 = vmax.xlane.f32.xlu0 %v3148
      %v3150 = vpop.xlane.xlu0 %3149
      %v3151 = vsel %vm1229, %v3146, -inf
      %3152 = vmax.xlane.f32.xlu0 %v3151
      %v3153 = vpop.xlane.xlu0 %3152
      %v3154 = vsel %vm1229, %v3147, -inf
      %3155 = vmax.xlane.f32.xlu0 %v3154
      %v3156 = vpop.xlane.xlu0 %3155
      %v3157 = vsub.f32 %v3145, %v3150
      %v3158 = vsub.f32 %v3146, %v3153
      %v3159 = vsub.f32 %v3147, %v3156
      %v3160 = vmul.f32 %v3157, 1.442695
      %v3161 = vpow.pop %v3160
      %v3162 = vmul.f32 %v3158, 1.442695
      %v3163 = vpow.pop %v3162
      %v3164 = vmul.f32 %v3159, 1.442695
      %v3165 = vpow.pop %v3164
      %v3166 = vsel %vm1229, %v3161, 0.0
      %3167 = vadd.xlane.f32.xlu0 %v3166
      %v3168 = vpop.xlane.xlu0 %3167
      %v3169 = vsel %vm1229, %v3163, 0.0
      %3170 = vadd.xlane.f32.xlu0 %v3169
      %v3171 = vpop.xlane.xlu0 %3170
      %v3172 = vsel %vm1229, %v3165, 0.0
      %3173 = vadd.xlane.f32.xlu0 %v3172
      %v3174 = vpop.xlane.xlu0 %3173
      %v3175 = vrcp.pop %v3168
      %v3176 = vmul.f32 %v3161, %v3175
      %v3177 = vrcp.pop %v3171
      %v3178 = vmul.f32 %v3163, %v3177
      %v3179 = vrcp.pop %v3174
      %v3180 = vmul.f32 %v3165, %v3179
      %v3182 = vsel %vm1229, %v3176, 0
      %3184 = vmatprep.subr.mxu0 0.0
      %3185 = vmatpush1.msra.mxu0 %v2901
      %3186 = vmatprep.subr.mxu0 0.0
      %3187 = vmatpush1.msra.mxu0 0.0
      %3188 = vmatprep.subr.mxu0 0.0
      %3189 = vmatpush1.msra.mxu0 0.0
      %3190 = vmatprep.subr.mxu0 0.0
      %3191 = vmatpush1.msra.mxu0 0.0
      %3192 = vmatprep.subr.mxu0 0.0
      %3193 = vmatpush1.msra.mxu0 0.0
      %3194 = vmatprep.subr.mxu0 0.0
      %3195 = vmatpush1.msra.mxu0 0.0
      %3196 = vmatprep.subr.mxu0 0.0
      %3197 = vmatpush1.msra.mxu0 0.0
      %3198 = vmatprep.subr.mxu0 0.0
      %3199 = vmatpush1.msra.mxu0 0.0
      %3200 = vmatprep.subr.mxu0 0.0
      %3201 = vmatpush1.msra.mxu0 0.0
      %3202 = vmatprep.subr.mxu0 0.0
      %3203 = vmatpush1.msra.mxu0 0.0
      %3204 = vmatprep.subr.mxu0 0.0
      %3205 = vmatpush1.msra.mxu0 0.0
      %3206 = vmatprep.subr.mxu0 0.0
      %3207 = vmatpush1.msra.mxu0 0.0
      %3208 = vmatprep.subr.mxu0 0.0
      %3209 = vmatpush1.msra.mxu0 0.0
      %3210 = vmatprep.subr.mxu0 0.0
      %3211 = vmatpush1.msra.mxu0 0.0
      %3212 = vmatprep.subr.mxu0 0.0
      %3213 = vmatpush1.msra.mxu0 0.0
      %3214 = vmatprep.subr.mxu0 0.0
      %3215 = vmatpush1.msra.mxu0 0.0
      %3216 = vmatprep.subr.mxu0 0.0
      %3217 = vmatpush1.msra.mxu0 0.0
      %3218 = vmatprep.subr.mxu0 0.0
      %3219 = vmatpush1.msra.mxu0 0.0
      %3220 = vmatprep.subr.mxu0 0.0
      %3221 = vmatpush1.msra.mxu0 0.0
      %3222 = vmatprep.subr.mxu0 0.0
      %3223 = vmatpush1.msra.mxu0 0.0
      %3224 = vmatprep.subr.mxu0 0.0
      %3225 = vmatpush1.msra.mxu0 0.0
      %3226 = vmatprep.subr.mxu0 0.0
      %3227 = vmatpush1.msra.mxu0 0.0
      %3228 = vmatprep.subr.mxu0 0.0
      %3229 = vmatpush1.msra.mxu0 0.0
      %3230 = vmatprep.subr.mxu0 0.0
      %3231 = vmatpush1.msra.mxu0 0.0
      %3232 = vmatprep.subr.mxu0 0.0
      %3233 = vmatpush1.msra.mxu0 0.0
      %3234 = vmatprep.subr.mxu0 0.0
      %3235 = vmatpush1.msra.mxu0 0.0
      %3236 = vmatprep.subr.mxu0 0.0
      %3237 = vmatpush1.msra.mxu0 0.0
      %3238 = vmatprep.subr.mxu0 0.0
      %3239 = vmatpush1.msra.mxu0 0.0
      %3240 = vmatprep.subr.mxu0 0.0
      %3241 = vmatpush1.msra.mxu0 0.0
      %3242 = vmatprep.subr.mxu0 0.0
      %3243 = vmatpush1.msra.mxu0 0.0
      %3244 = vmatprep.subr.mxu0 0.0
      %3245 = vmatpush1.msra.mxu0 0.0
      %3246 = vmatprep.subr.mxu0 0.0
      %3247 = vmatpush1.msra.mxu0 0.0
      %3248 = vmatprep.mubr.f32.mxu0 0.0
      %3249 = vmatmul.mubr.f32.gmra.mrb[0].mxu0 %v3182
      %v3250 = vpop.f32.mrb[0].mxu0
      %v3251 = vadd.f32 0.0, %v3250
      %v3252 = vpop.f32.mrb[0].mxu0
      %3253 = vdwg.mxu0
      %v3255 = vsel %vm1229, %v3178, 0
      %3257 = vmatprep.subr.mxu0 0.0
      %3258 = vmatpush1.msra.mxu0 %v2906
      %3259 = vmatprep.subr.mxu0 0.0
      %3260 = vmatpush1.msra.mxu0 0.0
      %3261 = vmatprep.subr.mxu0 0.0
      %3262 = vmatpush1.msra.mxu0 0.0
      %3263 = vmatprep.subr.mxu0 0.0
      %3264 = vmatpush1.msra.mxu0 0.0
      %3265 = vmatprep.subr.mxu0 0.0
      %3266 = vmatpush1.msra.mxu0 0.0
      %3267 = vmatprep.subr.mxu0 0.0
      %3268 = vmatpush1.msra.mxu0 0.0
      %3269 = vmatprep.subr.mxu0 0.0
      %3270 = vmatpush1.msra.mxu0 0.0
      %3271 = vmatprep.subr.mxu0 0.0
      %3272 = vmatpush1.msra.mxu0 0.0
      %3273 = vmatprep.subr.mxu0 0.0
      %3274 = vmatpush1.msra.mxu0 0.0
      %3275 = vmatprep.subr.mxu0 0.0
      %3276 = vmatpush1.msra.mxu0 0.0
      %3277 = vmatprep.subr.mxu0 0.0
      %3278 = vmatpush1.msra.mxu0 0.0
      %3279 = vmatprep.subr.mxu0 0.0
      %3280 = vmatpush1.msra.mxu0 0.0
      %3281 = vmatprep.subr.mxu0 0.0
      %3282 = vmatpush1.msra.mxu0 0.0
      %3283 = vmatprep.subr.mxu0 0.0
      %3284 = vmatpush1.msra.mxu0 0.0
      %3285 = vmatprep.subr.mxu0 0.0
      %3286 = vmatpush1.msra.mxu0 0.0
      %3287 = vmatprep.subr.mxu0 0.0
      %3288 = vmatpush1.msra.mxu0 0.0
      %3289 = vmatprep.subr.mxu0 0.0
      %3290 = vmatpush1.msra.mxu0 0.0
      %3291 = vmatprep.subr.mxu0 0.0
      %3292 = vmatpush1.msra.mxu0 0.0
      %3293 = vmatprep.subr.mxu0 0.0
      %3294 = vmatpush1.msra.mxu0 0.0
      %3295 = vmatprep.subr.mxu0 0.0
      %3296 = vmatpush1.msra.mxu0 0.0
      %3297 = vmatprep.subr.mxu0 0.0
      %3298 = vmatpush1.msra.mxu0 0.0
      %3299 = vmatprep.subr.mxu0 0.0
      %3300 = vmatpush1.msra.mxu0 0.0
      %3301 = vmatprep.subr.mxu0 0.0
      %3302 = vmatpush1.msra.mxu0 0.0
      %3303 = vmatprep.subr.mxu0 0.0
      %3304 = vmatpush1.msra.mxu0 0.0
      %3305 = vmatprep.subr.mxu0 0.0
      %3306 = vmatpush1.msra.mxu0 0.0
      %3307 = vmatprep.subr.mxu0 0.0
      %3308 = vmatpush1.msra.mxu0 0.0
      %3309 = vmatprep.subr.mxu0 0.0
      %3310 = vmatpush1.msra.mxu0 0.0
      %3311 = vmatprep.subr.mxu0 0.0
      %3312 = vmatpush1.msra.mxu0 0.0
      %3313 = vmatprep.subr.mxu0 0.0
      %3314 = vmatpush1.msra.mxu0 0.0
      %3315 = vmatprep.subr.mxu0 0.0
      %3316 = vmatpush1.msra.mxu0 0.0
      %3317 = vmatprep.subr.mxu0 0.0
      %3318 = vmatpush1.msra.mxu0 0.0
      %3319 = vmatprep.subr.mxu0 0.0
      %3320 = vmatpush1.msra.mxu0 0.0
      %3321 = vmatprep.mubr.f32.mxu0 0.0
      %3322 = vmatmul.mubr.f32.gmra.mrb[0].mxu0 %v3255
      %v3323 = vpop.f32.mrb[0].mxu0
      %v3324 = vadd.f32 0.0, %v3323
      %v3325 = vpop.f32.mrb[0].mxu0
      %3326 = vdwg.mxu0
      %v3328 = vsel %vm1229, %v3180, 0
      %3330 = vmatprep.subr.mxu0 0.0
      %3331 = vmatpush1.msra.mxu0 %v2911
      %3332 = vmatprep.subr.mxu0 0.0
      %3333 = vmatpush1.msra.mxu0 0.0
      %3334 = vmatprep.subr.mxu0 0.0
      %3335 = vmatpush1.msra.mxu0 0.0
      %3336 = vmatprep.subr.mxu0 0.0
      %3337 = vmatpush1.msra.mxu0 0.0
      %3338 = vmatprep.subr.mxu0 0.0
      %3339 = vmatpush1.msra.mxu0 0.0
      %3340 = vmatprep.subr.mxu0 0.0
      %3341 = vmatpush1.msra.mxu0 0.0
      %3342 = vmatprep.subr.mxu0 0.0
      %3343 = vmatpush1.msra.mxu0 0.0
      %3344 = vmatprep.subr.mxu0 0.0
      %3345 = vmatpush1.msra.mxu0 0.0
      %3346 = vmatprep.subr.mxu0 0.0
      %3347 = vmatpush1.msra.mxu0 0.0
      %3348 = vmatprep.subr.mxu0 0.0
      %3349 = vmatpush1.msra.mxu0 0.0
      %3350 = vmatprep.subr.mxu0 0.0
      %3351 = vmatpush1.msra.mxu0 0.0
      %3352 = vmatprep.subr.mxu0 0.0
      %3353 = vmatpush1.msra.mxu0 0.0
      %3354 = vmatprep.subr.mxu0 0.0
      %3355 = vmatpush1.msra.mxu0 0.0
      %3356 = vmatprep.subr.mxu0 0.0
      %3357 = vmatpush1.msra.mxu0 0.0
      %3358 = vmatprep.subr.mxu0 0.0
      %3359 = vmatpush1.msra.mxu0 0.0
      %3360 = vmatprep.subr.mxu0 0.0
      %3361 = vmatpush1.msra.mxu0 0.0
      %3362 = vmatprep.subr.mxu0 0.0
      %3363 = vmatpush1.msra.mxu0 0.0
      %3364 = vmatprep.subr.mxu0 0.0
      %3365 = vmatpush1.msra.mxu0 0.0
      %3366 = vmatprep.subr.mxu0 0.0
      %3367 = vmatpush1.msra.mxu0 0.0
      %3368 = vmatprep.subr.mxu0 0.0
      %3369 = vmatpush1.msra.mxu0 0.0
      %3370 = vmatprep.subr.mxu0 0.0
      %3371 = vmatpush1.msra.mxu0 0.0
      %3372 = vmatprep.subr.mxu0 0.0
      %3373 = vmatpush1.msra.mxu0 0.0
      %3374 = vmatprep.subr.mxu0 0.0
      %3375 = vmatpush1.msra.mxu0 0.0
      %3376 = vmatprep.subr.mxu0 0.0
      %3377 = vmatpush1.msra.mxu0 0.0
      %3378 = vmatprep.subr.mxu0 0.0
      %3379 = vmatpush1.msra.mxu0 0.0
      %3380 = vmatprep.subr.mxu0 0.0
      %3381 = vmatpush1.msra.mxu0 0.0
      %3382 = vmatprep.subr.mxu0 0.0
      %3383 = vmatpush1.msra.mxu0 0.0
      %3384 = vmatprep.subr.mxu0 0.0
      %3385 = vmatpush1.msra.mxu0 0.0
      %3386 = vmatprep.subr.mxu0 0.0
      %3387 = vmatpush1.msra.mxu0 0.0
      %3388 = vmatprep.subr.mxu0 0.0
      %3389 = vmatpush1.msra.mxu0 0.0
      %3390 = vmatprep.subr.mxu0 0.0
      %3391 = vmatpush1.msra.mxu0 0.0
      %3392 = vmatprep.subr.mxu0 0.0
      %3393 = vmatpush1.msra.mxu0 0.0
      %3394 = vmatprep.mubr.f32.mxu0 0.0
      %3395 = vmatmul.mubr.f32.gmra.mrb[0].mxu0 %v3328
      %v3396 = vpop.f32.mrb[0].mxu0
      %v3397 = vadd.f32 0.0, %v3396
      %v3398 = vpop.f32.mrb[0].mxu0
      %3399 = vdwg.mxu0
      %v3401 = vsel %vm1229, %v3251, 0
      %v3404 = vsel %vm1229, %v3324, 0
      %v3407 = vsel %vm1229, %v3397, 0
      %3409 = vmatprep.subr.mxu0 0.0
      %3410 = vmatpush1.msra.mxu0 %v958
      %3411 = vmatprep.subr.mxu0 0.0
      %3412 = vmatpush1.msra.mxu0 0.0
      %3413 = vmatprep.subr.mxu0 0.0
      %3414 = vmatpush1.msra.mxu0 0.0
      %3415 = vmatprep.subr.mxu0 0.0
      %3416 = vmatpush1.msra.mxu0 0.0
      %3417 = vmatprep.subr.mxu0 0.0
      %3418 = vmatpush1.msra.mxu0 0.0
      %3419 = vmatprep.subr.mxu0 0.0
      %3420 = vmatpush1.msra.mxu0 0.0
      %3421 = vmatprep.subr.mxu0 0.0
      %3422 = vmatpush1.msra.mxu0 0.0
      %3423 = vmatprep.subr.mxu0 0.0
      %3424 = vmatpush1.msra.mxu0 0.0
      %3425 = vmatprep.subr.mxu0 0.0
      %3426 = vmatpush1.msra.mxu0 0.0
      %3427 = vmatprep.subr.mxu0 0.0
      %3428 = vmatpush1.msra.mxu0 0.0
      %3429 = vmatprep.subr.mxu0 0.0
      %3430 = vmatpush1.msra.mxu0 0.0
      %3431 = vmatprep.subr.mxu0 0.0
      %3432 = vmatpush1.msra.mxu0 0.0
      %3433 = vmatprep.subr.mxu0 0.0
      %3434 = vmatpush1.msra.mxu0 0.0
      %3435 = vmatprep.subr.mxu0 0.0
      %3436 = vmatpush1.msra.mxu0 0.0
      %3437 = vmatprep.subr.mxu0 0.0
      %3438 = vmatpush1.msra.mxu0 0.0
      %3439 = vmatprep.subr.mxu0 0.0
      %3440 = vmatpush1.msra.mxu0 0.0
      %3441 = vmatprep.subr.mxu0 0.0
      %3442 = vmatpush1.msra.mxu0 0.0
      %3443 = vmatprep.subr.mxu0 0.0
      %3444 = vmatpush1.msra.mxu0 0.0
      %3445 = vmatprep.subr.mxu0 0.0
      %3446 = vmatpush1.msra.mxu0 0.0
      %3447 = vmatprep.subr.mxu0 0.0
      %3448 = vmatpush1.msra.mxu0 0.0
      %3449 = vmatprep.subr.mxu0 0.0
      %3450 = vmatpush1.msra.mxu0 0.0
      %3451 = vmatprep.subr.mxu0 0.0
      %3452 = vmatpush1.msra.mxu0 0.0
      %3453 = vmatprep.subr.mxu0 0.0
      %3454 = vmatpush1.msra.mxu0 0.0
      %3455 = vmatprep.subr.mxu0 0.0
      %3456 = vmatpush1.msra.mxu0 0.0
      %3457 = vmatprep.subr.mxu0 0.0
      %3458 = vmatpush1.msra.mxu0 0.0
      %3459 = vmatprep.subr.mxu0 0.0
      %3460 = vmatpush1.msra.mxu0 0.0
      %3461 = vmatprep.subr.mxu0 0.0
      %3462 = vmatpush1.msra.mxu0 0.0
      %3463 = vmatprep.subr.mxu0 0.0
      %3464 = vmatpush1.msra.mxu0 0.0
      %3465 = vmatprep.subr.mxu0 0.0
      %3466 = vmatpush1.msra.mxu0 0.0
      %3467 = vmatprep.subr.mxu0 0.0
      %3468 = vmatpush1.msra.mxu0 0.0
      %3469 = vmatprep.subr.mxu0 0.0
      %3470 = vmatpush1.msra.mxu0 0.0
      %3471 = vmatprep.subr.mxu0 0.0
      %3472 = vmatpush1.msra.mxu0 0.0
      %3473 = vmatprep.mubr.f32.mxu0 0.0
      %3474 = vmatmul.mubr.f32.gmra.mrb[0].mxu0 %v3401
      %v3475 = vpop.f32.mrb[0].mxu0
      %v3476 = vadd.f32 0.0, %v3475
      %v3477 = vpop.f32.mrb[0].mxu0
      %3478 = vmatprep.mubr.f32.mxu0 0.0
      %3479 = vmatmul.mubr.f32.gmra.mrb[0].mxu0 %v3404
      %v3480 = vpop.f32.mrb[0].mxu0
      %v3481 = vadd.f32 0.0, %v3480
      %v3482 = vpop.f32.mrb[0].mxu0
      %3483 = vmatprep.mubr.f32.mxu0 0.0
      %3484 = vmatmul.mubr.f32.gmra.mrb[0].mxu0 %v3407
      %v3485 = vpop.f32.mrb[0].mxu0
      %v3486 = vadd.f32 0.0, %v3485
      %v3487 = vpop.f32.mrb[0].mxu0
      %3488 = vdwg.mxu0
      %v3489 = vadd.f32 %v2643, %v3476
      %v3490 = vadd.f32 %v2648, %v3481
      %v3491 = vadd.f32 %v2653, %v3486
      %v3493 = vlaneseq
      %v3494 = vshrl.u32 %v3493, 7
      %v3495 = vsub.s32 0, %v3494
      %v3496 = vrot.slane %v915, %v3495
      %3498 = vmatprep.subr.mxu0 0.0
      %3499 = vmatpush1.msra.mxu0 %v908
      %3500 = vmatprep.subr.mxu0 0.0
      %3501 = vmatpush1.msra.mxu0 %v909
      %3502 = vmatprep.subr.mxu0 0.0
      %3503 = vmatpush1.msra.mxu0 %v910
      %3504 = vmatprep.subr.mxu0 0.0
      %3505 = vmatpush1.msra.mxu0 %v911
      %3506 = vmatprep.subr.mxu0 0.0
      %3507 = vmatpush1.msra.mxu0 0.0
      %3508 = vmatprep.subr.mxu0 0.0
      %3509 = vmatpush1.msra.mxu0 0.0
      %3510 = vmatprep.subr.mxu0 0.0
      %3511 = vmatpush1.msra.mxu0 0.0
      %3512 = vmatprep.subr.mxu0 0.0
      %3513 = vmatpush1.msra.mxu0 0.0
      %3514 = vmatprep.subr.mxu0 0.0
      %3515 = vmatpush1.msra.mxu0 0.0
      %3516 = vmatprep.subr.mxu0 0.0
      %3517 = vmatpush1.msra.mxu0 0.0
      %3518 = vmatprep.subr.mxu0 0.0
      %3519 = vmatpush1.msra.mxu0 0.0
      %3520 = vmatprep.subr.mxu0 0.0
      %3521 = vmatpush1.msra.mxu0 0.0
      %3522 = vmatprep.subr.mxu0 0.0
      %3523 = vmatpush1.msra.mxu0 0.0
      %3524 = vmatprep.subr.mxu0 0.0
      %3525 = vmatpush1.msra.mxu0 0.0
      %3526 = vmatprep.subr.mxu0 0.0
      %3527 = vmatpush1.msra.mxu0 0.0
      %3528 = vmatprep.subr.mxu0 0.0
      %3529 = vmatpush1.msra.mxu0 0.0
      %3530 = vmatprep.subr.mxu0 0.0
      %3531 = vmatpush1.msra.mxu0 0.0
      %3532 = vmatprep.subr.mxu0 0.0
      %3533 = vmatpush1.msra.mxu0 0.0
      %3534 = vmatprep.subr.mxu0 0.0
      %3535 = vmatpush1.msra.mxu0 0.0
      %3536 = vmatprep.subr.mxu0 0.0
      %3537 = vmatpush1.msra.mxu0 0.0
      %3538 = vmatprep.subr.mxu0 0.0
      %3539 = vmatpush1.msra.mxu0 0.0
      %3540 = vmatprep.subr.mxu0 0.0
      %3541 = vmatpush1.msra.mxu0 0.0
      %3542 = vmatprep.subr.mxu0 0.0
      %3543 = vmatpush1.msra.mxu0 0.0
      %3544 = vmatprep.subr.mxu0 0.0
      %3545 = vmatpush1.msra.mxu0 0.0
      %3546 = vmatprep.subr.mxu0 0.0
      %3547 = vmatpush1.msra.mxu0 0.0
      %3548 = vmatprep.subr.mxu0 0.0
      %3549 = vmatpush1.msra.mxu0 0.0
      %3550 = vmatprep.subr.mxu0 0.0
      %3551 = vmatpush1.msra.mxu0 0.0
      %3552 = vmatprep.subr.mxu0 0.0
      %3553 = vmatpush1.msra.mxu0 0.0
      %3554 = vmatprep.subr.mxu0 0.0
      %3555 = vmatpush1.msra.mxu0 0.0
      %3556 = vmatprep.subr.mxu0 0.0
      %3557 = vmatpush1.msra.mxu0 0.0
      %3558 = vmatprep.subr.mxu0 0.0
      %3559 = vmatpush1.msra.mxu0 0.0
      %3560 = vmatprep.subr.mxu0 0.0
      %3561 = vmatpush1.msra.mxu0 0.0
      %3562 = vmatprep.mubr.f32.mxu0 0.0
      %3563 = vmatmul.mubr.f32.gmra.mrb[0].mxu0 %v969
      %v3564 = vpop.f32.mrb[0].mxu0
      %v3565 = vadd.f32 %v3496, %v3564
      %v3566 = vpop.f32.mrb[0].mxu0
      %3567 = vmatprep.mubr.f32.mxu0 0.0
      %3568 = vmatmul.mubr.f32.gmra.mrb[0].mxu0 %v972
      %v3569 = vpop.f32.mrb[0].mxu0
      %v3570 = vadd.f32 %v3496, %v3569
      %v3571 = vpop.f32.mrb[0].mxu0
      %3572 = vmatprep.mubr.f32.mxu0 0.0
      %3573 = vmatmul.mubr.f32.gmra.mrb[0].mxu0 %v975
      %v3574 = vpop.f32.mrb[0].mxu0
      %v3575 = vadd.f32 %v3496, %v3574
      %v3576 = vpop.f32.mrb[0].mxu0
      %3577 = vdwg.mxu0
      %v3579 = vlaneseq
      %v3580 = vshrl.u32 %v3579, 7
      %v3581 = vsub.s32 0, %v3580
      %v3582 = vrot.slane %v935, %v3581
      %3584 = vmatprep.subr.mxu0 0.0
      %3585 = vmatpush1.msra.mxu0 %v928
      %3586 = vmatprep.subr.mxu0 0.0
      %3587 = vmatpush1.msra.mxu0 %v929
      %3588 = vmatprep.subr.mxu0 0.0
      %3589 = vmatpush1.msra.mxu0 %v930
      %3590 = vmatprep.subr.mxu0 0.0
      %3591 = vmatpush1.msra.mxu0 %v931
      %3592 = vmatprep.subr.mxu0 0.0
      %3593 = vmatpush1.msra.mxu0 0.0
      %3594 = vmatprep.subr.mxu0 0.0
      %3595 = vmatpush1.msra.mxu0 0.0
      %3596 = vmatprep.subr.mxu0 0.0
      %3597 = vmatpush1.msra.mxu0 0.0
      %3598 = vmatprep.subr.mxu0 0.0
      %3599 = vmatpush1.msra.mxu0 0.0
      %3600 = vmatprep.subr.mxu0 0.0
      %3601 = vmatpush1.msra.mxu0 0.0
      %3602 = vmatprep.subr.mxu0 0.0
      %3603 = vmatpush1.msra.mxu0 0.0
      %3604 = vmatprep.subr.mxu0 0.0
      %3605 = vmatpush1.msra.mxu0 0.0
      %3606 = vmatprep.subr.mxu0 0.0
      %3607 = vmatpush1.msra.mxu0 0.0
      %3608 = vmatprep.subr.mxu0 0.0
      %3609 = vmatpush1.msra.mxu0 0.0
      %3610 = vmatprep.subr.mxu0 0.0
      %3611 = vmatpush1.msra.mxu0 0.0
      %3612 = vmatprep.subr.mxu0 0.0
      %3613 = vmatpush1.msra.mxu0 0.0
      %3614 = vmatprep.subr.mxu0 0.0
      %3615 = vmatpush1.msra.mxu0 0.0
      %3616 = vmatprep.subr.mxu0 0.0
      %3617 = vmatpush1.msra.mxu0 0.0
      %3618 = vmatprep.subr.mxu0 0.0
      %3619 = vmatpush1.msra.mxu0 0.0
      %3620 = vmatprep.subr.mxu0 0.0
      %3621 = vmatpush1.msra.mxu0 0.0
      %3622 = vmatprep.subr.mxu0 0.0
      %3623 = vmatpush1.msra.mxu0 0.0
      %3624 = vmatprep.subr.mxu0 0.0
      %3625 = vmatpush1.msra.mxu0 0.0
      %3626 = vmatprep.subr.mxu0 0.0
      %3627 = vmatpush1.msra.mxu0 0.0
      %3628 = vmatprep.subr.mxu0 0.0
      %3629 = vmatpush1.msra.mxu0 0.0
      %3630 = vmatprep.subr.mxu0 0.0
      %3631 = vmatpush1.msra.mxu0 0.0
      %3632 = vmatprep.subr.mxu0 0.0
      %3633 = vmatpush1.msra.mxu0 0.0
      %3634 = vmatprep.subr.mxu0 0.0
      %3635 = vmatpush1.msra.mxu0 0.0
      %3636 = vmatprep.subr.mxu0 0.0
      %3637 = vmatpush1.msra.mxu0 0.0
      %3638 = vmatprep.subr.mxu0 0.0
      %3639 = vmatpush1.msra.mxu0 0.0
      %3640 = vmatprep.subr.mxu0 0.0
      %3641 = vmatpush1.msra.mxu0 0.0
      %3642 = vmatprep.subr.mxu0 0.0
      %3643 = vmatpush1.msra.mxu0 0.0
      %3644 = vmatprep.subr.mxu0 0.0
      %3645 = vmatpush1.msra.mxu0 0.0
      %3646 = vmatprep.subr.mxu0 0.0
      %3647 = vmatpush1.msra.mxu0 0.0
      %3648 = vmatprep.mubr.f32.mxu0 0.0
      %3649 = vmatmul.mubr.f32.gmra.mrb[0].mxu0 %v969
      %v3650 = vpop.f32.mrb[0].mxu0
      %v3651 = vadd.f32 %v3582, %v3650
      %v3652 = vpop.f32.mrb[0].mxu0
      %3653 = vmatprep.mubr.f32.mxu0 0.0
      %3654 = vmatmul.mubr.f32.gmra.mrb[0].mxu0 %v972
      %v3655 = vpop.f32.mrb[0].mxu0
      %v3656 = vadd.f32 %v3582, %v3655
      %v3657 = vpop.f32.mrb[0].mxu0
      %3658 = vmatprep.mubr.f32.mxu0 0.0
      %3659 = vmatmul.mubr.f32.gmra.mrb[0].mxu0 %v975
      %v3660 = vpop.f32.mrb[0].mxu0
      %v3661 = vadd.f32 %v3582, %v3660
      %v3662 = vpop.f32.mrb[0].mxu0
      %3663 = vdwg.mxu0
      %v3665 = vlaneseq
      %v3666 = vshrl.u32 %v3665, 7
      %v3667 = vsub.s32 0, %v3666
      %v3668 = vrot.slane %v955, %v3667
      %3670 = vmatprep.subr.mxu0 0.0
      %3671 = vmatpush1.msra.mxu0 %v948
      %3672 = vmatprep.subr.mxu0 0.0
      %3673 = vmatpush1.msra.mxu0 %v949
      %3674 = vmatprep.subr.mxu0 0.0
      %3675 = vmatpush1.msra.mxu0 %v950
      %3676 = vmatprep.subr.mxu0 0.0
      %3677 = vmatpush1.msra.mxu0 %v951
      %3678 = vmatprep.subr.mxu0 0.0
      %3679 = vmatpush1.msra.mxu0 0.0
      %3680 = vmatprep.subr.mxu0 0.0
      %3681 = vmatpush1.msra.mxu0 0.0
      %3682 = vmatprep.subr.mxu0 0.0
      %3683 = vmatpush1.msra.mxu0 0.0
      %3684 = vmatprep.subr.mxu0 0.0
      %3685 = vmatpush1.msra.mxu0 0.0
      %3686 = vmatprep.subr.mxu0 0.0
      %3687 = vmatpush1.msra.mxu0 0.0
      %3688 = vmatprep.subr.mxu0 0.0
      %3689 = vmatpush1.msra.mxu0 0.0
      %3690 = vmatprep.subr.mxu0 0.0
      %3691 = vmatpush1.msra.mxu0 0.0
      %3692 = vmatprep.subr.mxu0 0.0
      %3693 = vmatpush1.msra.mxu0 0.0
      %3694 = vmatprep.subr.mxu0 0.0
      %3695 = vmatpush1.msra.mxu0 0.0
      %3696 = vmatprep.subr.mxu0 0.0
      %3697 = vmatpush1.msra.mxu0 0.0
      %3698 = vmatprep.subr.mxu0 0.0
      %3699 = vmatpush1.msra.mxu0 0.0
      %3700 = vmatprep.subr.mxu0 0.0
      %3701 = vmatpush1.msra.mxu0 0.0
      %3702 = vmatprep.subr.mxu0 0.0
      %3703 = vmatpush1.msra.mxu0 0.0
      %3704 = vmatprep.subr.mxu0 0.0
      %3705 = vmatpush1.msra.mxu0 0.0
      %3706 = vmatprep.subr.mxu0 0.0
      %3707 = vmatpush1.msra.mxu0 0.0
      %3708 = vmatprep.subr.mxu0 0.0
      %3709 = vmatpush1.msra.mxu0 0.0
      %3710 = vmatprep.subr.mxu0 0.0
      %3711 = vmatpush1.msra.mxu0 0.0
      %3712 = vmatprep.subr.mxu0 0.0
      %3713 = vmatpush1.msra.mxu0 0.0
      %3714 = vmatprep.subr.mxu0 0.0
      %3715 = vmatpush1.msra.mxu0 0.0
      %3716 = vmatprep.subr.mxu0 0.0
      %3717 = vmatpush1.msra.mxu0 0.0
      %3718 = vmatprep.subr.mxu0 0.0
      %3719 = vmatpush1.msra.mxu0 0.0
      %3720 = vmatprep.subr.mxu0 0.0
      %3721 = vmatpush1.msra.mxu0 0.0
      %3722 = vmatprep.subr.mxu0 0.0
      %3723 = vmatpush1.msra.mxu0 0.0
      %3724 = vmatprep.subr.mxu0 0.0
      %3725 = vmatpush1.msra.mxu0 0.0
      %3726 = vmatprep.subr.mxu0 0.0
      %3727 = vmatpush1.msra.mxu0 0.0
      %3728 = vmatprep.subr.mxu0 0.0
      %3729 = vmatpush1.msra.mxu0 0.0
      %3730 = vmatprep.subr.mxu0 0.0
      %3731 = vmatpush1.msra.mxu0 0.0
      %3732 = vmatprep.subr.mxu0 0.0
      %3733 = vmatpush1.msra.mxu0 0.0
      %3734 = vmatprep.mubr.f32.mxu0 0.0
      %3735 = vmatmul.mubr.f32.gmra.mrb[0].mxu0 %v969
      %v3736 = vpop.f32.mrb[0].mxu0
      %v3737 = vadd.f32 %v3668, %v3736
      %v3738 = vpop.f32.mrb[0].mxu0
      %3739 = vmatprep.mubr.f32.mxu0 0.0
      %3740 = vmatmul.mubr.f32.gmra.mrb[0].mxu0 %v972
      %v3741 = vpop.f32.mrb[0].mxu0
      %v3742 = vadd.f32 %v3668, %v3741
      %v3743 = vpop.f32.mrb[0].mxu0
      %3744 = vmatprep.mubr.f32.mxu0 0.0
      %3745 = vmatmul.mubr.f32.gmra.mrb[0].mxu0 %v975
      %v3746 = vpop.f32.mrb[0].mxu0
      %v3747 = vadd.f32 %v3668, %v3746
      %v3748 = vpop.f32.mrb[0].mxu0
      %3749 = vdwg.mxu0
      %v3751 = vsel %vm1229, %v3565, 0
      %v3754 = vsel %vm1229, %v3651, 0
      %3756 = vmatprep.subr.mxu0 0.0
      %3757 = vmatpush1.xpose.msra.mxu0 %v3754
      %3758 = vmatprep.subr.mxu0 0.0
      %3759 = vmatpush1.xpose.msra.mxu0 0.0
      %3760 = vmatprep.subr.mxu0 0.0
      %3761 = vmatpush1.xpose.msra.mxu0 0.0
      %3762 = vmatprep.subr.mxu0 0.0
      %3763 = vmatpush1.xpose.msra.mxu0 0.0
      %3764 = vmatprep.subr.mxu0 0.0
      %3765 = vmatpush1.xpose.msra.mxu0 0.0
      %3766 = vmatprep.subr.mxu0 0.0
      %3767 = vmatpush1.xpose.msra.mxu0 0.0
      %3768 = vmatprep.subr.mxu0 0.0
      %3769 = vmatpush1.xpose.msra.mxu0 0.0
      %3770 = vmatprep.subr.mxu0 0.0
      %3771 = vmatpush1.xpose.msra.mxu0 0.0
      %3772 = vmatprep.subr.mxu0 0.0
      %3773 = vmatpush1.xpose.msra.mxu0 0.0
      %3774 = vmatprep.subr.mxu0 0.0
      %3775 = vmatpush1.xpose.msra.mxu0 0.0
      %3776 = vmatprep.subr.mxu0 0.0
      %3777 = vmatpush1.xpose.msra.mxu0 0.0
      %3778 = vmatprep.subr.mxu0 0.0
      %3779 = vmatpush1.xpose.msra.mxu0 0.0
      %3780 = vmatprep.subr.mxu0 0.0
      %3781 = vmatpush1.xpose.msra.mxu0 0.0
      %3782 = vmatprep.subr.mxu0 0.0
      %3783 = vmatpush1.xpose.msra.mxu0 0.0
      %3784 = vmatprep.subr.mxu0 0.0
      %3785 = vmatpush1.xpose.msra.mxu0 0.0
      %3786 = vmatprep.subr.mxu0 0.0
      %3787 = vmatpush1.xpose.msra.mxu0 0.0
      %3788 = vmatprep.subr.mxu0 0.0
      %3789 = vmatpush1.xpose.msra.mxu0 0.0
      %3790 = vmatprep.subr.mxu0 0.0
      %3791 = vmatpush1.xpose.msra.mxu0 0.0
      %3792 = vmatprep.subr.mxu0 0.0
      %3793 = vmatpush1.xpose.msra.mxu0 0.0
      %3794 = vmatprep.subr.mxu0 0.0
      %3795 = vmatpush1.xpose.msra.mxu0 0.0
      %3796 = vmatprep.subr.mxu0 0.0
      %3797 = vmatpush1.xpose.msra.mxu0 0.0
      %3798 = vmatprep.subr.mxu0 0.0
      %3799 = vmatpush1.xpose.msra.mxu0 0.0
      %3800 = vmatprep.subr.mxu0 0.0
      %3801 = vmatpush1.xpose.msra.mxu0 0.0
      %3802 = vmatprep.subr.mxu0 0.0
      %3803 = vmatpush1.xpose.msra.mxu0 0.0
      %3804 = vmatprep.subr.mxu0 0.0
      %3805 = vmatpush1.xpose.msra.mxu0 0.0
      %3806 = vmatprep.subr.mxu0 0.0
      %3807 = vmatpush1.xpose.msra.mxu0 0.0
      %3808 = vmatprep.subr.mxu0 0.0
      %3809 = vmatpush1.xpose.msra.mxu0 0.0
      %3810 = vmatprep.subr.mxu0 0.0
      %3811 = vmatpush1.xpose.msra.mxu0 0.0
      %3812 = vmatprep.subr.mxu0 0.0
      %3813 = vmatpush1.xpose.msra.mxu0 0.0
      %3814 = vmatprep.subr.mxu0 0.0
      %3815 = vmatpush1.xpose.msra.mxu0 0.0
      %3816 = vmatprep.subr.mxu0 0.0
      %3817 = vmatpush1.xpose.msra.mxu0 0.0
      %3818 = vmatprep.subr.mxu0 0.0
      %3819 = vmatpush1.xpose.msra.mxu0 0.0
      %3820 = vmatprep.mubr.f32.mxu0 0.0
      %3821 = vmatmul.mubr.f32.gmra.mrb[0].mxu0 %v3751
      %v3822 = vpop.f32.mrb[0].mxu0
      %v3823 = vadd.f32 0.0, %v3822
      %v3824 = vpop.f32.mrb[0].mxu0
      %3825 = vdwg.mxu0
      %v3827 = vsel %vm1229, %v3570, 0
      %v3830 = vsel %vm1229, %v3656, 0
      %3832 = vmatprep.subr.mxu0 0.0
      %3833 = vmatpush1.xpose.msra.mxu0 %v3830
      %3834 = vmatprep.subr.mxu0 0.0
      %3835 = vmatpush1.xpose.msra.mxu0 0.0
      %3836 = vmatprep.subr.mxu0 0.0
      %3837 = vmatpush1.xpose.msra.mxu0 0.0
      %3838 = vmatprep.subr.mxu0 0.0
      %3839 = vmatpush1.xpose.msra.mxu0 0.0
      %3840 = vmatprep.subr.mxu0 0.0
      %3841 = vmatpush1.xpose.msra.mxu0 0.0
      %3842 = vmatprep.subr.mxu0 0.0
      %3843 = vmatpush1.xpose.msra.mxu0 0.0
      %3844 = vmatprep.subr.mxu0 0.0
      %3845 = vmatpush1.xpose.msra.mxu0 0.0
      %3846 = vmatprep.subr.mxu0 0.0
      %3847 = vmatpush1.xpose.msra.mxu0 0.0
      %3848 = vmatprep.subr.mxu0 0.0
      %3849 = vmatpush1.xpose.msra.mxu0 0.0
      %3850 = vmatprep.subr.mxu0 0.0
      %3851 = vmatpush1.xpose.msra.mxu0 0.0
      %3852 = vmatprep.subr.mxu0 0.0
      %3853 = vmatpush1.xpose.msra.mxu0 0.0
      %3854 = vmatprep.subr.mxu0 0.0
      %3855 = vmatpush1.xpose.msra.mxu0 0.0
      %3856 = vmatprep.subr.mxu0 0.0
      %3857 = vmatpush1.xpose.msra.mxu0 0.0
      %3858 = vmatprep.subr.mxu0 0.0
      %3859 = vmatpush1.xpose.msra.mxu0 0.0
      %3860 = vmatprep.subr.mxu0 0.0
      %3861 = vmatpush1.xpose.msra.mxu0 0.0
      %3862 = vmatprep.subr.mxu0 0.0
      %3863 = vmatpush1.xpose.msra.mxu0 0.0
      %3864 = vmatprep.subr.mxu0 0.0
      %3865 = vmatpush1.xpose.msra.mxu0 0.0
      %3866 = vmatprep.subr.mxu0 0.0
      %3867 = vmatpush1.xpose.msra.mxu0 0.0
      %3868 = vmatprep.subr.mxu0 0.0
      %3869 = vmatpush1.xpose.msra.mxu0 0.0
      %3870 = vmatprep.subr.mxu0 0.0
      %3871 = vmatpush1.xpose.msra.mxu0 0.0
      %3872 = vmatprep.subr.mxu0 0.0
      %3873 = vmatpush1.xpose.msra.mxu0 0.0
      %3874 = vmatprep.subr.mxu0 0.0
      %3875 = vmatpush1.xpose.msra.mxu0 0.0
      %3876 = vmatprep.subr.mxu0 0.0
      %3877 = vmatpush1.xpose.msra.mxu0 0.0
      %3878 = vmatprep.subr.mxu0 0.0
      %3879 = vmatpush1.xpose.msra.mxu0 0.0
      %3880 = vmatprep.subr.mxu0 0.0
      %3881 = vmatpush1.xpose.msra.mxu0 0.0
      %3882 = vmatprep.subr.mxu0 0.0
      %3883 = vmatpush1.xpose.msra.mxu0 0.0
      %3884 = vmatprep.subr.mxu0 0.0
      %3885 = vmatpush1.xpose.msra.mxu0 0.0
      %3886 = vmatprep.subr.mxu0 0.0
      %3887 = vmatpush1.xpose.msra.mxu0 0.0
      %3888 = vmatprep.subr.mxu0 0.0
      %3889 = vmatpush1.xpose.msra.mxu0 0.0
      %3890 = vmatprep.subr.mxu0 0.0
      %3891 = vmatpush1.xpose.msra.mxu0 0.0
      %3892 = vmatprep.subr.mxu0 0.0
      %3893 = vmatpush1.xpose.msra.mxu0 0.0
      %3894 = vmatprep.subr.mxu0 0.0
      %3895 = vmatpush1.xpose.msra.mxu0 0.0
      %3896 = vmatprep.mubr.f32.mxu0 0.0
      %3897 = vmatmul.mubr.f32.gmra.mrb[0].mxu0 %v3827
      %v3898 = vpop.f32.mrb[0].mxu0
      %v3899 = vadd.f32 0.0, %v3898
      %v3900 = vpop.f32.mrb[0].mxu0
      %3901 = vdwg.mxu0
      %v3903 = vsel %vm1229, %v3575, 0
      %v3906 = vsel %vm1229, %v3661, 0
      %3908 = vmatprep.subr.mxu0 0.0
      %3909 = vmatpush1.xpose.msra.mxu0 %v3906
      %3910 = vmatprep.subr.mxu0 0.0
      %3911 = vmatpush1.xpose.msra.mxu0 0.0
      %3912 = vmatprep.subr.mxu0 0.0
      %3913 = vmatpush1.xpose.msra.mxu0 0.0
      %3914 = vmatprep.subr.mxu0 0.0
      %3915 = vmatpush1.xpose.msra.mxu0 0.0
      %3916 = vmatprep.subr.mxu0 0.0
      %3917 = vmatpush1.xpose.msra.mxu0 0.0
      %3918 = vmatprep.subr.mxu0 0.0
      %3919 = vmatpush1.xpose.msra.mxu0 0.0
      %3920 = vmatprep.subr.mxu0 0.0
      %3921 = vmatpush1.xpose.msra.mxu0 0.0
      %3922 = vmatprep.subr.mxu0 0.0
      %3923 = vmatpush1.xpose.msra.mxu0 0.0
      %3924 = vmatprep.subr.mxu0 0.0
      %3925 = vmatpush1.xpose.msra.mxu0 0.0
      %3926 = vmatprep.subr.mxu0 0.0
      %3927 = vmatpush1.xpose.msra.mxu0 0.0
      %3928 = vmatprep.subr.mxu0 0.0
      %3929 = vmatpush1.xpose.msra.mxu0 0.0
      %3930 = vmatprep.subr.mxu0 0.0
      %3931 = vmatpush1.xpose.msra.mxu0 0.0
      %3932 = vmatprep.subr.mxu0 0.0
      %3933 = vmatpush1.xpose.msra.mxu0 0.0
      %3934 = vmatprep.subr.mxu0 0.0
      %3935 = vmatpush1.xpose.msra.mxu0 0.0
      %3936 = vmatprep.subr.mxu0 0.0
      %3937 = vmatpush1.xpose.msra.mxu0 0.0
      %3938 = vmatprep.subr.mxu0 0.0
      %3939 = vmatpush1.xpose.msra.mxu0 0.0
      %3940 = vmatprep.subr.mxu0 0.0
      %3941 = vmatpush1.xpose.msra.mxu0 0.0
      %3942 = vmatprep.subr.mxu0 0.0
      %3943 = vmatpush1.xpose.msra.mxu0 0.0
      %3944 = vmatprep.subr.mxu0 0.0
      %3945 = vmatpush1.xpose.msra.mxu0 0.0
      %3946 = vmatprep.subr.mxu0 0.0
      %3947 = vmatpush1.xpose.msra.mxu0 0.0
      %3948 = vmatprep.subr.mxu0 0.0
      %3949 = vmatpush1.xpose.msra.mxu0 0.0
      %3950 = vmatprep.subr.mxu0 0.0
      %3951 = vmatpush1.xpose.msra.mxu0 0.0
      %3952 = vmatprep.subr.mxu0 0.0
      %3953 = vmatpush1.xpose.msra.mxu0 0.0
      %3954 = vmatprep.subr.mxu0 0.0
      %3955 = vmatpush1.xpose.msra.mxu0 0.0
      %3956 = vmatprep.subr.mxu0 0.0
      %3957 = vmatpush1.xpose.msra.mxu0 0.0
      %3958 = vmatprep.subr.mxu0 0.0
      %3959 = vmatpush1.xpose.msra.mxu0 0.0
      %3960 = vmatprep.subr.mxu0 0.0
      %3961 = vmatpush1.xpose.msra.mxu0 0.0
      %3962 = vmatprep.subr.mxu0 0.0
      %3963 = vmatpush1.xpose.msra.mxu0 0.0
      %3964 = vmatprep.subr.mxu0 0.0
      %3965 = vmatpush1.xpose.msra.mxu0 0.0
      %3966 = vmatprep.subr.mxu0 0.0
      %3967 = vmatpush1.xpose.msra.mxu0 0.0
      %3968 = vmatprep.subr.mxu0 0.0
      %3969 = vmatpush1.xpose.msra.mxu0 0.0
      %3970 = vmatprep.subr.mxu0 0.0
      %3971 = vmatpush1.xpose.msra.mxu0 0.0
      %3972 = vmatprep.mubr.f32.mxu0 0.0
      %3973 = vmatmul.mubr.f32.gmra.mrb[0].mxu0 %v3903
      %v3974 = vpop.f32.mrb[0].mxu0
      %v3975 = vadd.f32 0.0, %v3974
      %v3976 = vpop.f32.mrb[0].mxu0
      %3977 = vdwg.mxu0
      %v3978 = vmul.f32 %v3823, 0.35355338
      %v3979 = vmul.f32 %v3899, 0.35355338
      %v3980 = vmul.f32 %v3975, 0.35355338
      %v3981 = vadd.f32 %v3978, %v1467
      %v3982 = vadd.f32 %v3979, %v1471
      %v3983 = vadd.f32 %v3980, %v1475
      %v3984 = vsel %vm1229, %v3981, -inf
      %3985 = vmax.xlane.f32.xlu0 %v3984
      %v3986 = vpop.xlane.xlu0 %3985
      %v3987 = vsel %vm1229, %v3982, -inf
      %3988 = vmax.xlane.f32.xlu0 %v3987
      %v3989 = vpop.xlane.xlu0 %3988
      %v3990 = vsel %vm1229, %v3983, -inf
      %3991 = vmax.xlane.f32.xlu0 %v3990
      %v3992 = vpop.xlane.xlu0 %3991
      %v3993 = vsub.f32 %v3981, %v3986
      %v3994 = vsub.f32 %v3982, %v3989
      %v3995 = vsub.f32 %v3983, %v3992
      %v3996 = vmul.f32 %v3993, 1.442695
      %v3997 = vpow.pop %v3996
      %v3998 = vmul.f32 %v3994, 1.442695
      %v3999 = vpow.pop %v3998
      %v4000 = vmul.f32 %v3995, 1.442695
      %v4001 = vpow.pop %v4000
      %v4002 = vsel %vm1229, %v3997, 0.0
      %4003 = vadd.xlane.f32.xlu0 %v4002
      %v4004 = vpop.xlane.xlu0 %4003
      %v4005 = vsel %vm1229, %v3999, 0.0
      %4006 = vadd.xlane.f32.xlu0 %v4005
      %v4007 = vpop.xlane.xlu0 %4006
      %v4008 = vsel %vm1229, %v4001, 0.0
      %4009 = vadd.xlane.f32.xlu0 %v4008
      %v4010 = vpop.xlane.xlu0 %4009
      %v4011 = vrcp.pop %v4004
      %v4012 = vmul.f32 %v3997, %v4011
      %v4013 = vrcp.pop %v4007
      %v4014 = vmul.f32 %v3999, %v4013
      %v4015 = vrcp.pop %v4010
      %v4016 = vmul.f32 %v4001, %v4015
      %v4018 = vsel %vm1229, %v4012, 0
      %4020 = vmatprep.subr.mxu0 0.0
      %4021 = vmatpush1.msra.mxu0 %v3737
      %4022 = vmatprep.subr.mxu0 0.0
      %4023 = vmatpush1.msra.mxu0 0.0
      %4024 = vmatprep.subr.mxu0 0.0
      %4025 = vmatpush1.msra.mxu0 0.0
      %4026 = vmatprep.subr.mxu0 0.0
      %4027 = vmatpush1.msra.mxu0 0.0
      %4028 = vmatprep.subr.mxu0 0.0
      %4029 = vmatpush1.msra.mxu0 0.0
      %4030 = vmatprep.subr.mxu0 0.0
      %4031 = vmatpush1.msra.mxu0 0.0
      %4032 = vmatprep.subr.mxu0 0.0
      %4033 = vmatpush1.msra.mxu0 0.0
      %4034 = vmatprep.subr.mxu0 0.0
      %4035 = vmatpush1.msra.mxu0 0.0
      %4036 = vmatprep.subr.mxu0 0.0
      %4037 = vmatpush1.msra.mxu0 0.0
      %4038 = vmatprep.subr.mxu0 0.0
      %4039 = vmatpush1.msra.mxu0 0.0
      %4040 = vmatprep.subr.mxu0 0.0
      %4041 = vmatpush1.msra.mxu0 0.0
      %4042 = vmatprep.subr.mxu0 0.0
      %4043 = vmatpush1.msra.mxu0 0.0
      %4044 = vmatprep.subr.mxu0 0.0
      %4045 = vmatpush1.msra.mxu0 0.0
      %4046 = vmatprep.subr.mxu0 0.0
      %4047 = vmatpush1.msra.mxu0 0.0
      %4048 = vmatprep.subr.mxu0 0.0
      %4049 = vmatpush1.msra.mxu0 0.0
      %4050 = vmatprep.subr.mxu0 0.0
      %4051 = vmatpush1.msra.mxu0 0.0
      %4052 = vmatprep.subr.mxu0 0.0
      %4053 = vmatpush1.msra.mxu0 0.0
      %4054 = vmatprep.subr.mxu0 0.0
      %4055 = vmatpush1.msra.mxu0 0.0
      %4056 = vmatprep.subr.mxu0 0.0
      %4057 = vmatpush1.msra.mxu0 0.0
      %4058 = vmatprep.subr.mxu0 0.0
      %4059 = vmatpush1.msra.mxu0 0.0
      %4060 = vmatprep.subr.mxu0 0.0
      %4061 = vmatpush1.msra.mxu0 0.0
      %4062 = vmatprep.subr.mxu0 0.0
      %4063 = vmatpush1.msra.mxu0 0.0
      %4064 = vmatprep.subr.mxu0 0.0
      %4065 = vmatpush1.msra.mxu0 0.0
      %4066 = vmatprep.subr.mxu0 0.0
      %4067 = vmatpush1.msra.mxu0 0.0
      %4068 = vmatprep.subr.mxu0 0.0
      %4069 = vmatpush1.msra.mxu0 0.0
      %4070 = vmatprep.subr.mxu0 0.0
      %4071 = vmatpush1.msra.mxu0 0.0
      %4072 = vmatprep.subr.mxu0 0.0
      %4073 = vmatpush1.msra.mxu0 0.0
      %4074 = vmatprep.subr.mxu0 0.0
      %4075 = vmatpush1.msra.mxu0 0.0
      %4076 = vmatprep.subr.mxu0 0.0
      %4077 = vmatpush1.msra.mxu0 0.0
      %4078 = vmatprep.subr.mxu0 0.0
      %4079 = vmatpush1.msra.mxu0 0.0
      %4080 = vmatprep.subr.mxu0 0.0
      %4081 = vmatpush1.msra.mxu0 0.0
      %4082 = vmatprep.subr.mxu0 0.0
      %4083 = vmatpush1.msra.mxu0 0.0
      %4084 = vmatprep.mubr.f32.mxu0 0.0
      %4085 = vmatmul.mubr.f32.gmra.mrb[0].mxu0 %v4018
      %v4086 = vpop.f32.mrb[0].mxu0
      %v4087 = vadd.f32 0.0, %v4086
      %v4088 = vpop.f32.mrb[0].mxu0
      %4089 = vdwg.mxu0
      %v4091 = vsel %vm1229, %v4014, 0
      %4093 = vmatprep.subr.mxu0 0.0
      %4094 = vmatpush1.msra.mxu0 %v3742
      %4095 = vmatprep.subr.mxu0 0.0
      %4096 = vmatpush1.msra.mxu0 0.0
      %4097 = vmatprep.subr.mxu0 0.0
      %4098 = vmatpush1.msra.mxu0 0.0
      %4099 = vmatprep.subr.mxu0 0.0
      %4100 = vmatpush1.msra.mxu0 0.0
      %4101 = vmatprep.subr.mxu0 0.0
      %4102 = vmatpush1.msra.mxu0 0.0
      %4103 = vmatprep.subr.mxu0 0.0
      %4104 = vmatpush1.msra.mxu0 0.0
      %4105 = vmatprep.subr.mxu0 0.0
      %4106 = vmatpush1.msra.mxu0 0.0
      %4107 = vmatprep.subr.mxu0 0.0
      %4108 = vmatpush1.msra.mxu0 0.0
      %4109 = vmatprep.subr.mxu0 0.0
      %4110 = vmatpush1.msra.mxu0 0.0
      %4111 = vmatprep.subr.mxu0 0.0
      %4112 = vmatpush1.msra.mxu0 0.0
      %4113 = vmatprep.subr.mxu0 0.0
      %4114 = vmatpush1.msra.mxu0 0.0
      %4115 = vmatprep.subr.mxu0 0.0
      %4116 = vmatpush1.msra.mxu0 0.0
      %4117 = vmatprep.subr.mxu0 0.0
      %4118 = vmatpush1.msra.mxu0 0.0
      %4119 = vmatprep.subr.mxu0 0.0
      %4120 = vmatpush1.msra.mxu0 0.0
      %4121 = vmatprep.subr.mxu0 0.0
      %4122 = vmatpush1.msra.mxu0 0.0
      %4123 = vmatprep.subr.mxu0 0.0
      %4124 = vmatpush1.msra.mxu0 0.0
      %4125 = vmatprep.subr.mxu0 0.0
      %4126 = vmatpush1.msra.mxu0 0.0
      %4127 = vmatprep.subr.mxu0 0.0
      %4128 = vmatpush1.msra.mxu0 0.0
      %4129 = vmatprep.subr.mxu0 0.0
      %4130 = vmatpush1.msra.mxu0 0.0
      %4131 = vmatprep.subr.mxu0 0.0
      %4132 = vmatpush1.msra.mxu0 0.0
      %4133 = vmatprep.subr.mxu0 0.0
      %4134 = vmatpush1.msra.mxu0 0.0
      %4135 = vmatprep.subr.mxu0 0.0
      %4136 = vmatpush1.msra.mxu0 0.0
      %4137 = vmatprep.subr.mxu0 0.0
      %4138 = vmatpush1.msra.mxu0 0.0
      %4139 = vmatprep.subr.mxu0 0.0
      %4140 = vmatpush1.msra.mxu0 0.0
      %4141 = vmatprep.subr.mxu0 0.0
      %4142 = vmatpush1.msra.mxu0 0.0
      %4143 = vmatprep.subr.mxu0 0.0
      %4144 = vmatpush1.msra.mxu0 0.0
      %4145 = vmatprep.subr.mxu0 0.0
      %4146 = vmatpush1.msra.mxu0 0.0
      %4147 = vmatprep.subr.mxu0 0.0
      %4148 = vmatpush1.msra.mxu0 0.0
      %4149 = vmatprep.subr.mxu0 0.0
      %4150 = vmatpush1.msra.mxu0 0.0
      %4151 = vmatprep.subr.mxu0 0.0
      %4152 = vmatpush1.msra.mxu0 0.0
      %4153 = vmatprep.subr.mxu0 0.0
      %4154 = vmatpush1.msra.mxu0 0.0
      %4155 = vmatprep.subr.mxu0 0.0
      %4156 = vmatpush1.msra.mxu0 0.0
      %4157 = vmatprep.mubr.f32.mxu0 0.0
      %4158 = vmatmul.mubr.f32.gmra.mrb[0].mxu0 %v4091
      %v4159 = vpop.f32.mrb[0].mxu0
      %v4160 = vadd.f32 0.0, %v4159
      %v4161 = vpop.f32.mrb[0].mxu0
      %4162 = vdwg.mxu0
      %v4164 = vsel %vm1229, %v4016, 0
      %4166 = vmatprep.subr.mxu0 0.0
      %4167 = vmatpush1.msra.mxu0 %v3747
      %4168 = vmatprep.subr.mxu0 0.0
      %4169 = vmatpush1.msra.mxu0 0.0
      %4170 = vmatprep.subr.mxu0 0.0
      %4171 = vmatpush1.msra.mxu0 0.0
      %4172 = vmatprep.subr.mxu0 0.0
      %4173 = vmatpush1.msra.mxu0 0.0
      %4174 = vmatprep.subr.mxu0 0.0
      %4175 = vmatpush1.msra.mxu0 0.0
      %4176 = vmatprep.subr.mxu0 0.0
      %4177 = vmatpush1.msra.mxu0 0.0
      %4178 = vmatprep.subr.mxu0 0.0
      %4179 = vmatpush1.msra.mxu0 0.0
      %4180 = vmatprep.subr.mxu0 0.0
      %4181 = vmatpush1.msra.mxu0 0.0
      %4182 = vmatprep.subr.mxu0 0.0
      %4183 = vmatpush1.msra.mxu0 0.0
      %4184 = vmatprep.subr.mxu0 0.0
      %4185 = vmatpush1.msra.mxu0 0.0
      %4186 = vmatprep.subr.mxu0 0.0
      %4187 = vmatpush1.msra.mxu0 0.0
      %4188 = vmatprep.subr.mxu0 0.0
      %4189 = vmatpush1.msra.mxu0 0.0
      %4190 = vmatprep.subr.mxu0 0.0
      %4191 = vmatpush1.msra.mxu0 0.0
      %4192 = vmatprep.subr.mxu0 0.0
      %4193 = vmatpush1.msra.mxu0 0.0
      %4194 = vmatprep.subr.mxu0 0.0
      %4195 = vmatpush1.msra.mxu0 0.0
      %4196 = vmatprep.subr.mxu0 0.0
      %4197 = vmatpush1.msra.mxu0 0.0
      %4198 = vmatprep.subr.mxu0 0.0
      %4199 = vmatpush1.msra.mxu0 0.0
      %4200 = vmatprep.subr.mxu0 0.0
      %4201 = vmatpush1.msra.mxu0 0.0
      %4202 = vmatprep.subr.mxu0 0.0
      %4203 = vmatpush1.msra.mxu0 0.0
      %4204 = vmatprep.subr.mxu0 0.0
      %4205 = vmatpush1.msra.mxu0 0.0
      %4206 = vmatprep.subr.mxu0 0.0
      %4207 = vmatpush1.msra.mxu0 0.0
      %4208 = vmatprep.subr.mxu0 0.0
      %4209 = vmatpush1.msra.mxu0 0.0
      %4210 = vmatprep.subr.mxu0 0.0
      %4211 = vmatpush1.msra.mxu0 0.0
      %4212 = vmatprep.subr.mxu0 0.0
      %4213 = vmatpush1.msra.mxu0 0.0
      %4214 = vmatprep.subr.mxu0 0.0
      %4215 = vmatpush1.msra.mxu0 0.0
      %4216 = vmatprep.subr.mxu0 0.0
      %4217 = vmatpush1.msra.mxu0 0.0
      %4218 = vmatprep.subr.mxu0 0.0
      %4219 = vmatpush1.msra.mxu0 0.0
      %4220 = vmatprep.subr.mxu0 0.0
      %4221 = vmatpush1.msra.mxu0 0.0
      %4222 = vmatprep.subr.mxu0 0.0
      %4223 = vmatpush1.msra.mxu0 0.0
      %4224 = vmatprep.subr.mxu0 0.0
      %4225 = vmatpush1.msra.mxu0 0.0
      %4226 = vmatprep.subr.mxu0 0.0
      %4227 = vmatpush1.msra.mxu0 0.0
      %4228 = vmatprep.subr.mxu0 0.0
      %4229 = vmatpush1.msra.mxu0 0.0
      %4230 = vmatprep.mubr.f32.mxu0 0.0
      %4231 = vmatmul.mubr.f32.gmra.mrb[0].mxu0 %v4164
      %v4232 = vpop.f32.mrb[0].mxu0
      %v4233 = vadd.f32 0.0, %v4232
      %v4234 = vpop.f32.mrb[0].mxu0
      %4235 = vdwg.mxu0
      %v4237 = vsel %vm1229, %v4087, 0
      %v4240 = vsel %vm1229, %v4160, 0
      %v4243 = vsel %vm1229, %v4233, 0
      %4245 = vmatprep.subr.mxu0 0.0
      %4246 = vmatpush1.msra.mxu0 %v959
      %4247 = vmatprep.subr.mxu0 0.0
      %4248 = vmatpush1.msra.mxu0 0.0
      %4249 = vmatprep.subr.mxu0 0.0
      %4250 = vmatpush1.msra.mxu0 0.0
      %4251 = vmatprep.subr.mxu0 0.0
      %4252 = vmatpush1.msra.mxu0 0.0
      %4253 = vmatprep.subr.mxu0 0.0
      %4254 = vmatpush1.msra.mxu0 0.0
      %4255 = vmatprep.subr.mxu0 0.0
      %4256 = vmatpush1.msra.mxu0 0.0
      %4257 = vmatprep.subr.mxu0 0.0
      %4258 = vmatpush1.msra.mxu0 0.0
      %4259 = vmatprep.subr.mxu0 0.0
      %4260 = vmatpush1.msra.mxu0 0.0
      %4261 = vmatprep.subr.mxu0 0.0
      %4262 = vmatpush1.msra.mxu0 0.0
      %4263 = vmatprep.subr.mxu0 0.0
      %4264 = vmatpush1.msra.mxu0 0.0
      %4265 = vmatprep.subr.mxu0 0.0
      %4266 = vmatpush1.msra.mxu0 0.0
      %4267 = vmatprep.subr.mxu0 0.0
      %4268 = vmatpush1.msra.mxu0 0.0
      %4269 = vmatprep.subr.mxu0 0.0
      %4270 = vmatpush1.msra.mxu0 0.0
      %4271 = vmatprep.subr.mxu0 0.0
      %4272 = vmatpush1.msra.mxu0 0.0
      %4273 = vmatprep.subr.mxu0 0.0
      %4274 = vmatpush1.msra.mxu0 0.0
      %4275 = vmatprep.subr.mxu0 0.0
      %4276 = vmatpush1.msra.mxu0 0.0
      %4277 = vmatprep.subr.mxu0 0.0
      %4278 = vmatpush1.msra.mxu0 0.0
      %4279 = vmatprep.subr.mxu0 0.0
      %4280 = vmatpush1.msra.mxu0 0.0
      %4281 = vmatprep.subr.mxu0 0.0
      %4282 = vmatpush1.msra.mxu0 0.0
      %4283 = vmatprep.subr.mxu0 0.0
      %4284 = vmatpush1.msra.mxu0 0.0
      %4285 = vmatprep.subr.mxu0 0.0
      %4286 = vmatpush1.msra.mxu0 0.0
      %4287 = vmatprep.subr.mxu0 0.0
      %4288 = vmatpush1.msra.mxu0 0.0
      %4289 = vmatprep.subr.mxu0 0.0
      %4290 = vmatpush1.msra.mxu0 0.0
      %4291 = vmatprep.subr.mxu0 0.0
      %4292 = vmatpush1.msra.mxu0 0.0
      %4293 = vmatprep.subr.mxu0 0.0
      %4294 = vmatpush1.msra.mxu0 0.0
      %4295 = vmatprep.subr.mxu0 0.0
      %4296 = vmatpush1.msra.mxu0 0.0
      %4297 = vmatprep.subr.mxu0 0.0
      %4298 = vmatpush1.msra.mxu0 0.0
      %4299 = vmatprep.subr.mxu0 0.0
      %4300 = vmatpush1.msra.mxu0 0.0
      %4301 = vmatprep.subr.mxu0 0.0
      %4302 = vmatpush1.msra.mxu0 0.0
      %4303 = vmatprep.subr.mxu0 0.0
      %4304 = vmatpush1.msra.mxu0 0.0
      %4305 = vmatprep.subr.mxu0 0.0
      %4306 = vmatpush1.msra.mxu0 0.0
      %4307 = vmatprep.subr.mxu0 0.0
      %4308 = vmatpush1.msra.mxu0 0.0
      %4309 = vmatprep.mubr.f32.mxu0 0.0
      %4310 = vmatmul.mubr.f32.gmra.mrb[0].mxu0 %v4237
      %v4311 = vpop.f32.mrb[0].mxu0
      %v4312 = vadd.f32 0.0, %v4311
      %v4313 = vpop.f32.mrb[0].mxu0
      %4314 = vmatprep.mubr.f32.mxu0 0.0
      %4315 = vmatmul.mubr.f32.gmra.mrb[0].mxu0 %v4240
      %v4316 = vpop.f32.mrb[0].mxu0
      %v4317 = vadd.f32 0.0, %v4316
      %v4318 = vpop.f32.mrb[0].mxu0
      %4319 = vmatprep.mubr.f32.mxu0 0.0
      %4320 = vmatmul.mubr.f32.gmra.mrb[0].mxu0 %v4243
      %v4321 = vpop.f32.mrb[0].mxu0
      %v4322 = vadd.f32 0.0, %v4321
      %v4323 = vpop.f32.mrb[0].mxu0
      %4324 = vdwg.mxu0
      %v4325 = vadd.f32 %v3489, %v4312
      %v4326 = vadd.f32 %v3490, %v4317
      %v4327 = vadd.f32 %v3491, %v4322
      %v4329 = vlaneseq
      %v4330 = vshrl.u32 %v4329, 7
      %v4331 = vsub.s32 0, %v4330
      %v4332 = vrot.slane %v960, %v4331
      %v4334 = vadd.f32 %v4325, %v4332
      %v4335 = vadd.f32 %v4326, %v4332
      %v4336 = vadd.f32 %v4327, %v4332
      %v4337 = vadd.f32 %v890, %v4334
      %v4338 = vadd.f32 %v891, %v4335
      %v4339 = vadd.f32 %v892, %v4336
      %v4340 = vld [vmem:[%s847] sm:$0x1]
      %v4341 = vld [vmem:[%s850] sm:$0x1]
      %v4342 = vsel %vm967, %v4337, 0.0
      %4343 = vadd.xlane.f32.xlu0 %v4342
      %v4344 = vpop.xlane.xlu0 %4343
      %v4345 = vsel %vm967, %v4338, 0.0
      %4346 = vadd.xlane.f32.xlu0 %v4345
      %v4347 = vpop.xlane.xlu0 %4346
      %v4348 = vsel %vm967, %v4339, 0.0
      %4349 = vadd.xlane.f32.xlu0 %v4348
      %v4350 = vpop.xlane.xlu0 %4349
      %v4351 = vrcp.pop 32.0
      %v4352 = vmul.f32 %v4344, %v4351
      %v4353 = vmul.f32 %v4347, %v4351
      %v4354 = vmul.f32 %v4350, %v4351
      %v4355 = vsub.f32 %v4337, %v4352
      %v4356 = vsub.f32 %v4338, %v4353
      %v4357 = vsub.f32 %v4339, %v4354
      %v4358 = vmul.f32 %v4355, %v4355
      %v4359 = vmul.f32 %v4356, %v4356
      %v4360 = vmul.f32 %v4357, %v4357
      %v4361 = vsel %vm967, %v4358, 0.0
      %4362 = vadd.xlane.f32.xlu0 %v4361
      %v4363 = vpop.xlane.xlu0 %4362
      %v4364 = vsel %vm967, %v4359, 0.0
      %4365 = vadd.xlane.f32.xlu0 %v4364
      %v4366 = vpop.xlane.xlu0 %4365
      %v4367 = vsel %vm967, %v4360, 0.0
      %4368 = vadd.xlane.f32.xlu0 %v4367
      %v4369 = vpop.xlane.xlu0 %4368
      %v4370 = vmul.f32 %v4363, %v4351
      %v4371 = vmul.f32 %v4366, %v4351
      %v4372 = vmul.f32 %v4369, %v4351
      %v4373 = vadd.f32 %v4370, 1e-12
      %v4374 = vadd.f32 %v4371, 1e-12
      %v4375 = vadd.f32 %v4372, 1e-12
      %v4376 = vrsqrt.pop %v4373
      %v4377 = vrsqrt.pop %v4374
      %v4378 = vrsqrt.pop %v4375
      %v4379 = vmul.f32 %v4355, %v4376
      %v4380 = vmul.f32 %v4356, %v4377
      %v4381 = vmul.f32 %v4357, %v4378
      %v4383 = vlaneseq
      %v4384 = vshrl.u32 %v4383, 7
      %v4385 = vsub.s32 0, %v4384
      %v4386 = vrot.slane %v4340, %v4385
      %v4388 = vmul.f32 %v4379, %v4386
      %v4389 = vmul.f32 %v4380, %v4386
      %v4390 = vmul.f32 %v4381, %v4386
      %v4392 = vlaneseq
      %v4393 = vshrl.u32 %v4392, 7
      %v4394 = vsub.s32 0, %v4393
      %v4395 = vrot.slane %v4341, %v4394
      %v4397 = vadd.f32 %v4388, %v4395
      %v4398 = vadd.f32 %v4389, %v4395
      %v4399 = vadd.f32 %v4390, %v4395
      %v4400 = vld [vmem:[%s855] sm:$0xff]
      %v4401 = vld [vmem:[%s855 + $0x8] sm:$0xff]
      %v4402 = vld [vmem:[%s855 + $0x10] sm:$0xff]
      %v4403 = vld [vmem:[%s855 + $0x18] sm:$0xff]
      %v4404 = vld [vmem:[%s858] sm:$0x1]
      %v4406 = vlaneseq
      %v4407 = vshrl.u32 %v4406, 7
      %v4408 = vsub.s32 0, %v4407
      %v4409 = vrot.slane %v4404, %v4408
      %v4412 = vsel %vm967, %v4397, 0
      %v4415 = vsel %vm967, %v4398, 0
      %v4418 = vsel %vm967, %v4399, 0
      %4420 = vmatprep.subr.mxu0 0.0
      %4421 = vmatpush1.msra.mxu0 %v4400
      %4422 = vmatprep.subr.mxu0 0.0
      %4423 = vmatpush1.msra.mxu0 %v4401
      %4424 = vmatprep.subr.mxu0 0.0
      %4425 = vmatpush1.msra.mxu0 %v4402
      %4426 = vmatprep.subr.mxu0 0.0
      %4427 = vmatpush1.msra.mxu0 %v4403
      %4428 = vmatprep.subr.mxu0 0.0
      %4429 = vmatpush1.msra.mxu0 0.0
      %4430 = vmatprep.subr.mxu0 0.0
      %4431 = vmatpush1.msra.mxu0 0.0
      %4432 = vmatprep.subr.mxu0 0.0
      %4433 = vmatpush1.msra.mxu0 0.0
      %4434 = vmatprep.subr.mxu0 0.0
      %4435 = vmatpush1.msra.mxu0 0.0
      %4436 = vmatprep.subr.mxu0 0.0
      %4437 = vmatpush1.msra.mxu0 0.0
      %4438 = vmatprep.subr.mxu0 0.0
      %4439 = vmatpush1.msra.mxu0 0.0
      %4440 = vmatprep.subr.mxu0 0.0
      %4441 = vmatpush1.msra.mxu0 0.0
      %4442 = vmatprep.subr.mxu0 0.0
      %4443 = vmatpush1.msra.mxu0 0.0
      %4444 = vmatprep.subr.mxu0 0.0
      %4445 = vmatpush1.msra.mxu0 0.0
      %4446 = vmatprep.subr.mxu0 0.0
      %4447 = vmatpush1.msra.mxu0 0.0
      %4448 = vmatprep.subr.mxu0 0.0
      %4449 = vmatpush1.msra.mxu0 0.0
      %4450 = vmatprep.subr.mxu0 0.0
      %4451 = vmatpush1.msra.mxu0 0.0
      %4452 = vmatprep.subr.mxu0 0.0
      %4453 = vmatpush1.msra.mxu0 0.0
      %4454 = vmatprep.subr.mxu0 0.0
      %4455 = vmatpush1.msra.mxu0 0.0
      %4456 = vmatprep.subr.mxu0 0.0
      %4457 = vmatpush1.msra.mxu0 0.0
      %4458 = vmatprep.subr.mxu0 0.0
      %4459 = vmatpush1.msra.mxu0 0.0
      %4460 = vmatprep.subr.mxu0 0.0
      %4461 = vmatpush1.msra.mxu0 0.0
      %4462 = vmatprep.subr.mxu0 0.0
      %4463 = vmatpush1.msra.mxu0 0.0
      %4464 = vmatprep.subr.mxu0 0.0
      %4465 = vmatpush1.msra.mxu0 0.0
      %4466 = vmatprep.subr.mxu0 0.0
      %4467 = vmatpush1.msra.mxu0 0.0
      %4468 = vmatprep.subr.mxu0 0.0
      %4469 = vmatpush1.msra.mxu0 0.0
      %4470 = vmatprep.subr.mxu0 0.0
      %4471 = vmatpush1.msra.mxu0 0.0
      %4472 = vmatprep.subr.mxu0 0.0
      %4473 = vmatpush1.msra.mxu0 0.0
      %4474 = vmatprep.subr.mxu0 0.0
      %4475 = vmatpush1.msra.mxu0 0.0
      %4476 = vmatprep.subr.mxu0 0.0
      %4477 = vmatpush1.msra.mxu0 0.0
      %4478 = vmatprep.subr.mxu0 0.0
      %4479 = vmatpush1.msra.mxu0 0.0
      %4480 = vmatprep.subr.mxu0 0.0
      %4481 = vmatpush1.msra.mxu0 0.0
      %4482 = vmatprep.subr.mxu0 0.0
      %4483 = vmatpush1.msra.mxu0 0.0
      %4484 = vmatprep.mubr.f32.mxu0 0.0
      %4485 = vmatmul.mubr.f32.gmra.mrb[0].mxu0 %v4412
      %v4486 = vpop.f32.mrb[0].mxu0
      %v4487 = vadd.f32 %v4409, %v4486
      %v4488 = vpop.f32.mrb[0].mxu0
      %4489 = vmatprep.mubr.f32.mxu0 0.0
      %4490 = vmatmul.mubr.f32.gmra.mrb[0].mxu0 %v4415
      %v4491 = vpop.f32.mrb[0].mxu0
      %v4492 = vadd.f32 %v4409, %v4491
      %v4493 = vpop.f32.mrb[0].mxu0
      %4494 = vmatprep.mubr.f32.mxu0 0.0
      %4495 = vmatmul.mubr.f32.gmra.mrb[0].mxu0 %v4418
      %v4496 = vpop.f32.mrb[0].mxu0
      %v4497 = vadd.f32 %v4409, %v4496
      %v4498 = vpop.f32.mrb[0].mxu0
      %4499 = vdwg.mxu0
      %v4500 = vmul.f32 %v4487, %v4487
      %v4501 = vmul.f32 %v4492, %v4492
      %v4502 = vmul.f32 %v4497, %v4497
      %v4503 = vmul.f32 %v4487, %v4500
      %v4504 = vmul.f32 %v4492, %v4501
      %v4505 = vmul.f32 %v4497, %v4502
      %v4506 = vmul.f32 %v4503, 0.044715
      %v4507 = vmul.f32 %v4504, 0.044715
      %v4508 = vmul.f32 %v4505, 0.044715
      %v4509 = vadd.f32 %v4487, %v4506
      %v4510 = vadd.f32 %v4492, %v4507
      %v4511 = vadd.f32 %v4497, %v4508
      %v4512 = vmul.f32 %v4509, 0.7978846
      %v4513 = vmul.f32 %v4510, 0.7978846
      %v4514 = vmul.f32 %v4511, 0.7978846
      %v4515 = vtanh.pop %v4512
      %v4516 = vtanh.pop %v4513
      %v4517 = vtanh.pop %v4514
      %v4518 = vadd.f32 %v4515, 1.0
      %v4519 = vadd.f32 %v4516, 1.0
      %v4520 = vadd.f32 %v4517, 1.0
      %v4521 = vmul.f32 %v4518, 0.5
      %v4522 = vmul.f32 %v4519, 0.5
      %v4523 = vmul.f32 %v4520, 0.5
      %v4524 = vmul.f32 %v4487, %v4521
      %v4525 = vmul.f32 %v4492, %v4522
      %v4526 = vmul.f32 %v4497, %v4523
      %v4527 = vld [vmem:[%s863] sm:$0xff]
      %v4528 = vld [vmem:[%s863 + $0x8] sm:$0xff]
      %v4529 = vld [vmem:[%s863 + $0x10] sm:$0xff]
      %v4530 = vld [vmem:[%s863 + $0x18] sm:$0xff]
      %v4531 = vld [vmem:[%s863 + $0x20] sm:$0xff]
      %v4532 = vld [vmem:[%s863 + $0x28] sm:$0xff]
      %v4533 = vld [vmem:[%s863 + $0x30] sm:$0xff]
      %v4534 = vld [vmem:[%s863 + $0x38] sm:$0xff]
      %v4535 = vld [vmem:[%s866] sm:$0x1]
      %v4537 = vlaneseq
      %v4538 = vshrl.u32 %v4537, 7
      %v4539 = vsub.s32 0, %v4538
      %v4540 = vrot.slane %v4535, %v4539
      %vm4542 = vcmask 523264
      %v4544 = vsel %vm4542, %v4524, 0
      %v4547 = vsel %vm4542, %v4525, 0
      %v4550 = vsel %vm4542, %v4526, 0
      %4552 = vmatprep.subr.mxu0 0.0
      %4553 = vmatpush1.msra.mxu0 %v4527
      %4554 = vmatprep.subr.mxu0 0.0
      %4555 = vmatpush1.msra.mxu0 %v4528
      %4556 = vmatprep.subr.mxu0 0.0
      %4557 = vmatpush1.msra.mxu0 %v4529
      %4558 = vmatprep.subr.mxu0 0.0
      %4559 = vmatpush1.msra.mxu0 %v4530
      %4560 = vmatprep.subr.mxu0 0.0
      %4561 = vmatpush1.msra.mxu0 %v4531
      %4562 = vmatprep.subr.mxu0 0.0
      %4563 = vmatpush1.msra.mxu0 %v4532
      %4564 = vmatprep.subr.mxu0 0.0
      %4565 = vmatpush1.msra.mxu0 %v4533
      %4566 = vmatprep.subr.mxu0 0.0
      %4567 = vmatpush1.msra.mxu0 %v4534
      %4568 = vmatprep.subr.mxu0 0.0
      %4569 = vmatpush1.msra.mxu0 0.0
      %4570 = vmatprep.subr.mxu0 0.0
      %4571 = vmatpush1.msra.mxu0 0.0
      %4572 = vmatprep.subr.mxu0 0.0
      %4573 = vmatpush1.msra.mxu0 0.0
      %4574 = vmatprep.subr.mxu0 0.0
      %4575 = vmatpush1.msra.mxu0 0.0
      %4576 = vmatprep.subr.mxu0 0.0
      %4577 = vmatpush1.msra.mxu0 0.0
      %4578 = vmatprep.subr.mxu0 0.0
      %4579 = vmatpush1.msra.mxu0 0.0
      %4580 = vmatprep.subr.mxu0 0.0
      %4581 = vmatpush1.msra.mxu0 0.0
      %4582 = vmatprep.subr.mxu0 0.0
      %4583 = vmatpush1.msra.mxu0 0.0
      %4584 = vmatprep.subr.mxu0 0.0
      %4585 = vmatpush1.msra.mxu0 0.0
      %4586 = vmatprep.subr.mxu0 0.0
      %4587 = vmatpush1.msra.mxu0 0.0
      %4588 = vmatprep.subr.mxu0 0.0
      %4589 = vmatpush1.msra.mxu0 0.0
      %4590 = vmatprep.subr.mxu0 0.0
      %4591 = vmatpush1.msra.mxu0 0.0
      %4592 = vmatprep.subr.mxu0 0.0
      %4593 = vmatpush1.msra.mxu0 0.0
      %4594 = vmatprep.subr.mxu0 0.0
      %4595 = vmatpush1.msra.mxu0 0.0
      %4596 = vmatprep.subr.mxu0 0.0
      %4597 = vmatpush1.msra.mxu0 0.0
      %4598 = vmatprep.subr.mxu0 0.0
      %4599 = vmatpush1.msra.mxu0 0.0
      %4600 = vmatprep.subr.mxu0 0.0
      %4601 = vmatpush1.msra.mxu0 0.0
      %4602 = vmatprep.subr.mxu0 0.0
      %4603 = vmatpush1.msra.mxu0 0.0
      %4604 = vmatprep.subr.mxu0 0.0
      %4605 = vmatpush1.msra.mxu0 0.0
      %4606 = vmatprep.subr.mxu0 0.0
      %4607 = vmatpush1.msra.mxu0 0.0
      %4608 = vmatprep.subr.mxu0 0.0
      %4609 = vmatpush1.msra.mxu0 0.0
      %4610 = vmatprep.subr.mxu0 0.0
      %4611 = vmatpush1.msra.mxu0 0.0
      %4612 = vmatprep.subr.mxu0 0.0
      %4613 = vmatpush1.msra.mxu0 0.0
      %4614 = vmatprep.subr.mxu0 0.0
      %4615 = vmatpush1.msra.mxu0 0.0
      %4616 = vmatprep.mubr.f32.mxu0 0.0
      %4617 = vmatmul.mubr.f32.gmra.mrb[0].mxu0 %v4544
      %v4618 = vpop.f32.mrb[0].mxu0
      %v4619 = vadd.f32 %v4540, %v4618
      %v4620 = vpop.f32.mrb[0].mxu0
      %4621 = vmatprep.mubr.f32.mxu0 0.0
      %4622 = vmatmul.mubr.f32.gmra.mrb[0].mxu0 %v4547
      %v4623 = vpop.f32.mrb[0].mxu0
      %v4624 = vadd.f32 %v4540, %v4623
      %v4625 = vpop.f32.mrb[0].mxu0
      %4626 = vmatprep.mubr.f32.mxu0 0.0
      %4627 = vmatmul.mubr.f32.gmra.mrb[0].mxu0 %v4550
      %v4628 = vpop.f32.mrb[0].mxu0
      %v4629 = vadd.f32 %v4540, %v4628
      %v4630 = vpop.f32.mrb[0].mxu0
      %4631 = vdwg.mxu0
      %v4632 = vadd.f32 %v4397, %v4619
      %v4633 = vadd.f32 %v4398, %v4624
      %v4634 = vadd.f32 %v4399, %v4629
      %v4635 = vld [vmem:[%s869] sm:$0x1]
      %v4636 = vld [vmem:[%s872] sm:$0x1]
      %v4637 = vsel %vm967, %v4632, 0.0
      %4638 = vadd.xlane.f32.xlu0 %v4637
      %v4639 = vpop.xlane.xlu0 %4638
      %v4640 = vsel %vm967, %v4633, 0.0
      %4641 = vadd.xlane.f32.xlu0 %v4640
      %v4642 = vpop.xlane.xlu0 %4641
      %v4643 = vsel %vm967, %v4634, 0.0
      %4644 = vadd.xlane.f32.xlu0 %v4643
      %v4645 = vpop.xlane.xlu0 %4644
      %v4646 = vmul.f32 %v4639, %v4351
      %v4647 = vmul.f32 %v4642, %v4351
      %v4648 = vmul.f32 %v4645, %v4351
      %v4649 = vsub.f32 %v4632, %v4646
      %v4650 = vsub.f32 %v4633, %v4647
      %v4651 = vsub.f32 %v4634, %v4648
      %v4652 = vmul.f32 %v4649, %v4649
      %v4653 = vmul.f32 %v4650, %v4650
      %v4654 = vmul.f32 %v4651, %v4651
      %v4655 = vsel %vm967, %v4652, 0.0
      %4656 = vadd.xlane.f32.xlu0 %v4655
      %v4657 = vpop.xlane.xlu0 %4656
      %v4658 = vsel %vm967, %v4653, 0.0
      %4659 = vadd.xlane.f32.xlu0 %v4658
      %v4660 = vpop.xlane.xlu0 %4659
      %v4661 = vsel %vm967, %v4654, 0.0
      %4662 = vadd.xlane.f32.xlu0 %v4661
      %v4663 = vpop.xlane.xlu0 %4662
      %v4664 = vmul.f32 %v4657, %v4351
      %v4665 = vmul.f32 %v4660, %v4351
      %v4666 = vmul.f32 %v4663, %v4351
      %v4667 = vadd.f32 %v4664, 1e-12
      %v4668 = vadd.f32 %v4665, 1e-12
      %v4669 = vadd.f32 %v4666, 1e-12
      %v4670 = vrsqrt.pop %v4667
      %v4671 = vrsqrt.pop %v4668
      %v4672 = vrsqrt.pop %v4669
      %v4673 = vmul.f32 %v4649, %v4670
      %v4674 = vmul.f32 %v4650, %v4671
      %v4675 = vmul.f32 %v4651, %v4672
      %v4677 = vlaneseq
      %v4678 = vshrl.u32 %v4677, 7
      %v4679 = vsub.s32 0, %v4678
      %v4680 = vrot.slane %v4635, %v4679
      %v4682 = vmul.f32 %v4673, %v4680
      %v4683 = vmul.f32 %v4674, %v4680
      %v4684 = vmul.f32 %v4675, %v4680
      %v4686 = vlaneseq
      %v4687 = vshrl.u32 %v4686, 7
      %v4688 = vsub.s32 0, %v4687
      %v4689 = vrot.slane %v4636, %v4688
      %v4691 = vadd.f32 %v4682, %v4689
      %v4692 = vadd.f32 %v4683, %v4689
      %v4693 = vadd.f32 %v4684, %v4689
      %4694 = vst.msk [vmem:[%s877] sm:$0xff] %vm967, %v4691
      %4695 = vst.msk [vmem:[%s877 + $0x8] sm:$0xff] %vm967, %v4692
      %4696 = vst.msk [vmem:[%s877 + $0x10] sm:$0xff] %vm967, %v4693
      %s4697 = smul.u32 3, %s33
      %p4698 = scmp.lt.s32.totalorder %s4697, 5
      %s4699 = scalar_select %p4698, %s4697, 5
      %s4700 = smul.addr %s4699, 8
      %s4701 = scalar_lea.vmem %s18, %s4700
      // Predicated region
      $region97: #{forward.2} parent=91 // pred_check
        %p4702 = pneg %p527
      $region98: #{forward.2} parent=91 // pred_check_branch
        %4704 = sbr.rel (%p4702) target = $region100
      $region99: #{forward.2} parent=91 // pred_region
        %s4705 = smul.u32 3, %s33
      $region100: #{forward.2} parent=91 // pred_fallthru
        _
    $region92: #{forward.2} parent=5 // pred_fallthru
      _
    %p4706 = scmp.le.s32.totalorder 2, %s24
    // Predicated region
    $region101: #{forward.2} parent=5 // pred_check
      %p4707 = pneg %p4706
    $region102: #{forward.2} parent=5 // pred_check_branch
      %4709 = sbr.rel (%p4707) target = $region104
    $region103: #{forward.2} parent=5 // pred_region
      %s4710 = ssub.s32 %s24, 2
      // Predicated region
      $region105: #{forward.2} parent=103 // pred_check
        %p4711 = pneg %p533
      $region106: #{forward.2} parent=103 // pred_check_branch
        %4713 = sbr.rel (%p4711) target = $region108
      $region107: #{forward.2} parent=103 // pred_region
        %s4714 = smul.u32 3, %s35
        %p4715 = scmp.lt.s32.totalorder %s4714, 5
        %s4716 = scalar_select %p4715, %s4714, 5
        %s4717 = smul.addr %s4716, 8
        %s4718 = scalar_lea.vmem %s18, %s4717
      $region108: #{forward.2} parent=103 // pred_fallthru
        _
    $region104: #{forward.2} parent=5 // pred_fallthru
      _
  $region6: #{forward.2} parent=0 // loop_footer
    %s28 = sadd.s32 1, %s24
  $region7: #{forward.2} parent=0 // loop_footer_branch
    %23 = sbr.rel target = $region3
  $region8: #{forward.2} parent=0 // loop_exit
    _

</llo_original>
